<compile_context>
chip_gen: v5e
topology: v5e:2x2
jax: 0.10.0
libtpu: 0.0.40
codegen_flags: <defaults>
</compile_context>

<pallas_src>
import jax
import jax.numpy as jnp
from jax import lax
from jax.experimental import pallas as pl
from jax.experimental.pallas import tpu as pltpu


def _round_up(x, m):
    return ((x + m - 1) // m) * m


# ----------------------------------------------------------------------------
# Kernel factory: one grid step == one bi-LSTM layer (last step also does head)
# ----------------------------------------------------------------------------
def _make_kernel(T, B_pad, E_pad, Hp, n_layers):
    Hp2 = 2 * Hp
    G8 = 8 * Hp
    inv_t = 1.0 / T
    # Cap the unroll for long sequences (real T=312); fully unroll toy T.
    unroll = T if T <= 16 else 2

    def kernel(x_ref, wih_ref, whh_ref, b_ref, wfc_ref, bfc_ref, out_ref,
               gx_ref, hseqf_ref, hseqb_ref):
        layer = pl.program_id(0)

        # ------------------------------------------------------------------
        # 1) Dense input projection for the whole sequence, both directions.
        #    Gate-major columns: [i_f i_b f_f f_b g_f g_b o_f o_b] (Hp each).
        # ------------------------------------------------------------------
        @pl.when(layer == 0)
        def _():
            gx_ref[...] = (
                jnp.dot(x_ref[...], wih_ref[0, 0:E_pad, :],
                        preferred_element_type=jnp.float32)
                + b_ref[0])

        @pl.when(layer != 0)
        def _():
            gx_ref[...] = (
                jnp.dot(hseqf_ref[...], wih_ref[0, 0:Hp, :],
                        preferred_element_type=jnp.float32)
                + jnp.dot(hseqb_ref[...], wih_ref[0, Hp:Hp2, :],
                          preferred_element_type=jnp.float32)
                + b_ref[0])

        # ------------------------------------------------------------------
        # 2) Recurrence: fwd & bwd fused into one block-diagonal matmul per
        #    step; h/c/sum carried in vregs via the fori_loop carry.
        # ------------------------------------------------------------------
        whh_blk = whh_ref[0]                                    # (2Hp, 8Hp), hoisted
        col = lax.broadcasted_iota(jnp.int32, (B_pad, G8), 1)   # hoisted mask
        fwd_cols = (col % Hp2) < Hp       # fwd gate columns within each Hp pair

        def step(t, carry):
            h_cat, c_cat, s_cat = carry                         # (B, 2Hp) each
            off_f = pl.multiple_of(t * B_pad, B_pad)            # fwd: time t
            off_b = pl.multiple_of((T - 1 - t) * B_pad, B_pad)  # bwd: time T-1-t
            gx_f = gx_ref[pl.ds(off_f, B_pad), :]
            gx_b = gx_ref[pl.ds(off_b, B_pad), :]
            gx_t = jnp.where(fwd_cols, gx_f, gx_b)              # off critical path

            gates = gx_t + jnp.dot(h_cat, whh_blk,
                                   preferred_element_type=jnp.float32)
            i_s = jax.nn.sigmoid(gates[:, 0 * Hp2:1 * Hp2])     # [i_f | i_b]
            f_s = jax.nn.sigmoid(gates[:, 1 * Hp2:2 * Hp2])     # [f_f | f_b]
            g_t = jnp.tanh(gates[:, 2 * Hp2:3 * Hp2])           # [g_f | g_b]
            o_s = jax.nn.sigmoid(gates[:, 3 * Hp2:4 * Hp2])     # [o_f | o_b]
            c_new = f_s * c_cat + i_s * g_t
            h_new = o_s * jnp.tanh(c_new)                       # [h_f | h_b]

            # Stash layer output for the next layer's projection (lane-aligned,
            # off the critical path; harmless extra store at the last layer).
            hseqf_ref[pl.ds(off_f, B_pad), :] = h_new[:, 0:Hp]
            hseqb_ref[pl.ds(off_b, B_pad), :] = h_new[:, Hp:Hp2]
            return h_new, c_new, s_cat + h_new

        zeros = jnp.zeros((B_pad, Hp2), jnp.float32)
        _, _, s_cat = lax.fori_loop(0, T, step, (zeros, zeros, zeros),
                                    unroll=unroll)

        # ------------------------------------------------------------------
        # 3) Classifier head (only the last layer writes the output):
        #    mean over time -> tanh -> Linear, lane-dense store.
        # ------------------------------------------------------------------
        @pl.when(layer == n_layers - 1)
        def _():
            a = jnp.tanh(s_cat * inv_t)
            out_ref[...] = (
                jnp.dot(a, wfc_ref[...], preferred_element_type=jnp.float32)
                + bfc_ref[...])

    return kernel


# ----------------------------------------------------------------------------
# Full model forward (inference / eval mode), batch_first like PyTorch.
# ----------------------------------------------------------------------------
def lstm_classifier_forward(x_btd, lstm_params, fc_params):
    """x_btd: (B, T, E) -> (B, n_classes)."""
    # TODO(synk): dropout (p=0.3) between LSTM layers is train-only; eval omits it.
    B, T, E = x_btd.shape
    NL = len(lstm_params)
    H = lstm_params[0][0][1].shape[1]                 # w_hh: (4H, H)
    w_fc, b_fc = fc_params
    C = w_fc.shape[0]

    B_pad = _round_up(max(B, 8), 8)                   # full sublane group
    E_pad = _round_up(max(E, 128), 128)
    Hp = _round_up(max(H, 128), 128)                  # lane-aligned hidden size
    Cp = _round_up(max(C, 128), 128)                  # lane-dense final store
    Hp2, G8 = 2 * Hp, 8 * Hp
    Dmax = max(E_pad, Hp2)
    TB = T * B_pad

    # ---- inputs: time-major, zero-padded, flattened to (T*B_pad, E_pad) ----
    x_tbd = jnp.transpose(x_btd, (1, 0, 2)).astype(jnp.float32)
    x_tbd = jnp.pad(x_tbd, ((0, 0), (0, B_pad - B), (0, E_pad - E)))
    x_flat = x_tbd.reshape(TB, E_pad)

    # ---- weights: gate-major columns, block-diagonal recurrent weights ----
    # TODO(synk): store weights / gx / hseq in bf16 (f32 accumulate) for the
    #             real T=312/H=300 shapes to halve resident VMEM.
    wih = jnp.zeros((NL, Dmax, G8), jnp.float32)      # per-layer input projection
    whh = jnp.zeros((NL, Hp2, G8), jnp.float32)       # per-layer blockdiag(Whh_f, Whh_b)
    bias = jnp.zeros((NL, 1, G8), jnp.float32)        # per-layer b_ih + b_hh
    for l in range(NL):
        for d in range(2):                            # 0 = forward, 1 = backward
            w_ih, w_hh, b_ih, b_hh = lstm_params[l][d]
            b_sum = b_ih + b_hh
            for g in range(4):                        # PyTorch gate order: i, f, g, o
                c0 = (2 * g + d) * Hp
                w_ih_g = w_ih[g * H:(g + 1) * H, :]
                w_hh_g = w_hh[g * H:(g + 1) * H, :]
                if l == 0:
                    wih = wih.at[l, 0:E, c0:c0 + H].set(w_ih_g.T)
                else:  # layer input is [h_fwd | h_bwd] of the previous layer
                    wih = wih.at[l, 0:H, c0:c0 + H].set(w_ih_g[:, 0:H].T)
                    wih = wih.at[l, Hp:Hp + H, c0:c0 + H].set(w_ih_g[:, H:2 * H].T)
                whh = whh.at[l, d * Hp:d * Hp + H, c0:c0 + H].set(w_hh_g.T)
                bias = bias.at[l, 0, c0:c0 + H].set(b_sum[g * H:(g + 1) * H])

    wfc = jnp.zeros((Hp2, Cp), jnp.float32)
    wfc = wfc.at[0:H, 0:C].set(w_fc[:, 0:H].T)             # fwd half
    wfc = wfc.at[Hp:Hp + H, 0:C].set(w_fc[:, H:2 * H].T)   # bwd half
    bfc = jnp.zeros((1, Cp), jnp.float32).at[0, 0:C].set(b_fc)

    kernel = _make_kernel(T, B_pad, E_pad, Hp, NL)
    out = pl.pallas_call(
        kernel,
        out_shape=jax.ShapeDtypeStruct((B_pad, Cp), jnp.float32),
        grid=(NL,),                                     # one grid step per layer
        in_specs=[
            pl.BlockSpec((TB, E_pad), lambda l: (0, 0)),        # x (resident)
            pl.BlockSpec((1, Dmax, G8), lambda l: (l, 0, 0)),   # per-layer W_ih
            pl.BlockSpec((1, Hp2, G8), lambda l: (l, 0, 0)),    # per-layer W_hh
            pl.BlockSpec((1, 1, G8), lambda l: (l, 0, 0)),      # per-layer bias
            pl.BlockSpec((Hp2, Cp), lambda l: (0, 0)),          # FC weight (resident)
            pl.BlockSpec((1, Cp), lambda l: (0, 0)),            # FC bias
        ],
        out_specs=pl.BlockSpec((B_pad, Cp), lambda l: (0, 0)),
        scratch_shapes=[
            pltpu.VMEM((TB, G8), jnp.float32),   # gx: gate pre-activations (layer)
            pltpu.VMEM((TB, Hp), jnp.float32),   # hseq fwd (layer output at time t)
            pltpu.VMEM((TB, Hp), jnp.float32),   # hseq bwd (layer output at time t)
        ],
        compiler_params=pltpu.CompilerParams(
            dimension_semantics=("arbitrary",),          # layers are sequential
            vmem_limit_bytes=64 * 1024 * 1024),
    )(x_flat, wih, whh, bias, wfc, bfc)
    return out[:B, :C]


# ----------------------------------------------------------------------------
# Pure-JAX reference (PyTorch LSTM semantics) for a correctness sanity check.
# ----------------------------------------------------------------------------
def lstm_classifier_reference(x_btd, lstm_params, fc_params):
    B, T, E = x_btd.shape
    h_in = x_btd.astype(jnp.float32)
    for dir_params in lstm_params:
        outs = []
        for d, (w_ih, w_hh, b_ih, b_hh) in enumerate(dir_params):
            H = w_hh.shape[1]

            def cell(carry, x_t, w_ih=w_ih, w_hh=w_hh, b_ih=b_ih, b_hh=b_hh):
                h, c = carry
                gates = x_t @ w_ih.T + h @ w_hh.T + b_ih + b_hh
                i, f, g, o = jnp.split(gates, 4, axis=-1)
                c = jax.nn.sigmoid(f) * c + jax.nn.sigmoid(i) * jnp.tanh(g)
                h = jax.nn.sigmoid(o) * jnp.tanh(c)
                return (h, c), h

            xs = h_in if d == 0 else h_in[:, ::-1, :]
            init = (jnp.zeros((B, H), jnp.float32),
                    jnp.zeros((B, H), jnp.float32))
            _, hs = lax.scan(cell, init, jnp.swapaxes(xs, 0, 1))
            hs = jnp.swapaxes(hs, 0, 1)
            if d == 1:
                hs = hs[:, ::-1, :]
            outs.append(hs)
        h_in = jnp.concatenate(outs, axis=-1)
    w_fc, b_fc = fc_params
    return jnp.tanh(jnp.mean(h_in, axis=1)) @ w_fc.T + b_fc


# ----------------------------------------------------------------------------
# Deterministic parameter init (PyTorch LSTM-style uniform(-1/sqrt(H), 1/sqrt(H))).
# ----------------------------------------------------------------------------
def init_params(key, embedding_dim, hidden_dim, n_layers, n_classes):
    k = 1.0 / jnp.sqrt(hidden_dim)
    params = []
    for layer in range(n_layers):
        din = embedding_dim if layer == 0 else 2 * hidden_dim
        dir_params = []
        for _ in range(2):  # forward, backward
            key, k1, k2, k3, k4 = jax.random.split(key, 5)
            w_ih = jax.random.uniform(k1, (4 * hidden_dim, din), jnp.float32, -k, k)
            w_hh = jax.random.uniform(k2, (4 * hidden_dim, hidden_dim), jnp.float32, -k, k)
            b_ih = jax.random.uniform(k3, (4 * hidden_dim,), jnp.float32, -k, k)
            b_hh = jax.random.uniform(k4, (4 * hidden_dim,), jnp.float32, -k, k)
            dir_params.append((w_ih, w_hh, b_ih, b_hh))
        params.append(tuple(dir_params))

    feat = 2 * hidden_dim
    kf = 1.0 / jnp.sqrt(feat)
    key, k5, k6 = jax.random.split(key, 3)
    w_fc = jax.random.uniform(k5, (n_classes, feat), jnp.float32, -kf, kf)
    b_fc = jax.random.uniform(k6, (n_classes,), jnp.float32, -kf, kf)
    return params, (w_fc, b_fc)


if __name__ == "__main__":
    # Small shapes consistent with the module's forward:
    # inputs (batch_first): (B, T, embedding_dim); output: (B, n_classes).
    B, T = 2, 8
    EMBEDDING_DIM = 16
    HIDDEN_DIM = 32
    N_LAYERS = 4
    N_CLASSES = 9

    key = jax.random.PRNGKey(0)
    key, kx, kp = jax.random.split(key, 3)
    x = jax.random.normal(kx, (B, T, EMBEDDING_DIM), dtype=jnp.float32)
    lstm_params, fc_params = init_params(kp, EMBEDDING_DIM, HIDDEN_DIM,
                                         N_LAYERS, N_CLASSES)

    fwd = jax.jit(lstm_classifier_forward)
    out = jax.block_until_ready(fwd(x, lstm_params, fc_params))

    assert out.shape == (B, N_CLASSES), out.shape
    assert bool(jnp.all(jnp.isfinite(out)))

    ref = jax.jit(lstm_classifier_reference)(x, lstm_params, fc_params)
    max_err = float(jnp.max(jnp.abs(out - ref)))
    assert max_err < 5e-2, f"mismatch vs pure-JAX reference: {max_err}"

    print("KERNEL_OK")
</pallas_src>

<mosaic_0001>
module attributes {stable_mosaic.version = 11 : i64} {
  func.func @kernel(%arg0: i32, %arg1: memref<64x128xf32, #tpu.memory_space<vmem>>, %arg2: memref<1x256x1024xf32, #tpu.memory_space<vmem>>, %arg3: memref<1x256x1024xf32, #tpu.memory_space<vmem>>, %arg4: memref<1x1x1024xf32, #tpu.memory_space<vmem>>, %arg5: memref<256x128xf32, #tpu.memory_space<vmem>>, %arg6: memref<1x128xf32, #tpu.memory_space<vmem>>, %arg7: memref<8x128xf32, #tpu.memory_space<vmem>>, %arg8: memref<64x1024xf32, #tpu.memory_space<vmem>>, %arg9: memref<64x128xf32, #tpu.memory_space<vmem>>, %arg10: memref<64x128xf32, #tpu.memory_space<vmem>>) attributes {dimension_semantics = [#tpu.dimension_semantics<arbitrary>], iteration_bounds = array<i64: 4>, scalar_prefetch = 0 : i64, scratch_operands = 3 : i64, tpu.core_type = #tpu.core_type<tc>, window_params = [{pipeline_mode = #tpu.pipeline_mode<synchronous>, transform_indices = @transform_0, window_bounds = array<i64: 64, 128>}, {transform_indices = @transform_1, window_bounds = array<i64: 1, 256, 1024>}, {transform_indices = @transform_2, window_bounds = array<i64: 1, 256, 1024>}, {transform_indices = @transform_3, window_bounds = array<i64: 1, 1, 1024>}, {pipeline_mode = #tpu.pipeline_mode<synchronous>, transform_indices = @transform_4, window_bounds = array<i64: 256, 128>}, {pipeline_mode = #tpu.pipeline_mode<synchronous>, transform_indices = @transform_5, window_bounds = array<i64: 1, 128>}, {pipeline_mode = #tpu.pipeline_mode<synchronous>, transform_indices = @transform_6, window_bounds = array<i64: 8, 128>}]} {
    %c0_i32 = arith.constant 0 : i32
    %0 = arith.cmpi eq, %arg0, %c0_i32 : i32
    %1 = arith.extui %0 : i1 to i32
    %c0_i32_0 = arith.constant 0 : i32
    %2 = arith.cmpi ne, %1, %c0_i32_0 : i32
    scf.if %2 {
      %c0_101 = arith.constant 0 : index
      %c0_102 = arith.constant 0 : index
      %383 = vector.load %arg1[%c0_101, %c0_102] : memref<64x128xf32, #tpu.memory_space<vmem>>, vector<64x128xf32>
      %c0_103 = arith.constant 0 : index
      %c0_104 = arith.constant 0 : index
      %c0_105 = arith.constant 0 : index
      %384 = vector.load %arg2[%c0_103, %c0_104, %c0_105] : memref<1x256x1024xf32, #tpu.memory_space<vmem>>, vector<1x128x1024xf32>
      %385 = vector.shape_cast %384 : vector<1x128x1024xf32> to vector<128x1024xf32>
      %cst_106 = arith.constant dense<0.000000e+00> : vector<64x1024xf32>
      %386 = tpu.matmul %383, %385, %cst_106 {dimension_numbers = #tpu.dot_dimension_numbers<[1], [0], [0], [1], [0, 0, 1, 1], [], []>} : vector<64x128xf32>, vector<128x1024xf32>, vector<64x1024xf32> -> vector<64x1024xf32>
      %c0_107 = arith.constant 0 : index
      %c0_108 = arith.constant 0 : index
      %c0_109 = arith.constant 0 : index
      %387 = vector.load %arg4[%c0_107, %c0_108, %c0_109] : memref<1x1x1024xf32, #tpu.memory_space<vmem>>, vector<1x1x1024xf32>
      %388 = vector.shape_cast %387 : vector<1x1x1024xf32> to vector<1x1024xf32>
      %389 = vector.broadcast %388 : vector<1x1024xf32> to vector<64x1024xf32>
      %390 = arith.addf %386, %389 : vector<64x1024xf32>
      %c0_110 = arith.constant 0 : index
      %c0_111 = arith.constant 0 : index
      %391 = vector.load %arg8[%c0_110, %c0_111] : memref<64x1024xf32, #tpu.memory_space<vmem>>, vector<64x1024xf32>
      tpu.vector_store %arg8[%c0_110, %c0_111], %390 {strides = array<i32>} : memref<64x1024xf32, #tpu.memory_space<vmem>>, vector<64x1024xf32>,
    } else {
    }
    %c0_i32_1 = arith.constant 0 : i32
    %3 = arith.cmpi ne, %arg0, %c0_i32_1 : i32
    %4 = arith.extui %3 : i1 to i32
    %c0_i32_2 = arith.constant 0 : i32
    %5 = arith.cmpi ne, %4, %c0_i32_2 : i32
    scf.if %5 {
      %c0_101 = arith.constant 0 : index
      %c0_102 = arith.constant 0 : index
      %383 = vector.load %arg9[%c0_101, %c0_102] : memref<64x128xf32, #tpu.memory_space<vmem>>, vector<64x128xf32>
      %c0_103 = arith.constant 0 : index
      %c0_104 = arith.constant 0 : index
      %c0_105 = arith.constant 0 : index
      %384 = vector.load %arg2[%c0_103, %c0_104, %c0_105] : memref<1x256x1024xf32, #tpu.memory_space<vmem>>, vector<1x128x1024xf32>
      %385 = vector.shape_cast %384 : vector<1x128x1024xf32> to vector<128x1024xf32>
      %cst_106 = arith.constant dense<0.000000e+00> : vector<64x1024xf32>
      %386 = tpu.matmul %383, %385, %cst_106 {dimension_numbers = #tpu.dot_dimension_numbers<[1], [0], [0], [1], [0, 0, 1, 1], [], []>} : vector<64x128xf32>, vector<128x1024xf32>, vector<64x1024xf32> -> vector<64x1024xf32>
      %c0_107 = arith.constant 0 : index
      %c0_108 = arith.constant 0 : index
      %387 = vector.load %arg10[%c0_107, %c0_108] : memref<64x128xf32, #tpu.memory_space<vmem>>, vector<64x128xf32>
      %c0_109 = arith.constant 0 : index
      %c128 = arith.constant 128 : index
      %c0_110 = arith.constant 0 : index
      %388 = vector.load %arg2[%c0_109, %c128, %c0_110] : memref<1x256x1024xf32, #tpu.memory_space<vmem>>, vector<1x128x1024xf32>
      %389 = vector.shape_cast %388 : vector<1x128x1024xf32> to vector<128x1024xf32>
      %cst_111 = arith.constant dense<0.000000e+00> : vector<64x1024xf32>
      %390 = tpu.matmul %387, %389, %cst_111 {dimension_numbers = #tpu.dot_dimension_numbers<[1], [0], [0], [1], [0, 0, 1, 1], [], []>} : vector<64x128xf32>, vector<128x1024xf32>, vector<64x1024xf32> -> vector<64x1024xf32>
      %391 = arith.addf %386, %390 : vector<64x1024xf32>
      %c0_112 = arith.constant 0 : index
      %c0_113 = arith.constant 0 : index
      %c0_114 = arith.constant 0 : index
      %392 = vector.load %arg4[%c0_112, %c0_113, %c0_114] : memref<1x1x1024xf32, #tpu.memory_space<vmem>>, vector<1x1x1024xf32>
      %393 = vector.shape_cast %392 : vector<1x1x1024xf32> to vector<1x1024xf32>
      %394 = vector.broadcast %393 : vector<1x1024xf32> to vector<64x1024xf32>
      %395 = arith.addf %391, %394 : vector<64x1024xf32>
      %c0_115 = arith.constant 0 : index
      %c0_116 = arith.constant 0 : index
      %396 = vector.load %arg8[%c0_115, %c0_116] : memref<64x1024xf32, #tpu.memory_space<vmem>>, vector<64x1024xf32>
      tpu.vector_store %arg8[%c0_115, %c0_116], %395 {strides = array<i32>} : memref<64x1024xf32, #tpu.memory_space<vmem>>, vector<64x1024xf32>,
    } else {
    }
    %c0 = arith.constant 0 : index
    %c0_3 = arith.constant 0 : index
    %c0_4 = arith.constant 0 : index
    %6 = vector.load %arg3[%c0, %c0_3, %c0_4] : memref<1x256x1024xf32, #tpu.memory_space<vmem>>, vector<1x256x1024xf32>
    %7 = vector.shape_cast %6 : vector<1x256x1024xf32> to vector<256x1024xf32>
    %8 = tpu.iota {dimensions = array<i32: 1>} : vector<8x1024xi32>
    %c256_i32 = arith.constant 256 : i32
    %c0_i32_5 = arith.constant 0 : i32
    %9 = arith.cmpi eq, %c256_i32, %c0_i32_5 : i32
    %c1_i32 = arith.constant 1 : i32
    %10 = arith.select %9, %c1_i32, %c256_i32 : i32
    %11 = vector.broadcast %10 : i32 to vector<8x1024xi32>
    %12 = arith.remsi %8, %11 : vector<8x1024xi32>
    %c0_i32_6 = arith.constant 0 : i32
    %13 = vector.broadcast %c0_i32_6 : i32 to vector<8x1024xi32>
    %14 = arith.cmpi ne, %12, %13 : vector<8x1024xi32>
    %c0_i32_7 = arith.constant 0 : i32
    %15 = vector.broadcast %c0_i32_7 : i32 to vector<8x1024xi32>
    %16 = arith.cmpi slt, %12, %15 : vector<8x1024xi32>
    %c0_i32_8 = arith.constant 0 : i32
    %17 = arith.cmpi slt, %10, %c0_i32_8 : i32
    %18 = vector.broadcast %17 : i1 to vector<8x1024xi1>
    %19 = vector.broadcast %18 : vector<8x1024xi1> to vector<8x1024xi1>
    %20 = arith.xori %16, %19 : vector<8x1024xi1>
    %21 = arith.andi %20, %14 : vector<8x1024xi1>
    %22 = vector.broadcast %10 : i32 to vector<8x1024xi32>
    %23 = arith.addi %12, %22 : vector<8x1024xi32>
    %24 = arith.select %21, %23, %12 : vector<8x1024xi1>, vector<8x1024xi32>
    %c128_i32 = arith.constant 128 : i32
    %25 = vector.broadcast %c128_i32 : i32 to vector<8x1024xi32>
    %26 = arith.cmpi slt, %24, %25 : vector<8x1024xi32>
    %cst = arith.constant 0.000000e+00 : f32
    %27 = vector.broadcast %cst : f32 to vector<8x256xf32>
    %c0_i32_9 = arith.constant 0 : i32
    %c8_i32 = arith.constant 8 : i32
    %28 = arith.muli %c0_i32_9, %c8_i32 : i32
    %29 = tpu.assume_multiple %28, 8 : i32
    %c7_i32 = arith.constant 7 : i32
    %30 = arith.subi %c7_i32, %c0_i32_9 : i32
    %c8_i32_10 = arith.constant 8 : i32
    %31 = arith.muli %30, %c8_i32_10 : i32
    %32 = tpu.assume_multiple %31, 8 : i32
    %33 = arith.index_cast %29 : i32 to index
    %c0_11 = arith.constant 0 : index
    %34 = vector.load %arg8[%33, %c0_11] : memref<64x1024xf32, #tpu.memory_space<vmem>>, vector<8x1024xf32>
    %35 = arith.index_cast %32 : i32 to index
    %c0_12 = arith.constant 0 : index
    %36 = vector.load %arg8[%35, %c0_12] : memref<64x1024xf32, #tpu.memory_space<vmem>>, vector<8x1024xf32>
    %37 = arith.select %26, %34, %36 : vector<8x1024xi1>, vector<8x1024xf32>
    %cst_13 = arith.constant dense<0.000000e+00> : vector<8x1024xf32>
    %38 = tpu.matmul %27, %7, %cst_13 {dimension_numbers = #tpu.dot_dimension_numbers<[1], [0], [0], [1], [0, 0, 1, 1], [], []>} : vector<8x256xf32>, vector<256x1024xf32>, vector<8x1024xf32> -> vector<8x1024xf32>
    %39 = arith.addf %37, %38 : vector<8x1024xf32>
    %40 = vector.extract_strided_slice %39 {offsets = [0, 0], sizes = [8, 256], strides = [1, 1]} : vector<8x1024xf32> to vector<8x256xf32>
    %41 = arith.negf %40 : vector<8x256xf32>
    %42 = math.exp %41 : vector<8x256xf32>
    %cst_14 = arith.constant 1.000000e+00 : f32
    %43 = vector.broadcast %cst_14 : f32 to vector<8x256xf32>
    %44 = arith.addf %43, %42 : vector<8x256xf32>
    %45 = arith.divf %43, %44 : vector<8x256xf32>
    %46 = vector.extract_strided_slice %39 {offsets = [0, 256], sizes = [8, 256], strides = [1, 1]} : vector<8x1024xf32> to vector<8x256xf32>
    %47 = arith.negf %46 : vector<8x256xf32>
    %48 = math.exp %47 : vector<8x256xf32>
    %cst_15 = arith.constant 1.000000e+00 : f32
    %49 = vector.broadcast %cst_15 : f32 to vector<8x256xf32>
    %50 = arith.addf %49, %48 : vector<8x256xf32>
    %51 = arith.divf %49, %50 : vector<8x256xf32>
    %52 = vector.extract_strided_slice %39 {offsets = [0, 512], sizes = [8, 256], strides = [1, 1]} : vector<8x1024xf32> to vector<8x256xf32>
    %53 = math.tanh %52 : vector<8x256xf32>
    %54 = vector.extract_strided_slice %39 {offsets = [0, 768], sizes = [8, 256], strides = [1, 1]} : vector<8x1024xf32> to vector<8x256xf32>
    %55 = arith.negf %54 : vector<8x256xf32>
    %56 = math.exp %55 : vector<8x256xf32>
    %cst_16 = arith.constant 1.000000e+00 : f32
    %57 = vector.broadcast %cst_16 : f32 to vector<8x256xf32>
    %58 = arith.addf %57, %56 : vector<8x256xf32>
    %59 = arith.divf %57, %58 : vector<8x256xf32>
    %60 = arith.mulf %51, %27 : vector<8x256xf32>
    %61 = arith.mulf %45, %53 : vector<8x256xf32>
    %62 = arith.addf %60, %61 : vector<8x256xf32>
    %63 = math.tanh %62 : vector<8x256xf32>
    %64 = arith.mulf %59, %63 : vector<8x256xf32>
    %65 = vector.extract_strided_slice %64 {offsets = [0, 0], sizes = [8, 128], strides = [1, 1]} : vector<8x256xf32> to vector<8x128xf32>
    %66 = arith.index_cast %29 : i32 to index
    %c0_17 = arith.constant 0 : index
    %67 = vector.load %arg9[%66, %c0_17] : memref<64x128xf32, #tpu.memory_space<vmem>>, vector<8x128xf32>
    tpu.vector_store %arg9[%66, %c0_17], %65 {strides = array<i32>} : memref<64x128xf32, #tpu.memory_space<vmem>>, vector<8x128xf32>,
    %68 = vector.extract_strided_slice %64 {offsets = [0, 128], sizes = [8, 128], strides = [1, 1]} : vector<8x256xf32> to vector<8x128xf32>
    %69 = arith.index_cast %32 : i32 to index
    %c0_18 = arith.constant 0 : index
    %70 = vector.load %arg10[%69, %c0_18] : memref<64x128xf32, #tpu.memory_space<vmem>>, vector<8x128xf32>
    tpu.vector_store %arg10[%69, %c0_18], %68 {strides = array<i32>} : memref<64x128xf32, #tpu.memory_space<vmem>>, vector<8x128xf32>,
    %71 = arith.addf %27, %64 : vector<8x256xf32>
    %c1_i32_19 = arith.constant 1 : i32
    %c8_i32_20 = arith.constant 8 : i32
    %72 = arith.muli %c1_i32_19, %c8_i32_20 : i32
    %73 = tpu.assume_multiple %72, 8 : i32
    %c7_i32_21 = arith.constant 7 : i32
    %74 = arith.subi %c7_i32_21, %c1_i32_19 : i32
    %c8_i32_22 = arith.constant 8 : i32
    %75 = arith.muli %74, %c8_i32_22 : i32
    %76 = tpu.assume_multiple %75, 8 : i32
    %77 = arith.index_cast %73 : i32 to index
    %c0_23 = arith.constant 0 : index
    %78 = vector.load %arg8[%77, %c0_23] : memref<64x1024xf32, #tpu.memory_space<vmem>>, vector<8x1024xf32>
    %79 = arith.index_cast %76 : i32 to index
    %c0_24 = arith.constant 0 : index
    %80 = vector.load %arg8[%79, %c0_24] : memref<64x1024xf32, #tpu.memory_space<vmem>>, vector<8x1024xf32>
    %81 = arith.select %26, %78, %80 : vector<8x1024xi1>, vector<8x1024xf32>
    %cst_25 = arith.constant dense<0.000000e+00> : vector<8x1024xf32>
    %82 = tpu.matmul %64, %7, %cst_25 {dimension_numbers = #tpu.dot_dimension_numbers<[1], [0], [0], [1], [0, 0, 1, 1], [], []>} : vector<8x256xf32>, vector<256x1024xf32>, vector<8x1024xf32> -> vector<8x1024xf32>
    %83 = arith.addf %81, %82 : vector<8x1024xf32>
    %84 = vector.extract_strided_slice %83 {offsets = [0, 0], sizes = [8, 256], strides = [1, 1]} : vector<8x1024xf32> to vector<8x256xf32>
    %85 = arith.negf %84 : vector<8x256xf32>
    %86 = math.exp %85 : vector<8x256xf32>
    %cst_26 = arith.constant 1.000000e+00 : f32
    %87 = vector.broadcast %cst_26 : f32 to vector<8x256xf32>
    %88 = arith.addf %87, %86 : vector<8x256xf32>
    %89 = arith.divf %87, %88 : vector<8x256xf32>
    %90 = vector.extract_strided_slice %83 {offsets = [0, 256], sizes = [8, 256], strides = [1, 1]} : vector<8x1024xf32> to vector<8x256xf32>
    %91 = arith.negf %90 : vector<8x256xf32>
    %92 = math.exp %91 : vector<8x256xf32>
    %cst_27 = arith.constant 1.000000e+00 : f32
    %93 = vector.broadcast %cst_27 : f32 to vector<8x256xf32>
    %94 = arith.addf %93, %92 : vector<8x256xf32>
    %95 = arith.divf %93, %94 : vector<8x256xf32>
    %96 = vector.extract_strided_slice %83 {offsets = [0, 512], sizes = [8, 256], strides = [1, 1]} : vector<8x1024xf32> to vector<8x256xf32>
    %97 = math.tanh %96 : vector<8x256xf32>
    %98 = vector.extract_strided_slice %83 {offsets = [0, 768], sizes = [8, 256], strides = [1, 1]} : vector<8x1024xf32> to vector<8x256xf32>
    %99 = arith.negf %98 : vector<8x256xf32>
    %100 = math.exp %99 : vector<8x256xf32>
    %cst_28 = arith.constant 1.000000e+00 : f32
    %101 = vector.broadcast %cst_28 : f32 to vector<8x256xf32>
    %102 = arith.addf %101, %100 : vector<8x256xf32>
    %103 = arith.divf %101, %102 : vector<8x256xf32>
    %104 = arith.mulf %95, %62 : vector<8x256xf32>
    %105 = arith.mulf %89, %97 : vector<8x256xf32>
    %106 = arith.addf %104, %105 : vector<8x256xf32>
    %107 = math.tanh %106 : vector<8x256xf32>
    %108 = arith.mulf %103, %107 : vector<8x256xf32>
    %109 = vector.extract_strided_slice %108 {offsets = [0, 0], sizes = [8, 128], strides = [1, 1]} : vector<8x256xf32> to vector<8x128xf32>
    %110 = arith.index_cast %73 : i32 to index
    %c0_29 = arith.constant 0 : index
    %111 = vector.load %arg9[%110, %c0_29] : memref<64x128xf32, #tpu.memory_space<vmem>>, vector<8x128xf32>
    tpu.vector_store %arg9[%110, %c0_29], %109 {strides = array<i32>} : memref<64x128xf32, #tpu.memory_space<vmem>>, vector<8x128xf32>,
    %112 = vector.extract_strided_slice %108 {offsets = [0, 128], sizes = [8, 128], strides = [1, 1]} : vector<8x256xf32> to vector<8x128xf32>
    %113 = arith.index_cast %76 : i32 to index
    %c0_30 = arith.constant 0 : index
    %114 = vector.load %arg10[%113, %c0_30] : memref<64x128xf32, #tpu.memory_space<vmem>>, vector<8x128xf32>
    tpu.vector_store %arg10[%113, %c0_30], %112 {strides = array<i32>} : memref<64x128xf32, #tpu.memory_space<vmem>>, vector<8x128xf32>,
    %115 = arith.addf %71, %108 : vector<8x256xf32>
    %c2_i32 = arith.constant 2 : i32
    %c8_i32_31 = arith.constant 8 : i32
    %116 = arith.muli %c2_i32, %c8_i32_31 : i32
    %117 = tpu.assume_multiple %116, 8 : i32
    %c7_i32_32 = arith.constant 7 : i32
    %118 = arith.subi %c7_i32_32, %c2_i32 : i32
    %c8_i32_33 = arith.constant 8 : i32
    %119 = arith.muli %118, %c8_i32_33 : i32
    %120 = tpu.assume_multiple %119, 8 : i32
    %121 = arith.index_cast %117 : i32 to index
    %c0_34 = arith.constant 0 : index
    %122 = vector.load %arg8[%121, %c0_34] : memref<64x1024xf32, #tpu.memory_space<vmem>>, vector<8x1024xf32>
    %123 = arith.index_cast %120 : i32 to index
    %c0_35 = arith.constant 0 : index
    %124 = vector.load %arg8[%123, %c0_35] : memref<64x1024xf32, #tpu.memory_space<vmem>>, vector<8x1024xf32>
    %125 = arith.select %26, %122, %124 : vector<8x1024xi1>, vector<8x1024xf32>
    %cst_36 = arith.constant dense<0.000000e+00> : vector<8x1024xf32>
    %126 = tpu.matmul %108, %7, %cst_36 {dimension_numbers = #tpu.dot_dimension_numbers<[1], [0], [0], [1], [0, 0, 1, 1], [], []>} : vector<8x256xf32>, vector<256x1024xf32>, vector<8x1024xf32> -> vector<8x1024xf32>
    %127 = arith.addf %125, %126 : vector<8x1024xf32>
    %128 = vector.extract_strided_slice %127 {offsets = [0, 0], sizes = [8, 256], strides = [1, 1]} : vector<8x1024xf32> to vector<8x256xf32>
    %129 = arith.negf %128 : vector<8x256xf32>
    %130 = math.exp %129 : vector<8x256xf32>
    %cst_37 = arith.constant 1.000000e+00 : f32
    %131 = vector.broadcast %cst_37 : f32 to vector<8x256xf32>
    %132 = arith.addf %131, %130 : vector<8x256xf32>
    %133 = arith.divf %131, %132 : vector<8x256xf32>
    %134 = vector.extract_strided_slice %127 {offsets = [0, 256], sizes = [8, 256], strides = [1, 1]} : vector<8x1024xf32> to vector<8x256xf32>
    %135 = arith.negf %134 : vector<8x256xf32>
    %136 = math.exp %135 : vector<8x256xf32>
    %cst_38 = arith.constant 1.000000e+00 : f32
    %137 = vector.broadcast %cst_38 : f32 to vector<8x256xf32>
    %138 = arith.addf %137, %136 : vector<8x256xf32>
    %139 = arith.divf %137, %138 : vector<8x256xf32>
    %140 = vector.extract_strided_slice %127 {offsets = [0, 512], sizes = [8, 256], strides = [1, 1]} : vector<8x1024xf32> to vector<8x256xf32>
    %141 = math.tanh %140 : vector<8x256xf32>
    %142 = vector.extract_strided_slice %127 {offsets = [0, 768], sizes = [8, 256], strides = [1, 1]} : vector<8x1024xf32> to vector<8x256xf32>
    %143 = arith.negf %142 : vector<8x256xf32>
    %144 = math.exp %143 : vector<8x256xf32>
    %cst_39 = arith.constant 1.000000e+00 : f32
    %145 = vector.broadcast %cst_39 : f32 to vector<8x256xf32>
    %146 = arith.addf %145, %144 : vector<8x256xf32>
    %147 = arith.divf %145, %146 : vector<8x256xf32>
    %148 = arith.mulf %139, %106 : vector<8x256xf32>
    %149 = arith.mulf %133, %141 : vector<8x256xf32>
    %150 = arith.addf %148, %149 : vector<8x256xf32>
    %151 = math.tanh %150 : vector<8x256xf32>
    %152 = arith.mulf %147, %151 : vector<8x256xf32>
    %153 = vector.extract_strided_slice %152 {offsets = [0, 0], sizes = [8, 128], strides = [1, 1]} : vector<8x256xf32> to vector<8x128xf32>
    %154 = arith.index_cast %117 : i32 to index
    %c0_40 = arith.constant 0 : index
    %155 = vector.load %arg9[%154, %c0_40] : memref<64x128xf32, #tpu.memory_space<vmem>>, vector<8x128xf32>
    tpu.vector_store %arg9[%154, %c0_40], %153 {strides = array<i32>} : memref<64x128xf32, #tpu.memory_space<vmem>>, vector<8x128xf32>,
    %156 = vector.extract_strided_slice %152 {offsets = [0, 128], sizes = [8, 128], strides = [1, 1]} : vector<8x256xf32> to vector<8x128xf32>
    %157 = arith.index_cast %120 : i32 to index
    %c0_41 = arith.constant 0 : index
    %158 = vector.load %arg10[%157, %c0_41] : memref<64x128xf32, #tpu.memory_space<vmem>>, vector<8x128xf32>
    tpu.vector_store %arg10[%157, %c0_41], %156 {strides = array<i32>} : memref<64x128xf32, #tpu.memory_space<vmem>>, vector<8x128xf32>,
    %159 = arith.addf %115, %152 : vector<8x256xf32>
    %c3_i32 = arith.constant 3 : i32
    %c8_i32_42 = arith.constant 8 : i32
    %160 = arith.muli %c3_i32, %c8_i32_42 : i32
    %161 = tpu.assume_multiple %160, 8 : i32
    %c7_i32_43 = arith.constant 7 : i32
    %162 = arith.subi %c7_i32_43, %c3_i32 : i32
    %c8_i32_44 = arith.constant 8 : i32
    %163 = arith.muli %162, %c8_i32_44 : i32
    %164 = tpu.assume_multiple %163, 8 : i32
    %165 = arith.index_cast %161 : i32 to index
    %c0_45 = arith.constant 0 : index
    %166 = vector.load %arg8[%165, %c0_45] : memref<64x1024xf32, #tpu.memory_space<vmem>>, vector<8x1024xf32>
    %167 = arith.index_cast %164 : i32 to index
    %c0_46 = arith.constant 0 : index
    %168 = vector.load %arg8[%167, %c0_46] : memref<64x1024xf32, #tpu.memory_space<vmem>>, vector<8x1024xf32>
    %169 = arith.select %26, %166, %168 : vector<8x1024xi1>, vector<8x1024xf32>
    %cst_47 = arith.constant dense<0.000000e+00> : vector<8x1024xf32>
    %170 = tpu.matmul %152, %7, %cst_47 {dimension_numbers = #tpu.dot_dimension_numbers<[1], [0], [0], [1], [0, 0, 1, 1], [], []>} : vector<8x256xf32>, vector<256x1024xf32>, vector<8x1024xf32> -> vector<8x1024xf32>
    %171 = arith.addf %169, %170 : vector<8x1024xf32>
    %172 = vector.extract_strided_slice %171 {offsets = [0, 0], sizes = [8, 256], strides = [1, 1]} : vector<8x1024xf32> to vector<8x256xf32>
    %173 = arith.negf %172 : vector<8x256xf32>
    %174 = math.exp %173 : vector<8x256xf32>
    %cst_48 = arith.constant 1.000000e+00 : f32
    %175 = vector.broadcast %cst_48 : f32 to vector<8x256xf32>
    %176 = arith.addf %175, %174 : vector<8x256xf32>
    %177 = arith.divf %175, %176 : vector<8x256xf32>
    %178 = vector.extract_strided_slice %171 {offsets = [0, 256], sizes = [8, 256], strides = [1, 1]} : vector<8x1024xf32> to vector<8x256xf32>
    %179 = arith.negf %178 : vector<8x256xf32>
    %180 = math.exp %179 : vector<8x256xf32>
    %cst_49 = arith.constant 1.000000e+00 : f32
    %181 = vector.broadcast %cst_49 : f32 to vector<8x256xf32>
    %182 = arith.addf %181, %180 : vector<8x256xf32>
    %183 = arith.divf %181, %182 : vector<8x256xf32>
    %184 = vector.extract_strided_slice %171 {offsets = [0, 512], sizes = [8, 256], strides = [1, 1]} : vector<8x1024xf32> to vector<8x256xf32>
    %185 = math.tanh %184 : vector<8x256xf32>
    %186 = vector.extract_strided_slice %171 {offsets = [0, 768], sizes = [8, 256], strides = [1, 1]} : vector<8x1024xf32> to vector<8x256xf32>
    %187 = arith.negf %186 : vector<8x256xf32>
    %188 = math.exp %187 : vector<8x256xf32>
    %cst_50 = arith.constant 1.000000e+00 : f32
    %189 = vector.broadcast %cst_50 : f32 to vector<8x256xf32>
    %190 = arith.addf %189, %188 : vector<8x256xf32>
    %191 = arith.divf %189, %190 : vector<8x256xf32>
    %192 = arith.mulf %183, %150 : vector<8x256xf32>
    %193 = arith.mulf %177, %185 : vector<8x256xf32>
    %194 = arith.addf %192, %193 : vector<8x256xf32>
    %195 = math.tanh %194 : vector<8x256xf32>
    %196 = arith.mulf %191, %195 : vector<8x256xf32>
    %197 = vector.extract_strided_slice %196 {offsets = [0, 0], sizes = [8, 128], strides = [1, 1]} : vector<8x256xf32> to vector<8x128xf32>
    %198 = arith.index_cast %161 : i32 to index
    %c0_51 = arith.constant 0 : index
    %199 = vector.load %arg9[%198, %c0_51] : memref<64x128xf32, #tpu.memory_space<vmem>>, vector<8x128xf32>
    tpu.vector_store %arg9[%198, %c0_51], %197 {strides = array<i32>} : memref<64x128xf32, #tpu.memory_space<vmem>>, vector<8x128xf32>,
    %200 = vector.extract_strided_slice %196 {offsets = [0, 128], sizes = [8, 128], strides = [1, 1]} : vector<8x256xf32> to vector<8x128xf32>
    %201 = arith.index_cast %164 : i32 to index
    %c0_52 = arith.constant 0 : index
    %202 = vector.load %arg10[%201, %c0_52] : memref<64x128xf32, #tpu.memory_space<vmem>>, vector<8x128xf32>
    tpu.vector_store %arg10[%201, %c0_52], %200 {strides = array<i32>} : memref<64x128xf32, #tpu.memory_space<vmem>>, vector<8x128xf32>,
    %203 = arith.addf %159, %196 : vector<8x256xf32>
    %c4_i32 = arith.constant 4 : i32
    %c8_i32_53 = arith.constant 8 : i32
    %204 = arith.muli %c4_i32, %c8_i32_53 : i32
    %205 = tpu.assume_multiple %204, 8 : i32
    %c7_i32_54 = arith.constant 7 : i32
    %206 = arith.subi %c7_i32_54, %c4_i32 : i32
    %c8_i32_55 = arith.constant 8 : i32
    %207 = arith.muli %206, %c8_i32_55 : i32
    %208 = tpu.assume_multiple %207, 8 : i32
    %209 = arith.index_cast %205 : i32 to index
    %c0_56 = arith.constant 0 : index
    %210 = vector.load %arg8[%209, %c0_56] : memref<64x1024xf32, #tpu.memory_space<vmem>>, vector<8x1024xf32>
    %211 = arith.index_cast %208 : i32 to index
    %c0_57 = arith.constant 0 : index
    %212 = vector.load %arg8[%211, %c0_57] : memref<64x1024xf32, #tpu.memory_space<vmem>>, vector<8x1024xf32>
    %213 = arith.select %26, %210, %212 : vector<8x1024xi1>, vector<8x1024xf32>
    %cst_58 = arith.constant dense<0.000000e+00> : vector<8x1024xf32>
    %214 = tpu.matmul %196, %7, %cst_58 {dimension_numbers = #tpu.dot_dimension_numbers<[1], [0], [0], [1], [0, 0, 1, 1], [], []>} : vector<8x256xf32>, vector<256x1024xf32>, vector<8x1024xf32> -> vector<8x1024xf32>
    %215 = arith.addf %213, %214 : vector<8x1024xf32>
    %216 = vector.extract_strided_slice %215 {offsets = [0, 0], sizes = [8, 256], strides = [1, 1]} : vector<8x1024xf32> to vector<8x256xf32>
    %217 = arith.negf %216 : vector<8x256xf32>
    %218 = math.exp %217 : vector<8x256xf32>
    %cst_59 = arith.constant 1.000000e+00 : f32
    %219 = vector.broadcast %cst_59 : f32 to vector<8x256xf32>
    %220 = arith.addf %219, %218 : vector<8x256xf32>
    %221 = arith.divf %219, %220 : vector<8x256xf32>
    %222 = vector.extract_strided_slice %215 {offsets = [0, 256], sizes = [8, 256], strides = [1, 1]} : vector<8x1024xf32> to vector<8x256xf32>
    %223 = arith.negf %222 : vector<8x256xf32>
    %224 = math.exp %223 : vector<8x256xf32>
    %cst_60 = arith.constant 1.000000e+00 : f32
    %225 = vector.broadcast %cst_60 : f32 to vector<8x256xf32>
    %226 = arith.addf %225, %224 : vector<8x256xf32>
    %227 = arith.divf %225, %226 : vector<8x256xf32>
    %228 = vector.extract_strided_slice %215 {offsets = [0, 512], sizes = [8, 256], strides = [1, 1]} : vector<8x1024xf32> to vector<8x256xf32>
    %229 = math.tanh %228 : vector<8x256xf32>
    %230 = vector.extract_strided_slice %215 {offsets = [0, 768], sizes = [8, 256], strides = [1, 1]} : vector<8x1024xf32> to vector<8x256xf32>
    %231 = arith.negf %230 : vector<8x256xf32>
    %232 = math.exp %231 : vector<8x256xf32>
    %cst_61 = arith.constant 1.000000e+00 : f32
    %233 = vector.broadcast %cst_61 : f32 to vector<8x256xf32>
    %234 = arith.addf %233, %232 : vector<8x256xf32>
    %235 = arith.divf %233, %234 : vector<8x256xf32>
    %236 = arith.mulf %227, %194 : vector<8x256xf32>
    %237 = arith.mulf %221, %229 : vector<8x256xf32>
    %238 = arith.addf %236, %237 : vector<8x256xf32>
    %239 = math.tanh %238 : vector<8x256xf32>
    %240 = arith.mulf %235, %239 : vector<8x256xf32>
    %241 = vector.extract_strided_slice %240 {offsets = [0, 0], sizes = [8, 128], strides = [1, 1]} : vector<8x256xf32> to vector<8x128xf32>
    %242 = arith.index_cast %205 : i32 to index
    %c0_62 = arith.constant 0 : index
    %243 = vector.load %arg9[%242, %c0_62] : memref<64x128xf32, #tpu.memory_space<vmem>>, vector<8x128xf32>
    tpu.vector_store %arg9[%242, %c0_62], %241 {strides = array<i32>} : memref<64x128xf32, #tpu.memory_space<vmem>>, vector<8x128xf32>,
    %244 = vector.extract_strided_slice %240 {offsets = [0, 128], sizes = [8, 128], strides = [1, 1]} : vector<8x256xf32> to vector<8x128xf32>
    %245 = arith.index_cast %208 : i32 to index
    %c0_63 = arith.constant 0 : index
    %246 = vector.load %arg10[%245, %c0_63] : memref<64x128xf32, #tpu.memory_space<vmem>>, vector<8x128xf32>
    tpu.vector_store %arg10[%245, %c0_63], %244 {strides = array<i32>} : memref<64x128xf32, #tpu.memory_space<vmem>>, vector<8x128xf32>,
    %247 = arith.addf %203, %240 : vector<8x256xf32>
    %c5_i32 = arith.constant 5 : i32
    %c8_i32_64 = arith.constant 8 : i32
    %248 = arith.muli %c5_i32, %c8_i32_64 : i32
    %249 = tpu.assume_multiple %248, 8 : i32
    %c7_i32_65 = arith.constant 7 : i32
    %250 = arith.subi %c7_i32_65, %c5_i32 : i32
    %c8_i32_66 = arith.constant 8 : i32
    %251 = arith.muli %250, %c8_i32_66 : i32
    %252 = tpu.assume_multiple %251, 8 : i32
    %253 = arith.index_cast %249 : i32 to index
    %c0_67 = arith.constant 0 : index
    %254 = vector.load %arg8[%253, %c0_67] : memref<64x1024xf32, #tpu.memory_space<vmem>>, vector<8x1024xf32>
    %255 = arith.index_cast %252 : i32 to index
    %c0_68 = arith.constant 0 : index
    %256 = vector.load %arg8[%255, %c0_68] : memref<64x1024xf32, #tpu.memory_space<vmem>>, vector<8x1024xf32>
    %257 = arith.select %26, %254, %256 : vector<8x1024xi1>, vector<8x1024xf32>
    %cst_69 = arith.constant dense<0.000000e+00> : vector<8x1024xf32>
    %258 = tpu.matmul %240, %7, %cst_69 {dimension_numbers = #tpu.dot_dimension_numbers<[1], [0], [0], [1], [0, 0, 1, 1], [], []>} : vector<8x256xf32>, vector<256x1024xf32>, vector<8x1024xf32> -> vector<8x1024xf32>
    %259 = arith.addf %257, %258 : vector<8x1024xf32>
    %260 = vector.extract_strided_slice %259 {offsets = [0, 0], sizes = [8, 256], strides = [1, 1]} : vector<8x1024xf32> to vector<8x256xf32>
    %261 = arith.negf %260 : vector<8x256xf32>
    %262 = math.exp %261 : vector<8x256xf32>
    %cst_70 = arith.constant 1.000000e+00 : f32
    %263 = vector.broadcast %cst_70 : f32 to vector<8x256xf32>
    %264 = arith.addf %263, %262 : vector<8x256xf32>
    %265 = arith.divf %263, %264 : vector<8x256xf32>
    %266 = vector.extract_strided_slice %259 {offsets = [0, 256], sizes = [8, 256], strides = [1, 1]} : vector<8x1024xf32> to vector<8x256xf32>
    %267 = arith.negf %266 : vector<8x256xf32>
    %268 = math.exp %267 : vector<8x256xf32>
    %cst_71 = arith.constant 1.000000e+00 : f32
    %269 = vector.broadcast %cst_71 : f32 to vector<8x256xf32>
    %270 = arith.addf %269, %268 : vector<8x256xf32>
    %271 = arith.divf %269, %270 : vector<8x256xf32>
    %272 = vector.extract_strided_slice %259 {offsets = [0, 512], sizes = [8, 256], strides = [1, 1]} : vector<8x1024xf32> to vector<8x256xf32>
    %273 = math.tanh %272 : vector<8x256xf32>
    %274 = vector.extract_strided_slice %259 {offsets = [0, 768], sizes = [8, 256], strides = [1, 1]} : vector<8x1024xf32> to vector<8x256xf32>
    %275 = arith.negf %274 : vector<8x256xf32>
    %276 = math.exp %275 : vector<8x256xf32>
    %cst_72 = arith.constant 1.000000e+00 : f32
    %277 = vector.broadcast %cst_72 : f32 to vector<8x256xf32>
    %278 = arith.addf %277, %276 : vector<8x256xf32>
    %279 = arith.divf %277, %278 : vector<8x256xf32>
    %280 = arith.mulf %271, %238 : vector<8x256xf32>
    %281 = arith.mulf %265, %273 : vector<8x256xf32>
    %282 = arith.addf %280, %281 : vector<8x256xf32>
    %283 = math.tanh %282 : vector<8x256xf32>
    %284 = arith.mulf %279, %283 : vector<8x256xf32>
    %285 = vector.extract_strided_slice %284 {offsets = [0, 0], sizes = [8, 128], strides = [1, 1]} : vector<8x256xf32> to vector<8x128xf32>
    %286 = arith.index_cast %249 : i32 to index
    %c0_73 = arith.constant 0 : index
    %287 = vector.load %arg9[%286, %c0_73] : memref<64x128xf32, #tpu.memory_space<vmem>>, vector<8x128xf32>
    tpu.vector_store %arg9[%286, %c0_73], %285 {strides = array<i32>} : memref<64x128xf32, #tpu.memory_space<vmem>>, vector<8x128xf32>,
    %288 = vector.extract_strided_slice %284 {offsets = [0, 128], sizes = [8, 128], strides = [1, 1]} : vector<8x256xf32> to vector<8x128xf32>
    %289 = arith.index_cast %252 : i32 to index
    %c0_74 = arith.constant 0 : index
    %290 = vector.load %arg10[%289, %c0_74] : memref<64x128xf32, #tpu.memory_space<vmem>>, vector<8x128xf32>
    tpu.vector_store %arg10[%289, %c0_74], %288 {strides = array<i32>} : memref<64x128xf32, #tpu.memory_space<vmem>>, vector<8x128xf32>,
    %291 = arith.addf %247, %284 : vector<8x256xf32>
    %c6_i32 = arith.constant 6 : i32
    %c8_i32_75 = arith.constant 8 : i32
    %292 = arith.muli %c6_i32, %c8_i32_75 : i32
    %293 = tpu.assume_multiple %292, 8 : i32
    %c7_i32_76 = arith.constant 7 : i32
    %294 = arith.subi %c7_i32_76, %c6_i32 : i32
    %c8_i32_77 = arith.constant 8 : i32
    %295 = arith.muli %294, %c8_i32_77 : i32
    %296 = tpu.assume_multiple %295, 8 : i32
    %297 = arith.index_cast %293 : i32 to index
    %c0_78 = arith.constant 0 : index
    %298 = vector.load %arg8[%297, %c0_78] : memref<64x1024xf32, #tpu.memory_space<vmem>>, vector<8x1024xf32>
    %299 = arith.index_cast %296 : i32 to index
    %c0_79 = arith.constant 0 : index
    %300 = vector.load %arg8[%299, %c0_79] : memref<64x1024xf32, #tpu.memory_space<vmem>>, vector<8x1024xf32>
    %301 = arith.select %26, %298, %300 : vector<8x1024xi1>, vector<8x1024xf32>
    %cst_80 = arith.constant dense<0.000000e+00> : vector<8x1024xf32>
    %302 = tpu.matmul %284, %7, %cst_80 {dimension_numbers = #tpu.dot_dimension_numbers<[1], [0], [0], [1], [0, 0, 1, 1], [], []>} : vector<8x256xf32>, vector<256x1024xf32>, vector<8x1024xf32> -> vector<8x1024xf32>
    %303 = arith.addf %301, %302 : vector<8x1024xf32>
    %304 = vector.extract_strided_slice %303 {offsets = [0, 0], sizes = [8, 256], strides = [1, 1]} : vector<8x1024xf32> to vector<8x256xf32>
    %305 = arith.negf %304 : vector<8x256xf32>
    %306 = math.exp %305 : vector<8x256xf32>
    %cst_81 = arith.constant 1.000000e+00 : f32
    %307 = vector.broadcast %cst_81 : f32 to vector<8x256xf32>
    %308 = arith.addf %307, %306 : vector<8x256xf32>
    %309 = arith.divf %307, %308 : vector<8x256xf32>
    %310 = vector.extract_strided_slice %303 {offsets = [0, 256], sizes = [8, 256], strides = [1, 1]} : vector<8x1024xf32> to vector<8x256xf32>
    %311 = arith.negf %310 : vector<8x256xf32>
    %312 = math.exp %311 : vector<8x256xf32>
    %cst_82 = arith.constant 1.000000e+00 : f32
    %313 = vector.broadcast %cst_82 : f32 to vector<8x256xf32>
    %314 = arith.addf %313, %312 : vector<8x256xf32>
    %315 = arith.divf %313, %314 : vector<8x256xf32>
    %316 = vector.extract_strided_slice %303 {offsets = [0, 512], sizes = [8, 256], strides = [1, 1]} : vector<8x1024xf32> to vector<8x256xf32>
    %317 = math.tanh %316 : vector<8x256xf32>
    %318 = vector.extract_strided_slice %303 {offsets = [0, 768], sizes = [8, 256], strides = [1, 1]} : vector<8x1024xf32> to vector<8x256xf32>
    %319 = arith.negf %318 : vector<8x256xf32>
    %320 = math.exp %319 : vector<8x256xf32>
    %cst_83 = arith.constant 1.000000e+00 : f32
    %321 = vector.broadcast %cst_83 : f32 to vector<8x256xf32>
    %322 = arith.addf %321, %320 : vector<8x256xf32>
    %323 = arith.divf %321, %322 : vector<8x256xf32>
    %324 = arith.mulf %315, %282 : vector<8x256xf32>
    %325 = arith.mulf %309, %317 : vector<8x256xf32>
    %326 = arith.addf %324, %325 : vector<8x256xf32>
    %327 = math.tanh %326 : vector<8x256xf32>
    %328 = arith.mulf %323, %327 : vector<8x256xf32>
    %329 = vector.extract_strided_slice %328 {offsets = [0, 0], sizes = [8, 128], strides = [1, 1]} : vector<8x256xf32> to vector<8x128xf32>
    %330 = arith.index_cast %293 : i32 to index
    %c0_84 = arith.constant 0 : index
    %331 = vector.load %arg9[%330, %c0_84] : memref<64x128xf32, #tpu.memory_space<vmem>>, vector<8x128xf32>
    tpu.vector_store %arg9[%330, %c0_84], %329 {strides = array<i32>} : memref<64x128xf32, #tpu.memory_space<vmem>>, vector<8x128xf32>,
    %332 = vector.extract_strided_slice %328 {offsets = [0, 128], sizes = [8, 128], strides = [1, 1]} : vector<8x256xf32> to vector<8x128xf32>
    %333 = arith.index_cast %296 : i32 to index
    %c0_85 = arith.constant 0 : index
    %334 = vector.load %arg10[%333, %c0_85] : memref<64x128xf32, #tpu.memory_space<vmem>>, vector<8x128xf32>
    tpu.vector_store %arg10[%333, %c0_85], %332 {strides = array<i32>} : memref<64x128xf32, #tpu.memory_space<vmem>>, vector<8x128xf32>,
    %335 = arith.addf %291, %328 : vector<8x256xf32>
    %c7_i32_86 = arith.constant 7 : i32
    %c8_i32_87 = arith.constant 8 : i32
    %336 = arith.muli %c7_i32_86, %c8_i32_87 : i32
    %337 = tpu.assume_multiple %336, 8 : i32
    %c7_i32_88 = arith.constant 7 : i32
    %338 = arith.subi %c7_i32_88, %c7_i32_86 : i32
    %c8_i32_89 = arith.constant 8 : i32
    %339 = arith.muli %338, %c8_i32_89 : i32
    %340 = tpu.assume_multiple %339, 8 : i32
    %341 = arith.index_cast %337 : i32 to index
    %c0_90 = arith.constant 0 : index
    %342 = vector.load %arg8[%341, %c0_90] : memref<64x1024xf32, #tpu.memory_space<vmem>>, vector<8x1024xf32>
    %343 = arith.index_cast %340 : i32 to index
    %c0_91 = arith.constant 0 : index
    %344 = vector.load %arg8[%343, %c0_91] : memref<64x1024xf32, #tpu.memory_space<vmem>>, vector<8x1024xf32>
    %345 = arith.select %26, %342, %344 : vector<8x1024xi1>, vector<8x1024xf32>
    %cst_92 = arith.constant dense<0.000000e+00> : vector<8x1024xf32>
    %346 = tpu.matmul %328, %7, %cst_92 {dimension_numbers = #tpu.dot_dimension_numbers<[1], [0], [0], [1], [0, 0, 1, 1], [], []>} : vector<8x256xf32>, vector<256x1024xf32>, vector<8x1024xf32> -> vector<8x1024xf32>
    %347 = arith.addf %345, %346 : vector<8x1024xf32>
    %348 = vector.extract_strided_slice %347 {offsets = [0, 0], sizes = [8, 256], strides = [1, 1]} : vector<8x1024xf32> to vector<8x256xf32>
    %349 = arith.negf %348 : vector<8x256xf32>
    %350 = math.exp %349 : vector<8x256xf32>
    %cst_93 = arith.constant 1.000000e+00 : f32
    %351 = vector.broadcast %cst_93 : f32 to vector<8x256xf32>
    %352 = arith.addf %351, %350 : vector<8x256xf32>
    %353 = arith.divf %351, %352 : vector<8x256xf32>
    %354 = vector.extract_strided_slice %347 {offsets = [0, 256], sizes = [8, 256], strides = [1, 1]} : vector<8x1024xf32> to vector<8x256xf32>
    %355 = arith.negf %354 : vector<8x256xf32>
    %356 = math.exp %355 : vector<8x256xf32>
    %cst_94 = arith.constant 1.000000e+00 : f32
    %357 = vector.broadcast %cst_94 : f32 to vector<8x256xf32>
    %358 = arith.addf %357, %356 : vector<8x256xf32>
    %359 = arith.divf %357, %358 : vector<8x256xf32>
    %360 = vector.extract_strided_slice %347 {offsets = [0, 512], sizes = [8, 256], strides = [1, 1]} : vector<8x1024xf32> to vector<8x256xf32>
    %361 = math.tanh %360 : vector<8x256xf32>
    %362 = vector.extract_strided_slice %347 {offsets = [0, 768], sizes = [8, 256], strides = [1, 1]} : vector<8x1024xf32> to vector<8x256xf32>
    %363 = arith.negf %362 : vector<8x256xf32>
    %364 = math.exp %363 : vector<8x256xf32>
    %cst_95 = arith.constant 1.000000e+00 : f32
    %365 = vector.broadcast %cst_95 : f32 to vector<8x256xf32>
    %366 = arith.addf %365, %364 : vector<8x256xf32>
    %367 = arith.divf %365, %366 : vector<8x256xf32>
    %368 = arith.mulf %359, %326 : vector<8x256xf32>
    %369 = arith.mulf %353, %361 : vector<8x256xf32>
    %370 = arith.addf %368, %369 : vector<8x256xf32>
    %371 = math.tanh %370 : vector<8x256xf32>
    %372 = arith.mulf %367, %371 : vector<8x256xf32>
    %373 = vector.extract_strided_slice %372 {offsets = [0, 0], sizes = [8, 128], strides = [1, 1]} : vector<8x256xf32> to vector<8x128xf32>
    %374 = arith.index_cast %337 : i32 to index
    %c0_96 = arith.constant 0 : index
    %375 = vector.load %arg9[%374, %c0_96] : memref<64x128xf32, #tpu.memory_space<vmem>>, vector<8x128xf32>
    tpu.vector_store %arg9[%374, %c0_96], %373 {strides = array<i32>} : memref<64x128xf32, #tpu.memory_space<vmem>>, vector<8x128xf32>,
    %376 = vector.extract_strided_slice %372 {offsets = [0, 128], sizes = [8, 128], strides = [1, 1]} : vector<8x256xf32> to vector<8x128xf32>
    %377 = arith.index_cast %340 : i32 to index
    %c0_97 = arith.constant 0 : index
    %378 = vector.load %arg10[%377, %c0_97] : memref<64x128xf32, #tpu.memory_space<vmem>>, vector<8x128xf32>
    tpu.vector_store %arg10[%377, %c0_97], %376 {strides = array<i32>} : memref<64x128xf32, #tpu.memory_space<vmem>>, vector<8x128xf32>,
    %379 = arith.addf %335, %372 : vector<8x256xf32>
    %c8_i32_98 = arith.constant 8 : i32
    %c3_i32_99 = arith.constant 3 : i32
    %380 = arith.cmpi eq, %arg0, %c3_i32_99 : i32
    %381 = arith.extui %380 : i1 to i32
    %c0_i32_100 = arith.constant 0 : i32
    %382 = arith.cmpi ne, %381, %c0_i32_100 : i32
    scf.if %382 {
      %cst_101 = arith.constant 1.250000e-01 : f32
      %383 = vector.broadcast %cst_101 : f32 to vector<8x256xf32>
      %384 = arith.mulf %379, %383 : vector<8x256xf32>
      %385 = math.tanh %384 : vector<8x256xf32>
      %c0_102 = arith.constant 0 : index
      %c0_103 = arith.constant 0 : index
      %386 = vector.load %arg5[%c0_102, %c0_103] : memref<256x128xf32, #tpu.memory_space<vmem>>, vector<256x128xf32>
      %cst_104 = arith.constant dense<0.000000e+00> : vector<8x128xf32>
      %387 = tpu.matmul %385, %386, %cst_104 {dimension_numbers = #tpu.dot_dimension_numbers<[1], [0], [0], [1], [0, 0, 1, 1], [], []>} : vector<8x256xf32>, vector<256x128xf32>, vector<8x128xf32> -> vector<8x128xf32>
      %c0_105 = arith.constant 0 : index
      %c0_106 = arith.constant 0 : index
      %388 = vector.load %arg6[%c0_105, %c0_106] : memref<1x128xf32, #tpu.memory_space<vmem>>, vector<1x128xf32>
      %389 = vector.broadcast %388 : vector<1x128xf32> to vector<8x128xf32>
      %390 = arith.addf %387, %389 : vector<8x128xf32>
      %c0_107 = arith.constant 0 : index
      %c0_108 = arith.constant 0 : index
      %391 = vector.load %arg7[%c0_107, %c0_108] : memref<8x128xf32, #tpu.memory_space<vmem>>, vector<8x128xf32>
      tpu.vector_store %arg7[%c0_107, %c0_108], %390 {strides = array<i32>} : memref<8x128xf32, #tpu.memory_space<vmem>>, vector<8x128xf32>,
    } else {
    }
    return
  }
  func.func @transform_0(%arg0: i32) -> (i32, i32) {
    %c0_i32 = arith.constant 0 : i32
    %c0_i32_0 = arith.constant 0 : i32
    %c0_i32_1 = arith.constant 0 : i32
    return %c0_i32, %c0_i32_0 : i32, i32
  }
  func.func @transform_1(%arg0: i32) -> (i32, i32, i32) {
    %c0_i32 = arith.constant 0 : i32
    %c0_i32_0 = arith.constant 0 : i32
    %c0_i32_1 = arith.constant 0 : i32
    return %arg0, %c0_i32, %c0_i32_0 : i32, i32, i32
  }
  func.func @transform_2(%arg0: i32) -> (i32, i32, i32) {
    %c0_i32 = arith.constant 0 : i32
    %c0_i32_0 = arith.constant 0 : i32
    %c0_i32_1 = arith.constant 0 : i32
    return %arg0, %c0_i32, %c0_i32_0 : i32, i32, i32
  }
  func.func @transform_3(%arg0: i32) -> (i32, i32, i32) {
    %c0_i32 = arith.constant 0 : i32
    %c0_i32_0 = arith.constant 0 : i32
    %c0_i32_1 = arith.constant 0 : i32
    return %arg0, %c0_i32, %c0_i32_0 : i32, i32, i32
  }
  func.func @transform_4(%arg0: i32) -> (i32, i32) {
    %c0_i32 = arith.constant 0 : i32
    %c0_i32_0 = arith.constant 0 : i32
    %c0_i32_1 = arith.constant 0 : i32
    return %c0_i32, %c0_i32_0 : i32, i32
  }
  func.func @transform_5(%arg0: i32) -> (i32, i32) {
    %c0_i32 = arith.constant 0 : i32
    %c0_i32_0 = arith.constant 0 : i32
    %c0_i32_1 = arith.constant 0 : i32
    return %c0_i32, %c0_i32_0 : i32, i32
  }
  func.func @transform_6(%arg0: i32) -> (i32, i32) {
    %c0_i32 = arith.constant 0 : i32
    %c0_i32_0 = arith.constant 0 : i32
    %c0_i32_1 = arith.constant 0 : i32
    return %c0_i32, %c0_i32_0 : i32, i32
  }
}

</mosaic_0001>

<llo_original>
// kernel: lstm_classifier_forward.1
$region0: #{lstm_classifier_forward.1}
  #allocation0 [shape = 'u32[]', space=smem, size = 0x4, offset = 0x4, fixed_abs, tag = 'smem constant byte address 0x4 - core index']
  #allocation1 [shape = 'u32[72,128]{1,0:T(1,128)}', space=vmem, size = 0x9000, scoped, tag = 'internal scratch']
  #allocation2 [shape = 'f32[64,1024]{1,0:T(8,128)}', space=vmem, size = 0x40000, scoped, tag = 'scratch operand']
  #allocation3 [shape = 'f32[64,128]{1,0:T(8,128)}', space=vmem, size = 0x8000, scoped, tag = 'scratch operand']
  #allocation4 [shape = 'f32[64,128]{1,0:T(8,128)}', space=vmem, size = 0x8000, scoped, tag = 'scratch operand']
  %s0 = inlined_call_operand.vmem [shape: f32[64,128], index: 0, kind: input, shape index: {}]
  %s1 = inlined_call_operand.vmem [shape: f32[4,256,1024], index: 1, kind: input, shape index: {}]
  %s2 = inlined_call_operand.vmem [shape: f32[4,256,1024], index: 2, kind: input, shape index: {}]
  %s3 = inlined_call_operand.vmem [shape: f32[4,1,1024], index: 3, kind: input, shape index: {}]
  %s4 = inlined_call_operand.vmem [shape: f32[256,128], index: 4, kind: input, shape index: {}]
  %s5 = inlined_call_operand.vmem [shape: f32[1,128], index: 5, kind: input, shape index: {}]
  %s6 = inlined_call_operand.vmem [shape: f32[8,128], index: 6, kind: output, shape index: {}]
  %s7 = sld [smem:[#allocation0]]
  $region69: #{lstm_classifier_forward.1} parent=0
    _
  %s9 = ssub.s32 1, %s7
  %s10 = scalar_select 0, %s9, %s7
  loop: start=0, step=1, limit=6
  $region2: #{lstm_classifier_forward.1} parent=0 // loop_pre_header
    _
  $region3: #{lstm_classifier_forward.1} parent=0 // loop_header
    %s12 = sphi 0, %s16
    %p13 = scmp.ge.s32.totalorder %s12, 6
    %s20 = sphi 0, %s20
    %s22 = sphi 0, %s20
    %s23 = sphi 0, %s22
    %s37 = sphi 0, %s23
    %s43 = sphi 0, %s45
    %s46 = sphi 0, %s43
    %s47 = sphi 0, %s46
    %s63 = sphi 0, %s47
    %s69 = sphi 0, %s71
    %s72 = sphi 0, %s69
    %s73 = sphi 0, %s72
    %s89 = sphi 0, %s73
    %s95 = sphi 0, %s97
    %s98 = sphi 0, %s95
    %s99 = sphi 0, %s98
    %s115 = sphi 0, %s99
    %s119 = sphi 0, %s119
    %s121 = sphi 0, %s119
    %s122 = sphi 0, %s121
    %s136 = sphi 0, %s122
    %s140 = sphi 0, %s140
    %s142 = sphi 0, %s140
    %s143 = sphi 0, %s142
    %s157 = sphi 0, %s143
    %s161 = sphi 0, %s161
    %s163 = sphi 0, %s161
    %s164 = sphi 0, %s163
    %s178 = sphi 0, %s164
  $region4: #{lstm_classifier_forward.1} parent=0 // loop_header_branch
    %15 = sbr.rel (%p13) target = $region8
  $region5: #{lstm_classifier_forward.1} parent=0 // loop_body
    %s17 = ssub.s32 %s12, 1
    %s18 = ssub.s32 %s12, 2
    %s19 = sadd.s32 %s12, 1
    %s21 = sadd.s32 %s20, 1
    %p24 = scmp.eq.s32.totalorder %s12, 3
    %p25 = scmp.ne.s32.totalorder %s20, %s22
    %p26 = scmp.eq.s32.totalorder %s12, 0
    %p27 = por %p25, %p26
    %p28 = scmp.ne.s32.totalorder %s20, %s22
    %p29 = scmp.eq.s32.totalorder %s17, 3
    %p30 = por %p28, %p29
    %p31 = scmp.ne.s32.totalorder %s22, %s23
    %p32 = scmp.eq.s32.totalorder %s17, 0
    %p33 = por %p31, %p32
    %p34 = scmp.ne.s32.totalorder %s22, %s23
    %p35 = scmp.eq.s32.totalorder %s18, 3
    %p36 = por %p34, %p35
    %p38 = scmp.ne.s32.totalorder %s23, %s37
    %p39 = scmp.eq.s32.totalorder %s18, 0
    %p40 = por %p38, %p39
    %s41 = ssub.s32 %s12, %s19
    %p42 = scmp.eq.s32.totalorder %s41, 0
    %s44 = sadd.s32 %s43, 1
    %s45 = scalar_select %p42, %s43, %s44
    %p48 = pneg %p42
    %p49 = scmp.eq.s32.totalorder %s12, 3
    %p50 = por %p48, %p49
    %p51 = scmp.ne.s32.totalorder %s43, %s46
    %p52 = scmp.eq.s32.totalorder %s12, 0
    %p53 = por %p51, %p52
    %p54 = scmp.ne.s32.totalorder %s43, %s46
    %p55 = scmp.eq.s32.totalorder %s17, 3
    %p56 = por %p54, %p55
    %p57 = scmp.ne.s32.totalorder %s46, %s47
    %p58 = scmp.eq.s32.totalorder %s17, 0
    %p59 = por %p57, %p58
    %p60 = scmp.ne.s32.totalorder %s46, %s47
    %p61 = scmp.eq.s32.totalorder %s18, 3
    %p62 = por %p60, %p61
    %p64 = scmp.ne.s32.totalorder %s47, %s63
    %p65 = scmp.eq.s32.totalorder %s18, 0
    %p66 = por %p64, %p65
    %s67 = ssub.s32 %s12, %s19
    %p68 = scmp.eq.s32.totalorder %s67, 0
    %s70 = sadd.s32 %s69, 1
    %s71 = scalar_select %p68, %s69, %s70
    %p74 = pneg %p68
    %p75 = scmp.eq.s32.totalorder %s12, 3
    %p76 = por %p74, %p75
    %p77 = scmp.ne.s32.totalorder %s69, %s72
    %p78 = scmp.eq.s32.totalorder %s12, 0
    %p79 = por %p77, %p78
    %p80 = scmp.ne.s32.totalorder %s69, %s72
    %p81 = scmp.eq.s32.totalorder %s17, 3
    %p82 = por %p80, %p81
    %p83 = scmp.ne.s32.totalorder %s72, %s73
    %p84 = scmp.eq.s32.totalorder %s17, 0
    %p85 = por %p83, %p84
    %p86 = scmp.ne.s32.totalorder %s72, %s73
    %p87 = scmp.eq.s32.totalorder %s18, 3
    %p88 = por %p86, %p87
    %p90 = scmp.ne.s32.totalorder %s73, %s89
    %p91 = scmp.eq.s32.totalorder %s18, 0
    %p92 = por %p90, %p91
    %s93 = ssub.s32 %s12, %s19
    %p94 = scmp.eq.s32.totalorder %s93, 0
    %s96 = sadd.s32 %s95, 1
    %s97 = scalar_select %p94, %s95, %s96
    %p100 = pneg %p94
    %p101 = scmp.eq.s32.totalorder %s12, 3
    %p102 = por %p100, %p101
    %p103 = scmp.ne.s32.totalorder %s95, %s98
    %p104 = scmp.eq.s32.totalorder %s12, 0
    %p105 = por %p103, %p104
    %p106 = scmp.ne.s32.totalorder %s95, %s98
    %p107 = scmp.eq.s32.totalorder %s17, 3
    %p108 = por %p106, %p107
    %p109 = scmp.ne.s32.totalorder %s98, %s99
    %p110 = scmp.eq.s32.totalorder %s17, 0
    %p111 = por %p109, %p110
    %p112 = scmp.ne.s32.totalorder %s98, %s99
    %p113 = scmp.eq.s32.totalorder %s18, 3
    %p114 = por %p112, %p113
    %p116 = scmp.ne.s32.totalorder %s99, %s115
    %p117 = scmp.eq.s32.totalorder %s18, 0
    %p118 = por %p116, %p117
    %s120 = sadd.s32 %s119, 1
    %p123 = scmp.eq.s32.totalorder %s12, 3
    %p124 = scmp.ne.s32.totalorder %s119, %s121
    %p125 = scmp.eq.s32.totalorder %s12, 0
    %p126 = por %p124, %p125
    %p127 = scmp.ne.s32.totalorder %s119, %s121
    %p128 = scmp.eq.s32.totalorder %s17, 3
    %p129 = por %p127, %p128
    %p130 = scmp.ne.s32.totalorder %s121, %s122
    %p131 = scmp.eq.s32.totalorder %s17, 0
    %p132 = por %p130, %p131
    %p133 = scmp.ne.s32.totalorder %s121, %s122
    %p134 = scmp.eq.s32.totalorder %s18, 3
    %p135 = por %p133, %p134
    %p137 = scmp.ne.s32.totalorder %s122, %s136
    %p138 = scmp.eq.s32.totalorder %s18, 0
    %p139 = por %p137, %p138
    %s141 = sadd.s32 %s140, 1
    %p144 = scmp.eq.s32.totalorder %s12, 3
    %p145 = scmp.ne.s32.totalorder %s140, %s142
    %p146 = scmp.eq.s32.totalorder %s12, 0
    %p147 = por %p145, %p146
    %p148 = scmp.ne.s32.totalorder %s140, %s142
    %p149 = scmp.eq.s32.totalorder %s17, 3
    %p150 = por %p148, %p149
    %p151 = scmp.ne.s32.totalorder %s142, %s143
    %p152 = scmp.eq.s32.totalorder %s17, 0
    %p153 = por %p151, %p152
    %p154 = scmp.ne.s32.totalorder %s142, %s143
    %p155 = scmp.eq.s32.totalorder %s18, 3
    %p156 = por %p154, %p155
    %p158 = scmp.ne.s32.totalorder %s143, %s157
    %p159 = scmp.eq.s32.totalorder %s18, 0
    %p160 = por %p158, %p159
    %s162 = sadd.s32 %s161, 1
    %p165 = scmp.eq.s32.totalorder %s12, 3
    %p166 = scmp.ne.s32.totalorder %s161, %s163
    %p167 = scmp.eq.s32.totalorder %s12, 0
    %p168 = por %p166, %p167
    %p169 = scmp.ne.s32.totalorder %s161, %s163
    %p170 = scmp.eq.s32.totalorder %s17, 3
    %p171 = por %p169, %p170
    %p172 = scmp.ne.s32.totalorder %s163, %s164
    %p173 = scmp.eq.s32.totalorder %s17, 0
    %p174 = por %p172, %p173
    %p175 = scmp.ne.s32.totalorder %s163, %s164
    %p176 = scmp.eq.s32.totalorder %s18, 3
    %p177 = por %p175, %p176
    %p179 = scmp.ne.s32.totalorder %s164, %s178
    %p180 = scmp.eq.s32.totalorder %s18, 0
    %p181 = por %p179, %p180
    %p182 = scmp.le.s32.totalorder 1, %s12
    %p183 = scmp.lt.s32.totalorder %s12, 5
    %p184 = pnand %p182, %p183
    %p185 = pneg %p184
    // Predicated region
    $region9: #{lstm_classifier_forward.1} parent=5 // pred_check
      _
    $region10: #{lstm_classifier_forward.1} parent=5 // pred_check_branch
      %187 = sbr.rel (%p184) target = $region12
    $region11: #{lstm_classifier_forward.1} parent=5 // pred_region
      %s188 = ssub.s32 %s12, 1
      // Predicated region
      $region13: #{lstm_classifier_forward.1} parent=11 // pred_check
        %p189 = pneg %p33
      $region14: #{lstm_classifier_forward.1} parent=11 // pred_check_branch
        %191 = sbr.rel (%p189) target = $region16
      $region15: #{lstm_classifier_forward.1} parent=11 // pred_region
        _
      $region16: #{lstm_classifier_forward.1} parent=11 // pred_fallthru
        _
      // Predicated region
      $region17: #{lstm_classifier_forward.1} parent=11 // pred_check
        %p192 = pneg %p132
      $region18: #{lstm_classifier_forward.1} parent=11 // pred_check_branch
        %194 = sbr.rel (%p192) target = $region20
      $region19: #{lstm_classifier_forward.1} parent=11 // pred_region
        _
      $region20: #{lstm_classifier_forward.1} parent=11 // pred_fallthru
        _
      // Predicated region
      $region21: #{lstm_classifier_forward.1} parent=11 // pred_check
        %p195 = pneg %p153
      $region22: #{lstm_classifier_forward.1} parent=11 // pred_check_branch
        %197 = sbr.rel (%p195) target = $region24
      $region23: #{lstm_classifier_forward.1} parent=11 // pred_region
        _
      $region24: #{lstm_classifier_forward.1} parent=11 // pred_fallthru
        _
    $region12: #{lstm_classifier_forward.1} parent=5 // pred_fallthru
      _
    %p198 = scmp.lt.s32.totalorder %s12, 4
    // Predicated region
    $region25: #{lstm_classifier_forward.1} parent=5 // pred_check
      %p199 = pneg %p198
    $region26: #{lstm_classifier_forward.1} parent=5 // pred_check_branch
      %201 = sbr.rel (%p199) target = $region28
    $region27: #{lstm_classifier_forward.1} parent=5 // pred_region
      // Predicated region
      $region29: #{lstm_classifier_forward.1} parent=27 // pred_check
        %p202 = pneg %p53
      $region30: #{lstm_classifier_forward.1} parent=27 // pred_check_branch
        %204 = sbr.rel (%p202) target = $region32
      $region31: #{lstm_classifier_forward.1} parent=27 // pred_region
        %p205 = scmp.lt.s32.totalorder %s12, 3
        %s206 = scalar_select %p205, %s12, 3
        %s207 = smul.addr %s206, 256
        %s208 = smul.addr %s207, 8
        %s209 = scalar_lea.vmem %s1, %s208
      $region32: #{lstm_classifier_forward.1} parent=27 // pred_fallthru
        _
      // Predicated region
      $region33: #{lstm_classifier_forward.1} parent=27 // pred_check
        %p210 = pneg %p79
      $region34: #{lstm_classifier_forward.1} parent=27 // pred_check_branch
        %212 = sbr.rel (%p210) target = $region36
      $region35: #{lstm_classifier_forward.1} parent=27 // pred_region
        %p213 = scmp.lt.s32.totalorder %s12, 3
        %s214 = scalar_select %p213, %s12, 3
        %s215 = smul.addr %s214, 256
        %s216 = smul.addr %s215, 8
        %s217 = scalar_lea.vmem %s2, %s216
      $region36: #{lstm_classifier_forward.1} parent=27 // pred_fallthru
        _
      // Predicated region
      $region37: #{lstm_classifier_forward.1} parent=27 // pred_check
        %p218 = pneg %p105
      $region38: #{lstm_classifier_forward.1} parent=27 // pred_check_branch
        %220 = sbr.rel (%p218) target = $region40
      $region39: #{lstm_classifier_forward.1} parent=27 // pred_region
        %p221 = scmp.lt.s32.totalorder %s12, 3
        %s222 = scalar_select %p221, %s12, 3
        %s223 = smul.addr %s222, 8
        %s224 = scalar_lea.vmem %s3, %s223
      $region40: #{lstm_classifier_forward.1} parent=27 // pred_fallthru
        _
    $region28: #{lstm_classifier_forward.1} parent=5 // pred_fallthru
      _
    %p225 = scmp.le.s32.totalorder 1, %s12
    %p226 = scmp.lt.s32.totalorder %s12, 5
    %p227 = pnand %p225, %p226
    %p228 = pneg %p227
    // Predicated region
    $region41: #{lstm_classifier_forward.1} parent=5 // pred_check
      _
    $region42: #{lstm_classifier_forward.1} parent=5 // pred_check_branch
      %230 = sbr.rel (%p227) target = $region44
    $region43: #{lstm_classifier_forward.1} parent=5 // pred_region
      %s231 = ssub.s32 %s12, 1
      %p232 = pneg %p33
      %p233 = pneg %p30
      %p234 = scmp.lt.s32.totalorder %s17, 3
      %s235 = scalar_select %p234, %s17, 3
      %s236 = smul.addr %s235, 256
      %s237 = smul.addr %s236, 8
      %s238 = scalar_lea.vmem %s1, %s237
      %p239 = pneg %p59
      %p240 = pneg %p56
      %p241 = scmp.lt.s32.totalorder %s17, 3
      %s242 = scalar_select %p241, %s17, 3
      %s243 = smul.addr %s242, 256
      %s244 = smul.addr %s243, 8
      %s245 = scalar_lea.vmem %s2, %s244
      %p246 = pneg %p85
      %p247 = pneg %p82
      %p248 = scmp.lt.s32.totalorder %s17, 3
      %s249 = scalar_select %p248, %s17, 3
      %s250 = smul.addr %s249, 8
      %s251 = scalar_lea.vmem %s3, %s250
      %p252 = pneg %p111
      %p253 = pneg %p108
      %p254 = pneg %p132
      %p255 = pneg %p129
      %p256 = pneg %p153
      %p257 = pneg %p150
      %p258 = pneg %p174
      %p259 = pneg %p171
      %p260 = scmp.lt.s32.totalorder %s17, 3
      %s261 = scalar_select %p260, %s17, 3
      %s262 = smul.addr %s261, 256
      %s263 = smul.addr %s262, 8
      %s264 = scalar_lea.vmem %s1, %s263
      %p265 = scmp.lt.s32.totalorder %s17, 3
      %s266 = scalar_select %p265, %s17, 3
      %s267 = smul.addr %s266, 256
      %s268 = smul.addr %s267, 8
      %s269 = scalar_lea.vmem %s2, %s268
      %p270 = scmp.lt.s32.totalorder %s17, 3
      %s271 = scalar_select %p270, %s17, 3
      %s272 = smul.addr %s271, 8
      %s273 = scalar_lea.vmem %s3, %s272
      %p274 = scmp.eq.s32.totalorder %s17, 0
      // Predicated region
      $region45: #{lstm_classifier_forward.1} parent=43 // pred_check
        %p275 = pneg %p274
      $region46: #{lstm_classifier_forward.1} parent=43 // pred_check_branch
        %277 = sbr.rel (%p275) target = $region48
      $region47: #{lstm_classifier_forward.1} parent=43 // pred_region
        %v278 = vld [vmem:[%s0] sm:$0xff]
        %v279 = vld [vmem:[%s0 + $0x8] sm:$0xff]
        %v280 = vld [vmem:[%s0 + $0x10] sm:$0xff]
        %v281 = vld [vmem:[%s0 + $0x18] sm:$0xff]
        %v282 = vld [vmem:[%s0 + $0x20] sm:$0xff]
        %v283 = vld [vmem:[%s0 + $0x28] sm:$0xff]
        %v284 = vld [vmem:[%s0 + $0x30] sm:$0xff]
        %v285 = vld [vmem:[%s0 + $0x38] sm:$0xff]
        %v286 = vld [vmem:[%s264] sm:$0xff]
        %v287 = vld [vmem:[%s264 + $0x8] sm:$0xff]
        %v288 = vld [vmem:[%s264 + $0x10] sm:$0xff]
        %v289 = vld [vmem:[%s264 + $0x18] sm:$0xff]
        %v290 = vld [vmem:[%s264 + $0x20] sm:$0xff]
        %v291 = vld [vmem:[%s264 + $0x28] sm:$0xff]
        %v292 = vld [vmem:[%s264 + $0x30] sm:$0xff]
        %v293 = vld [vmem:[%s264 + $0x38] sm:$0xff]
        %v294 = vld [vmem:[%s264 + $0x40] sm:$0xff]
        %v295 = vld [vmem:[%s264 + $0x48] sm:$0xff]
        %v296 = vld [vmem:[%s264 + $0x50] sm:$0xff]
        %v297 = vld [vmem:[%s264 + $0x58] sm:$0xff]
        %v298 = vld [vmem:[%s264 + $0x60] sm:$0xff]
        %v299 = vld [vmem:[%s264 + $0x68] sm:$0xff]
        %v300 = vld [vmem:[%s264 + $0x70] sm:$0xff]
        %v301 = vld [vmem:[%s264 + $0x78] sm:$0xff]
        %v302 = vld [vmem:[%s264 + $0x80] sm:$0xff]
        %v303 = vld [vmem:[%s264 + $0x88] sm:$0xff]
        %v304 = vld [vmem:[%s264 + $0x90] sm:$0xff]
        %v305 = vld [vmem:[%s264 + $0x98] sm:$0xff]
        %v306 = vld [vmem:[%s264 + $0xa0] sm:$0xff]
        %v307 = vld [vmem:[%s264 + $0xa8] sm:$0xff]
        %v308 = vld [vmem:[%s264 + $0xb0] sm:$0xff]
        %v309 = vld [vmem:[%s264 + $0xb8] sm:$0xff]
        %v310 = vld [vmem:[%s264 + $0xc0] sm:$0xff]
        %v311 = vld [vmem:[%s264 + $0xc8] sm:$0xff]
        %v312 = vld [vmem:[%s264 + $0xd0] sm:$0xff]
        %v313 = vld [vmem:[%s264 + $0xd8] sm:$0xff]
        %v314 = vld [vmem:[%s264 + $0xe0] sm:$0xff]
        %v315 = vld [vmem:[%s264 + $0xe8] sm:$0xff]
        %v316 = vld [vmem:[%s264 + $0xf0] sm:$0xff]
        %v317 = vld [vmem:[%s264 + $0xf8] sm:$0xff]
        %v318 = vld [vmem:[%s264 + $0x100] sm:$0xff]
        %v319 = vld [vmem:[%s264 + $0x108] sm:$0xff]
        %v320 = vld [vmem:[%s264 + $0x110] sm:$0xff]
        %v321 = vld [vmem:[%s264 + $0x118] sm:$0xff]
        %v322 = vld [vmem:[%s264 + $0x120] sm:$0xff]
        %v323 = vld [vmem:[%s264 + $0x128] sm:$0xff]
        %v324 = vld [vmem:[%s264 + $0x130] sm:$0xff]
        %v325 = vld [vmem:[%s264 + $0x138] sm:$0xff]
        %v326 = vld [vmem:[%s264 + $0x140] sm:$0xff]
        %v327 = vld [vmem:[%s264 + $0x148] sm:$0xff]
        %v328 = vld [vmem:[%s264 + $0x150] sm:$0xff]
        %v329 = vld [vmem:[%s264 + $0x158] sm:$0xff]
        %v330 = vld [vmem:[%s264 + $0x160] sm:$0xff]
        %v331 = vld [vmem:[%s264 + $0x168] sm:$0xff]
        %v332 = vld [vmem:[%s264 + $0x170] sm:$0xff]
        %v333 = vld [vmem:[%s264 + $0x178] sm:$0xff]
        %v334 = vld [vmem:[%s264 + $0x180] sm:$0xff]
        %v335 = vld [vmem:[%s264 + $0x188] sm:$0xff]
        %v336 = vld [vmem:[%s264 + $0x190] sm:$0xff]
        %v337 = vld [vmem:[%s264 + $0x198] sm:$0xff]
        %v338 = vld [vmem:[%s264 + $0x1a0] sm:$0xff]
        %v339 = vld [vmem:[%s264 + $0x1a8] sm:$0xff]
        %v340 = vld [vmem:[%s264 + $0x1b0] sm:$0xff]
        %v341 = vld [vmem:[%s264 + $0x1b8] sm:$0xff]
        %v342 = vld [vmem:[%s264 + $0x1c0] sm:$0xff]
        %v343 = vld [vmem:[%s264 + $0x1c8] sm:$0xff]
        %v344 = vld [vmem:[%s264 + $0x1d0] sm:$0xff]
        %v345 = vld [vmem:[%s264 + $0x1d8] sm:$0xff]
        %v346 = vld [vmem:[%s264 + $0x1e0] sm:$0xff]
        %v347 = vld [vmem:[%s264 + $0x1e8] sm:$0xff]
        %v348 = vld [vmem:[%s264 + $0x1f0] sm:$0xff]
        %v349 = vld [vmem:[%s264 + $0x1f8] sm:$0xff]
        %v350 = vld [vmem:[%s264 + $0x200] sm:$0xff]
        %v351 = vld [vmem:[%s264 + $0x208] sm:$0xff]
        %v352 = vld [vmem:[%s264 + $0x210] sm:$0xff]
        %v353 = vld [vmem:[%s264 + $0x218] sm:$0xff]
        %v354 = vld [vmem:[%s264 + $0x220] sm:$0xff]
        %v355 = vld [vmem:[%s264 + $0x228] sm:$0xff]
        %v356 = vld [vmem:[%s264 + $0x230] sm:$0xff]
        %v357 = vld [vmem:[%s264 + $0x238] sm:$0xff]
        %v358 = vld [vmem:[%s264 + $0x240] sm:$0xff]
        %v359 = vld [vmem:[%s264 + $0x248] sm:$0xff]
        %v360 = vld [vmem:[%s264 + $0x250] sm:$0xff]
        %v361 = vld [vmem:[%s264 + $0x258] sm:$0xff]
        %v362 = vld [vmem:[%s264 + $0x260] sm:$0xff]
        %v363 = vld [vmem:[%s264 + $0x268] sm:$0xff]
        %v364 = vld [vmem:[%s264 + $0x270] sm:$0xff]
        %v365 = vld [vmem:[%s264 + $0x278] sm:$0xff]
        %v366 = vld [vmem:[%s264 + $0x280] sm:$0xff]
        %v367 = vld [vmem:[%s264 + $0x288] sm:$0xff]
        %v368 = vld [vmem:[%s264 + $0x290] sm:$0xff]
        %v369 = vld [vmem:[%s264 + $0x298] sm:$0xff]
        %v370 = vld [vmem:[%s264 + $0x2a0] sm:$0xff]
        %v371 = vld [vmem:[%s264 + $0x2a8] sm:$0xff]
        %v372 = vld [vmem:[%s264 + $0x2b0] sm:$0xff]
        %v373 = vld [vmem:[%s264 + $0x2b8] sm:$0xff]
        %v374 = vld [vmem:[%s264 + $0x2c0] sm:$0xff]
        %v375 = vld [vmem:[%s264 + $0x2c8] sm:$0xff]
        %v376 = vld [vmem:[%s264 + $0x2d0] sm:$0xff]
        %v377 = vld [vmem:[%s264 + $0x2d8] sm:$0xff]
        %v378 = vld [vmem:[%s264 + $0x2e0] sm:$0xff]
        %v379 = vld [vmem:[%s264 + $0x2e8] sm:$0xff]
        %v380 = vld [vmem:[%s264 + $0x2f0] sm:$0xff]
        %v381 = vld [vmem:[%s264 + $0x2f8] sm:$0xff]
        %v382 = vld [vmem:[%s264 + $0x300] sm:$0xff]
        %v383 = vld [vmem:[%s264 + $0x308] sm:$0xff]
        %v384 = vld [vmem:[%s264 + $0x310] sm:$0xff]
        %v385 = vld [vmem:[%s264 + $0x318] sm:$0xff]
        %v386 = vld [vmem:[%s264 + $0x320] sm:$0xff]
        %v387 = vld [vmem:[%s264 + $0x328] sm:$0xff]
        %v388 = vld [vmem:[%s264 + $0x330] sm:$0xff]
        %v389 = vld [vmem:[%s264 + $0x338] sm:$0xff]
        %v390 = vld [vmem:[%s264 + $0x340] sm:$0xff]
        %v391 = vld [vmem:[%s264 + $0x348] sm:$0xff]
        %v392 = vld [vmem:[%s264 + $0x350] sm:$0xff]
        %v393 = vld [vmem:[%s264 + $0x358] sm:$0xff]
        %v394 = vld [vmem:[%s264 + $0x360] sm:$0xff]
        %v395 = vld [vmem:[%s264 + $0x368] sm:$0xff]
        %v396 = vld [vmem:[%s264 + $0x370] sm:$0xff]
        %v397 = vld [vmem:[%s264 + $0x378] sm:$0xff]
        %v398 = vld [vmem:[%s264 + $0x380] sm:$0xff]
        %v399 = vld [vmem:[%s264 + $0x388] sm:$0xff]
        %v400 = vld [vmem:[%s264 + $0x390] sm:$0xff]
        %v401 = vld [vmem:[%s264 + $0x398] sm:$0xff]
        %v402 = vld [vmem:[%s264 + $0x3a0] sm:$0xff]
        %v403 = vld [vmem:[%s264 + $0x3a8] sm:$0xff]
        %v404 = vld [vmem:[%s264 + $0x3b0] sm:$0xff]
        %v405 = vld [vmem:[%s264 + $0x3b8] sm:$0xff]
        %v406 = vld [vmem:[%s264 + $0x3c0] sm:$0xff]
        %v407 = vld [vmem:[%s264 + $0x3c8] sm:$0xff]
        %v408 = vld [vmem:[%s264 + $0x3d0] sm:$0xff]
        %v409 = vld [vmem:[%s264 + $0x3d8] sm:$0xff]
        %v410 = vld [vmem:[%s264 + $0x3e0] sm:$0xff]
        %v411 = vld [vmem:[%s264 + $0x3e8] sm:$0xff]
        %v412 = vld [vmem:[%s264 + $0x3f0] sm:$0xff]
        %v413 = vld [vmem:[%s264 + $0x3f8] sm:$0xff]
        %v414 = vld [vmem:[%s273] sm:$0xff]
        %v416 = vperm.slane %v414, 0
        %v417 = vperm.slane %v414, 1
        %v418 = vperm.slane %v414, 2
        %v419 = vperm.slane %v414, 3
        %v420 = vperm.slane %v414, 4
        %v421 = vperm.slane %v414, 5
        %v422 = vperm.slane %v414, 6
        %v423 = vperm.slane %v414, 7
        %432 = vmatpush.msra.mxu0 %v406
        %433 = vmatpush.msra.mxu0 %v398
        %434 = vmatpush.msra.mxu0 %v390
        %435 = vmatpush.msra.mxu0 %v382
        %436 = vmatpush.msra.mxu0 %v374
        %437 = vmatpush.msra.mxu0 %v366
        %438 = vmatpush.msra.mxu0 %v358
        %439 = vmatpush.msra.mxu0 %v350
        %440 = vmatpush.msra.mxu0 %v342
        %441 = vmatpush.msra.mxu0 %v334
        %442 = vmatpush.msra.mxu0 %v326
        %443 = vmatpush.msra.mxu0 %v318
        %444 = vmatpush.msra.mxu0 %v310
        %445 = vmatpush.msra.mxu0 %v302
        %446 = vmatpush.msra.mxu0 %v294
        %447 = vmatpush.msra.mxu0 %v286
        %448 = vmatmul.f32.gmra.mxu0 %v278
        %v449 = vpop.f32.mrf.mxu0
        %v450 = vadd.f32 %v416, %v449
        %451 = vmatmul.f32.gmra.mxu0 %v279
        %v452 = vpop.f32.mrf.mxu0
        %v453 = vadd.f32 %v416, %v452
        %454 = vmatmul.f32.gmra.mxu0 %v280
        %v455 = vpop.f32.mrf.mxu0
        %v456 = vadd.f32 %v416, %v455
        %457 = vmatmul.f32.gmra.mxu0 %v281
        %v458 = vpop.f32.mrf.mxu0
        %v459 = vadd.f32 %v416, %v458
        %460 = vmatmul.f32.gmra.mxu0 %v282
        %v461 = vpop.f32.mrf.mxu0
        %v462 = vadd.f32 %v416, %v461
        %463 = vmatmul.f32.gmra.mxu0 %v283
        %v464 = vpop.f32.mrf.mxu0
        %v465 = vadd.f32 %v416, %v464
        %466 = vmatmul.f32.gmra.mxu0 %v284
        %v467 = vpop.f32.mrf.mxu0
        %v468 = vadd.f32 %v416, %v467
        %469 = vmatmul.f32.gmra.mxu0 %v285
        %v470 = vpop.f32.mrf.mxu0
        %v471 = vadd.f32 %v416, %v470
        %472 = vdwg.mxu0
        %473 = vmatpush.msra.mxu0 %v407
        %474 = vmatpush.msra.mxu0 %v399
        %475 = vmatpush.msra.mxu0 %v391
        %476 = vmatpush.msra.mxu0 %v383
        %477 = vmatpush.msra.mxu0 %v375
        %478 = vmatpush.msra.mxu0 %v367
        %479 = vmatpush.msra.mxu0 %v359
        %480 = vmatpush.msra.mxu0 %v351
        %481 = vmatpush.msra.mxu0 %v343
        %482 = vmatpush.msra.mxu0 %v335
        %483 = vmatpush.msra.mxu0 %v327
        %484 = vmatpush.msra.mxu0 %v319
        %485 = vmatpush.msra.mxu0 %v311
        %486 = vmatpush.msra.mxu0 %v303
        %487 = vmatpush.msra.mxu0 %v295
        %488 = vmatpush.msra.mxu0 %v287
        %489 = vmatmul.f32.gmra.mxu0 %v278
        %v490 = vpop.f32.mrf.mxu0
        %v491 = vadd.f32 %v417, %v490
        %492 = vmatmul.f32.gmra.mxu0 %v279
        %v493 = vpop.f32.mrf.mxu0
        %v494 = vadd.f32 %v417, %v493
        %495 = vmatmul.f32.gmra.mxu0 %v280
        %v496 = vpop.f32.mrf.mxu0
        %v497 = vadd.f32 %v417, %v496
        %498 = vmatmul.f32.gmra.mxu0 %v281
        %v499 = vpop.f32.mrf.mxu0
        %v500 = vadd.f32 %v417, %v499
        %501 = vmatmul.f32.gmra.mxu0 %v282
        %v502 = vpop.f32.mrf.mxu0
        %v503 = vadd.f32 %v417, %v502
        %504 = vmatmul.f32.gmra.mxu0 %v283
        %v505 = vpop.f32.mrf.mxu0
        %v506 = vadd.f32 %v417, %v505
        %507 = vmatmul.f32.gmra.mxu0 %v284
        %v508 = vpop.f32.mrf.mxu0
        %v509 = vadd.f32 %v417, %v508
        %510 = vmatmul.f32.gmra.mxu0 %v285
        %v511 = vpop.f32.mrf.mxu0
        %v512 = vadd.f32 %v417, %v511
        %513 = vdwg.mxu0
        %514 = vmatpush.msra.mxu0 %v408
        %515 = vmatpush.msra.mxu0 %v400
        %516 = vmatpush.msra.mxu0 %v392
        %517 = vmatpush.msra.mxu0 %v384
        %518 = vmatpush.msra.mxu0 %v376
        %519 = vmatpush.msra.mxu0 %v368
        %520 = vmatpush.msra.mxu0 %v360
        %521 = vmatpush.msra.mxu0 %v352
        %522 = vmatpush.msra.mxu0 %v344
        %523 = vmatpush.msra.mxu0 %v336
        %524 = vmatpush.msra.mxu0 %v328
        %525 = vmatpush.msra.mxu0 %v320
        %526 = vmatpush.msra.mxu0 %v312
        %527 = vmatpush.msra.mxu0 %v304
        %528 = vmatpush.msra.mxu0 %v296
        %529 = vmatpush.msra.mxu0 %v288
        %530 = vmatmul.f32.gmra.mxu0 %v278
        %v531 = vpop.f32.mrf.mxu0
        %v532 = vadd.f32 %v418, %v531
        %533 = vmatmul.f32.gmra.mxu0 %v279
        %v534 = vpop.f32.mrf.mxu0
        %v535 = vadd.f32 %v418, %v534
        %536 = vmatmul.f32.gmra.mxu0 %v280
        %v537 = vpop.f32.mrf.mxu0
        %v538 = vadd.f32 %v418, %v537
        %539 = vmatmul.f32.gmra.mxu0 %v281
        %v540 = vpop.f32.mrf.mxu0
        %v541 = vadd.f32 %v418, %v540
        %542 = vmatmul.f32.gmra.mxu0 %v282
        %v543 = vpop.f32.mrf.mxu0
        %v544 = vadd.f32 %v418, %v543
        %545 = vmatmul.f32.gmra.mxu0 %v283
        %v546 = vpop.f32.mrf.mxu0
        %v547 = vadd.f32 %v418, %v546
        %548 = vmatmul.f32.gmra.mxu0 %v284
        %v549 = vpop.f32.mrf.mxu0
        %v550 = vadd.f32 %v418, %v549
        %551 = vmatmul.f32.gmra.mxu0 %v285
        %v552 = vpop.f32.mrf.mxu0
        %v553 = vadd.f32 %v418, %v552
        %554 = vdwg.mxu0
        %555 = vmatpush.msra.mxu0 %v409
        %556 = vmatpush.msra.mxu0 %v401
        %557 = vmatpush.msra.mxu0 %v393
        %558 = vmatpush.msra.mxu0 %v385
        %559 = vmatpush.msra.mxu0 %v377
        %560 = vmatpush.msra.mxu0 %v369
        %561 = vmatpush.msra.mxu0 %v361
        %562 = vmatpush.msra.mxu0 %v353
        %563 = vmatpush.msra.mxu0 %v345
        %564 = vmatpush.msra.mxu0 %v337
        %565 = vmatpush.msra.mxu0 %v329
        %566 = vmatpush.msra.mxu0 %v321
        %567 = vmatpush.msra.mxu0 %v313
        %568 = vmatpush.msra.mxu0 %v305
        %569 = vmatpush.msra.mxu0 %v297
        %570 = vmatpush.msra.mxu0 %v289
        %571 = vmatmul.f32.gmra.mxu0 %v278
        %v572 = vpop.f32.mrf.mxu0
        %v573 = vadd.f32 %v419, %v572
        %574 = vmatmul.f32.gmra.mxu0 %v279
        %v575 = vpop.f32.mrf.mxu0
        %v576 = vadd.f32 %v419, %v575
        %577 = vmatmul.f32.gmra.mxu0 %v280
        %v578 = vpop.f32.mrf.mxu0
        %v579 = vadd.f32 %v419, %v578
        %580 = vmatmul.f32.gmra.mxu0 %v281
        %v581 = vpop.f32.mrf.mxu0
        %v582 = vadd.f32 %v419, %v581
        %583 = vmatmul.f32.gmra.mxu0 %v282
        %v584 = vpop.f32.mrf.mxu0
        %v585 = vadd.f32 %v419, %v584
        %586 = vmatmul.f32.gmra.mxu0 %v283
        %v587 = vpop.f32.mrf.mxu0
        %v588 = vadd.f32 %v419, %v587
        %589 = vmatmul.f32.gmra.mxu0 %v284
        %v590 = vpop.f32.mrf.mxu0
        %v591 = vadd.f32 %v419, %v590
        %592 = vmatmul.f32.gmra.mxu0 %v285
        %v593 = vpop.f32.mrf.mxu0
        %v594 = vadd.f32 %v419, %v593
        %595 = vdwg.mxu0
        %596 = vmatpush.msra.mxu0 %v410
        %597 = vmatpush.msra.mxu0 %v402
        %598 = vmatpush.msra.mxu0 %v394
        %599 = vmatpush.msra.mxu0 %v386
        %600 = vmatpush.msra.mxu0 %v378
        %601 = vmatpush.msra.mxu0 %v370
        %602 = vmatpush.msra.mxu0 %v362
        %603 = vmatpush.msra.mxu0 %v354
        %604 = vmatpush.msra.mxu0 %v346
        %605 = vmatpush.msra.mxu0 %v338
        %606 = vmatpush.msra.mxu0 %v330
        %607 = vmatpush.msra.mxu0 %v322
        %608 = vmatpush.msra.mxu0 %v314
        %609 = vmatpush.msra.mxu0 %v306
        %610 = vmatpush.msra.mxu0 %v298
        %611 = vmatpush.msra.mxu0 %v290
        %612 = vmatmul.f32.gmra.mxu0 %v278
        %v613 = vpop.f32.mrf.mxu0
        %v614 = vadd.f32 %v420, %v613
        %615 = vmatmul.f32.gmra.mxu0 %v279
        %v616 = vpop.f32.mrf.mxu0
        %v617 = vadd.f32 %v420, %v616
        %618 = vmatmul.f32.gmra.mxu0 %v280
        %v619 = vpop.f32.mrf.mxu0
        %v620 = vadd.f32 %v420, %v619
        %621 = vmatmul.f32.gmra.mxu0 %v281
        %v622 = vpop.f32.mrf.mxu0
        %v623 = vadd.f32 %v420, %v622
        %624 = vmatmul.f32.gmra.mxu0 %v282
        %v625 = vpop.f32.mrf.mxu0
        %v626 = vadd.f32 %v420, %v625
        %627 = vmatmul.f32.gmra.mxu0 %v283
        %v628 = vpop.f32.mrf.mxu0
        %v629 = vadd.f32 %v420, %v628
        %630 = vmatmul.f32.gmra.mxu0 %v284
        %v631 = vpop.f32.mrf.mxu0
        %v632 = vadd.f32 %v420, %v631
        %633 = vmatmul.f32.gmra.mxu0 %v285
        %v634 = vpop.f32.mrf.mxu0
        %v635 = vadd.f32 %v420, %v634
        %636 = vdwg.mxu0
        %637 = vmatpush.msra.mxu0 %v411
        %638 = vmatpush.msra.mxu0 %v403
        %639 = vmatpush.msra.mxu0 %v395
        %640 = vmatpush.msra.mxu0 %v387
        %641 = vmatpush.msra.mxu0 %v379
        %642 = vmatpush.msra.mxu0 %v371
        %643 = vmatpush.msra.mxu0 %v363
        %644 = vmatpush.msra.mxu0 %v355
        %645 = vmatpush.msra.mxu0 %v347
        %646 = vmatpush.msra.mxu0 %v339
        %647 = vmatpush.msra.mxu0 %v331
        %648 = vmatpush.msra.mxu0 %v323
        %649 = vmatpush.msra.mxu0 %v315
        %650 = vmatpush.msra.mxu0 %v307
        %651 = vmatpush.msra.mxu0 %v299
        %652 = vmatpush.msra.mxu0 %v291
        %653 = vmatmul.f32.gmra.mxu0 %v278
        %v654 = vpop.f32.mrf.mxu0
        %v655 = vadd.f32 %v421, %v654
        %656 = vmatmul.f32.gmra.mxu0 %v279
        %v657 = vpop.f32.mrf.mxu0
        %v658 = vadd.f32 %v421, %v657
        %659 = vmatmul.f32.gmra.mxu0 %v280
        %v660 = vpop.f32.mrf.mxu0
        %v661 = vadd.f32 %v421, %v660
        %662 = vmatmul.f32.gmra.mxu0 %v281
        %v663 = vpop.f32.mrf.mxu0
        %v664 = vadd.f32 %v421, %v663
        %665 = vmatmul.f32.gmra.mxu0 %v282
        %v666 = vpop.f32.mrf.mxu0
        %v667 = vadd.f32 %v421, %v666
        %668 = vmatmul.f32.gmra.mxu0 %v283
        %v669 = vpop.f32.mrf.mxu0
        %v670 = vadd.f32 %v421, %v669
        %671 = vmatmul.f32.gmra.mxu0 %v284
        %v672 = vpop.f32.mrf.mxu0
        %v673 = vadd.f32 %v421, %v672
        %674 = vmatmul.f32.gmra.mxu0 %v285
        %v675 = vpop.f32.mrf.mxu0
        %v676 = vadd.f32 %v421, %v675
        %677 = vdwg.mxu0
        %678 = vmatpush.msra.mxu0 %v412
        %679 = vmatpush.msra.mxu0 %v404
        %680 = vmatpush.msra.mxu0 %v396
        %681 = vmatpush.msra.mxu0 %v388
        %682 = vmatpush.msra.mxu0 %v380
        %683 = vmatpush.msra.mxu0 %v372
        %684 = vmatpush.msra.mxu0 %v364
        %685 = vmatpush.msra.mxu0 %v356
        %686 = vmatpush.msra.mxu0 %v348
        %687 = vmatpush.msra.mxu0 %v340
        %688 = vmatpush.msra.mxu0 %v332
        %689 = vmatpush.msra.mxu0 %v324
        %690 = vmatpush.msra.mxu0 %v316
        %691 = vmatpush.msra.mxu0 %v308
        %692 = vmatpush.msra.mxu0 %v300
        %693 = vmatpush.msra.mxu0 %v292
        %694 = vmatmul.f32.gmra.mxu0 %v278
        %v695 = vpop.f32.mrf.mxu0
        %v696 = vadd.f32 %v422, %v695
        %697 = vmatmul.f32.gmra.mxu0 %v279
        %v698 = vpop.f32.mrf.mxu0
        %v699 = vadd.f32 %v422, %v698
        %700 = vmatmul.f32.gmra.mxu0 %v280
        %v701 = vpop.f32.mrf.mxu0
        %v702 = vadd.f32 %v422, %v701
        %703 = vmatmul.f32.gmra.mxu0 %v281
        %v704 = vpop.f32.mrf.mxu0
        %v705 = vadd.f32 %v422, %v704
        %706 = vmatmul.f32.gmra.mxu0 %v282
        %v707 = vpop.f32.mrf.mxu0
        %v708 = vadd.f32 %v422, %v707
        %709 = vmatmul.f32.gmra.mxu0 %v283
        %v710 = vpop.f32.mrf.mxu0
        %v711 = vadd.f32 %v422, %v710
        %712 = vmatmul.f32.gmra.mxu0 %v284
        %v713 = vpop.f32.mrf.mxu0
        %v714 = vadd.f32 %v422, %v713
        %715 = vmatmul.f32.gmra.mxu0 %v285
        %v716 = vpop.f32.mrf.mxu0
        %v717 = vadd.f32 %v422, %v716
        %718 = vdwg.mxu0
        %719 = vmatpush.msra.mxu0 %v413
        %720 = vmatpush.msra.mxu0 %v405
        %721 = vmatpush.msra.mxu0 %v397
        %722 = vmatpush.msra.mxu0 %v389
        %723 = vmatpush.msra.mxu0 %v381
        %724 = vmatpush.msra.mxu0 %v373
        %725 = vmatpush.msra.mxu0 %v365
        %726 = vmatpush.msra.mxu0 %v357
        %727 = vmatpush.msra.mxu0 %v349
        %728 = vmatpush.msra.mxu0 %v341
        %729 = vmatpush.msra.mxu0 %v333
        %730 = vmatpush.msra.mxu0 %v325
        %731 = vmatpush.msra.mxu0 %v317
        %732 = vmatpush.msra.mxu0 %v309
        %733 = vmatpush.msra.mxu0 %v301
        %734 = vmatpush.msra.mxu0 %v293
        %735 = vmatmul.f32.gmra.mxu0 %v278
        %v736 = vpop.f32.mrf.mxu0
        %v737 = vadd.f32 %v423, %v736
        %738 = vmatmul.f32.gmra.mxu0 %v279
        %v739 = vpop.f32.mrf.mxu0
        %v740 = vadd.f32 %v423, %v739
        %741 = vmatmul.f32.gmra.mxu0 %v280
        %v742 = vpop.f32.mrf.mxu0
        %v743 = vadd.f32 %v423, %v742
        %744 = vmatmul.f32.gmra.mxu0 %v281
        %v745 = vpop.f32.mrf.mxu0
        %v746 = vadd.f32 %v423, %v745
        %747 = vmatmul.f32.gmra.mxu0 %v282
        %v748 = vpop.f32.mrf.mxu0
        %v749 = vadd.f32 %v423, %v748
        %750 = vmatmul.f32.gmra.mxu0 %v283
        %v751 = vpop.f32.mrf.mxu0
        %v752 = vadd.f32 %v423, %v751
        %753 = vmatmul.f32.gmra.mxu0 %v284
        %v754 = vpop.f32.mrf.mxu0
        %v755 = vadd.f32 %v423, %v754
        %756 = vmatmul.f32.gmra.mxu0 %v285
        %v757 = vpop.f32.mrf.mxu0
        %v758 = vadd.f32 %v423, %v757
        %759 = vdwg.mxu0
        %760 = vst [vmem:[#allocation2] sm:$0xff] %v450
        %761 = vst [vmem:[#allocation2 + $0x8] sm:$0xff] %v491
        %762 = vst [vmem:[#allocation2 + $0x10] sm:$0xff] %v532
        %763 = vst [vmem:[#allocation2 + $0x18] sm:$0xff] %v573
        %764 = vst [vmem:[#allocation2 + $0x20] sm:$0xff] %v614
        %765 = vst [vmem:[#allocation2 + $0x28] sm:$0xff] %v655
        %766 = vst [vmem:[#allocation2 + $0x30] sm:$0xff] %v696
        %767 = vst [vmem:[#allocation2 + $0x38] sm:$0xff] %v737
        %768 = vst [vmem:[#allocation2 + $0x40] sm:$0xff] %v453
        %769 = vst [vmem:[#allocation2 + $0x48] sm:$0xff] %v494
        %770 = vst [vmem:[#allocation2 + $0x50] sm:$0xff] %v535
        %771 = vst [vmem:[#allocation2 + $0x58] sm:$0xff] %v576
        %772 = vst [vmem:[#allocation2 + $0x60] sm:$0xff] %v617
        %773 = vst [vmem:[#allocation2 + $0x68] sm:$0xff] %v658
        %774 = vst [vmem:[#allocation2 + $0x70] sm:$0xff] %v699
        %775 = vst [vmem:[#allocation2 + $0x78] sm:$0xff] %v740
        %776 = vst [vmem:[#allocation2 + $0x80] sm:$0xff] %v456
        %777 = vst [vmem:[#allocation2 + $0x88] sm:$0xff] %v497
        %778 = vst [vmem:[#allocation2 + $0x90] sm:$0xff] %v538
        %779 = vst [vmem:[#allocation2 + $0x98] sm:$0xff] %v579
        %780 = vst [vmem:[#allocation2 + $0xa0] sm:$0xff] %v620
        %781 = vst [vmem:[#allocation2 + $0xa8] sm:$0xff] %v661
        %782 = vst [vmem:[#allocation2 + $0xb0] sm:$0xff] %v702
        %783 = vst [vmem:[#allocation2 + $0xb8] sm:$0xff] %v743
        %784 = vst [vmem:[#allocation2 + $0xc0] sm:$0xff] %v459
        %785 = vst [vmem:[#allocation2 + $0xc8] sm:$0xff] %v500
        %786 = vst [vmem:[#allocation2 + $0xd0] sm:$0xff] %v541
        %787 = vst [vmem:[#allocation2 + $0xd8] sm:$0xff] %v582
        %788 = vst [vmem:[#allocation2 + $0xe0] sm:$0xff] %v623
        %789 = vst [vmem:[#allocation2 + $0xe8] sm:$0xff] %v664
        %790 = vst [vmem:[#allocation2 + $0xf0] sm:$0xff] %v705
        %791 = vst [vmem:[#allocation2 + $0xf8] sm:$0xff] %v746
        %792 = vst [vmem:[#allocation2 + $0x100] sm:$0xff] %v462
        %793 = vst [vmem:[#allocation2 + $0x108] sm:$0xff] %v503
        %794 = vst [vmem:[#allocation2 + $0x110] sm:$0xff] %v544
        %795 = vst [vmem:[#allocation2 + $0x118] sm:$0xff] %v585
        %796 = vst [vmem:[#allocation2 + $0x120] sm:$0xff] %v626
        %797 = vst [vmem:[#allocation2 + $0x128] sm:$0xff] %v667
        %798 = vst [vmem:[#allocation2 + $0x130] sm:$0xff] %v708
        %799 = vst [vmem:[#allocation2 + $0x138] sm:$0xff] %v749
        %800 = vst [vmem:[#allocation2 + $0x140] sm:$0xff] %v465
        %801 = vst [vmem:[#allocation2 + $0x148] sm:$0xff] %v506
        %802 = vst [vmem:[#allocation2 + $0x150] sm:$0xff] %v547
        %803 = vst [vmem:[#allocation2 + $0x158] sm:$0xff] %v588
        %804 = vst [vmem:[#allocation2 + $0x160] sm:$0xff] %v629
        %805 = vst [vmem:[#allocation2 + $0x168] sm:$0xff] %v670
        %806 = vst [vmem:[#allocation2 + $0x170] sm:$0xff] %v711
        %807 = vst [vmem:[#allocation2 + $0x178] sm:$0xff] %v752
        %808 = vst [vmem:[#allocation2 + $0x180] sm:$0xff] %v468
        %809 = vst [vmem:[#allocation2 + $0x188] sm:$0xff] %v509
        %810 = vst [vmem:[#allocation2 + $0x190] sm:$0xff] %v550
        %811 = vst [vmem:[#allocation2 + $0x198] sm:$0xff] %v591
        %812 = vst [vmem:[#allocation2 + $0x1a0] sm:$0xff] %v632
        %813 = vst [vmem:[#allocation2 + $0x1a8] sm:$0xff] %v673
        %814 = vst [vmem:[#allocation2 + $0x1b0] sm:$0xff] %v714
        %815 = vst [vmem:[#allocation2 + $0x1b8] sm:$0xff] %v755
        %816 = vst [vmem:[#allocation2 + $0x1c0] sm:$0xff] %v471
        %817 = vst [vmem:[#allocation2 + $0x1c8] sm:$0xff] %v512
        %818 = vst [vmem:[#allocation2 + $0x1d0] sm:$0xff] %v553
        %819 = vst [vmem:[#allocation2 + $0x1d8] sm:$0xff] %v594
        %820 = vst [vmem:[#allocation2 + $0x1e0] sm:$0xff] %v635
        %821 = vst [vmem:[#allocation2 + $0x1e8] sm:$0xff] %v676
        %822 = vst [vmem:[#allocation2 + $0x1f0] sm:$0xff] %v717
        %823 = vst [vmem:[#allocation2 + $0x1f8] sm:$0xff] %v758
      $region48: #{lstm_classifier_forward.1} parent=43 // pred_fallthru
        _
      %p824 = scmp.ne.s32.totalorder %s17, 0
      // Predicated region
      $region49: #{lstm_classifier_forward.1} parent=43 // pred_check
        %p825 = pneg %p824
      $region50: #{lstm_classifier_forward.1} parent=43 // pred_check_branch
        %827 = sbr.rel (%p825) target = $region52
      $region51: #{lstm_classifier_forward.1} parent=43 // pred_region
        %v828 = vld [vmem:[#allocation3] sm:$0xff]
        %v829 = vld [vmem:[#allocation3 + $0x8] sm:$0xff]
        %v830 = vld [vmem:[#allocation3 + $0x10] sm:$0xff]
        %v831 = vld [vmem:[#allocation3 + $0x18] sm:$0xff]
        %v832 = vld [vmem:[#allocation3 + $0x20] sm:$0xff]
        %v833 = vld [vmem:[#allocation3 + $0x28] sm:$0xff]
        %v834 = vld [vmem:[#allocation3 + $0x30] sm:$0xff]
        %v835 = vld [vmem:[#allocation3 + $0x38] sm:$0xff]
        %v836 = vld [vmem:[%s264] sm:$0xff]
        %v837 = vld [vmem:[%s264 + $0x8] sm:$0xff]
        %v838 = vld [vmem:[%s264 + $0x10] sm:$0xff]
        %v839 = vld [vmem:[%s264 + $0x18] sm:$0xff]
        %v840 = vld [vmem:[%s264 + $0x20] sm:$0xff]
        %v841 = vld [vmem:[%s264 + $0x28] sm:$0xff]
        %v842 = vld [vmem:[%s264 + $0x30] sm:$0xff]
        %v843 = vld [vmem:[%s264 + $0x38] sm:$0xff]
        %v844 = vld [vmem:[%s264 + $0x40] sm:$0xff]
        %v845 = vld [vmem:[%s264 + $0x48] sm:$0xff]
        %v846 = vld [vmem:[%s264 + $0x50] sm:$0xff]
        %v847 = vld [vmem:[%s264 + $0x58] sm:$0xff]
        %v848 = vld [vmem:[%s264 + $0x60] sm:$0xff]
        %v849 = vld [vmem:[%s264 + $0x68] sm:$0xff]
        %v850 = vld [vmem:[%s264 + $0x70] sm:$0xff]
        %v851 = vld [vmem:[%s264 + $0x78] sm:$0xff]
        %v852 = vld [vmem:[%s264 + $0x80] sm:$0xff]
        %v853 = vld [vmem:[%s264 + $0x88] sm:$0xff]
        %v854 = vld [vmem:[%s264 + $0x90] sm:$0xff]
        %v855 = vld [vmem:[%s264 + $0x98] sm:$0xff]
        %v856 = vld [vmem:[%s264 + $0xa0] sm:$0xff]
        %v857 = vld [vmem:[%s264 + $0xa8] sm:$0xff]
        %v858 = vld [vmem:[%s264 + $0xb0] sm:$0xff]
        %v859 = vld [vmem:[%s264 + $0xb8] sm:$0xff]
        %v860 = vld [vmem:[%s264 + $0xc0] sm:$0xff]
        %v861 = vld [vmem:[%s264 + $0xc8] sm:$0xff]
        %v862 = vld [vmem:[%s264 + $0xd0] sm:$0xff]
        %v863 = vld [vmem:[%s264 + $0xd8] sm:$0xff]
        %v864 = vld [vmem:[%s264 + $0xe0] sm:$0xff]
        %v865 = vld [vmem:[%s264 + $0xe8] sm:$0xff]
        %v866 = vld [vmem:[%s264 + $0xf0] sm:$0xff]
        %v867 = vld [vmem:[%s264 + $0xf8] sm:$0xff]
        %v868 = vld [vmem:[%s264 + $0x100] sm:$0xff]
        %v869 = vld [vmem:[%s264 + $0x108] sm:$0xff]
        %v870 = vld [vmem:[%s264 + $0x110] sm:$0xff]
        %v871 = vld [vmem:[%s264 + $0x118] sm:$0xff]
        %v872 = vld [vmem:[%s264 + $0x120] sm:$0xff]
        %v873 = vld [vmem:[%s264 + $0x128] sm:$0xff]
        %v874 = vld [vmem:[%s264 + $0x130] sm:$0xff]
        %v875 = vld [vmem:[%s264 + $0x138] sm:$0xff]
        %v876 = vld [vmem:[%s264 + $0x140] sm:$0xff]
        %v877 = vld [vmem:[%s264 + $0x148] sm:$0xff]
        %v878 = vld [vmem:[%s264 + $0x150] sm:$0xff]
        %v879 = vld [vmem:[%s264 + $0x158] sm:$0xff]
        %v880 = vld [vmem:[%s264 + $0x160] sm:$0xff]
        %v881 = vld [vmem:[%s264 + $0x168] sm:$0xff]
        %v882 = vld [vmem:[%s264 + $0x170] sm:$0xff]
        %v883 = vld [vmem:[%s264 + $0x178] sm:$0xff]
        %v884 = vld [vmem:[%s264 + $0x180] sm:$0xff]
        %v885 = vld [vmem:[%s264 + $0x188] sm:$0xff]
        %v886 = vld [vmem:[%s264 + $0x190] sm:$0xff]
        %v887 = vld [vmem:[%s264 + $0x198] sm:$0xff]
        %v888 = vld [vmem:[%s264 + $0x1a0] sm:$0xff]
        %v889 = vld [vmem:[%s264 + $0x1a8] sm:$0xff]
        %v890 = vld [vmem:[%s264 + $0x1b0] sm:$0xff]
        %v891 = vld [vmem:[%s264 + $0x1b8] sm:$0xff]
        %v892 = vld [vmem:[%s264 + $0x1c0] sm:$0xff]
        %v893 = vld [vmem:[%s264 + $0x1c8] sm:$0xff]
        %v894 = vld [vmem:[%s264 + $0x1d0] sm:$0xff]
        %v895 = vld [vmem:[%s264 + $0x1d8] sm:$0xff]
        %v896 = vld [vmem:[%s264 + $0x1e0] sm:$0xff]
        %v897 = vld [vmem:[%s264 + $0x1e8] sm:$0xff]
        %v898 = vld [vmem:[%s264 + $0x1f0] sm:$0xff]
        %v899 = vld [vmem:[%s264 + $0x1f8] sm:$0xff]
        %v900 = vld [vmem:[%s264 + $0x200] sm:$0xff]
        %v901 = vld [vmem:[%s264 + $0x208] sm:$0xff]
        %v902 = vld [vmem:[%s264 + $0x210] sm:$0xff]
        %v903 = vld [vmem:[%s264 + $0x218] sm:$0xff]
        %v904 = vld [vmem:[%s264 + $0x220] sm:$0xff]
        %v905 = vld [vmem:[%s264 + $0x228] sm:$0xff]
        %v906 = vld [vmem:[%s264 + $0x230] sm:$0xff]
        %v907 = vld [vmem:[%s264 + $0x238] sm:$0xff]
        %v908 = vld [vmem:[%s264 + $0x240] sm:$0xff]
        %v909 = vld [vmem:[%s264 + $0x248] sm:$0xff]
        %v910 = vld [vmem:[%s264 + $0x250] sm:$0xff]
        %v911 = vld [vmem:[%s264 + $0x258] sm:$0xff]
        %v912 = vld [vmem:[%s264 + $0x260] sm:$0xff]
        %v913 = vld [vmem:[%s264 + $0x268] sm:$0xff]
        %v914 = vld [vmem:[%s264 + $0x270] sm:$0xff]
        %v915 = vld [vmem:[%s264 + $0x278] sm:$0xff]
        %v916 = vld [vmem:[%s264 + $0x280] sm:$0xff]
        %v917 = vld [vmem:[%s264 + $0x288] sm:$0xff]
        %v918 = vld [vmem:[%s264 + $0x290] sm:$0xff]
        %v919 = vld [vmem:[%s264 + $0x298] sm:$0xff]
        %v920 = vld [vmem:[%s264 + $0x2a0] sm:$0xff]
        %v921 = vld [vmem:[%s264 + $0x2a8] sm:$0xff]
        %v922 = vld [vmem:[%s264 + $0x2b0] sm:$0xff]
        %v923 = vld [vmem:[%s264 + $0x2b8] sm:$0xff]
        %v924 = vld [vmem:[%s264 + $0x2c0] sm:$0xff]
        %v925 = vld [vmem:[%s264 + $0x2c8] sm:$0xff]
        %v926 = vld [vmem:[%s264 + $0x2d0] sm:$0xff]
        %v927 = vld [vmem:[%s264 + $0x2d8] sm:$0xff]
        %v928 = vld [vmem:[%s264 + $0x2e0] sm:$0xff]
        %v929 = vld [vmem:[%s264 + $0x2e8] sm:$0xff]
        %v930 = vld [vmem:[%s264 + $0x2f0] sm:$0xff]
        %v931 = vld [vmem:[%s264 + $0x2f8] sm:$0xff]
        %v932 = vld [vmem:[%s264 + $0x300] sm:$0xff]
        %v933 = vld [vmem:[%s264 + $0x308] sm:$0xff]
        %v934 = vld [vmem:[%s264 + $0x310] sm:$0xff]
        %v935 = vld [vmem:[%s264 + $0x318] sm:$0xff]
        %v936 = vld [vmem:[%s264 + $0x320] sm:$0xff]
        %v937 = vld [vmem:[%s264 + $0x328] sm:$0xff]
        %v938 = vld [vmem:[%s264 + $0x330] sm:$0xff]
        %v939 = vld [vmem:[%s264 + $0x338] sm:$0xff]
        %v940 = vld [vmem:[%s264 + $0x340] sm:$0xff]
        %v941 = vld [vmem:[%s264 + $0x348] sm:$0xff]
        %v942 = vld [vmem:[%s264 + $0x350] sm:$0xff]
        %v943 = vld [vmem:[%s264 + $0x358] sm:$0xff]
        %v944 = vld [vmem:[%s264 + $0x360] sm:$0xff]
        %v945 = vld [vmem:[%s264 + $0x368] sm:$0xff]
        %v946 = vld [vmem:[%s264 + $0x370] sm:$0xff]
        %v947 = vld [vmem:[%s264 + $0x378] sm:$0xff]
        %v948 = vld [vmem:[%s264 + $0x380] sm:$0xff]
        %v949 = vld [vmem:[%s264 + $0x388] sm:$0xff]
        %v950 = vld [vmem:[%s264 + $0x390] sm:$0xff]
        %v951 = vld [vmem:[%s264 + $0x398] sm:$0xff]
        %v952 = vld [vmem:[%s264 + $0x3a0] sm:$0xff]
        %v953 = vld [vmem:[%s264 + $0x3a8] sm:$0xff]
        %v954 = vld [vmem:[%s264 + $0x3b0] sm:$0xff]
        %v955 = vld [vmem:[%s264 + $0x3b8] sm:$0xff]
        %v956 = vld [vmem:[%s264 + $0x3c0] sm:$0xff]
        %v957 = vld [vmem:[%s264 + $0x3c8] sm:$0xff]
        %v958 = vld [vmem:[%s264 + $0x3d0] sm:$0xff]
        %v959 = vld [vmem:[%s264 + $0x3d8] sm:$0xff]
        %v960 = vld [vmem:[%s264 + $0x3e0] sm:$0xff]
        %v961 = vld [vmem:[%s264 + $0x3e8] sm:$0xff]
        %v962 = vld [vmem:[%s264 + $0x3f0] sm:$0xff]
        %v963 = vld [vmem:[%s264 + $0x3f8] sm:$0xff]
        %v964 = vld [vmem:[#allocation4] sm:$0xff]
        %v965 = vld [vmem:[#allocation4 + $0x8] sm:$0xff]
        %v966 = vld [vmem:[#allocation4 + $0x10] sm:$0xff]
        %v967 = vld [vmem:[#allocation4 + $0x18] sm:$0xff]
        %v968 = vld [vmem:[#allocation4 + $0x20] sm:$0xff]
        %v969 = vld [vmem:[#allocation4 + $0x28] sm:$0xff]
        %v970 = vld [vmem:[#allocation4 + $0x30] sm:$0xff]
        %v971 = vld [vmem:[#allocation4 + $0x38] sm:$0xff]
        %v972 = vld [vmem:[%s264 + $0x400] sm:$0xff]
        %v973 = vld [vmem:[%s264 + $0x408] sm:$0xff]
        %v974 = vld [vmem:[%s264 + $0x410] sm:$0xff]
        %v975 = vld [vmem:[%s264 + $0x418] sm:$0xff]
        %v976 = vld [vmem:[%s264 + $0x420] sm:$0xff]
        %v977 = vld [vmem:[%s264 + $0x428] sm:$0xff]
        %v978 = vld [vmem:[%s264 + $0x430] sm:$0xff]
        %v979 = vld [vmem:[%s264 + $0x438] sm:$0xff]
        %v980 = vld [vmem:[%s264 + $0x440] sm:$0xff]
        %v981 = vld [vmem:[%s264 + $0x448] sm:$0xff]
        %v982 = vld [vmem:[%s264 + $0x450] sm:$0xff]
        %v983 = vld [vmem:[%s264 + $0x458] sm:$0xff]
        %v984 = vld [vmem:[%s264 + $0x460] sm:$0xff]
        %v985 = vld [vmem:[%s264 + $0x468] sm:$0xff]
        %v986 = vld [vmem:[%s264 + $0x470] sm:$0xff]
        %v987 = vld [vmem:[%s264 + $0x478] sm:$0xff]
        %v988 = vld [vmem:[%s264 + $0x480] sm:$0xff]
        %v989 = vld [vmem:[%s264 + $0x488] sm:$0xff]
        %v990 = vld [vmem:[%s264 + $0x490] sm:$0xff]
        %v991 = vld [vmem:[%s264 + $0x498] sm:$0xff]
        %v992 = vld [vmem:[%s264 + $0x4a0] sm:$0xff]
        %v993 = vld [vmem:[%s264 + $0x4a8] sm:$0xff]
        %v994 = vld [vmem:[%s264 + $0x4b0] sm:$0xff]
        %v995 = vld [vmem:[%s264 + $0x4b8] sm:$0xff]
        %v996 = vld [vmem:[%s264 + $0x4c0] sm:$0xff]
        %v997 = vld [vmem:[%s264 + $0x4c8] sm:$0xff]
        %v998 = vld [vmem:[%s264 + $0x4d0] sm:$0xff]
        %v999 = vld [vmem:[%s264 + $0x4d8] sm:$0xff]
        %v1000 = vld [vmem:[%s264 + $0x4e0] sm:$0xff]
        %v1001 = vld [vmem:[%s264 + $0x4e8] sm:$0xff]
        %v1002 = vld [vmem:[%s264 + $0x4f0] sm:$0xff]
        %v1003 = vld [vmem:[%s264 + $0x4f8] sm:$0xff]
        %v1004 = vld [vmem:[%s264 + $0x500] sm:$0xff]
        %v1005 = vld [vmem:[%s264 + $0x508] sm:$0xff]
        %v1006 = vld [vmem:[%s264 + $0x510] sm:$0xff]
        %v1007 = vld [vmem:[%s264 + $0x518] sm:$0xff]
        %v1008 = vld [vmem:[%s264 + $0x520] sm:$0xff]
        %v1009 = vld [vmem:[%s264 + $0x528] sm:$0xff]
        %v1010 = vld [vmem:[%s264 + $0x530] sm:$0xff]
        %v1011 = vld [vmem:[%s264 + $0x538] sm:$0xff]
        %v1012 = vld [vmem:[%s264 + $0x540] sm:$0xff]
        %v1013 = vld [vmem:[%s264 + $0x548] sm:$0xff]
        %v1014 = vld [vmem:[%s264 + $0x550] sm:$0xff]
        %v1015 = vld [vmem:[%s264 + $0x558] sm:$0xff]
        %v1016 = vld [vmem:[%s264 + $0x560] sm:$0xff]
        %v1017 = vld [vmem:[%s264 + $0x568] sm:$0xff]
        %v1018 = vld [vmem:[%s264 + $0x570] sm:$0xff]
        %v1019 = vld [vmem:[%s264 + $0x578] sm:$0xff]
        %v1020 = vld [vmem:[%s264 + $0x580] sm:$0xff]
        %v1021 = vld [vmem:[%s264 + $0x588] sm:$0xff]
        %v1022 = vld [vmem:[%s264 + $0x590] sm:$0xff]
        %v1023 = vld [vmem:[%s264 + $0x598] sm:$0xff]
        %v1024 = vld [vmem:[%s264 + $0x5a0] sm:$0xff]
        %v1025 = vld [vmem:[%s264 + $0x5a8] sm:$0xff]
        %v1026 = vld [vmem:[%s264 + $0x5b0] sm:$0xff]
        %v1027 = vld [vmem:[%s264 + $0x5b8] sm:$0xff]
        %v1028 = vld [vmem:[%s264 + $0x5c0] sm:$0xff]
        %v1029 = vld [vmem:[%s264 + $0x5c8] sm:$0xff]
        %v1030 = vld [vmem:[%s264 + $0x5d0] sm:$0xff]
        %v1031 = vld [vmem:[%s264 + $0x5d8] sm:$0xff]
        %v1032 = vld [vmem:[%s264 + $0x5e0] sm:$0xff]
        %v1033 = vld [vmem:[%s264 + $0x5e8] sm:$0xff]
        %v1034 = vld [vmem:[%s264 + $0x5f0] sm:$0xff]
        %v1035 = vld [vmem:[%s264 + $0x5f8] sm:$0xff]
        %v1036 = vld [vmem:[%s264 + $0x600] sm:$0xff]
        %v1037 = vld [vmem:[%s264 + $0x608] sm:$0xff]
        %v1038 = vld [vmem:[%s264 + $0x610] sm:$0xff]
        %v1039 = vld [vmem:[%s264 + $0x618] sm:$0xff]
        %v1040 = vld [vmem:[%s264 + $0x620] sm:$0xff]
        %v1041 = vld [vmem:[%s264 + $0x628] sm:$0xff]
        %v1042 = vld [vmem:[%s264 + $0x630] sm:$0xff]
        %v1043 = vld [vmem:[%s264 + $0x638] sm:$0xff]
        %v1044 = vld [vmem:[%s264 + $0x640] sm:$0xff]
        %v1045 = vld [vmem:[%s264 + $0x648] sm:$0xff]
        %v1046 = vld [vmem:[%s264 + $0x650] sm:$0xff]
        %v1047 = vld [vmem:[%s264 + $0x658] sm:$0xff]
        %v1048 = vld [vmem:[%s264 + $0x660] sm:$0xff]
        %v1049 = vld [vmem:[%s264 + $0x668] sm:$0xff]
        %v1050 = vld [vmem:[%s264 + $0x670] sm:$0xff]
        %v1051 = vld [vmem:[%s264 + $0x678] sm:$0xff]
        %v1052 = vld [vmem:[%s264 + $0x680] sm:$0xff]
        %v1053 = vld [vmem:[%s264 + $0x688] sm:$0xff]
        %v1054 = vld [vmem:[%s264 + $0x690] sm:$0xff]
        %v1055 = vld [vmem:[%s264 + $0x698] sm:$0xff]
        %v1056 = vld [vmem:[%s264 + $0x6a0] sm:$0xff]
        %v1057 = vld [vmem:[%s264 + $0x6a8] sm:$0xff]
        %v1058 = vld [vmem:[%s264 + $0x6b0] sm:$0xff]
        %v1059 = vld [vmem:[%s264 + $0x6b8] sm:$0xff]
        %v1060 = vld [vmem:[%s264 + $0x6c0] sm:$0xff]
        %v1061 = vld [vmem:[%s264 + $0x6c8] sm:$0xff]
        %v1062 = vld [vmem:[%s264 + $0x6d0] sm:$0xff]
        %v1063 = vld [vmem:[%s264 + $0x6d8] sm:$0xff]
        %v1064 = vld [vmem:[%s264 + $0x6e0] sm:$0xff]
        %v1065 = vld [vmem:[%s264 + $0x6e8] sm:$0xff]
        %v1066 = vld [vmem:[%s264 + $0x6f0] sm:$0xff]
        %v1067 = vld [vmem:[%s264 + $0x6f8] sm:$0xff]
        %v1068 = vld [vmem:[%s264 + $0x700] sm:$0xff]
        %v1069 = vld [vmem:[%s264 + $0x708] sm:$0xff]
        %v1070 = vld [vmem:[%s264 + $0x710] sm:$0xff]
        %v1071 = vld [vmem:[%s264 + $0x718] sm:$0xff]
        %v1072 = vld [vmem:[%s264 + $0x720] sm:$0xff]
        %v1073 = vld [vmem:[%s264 + $0x728] sm:$0xff]
        %v1074 = vld [vmem:[%s264 + $0x730] sm:$0xff]
        %v1075 = vld [vmem:[%s264 + $0x738] sm:$0xff]
        %v1076 = vld [vmem:[%s264 + $0x740] sm:$0xff]
        %v1077 = vld [vmem:[%s264 + $0x748] sm:$0xff]
        %v1078 = vld [vmem:[%s264 + $0x750] sm:$0xff]
        %v1079 = vld [vmem:[%s264 + $0x758] sm:$0xff]
        %v1080 = vld [vmem:[%s264 + $0x760] sm:$0xff]
        %v1081 = vld [vmem:[%s264 + $0x768] sm:$0xff]
        %v1082 = vld [vmem:[%s264 + $0x770] sm:$0xff]
        %v1083 = vld [vmem:[%s264 + $0x778] sm:$0xff]
        %v1084 = vld [vmem:[%s264 + $0x780] sm:$0xff]
        %v1085 = vld [vmem:[%s264 + $0x788] sm:$0xff]
        %v1086 = vld [vmem:[%s264 + $0x790] sm:$0xff]
        %v1087 = vld [vmem:[%s264 + $0x798] sm:$0xff]
        %v1088 = vld [vmem:[%s264 + $0x7a0] sm:$0xff]
        %v1089 = vld [vmem:[%s264 + $0x7a8] sm:$0xff]
        %v1090 = vld [vmem:[%s264 + $0x7b0] sm:$0xff]
        %v1091 = vld [vmem:[%s264 + $0x7b8] sm:$0xff]
        %v1092 = vld [vmem:[%s264 + $0x7c0] sm:$0xff]
        %v1093 = vld [vmem:[%s264 + $0x7c8] sm:$0xff]
        %v1094 = vld [vmem:[%s264 + $0x7d0] sm:$0xff]
        %v1095 = vld [vmem:[%s264 + $0x7d8] sm:$0xff]
        %v1096 = vld [vmem:[%s264 + $0x7e0] sm:$0xff]
        %v1097 = vld [vmem:[%s264 + $0x7e8] sm:$0xff]
        %v1098 = vld [vmem:[%s264 + $0x7f0] sm:$0xff]
        %v1099 = vld [vmem:[%s264 + $0x7f8] sm:$0xff]
        %1100 = vmatpush.msra.mxu0 %v1092
        %1101 = vmatpush.msra.mxu0 %v1084
        %1102 = vmatpush.msra.mxu0 %v1076
        %1103 = vmatpush.msra.mxu0 %v1068
        %1104 = vmatpush.msra.mxu0 %v1060
        %1105 = vmatpush.msra.mxu0 %v1052
        %1106 = vmatpush.msra.mxu0 %v1044
        %1107 = vmatpush.msra.mxu0 %v1036
        %1108 = vmatpush.msra.mxu0 %v1028
        %1109 = vmatpush.msra.mxu0 %v1020
        %1110 = vmatpush.msra.mxu0 %v1012
        %1111 = vmatpush.msra.mxu0 %v1004
        %1112 = vmatpush.msra.mxu0 %v996
        %1113 = vmatpush.msra.mxu0 %v988
        %1114 = vmatpush.msra.mxu0 %v980
        %1115 = vmatpush.msra.mxu0 %v972
        %1116 = vmatmul.f32.gmra.mxu0 %v964
        %v1117 = vpop.f32.mrf.mxu0
        %v1118 = vadd.f32 0.0, %v1117
        %1119 = vmatmul.f32.gmra.mxu0 %v965
        %v1120 = vpop.f32.mrf.mxu0
        %v1121 = vadd.f32 0.0, %v1120
        %1122 = vmatmul.f32.gmra.mxu0 %v966
        %v1123 = vpop.f32.mrf.mxu0
        %v1124 = vadd.f32 0.0, %v1123
        %1125 = vmatmul.f32.gmra.mxu0 %v967
        %v1126 = vpop.f32.mrf.mxu0
        %v1127 = vadd.f32 0.0, %v1126
        %1128 = vmatmul.f32.gmra.mxu0 %v968
        %v1129 = vpop.f32.mrf.mxu0
        %v1130 = vadd.f32 0.0, %v1129
        %1131 = vmatmul.f32.gmra.mxu0 %v969
        %v1132 = vpop.f32.mrf.mxu0
        %v1133 = vadd.f32 0.0, %v1132
        %1134 = vmatmul.f32.gmra.mxu0 %v970
        %v1135 = vpop.f32.mrf.mxu0
        %v1136 = vadd.f32 0.0, %v1135
        %1137 = vmatmul.f32.gmra.mxu0 %v971
        %v1138 = vpop.f32.mrf.mxu0
        %v1139 = vadd.f32 0.0, %v1138
        %1140 = vdwg.mxu0
        %1141 = vmatpush.msra.mxu0 %v1093
        %1142 = vmatpush.msra.mxu0 %v1085
        %1143 = vmatpush.msra.mxu0 %v1077
        %1144 = vmatpush.msra.mxu0 %v1069
        %1145 = vmatpush.msra.mxu0 %v1061
        %1146 = vmatpush.msra.mxu0 %v1053
        %1147 = vmatpush.msra.mxu0 %v1045
        %1148 = vmatpush.msra.mxu0 %v1037
        %1149 = vmatpush.msra.mxu0 %v1029
        %1150 = vmatpush.msra.mxu0 %v1021
        %1151 = vmatpush.msra.mxu0 %v1013
        %1152 = vmatpush.msra.mxu0 %v1005
        %1153 = vmatpush.msra.mxu0 %v997
        %1154 = vmatpush.msra.mxu0 %v989
        %1155 = vmatpush.msra.mxu0 %v981
        %1156 = vmatpush.msra.mxu0 %v973
        %1157 = vmatmul.f32.gmra.mxu0 %v964
        %v1158 = vpop.f32.mrf.mxu0
        %v1159 = vadd.f32 0.0, %v1158
        %1160 = vmatmul.f32.gmra.mxu0 %v965
        %v1161 = vpop.f32.mrf.mxu0
        %v1162 = vadd.f32 0.0, %v1161
        %1163 = vmatmul.f32.gmra.mxu0 %v966
        %v1164 = vpop.f32.mrf.mxu0
        %v1165 = vadd.f32 0.0, %v1164
        %1166 = vmatmul.f32.gmra.mxu0 %v967
        %v1167 = vpop.f32.mrf.mxu0
        %v1168 = vadd.f32 0.0, %v1167
        %1169 = vmatmul.f32.gmra.mxu0 %v968
        %v1170 = vpop.f32.mrf.mxu0
        %v1171 = vadd.f32 0.0, %v1170
        %1172 = vmatmul.f32.gmra.mxu0 %v969
        %v1173 = vpop.f32.mrf.mxu0
        %v1174 = vadd.f32 0.0, %v1173
        %1175 = vmatmul.f32.gmra.mxu0 %v970
        %v1176 = vpop.f32.mrf.mxu0
        %v1177 = vadd.f32 0.0, %v1176
        %1178 = vmatmul.f32.gmra.mxu0 %v971
        %v1179 = vpop.f32.mrf.mxu0
        %v1180 = vadd.f32 0.0, %v1179
        %1181 = vdwg.mxu0
        %1182 = vmatpush.msra.mxu0 %v1094
        %1183 = vmatpush.msra.mxu0 %v1086
        %1184 = vmatpush.msra.mxu0 %v1078
        %1185 = vmatpush.msra.mxu0 %v1070
        %1186 = vmatpush.msra.mxu0 %v1062
        %1187 = vmatpush.msra.mxu0 %v1054
        %1188 = vmatpush.msra.mxu0 %v1046
        %1189 = vmatpush.msra.mxu0 %v1038
        %1190 = vmatpush.msra.mxu0 %v1030
        %1191 = vmatpush.msra.mxu0 %v1022
        %1192 = vmatpush.msra.mxu0 %v1014
        %1193 = vmatpush.msra.mxu0 %v1006
        %1194 = vmatpush.msra.mxu0 %v998
        %1195 = vmatpush.msra.mxu0 %v990
        %1196 = vmatpush.msra.mxu0 %v982
        %1197 = vmatpush.msra.mxu0 %v974
        %1198 = vmatmul.f32.gmra.mxu0 %v964
        %v1199 = vpop.f32.mrf.mxu0
        %v1200 = vadd.f32 0.0, %v1199
        %1201 = vmatmul.f32.gmra.mxu0 %v965
        %v1202 = vpop.f32.mrf.mxu0
        %v1203 = vadd.f32 0.0, %v1202
        %1204 = vmatmul.f32.gmra.mxu0 %v966
        %v1205 = vpop.f32.mrf.mxu0
        %v1206 = vadd.f32 0.0, %v1205
        %1207 = vmatmul.f32.gmra.mxu0 %v967
        %v1208 = vpop.f32.mrf.mxu0
        %v1209 = vadd.f32 0.0, %v1208
        %1210 = vmatmul.f32.gmra.mxu0 %v968
        %v1211 = vpop.f32.mrf.mxu0
        %v1212 = vadd.f32 0.0, %v1211
        %1213 = vmatmul.f32.gmra.mxu0 %v969
        %v1214 = vpop.f32.mrf.mxu0
        %v1215 = vadd.f32 0.0, %v1214
        %1216 = vmatmul.f32.gmra.mxu0 %v970
        %v1217 = vpop.f32.mrf.mxu0
        %v1218 = vadd.f32 0.0, %v1217
        %1219 = vmatmul.f32.gmra.mxu0 %v971
        %v1220 = vpop.f32.mrf.mxu0
        %v1221 = vadd.f32 0.0, %v1220
        %1222 = vdwg.mxu0
        %1223 = vmatpush.msra.mxu0 %v1095
        %1224 = vmatpush.msra.mxu0 %v1087
        %1225 = vmatpush.msra.mxu0 %v1079
        %1226 = vmatpush.msra.mxu0 %v1071
        %1227 = vmatpush.msra.mxu0 %v1063
        %1228 = vmatpush.msra.mxu0 %v1055
        %1229 = vmatpush.msra.mxu0 %v1047
        %1230 = vmatpush.msra.mxu0 %v1039
        %1231 = vmatpush.msra.mxu0 %v1031
        %1232 = vmatpush.msra.mxu0 %v1023
        %1233 = vmatpush.msra.mxu0 %v1015
        %1234 = vmatpush.msra.mxu0 %v1007
        %1235 = vmatpush.msra.mxu0 %v999
        %1236 = vmatpush.msra.mxu0 %v991
        %1237 = vmatpush.msra.mxu0 %v983
        %1238 = vmatpush.msra.mxu0 %v975
        %1239 = vmatmul.f32.gmra.mxu0 %v964
        %v1240 = vpop.f32.mrf.mxu0
        %v1241 = vadd.f32 0.0, %v1240
        %1242 = vmatmul.f32.gmra.mxu0 %v965
        %v1243 = vpop.f32.mrf.mxu0
        %v1244 = vadd.f32 0.0, %v1243
        %1245 = vmatmul.f32.gmra.mxu0 %v966
        %v1246 = vpop.f32.mrf.mxu0
        %v1247 = vadd.f32 0.0, %v1246
        %1248 = vmatmul.f32.gmra.mxu0 %v967
        %v1249 = vpop.f32.mrf.mxu0
        %v1250 = vadd.f32 0.0, %v1249
        %1251 = vmatmul.f32.gmra.mxu0 %v968
        %v1252 = vpop.f32.mrf.mxu0
        %v1253 = vadd.f32 0.0, %v1252
        %1254 = vmatmul.f32.gmra.mxu0 %v969
        %v1255 = vpop.f32.mrf.mxu0
        %v1256 = vadd.f32 0.0, %v1255
        %1257 = vmatmul.f32.gmra.mxu0 %v970
        %v1258 = vpop.f32.mrf.mxu0
        %v1259 = vadd.f32 0.0, %v1258
        %1260 = vmatmul.f32.gmra.mxu0 %v971
        %v1261 = vpop.f32.mrf.mxu0
        %v1262 = vadd.f32 0.0, %v1261
        %1263 = vdwg.mxu0
        %1264 = vmatpush.msra.mxu0 %v1096
        %1265 = vmatpush.msra.mxu0 %v1088
        %1266 = vmatpush.msra.mxu0 %v1080
        %1267 = vmatpush.msra.mxu0 %v1072
        %1268 = vmatpush.msra.mxu0 %v1064
        %1269 = vmatpush.msra.mxu0 %v1056
        %1270 = vmatpush.msra.mxu0 %v1048
        %1271 = vmatpush.msra.mxu0 %v1040
        %1272 = vmatpush.msra.mxu0 %v1032
        %1273 = vmatpush.msra.mxu0 %v1024
        %1274 = vmatpush.msra.mxu0 %v1016
        %1275 = vmatpush.msra.mxu0 %v1008
        %1276 = vmatpush.msra.mxu0 %v1000
        %1277 = vmatpush.msra.mxu0 %v992
        %1278 = vmatpush.msra.mxu0 %v984
        %1279 = vmatpush.msra.mxu0 %v976
        %1280 = vmatmul.f32.gmra.mxu0 %v964
        %v1281 = vpop.f32.mrf.mxu0
        %v1282 = vadd.f32 0.0, %v1281
        %1283 = vmatmul.f32.gmra.mxu0 %v965
        %v1284 = vpop.f32.mrf.mxu0
        %v1285 = vadd.f32 0.0, %v1284
        %1286 = vmatmul.f32.gmra.mxu0 %v966
        %v1287 = vpop.f32.mrf.mxu0
        %v1288 = vadd.f32 0.0, %v1287
        %1289 = vmatmul.f32.gmra.mxu0 %v967
        %v1290 = vpop.f32.mrf.mxu0
        %v1291 = vadd.f32 0.0, %v1290
        %1292 = vmatmul.f32.gmra.mxu0 %v968
        %v1293 = vpop.f32.mrf.mxu0
        %v1294 = vadd.f32 0.0, %v1293
        %1295 = vmatmul.f32.gmra.mxu0 %v969
        %v1296 = vpop.f32.mrf.mxu0
        %v1297 = vadd.f32 0.0, %v1296
        %1298 = vmatmul.f32.gmra.mxu0 %v970
        %v1299 = vpop.f32.mrf.mxu0
        %v1300 = vadd.f32 0.0, %v1299
        %1301 = vmatmul.f32.gmra.mxu0 %v971
        %v1302 = vpop.f32.mrf.mxu0
        %v1303 = vadd.f32 0.0, %v1302
        %1304 = vdwg.mxu0
        %1305 = vmatpush.msra.mxu0 %v1097
        %1306 = vmatpush.msra.mxu0 %v1089
        %1307 = vmatpush.msra.mxu0 %v1081
        %1308 = vmatpush.msra.mxu0 %v1073
        %1309 = vmatpush.msra.mxu0 %v1065
        %1310 = vmatpush.msra.mxu0 %v1057
        %1311 = vmatpush.msra.mxu0 %v1049
        %1312 = vmatpush.msra.mxu0 %v1041
        %1313 = vmatpush.msra.mxu0 %v1033
        %1314 = vmatpush.msra.mxu0 %v1025
        %1315 = vmatpush.msra.mxu0 %v1017
        %1316 = vmatpush.msra.mxu0 %v1009
        %1317 = vmatpush.msra.mxu0 %v1001
        %1318 = vmatpush.msra.mxu0 %v993
        %1319 = vmatpush.msra.mxu0 %v985
        %1320 = vmatpush.msra.mxu0 %v977
        %1321 = vmatmul.f32.gmra.mxu0 %v964
        %v1322 = vpop.f32.mrf.mxu0
        %v1323 = vadd.f32 0.0, %v1322
        %1324 = vmatmul.f32.gmra.mxu0 %v965
        %v1325 = vpop.f32.mrf.mxu0
        %v1326 = vadd.f32 0.0, %v1325
        %1327 = vmatmul.f32.gmra.mxu0 %v966
        %v1328 = vpop.f32.mrf.mxu0
        %v1329 = vadd.f32 0.0, %v1328
        %1330 = vmatmul.f32.gmra.mxu0 %v967
        %v1331 = vpop.f32.mrf.mxu0
        %v1332 = vadd.f32 0.0, %v1331
        %1333 = vmatmul.f32.gmra.mxu0 %v968
        %v1334 = vpop.f32.mrf.mxu0
        %v1335 = vadd.f32 0.0, %v1334
        %1336 = vmatmul.f32.gmra.mxu0 %v969
        %v1337 = vpop.f32.mrf.mxu0
        %v1338 = vadd.f32 0.0, %v1337
        %1339 = vmatmul.f32.gmra.mxu0 %v970
        %v1340 = vpop.f32.mrf.mxu0
        %v1341 = vadd.f32 0.0, %v1340
        %1342 = vmatmul.f32.gmra.mxu0 %v971
        %v1343 = vpop.f32.mrf.mxu0
        %v1344 = vadd.f32 0.0, %v1343
        %1345 = vdwg.mxu0
        %1346 = vmatpush.msra.mxu0 %v1098
        %1347 = vmatpush.msra.mxu0 %v1090
        %1348 = vmatpush.msra.mxu0 %v1082
        %1349 = vmatpush.msra.mxu0 %v1074
        %1350 = vmatpush.msra.mxu0 %v1066
        %1351 = vmatpush.msra.mxu0 %v1058
        %1352 = vmatpush.msra.mxu0 %v1050
        %1353 = vmatpush.msra.mxu0 %v1042
        %1354 = vmatpush.msra.mxu0 %v1034
        %1355 = vmatpush.msra.mxu0 %v1026
        %1356 = vmatpush.msra.mxu0 %v1018
        %1357 = vmatpush.msra.mxu0 %v1010
        %1358 = vmatpush.msra.mxu0 %v1002
        %1359 = vmatpush.msra.mxu0 %v994
        %1360 = vmatpush.msra.mxu0 %v986
        %1361 = vmatpush.msra.mxu0 %v978
        %1362 = vmatmul.f32.gmra.mxu0 %v964
        %v1363 = vpop.f32.mrf.mxu0
        %v1364 = vadd.f32 0.0, %v1363
        %1365 = vmatmul.f32.gmra.mxu0 %v965
        %v1366 = vpop.f32.mrf.mxu0
        %v1367 = vadd.f32 0.0, %v1366
        %1368 = vmatmul.f32.gmra.mxu0 %v966
        %v1369 = vpop.f32.mrf.mxu0
        %v1370 = vadd.f32 0.0, %v1369
        %1371 = vmatmul.f32.gmra.mxu0 %v967
        %v1372 = vpop.f32.mrf.mxu0
        %v1373 = vadd.f32 0.0, %v1372
        %1374 = vmatmul.f32.gmra.mxu0 %v968
        %v1375 = vpop.f32.mrf.mxu0
        %v1376 = vadd.f32 0.0, %v1375
        %1377 = vmatmul.f32.gmra.mxu0 %v969
        %v1378 = vpop.f32.mrf.mxu0
        %v1379 = vadd.f32 0.0, %v1378
        %1380 = vmatmul.f32.gmra.mxu0 %v970
        %v1381 = vpop.f32.mrf.mxu0
        %v1382 = vadd.f32 0.0, %v1381
        %1383 = vmatmul.f32.gmra.mxu0 %v971
        %v1384 = vpop.f32.mrf.mxu0
        %v1385 = vadd.f32 0.0, %v1384
        %1386 = vdwg.mxu0
        %1387 = vmatpush.msra.mxu0 %v1099
        %1388 = vmatpush.msra.mxu0 %v1091
        %1389 = vmatpush.msra.mxu0 %v1083
        %1390 = vmatpush.msra.mxu0 %v1075
        %1391 = vmatpush.msra.mxu0 %v1067
        %1392 = vmatpush.msra.mxu0 %v1059
        %1393 = vmatpush.msra.mxu0 %v1051
        %1394 = vmatpush.msra.mxu0 %v1043
        %1395 = vmatpush.msra.mxu0 %v1035
        %1396 = vmatpush.msra.mxu0 %v1027
        %1397 = vmatpush.msra.mxu0 %v1019
        %1398 = vmatpush.msra.mxu0 %v1011
        %1399 = vmatpush.msra.mxu0 %v1003
        %1400 = vmatpush.msra.mxu0 %v995
        %1401 = vmatpush.msra.mxu0 %v987
        %1402 = vmatpush.msra.mxu0 %v979
        %1403 = vmatmul.f32.gmra.mxu0 %v964
        %v1404 = vpop.f32.mrf.mxu0
        %v1405 = vadd.f32 0.0, %v1404
        %1406 = vmatmul.f32.gmra.mxu0 %v965
        %v1407 = vpop.f32.mrf.mxu0
        %v1408 = vadd.f32 0.0, %v1407
        %1409 = vmatmul.f32.gmra.mxu0 %v966
        %v1410 = vpop.f32.mrf.mxu0
        %v1411 = vadd.f32 0.0, %v1410
        %1412 = vmatmul.f32.gmra.mxu0 %v967
        %v1413 = vpop.f32.mrf.mxu0
        %v1414 = vadd.f32 0.0, %v1413
        %1415 = vmatmul.f32.gmra.mxu0 %v968
        %v1416 = vpop.f32.mrf.mxu0
        %v1417 = vadd.f32 0.0, %v1416
        %1418 = vmatmul.f32.gmra.mxu0 %v969
        %v1419 = vpop.f32.mrf.mxu0
        %v1420 = vadd.f32 0.0, %v1419
        %1421 = vmatmul.f32.gmra.mxu0 %v970
        %v1422 = vpop.f32.mrf.mxu0
        %v1423 = vadd.f32 0.0, %v1422
        %1424 = vmatmul.f32.gmra.mxu0 %v971
        %v1425 = vpop.f32.mrf.mxu0
        %v1426 = vadd.f32 0.0, %v1425
        %1427 = vdwg.mxu0
        %1428 = vmatpush.msra.mxu0 %v956
        %1429 = vmatpush.msra.mxu0 %v948
        %1430 = vmatpush.msra.mxu0 %v940
        %1431 = vmatpush.msra.mxu0 %v932
        %1432 = vmatpush.msra.mxu0 %v924
        %1433 = vmatpush.msra.mxu0 %v916
        %1434 = vmatpush.msra.mxu0 %v908
        %1435 = vmatpush.msra.mxu0 %v900
        %1436 = vmatpush.msra.mxu0 %v892
        %1437 = vmatpush.msra.mxu0 %v884
        %1438 = vmatpush.msra.mxu0 %v876
        %1439 = vmatpush.msra.mxu0 %v868
        %1440 = vmatpush.msra.mxu0 %v860
        %1441 = vmatpush.msra.mxu0 %v852
        %1442 = vmatpush.msra.mxu0 %v844
        %1443 = vmatpush.msra.mxu0 %v836
        %1444 = vmatmul.f32.gmra.mxu0 %v828
        %v1445 = vpop.f32.mrf.mxu0
        %v1446 = vadd.f32 %v1118, %v1445
        %1447 = vmatmul.f32.gmra.mxu0 %v829
        %v1448 = vpop.f32.mrf.mxu0
        %v1449 = vadd.f32 %v1121, %v1448
        %1450 = vmatmul.f32.gmra.mxu0 %v830
        %v1451 = vpop.f32.mrf.mxu0
        %v1452 = vadd.f32 %v1124, %v1451
        %1453 = vmatmul.f32.gmra.mxu0 %v831
        %v1454 = vpop.f32.mrf.mxu0
        %v1455 = vadd.f32 %v1127, %v1454
        %1456 = vmatmul.f32.gmra.mxu0 %v832
        %v1457 = vpop.f32.mrf.mxu0
        %v1458 = vadd.f32 %v1130, %v1457
        %1459 = vmatmul.f32.gmra.mxu0 %v833
        %v1460 = vpop.f32.mrf.mxu0
        %v1461 = vadd.f32 %v1133, %v1460
        %1462 = vmatmul.f32.gmra.mxu0 %v834
        %v1463 = vpop.f32.mrf.mxu0
        %v1464 = vadd.f32 %v1136, %v1463
        %1465 = vmatmul.f32.gmra.mxu0 %v835
        %v1466 = vpop.f32.mrf.mxu0
        %v1467 = vadd.f32 %v1139, %v1466
        %1468 = vdwg.mxu0
        %1469 = vmatpush.msra.mxu0 %v957
        %1470 = vmatpush.msra.mxu0 %v949
        %1471 = vmatpush.msra.mxu0 %v941
        %1472 = vmatpush.msra.mxu0 %v933
        %1473 = vmatpush.msra.mxu0 %v925
        %1474 = vmatpush.msra.mxu0 %v917
        %1475 = vmatpush.msra.mxu0 %v909
        %1476 = vmatpush.msra.mxu0 %v901
        %1477 = vmatpush.msra.mxu0 %v893
        %1478 = vmatpush.msra.mxu0 %v885
        %1479 = vmatpush.msra.mxu0 %v877
        %1480 = vmatpush.msra.mxu0 %v869
        %1481 = vmatpush.msra.mxu0 %v861
        %1482 = vmatpush.msra.mxu0 %v853
        %1483 = vmatpush.msra.mxu0 %v845
        %1484 = vmatpush.msra.mxu0 %v837
        %1485 = vmatmul.f32.gmra.mxu0 %v828
        %v1486 = vpop.f32.mrf.mxu0
        %v1487 = vadd.f32 %v1159, %v1486
        %1488 = vmatmul.f32.gmra.mxu0 %v829
        %v1489 = vpop.f32.mrf.mxu0
        %v1490 = vadd.f32 %v1162, %v1489
        %1491 = vmatmul.f32.gmra.mxu0 %v830
        %v1492 = vpop.f32.mrf.mxu0
        %v1493 = vadd.f32 %v1165, %v1492
        %1494 = vmatmul.f32.gmra.mxu0 %v831
        %v1495 = vpop.f32.mrf.mxu0
        %v1496 = vadd.f32 %v1168, %v1495
        %1497 = vmatmul.f32.gmra.mxu0 %v832
        %v1498 = vpop.f32.mrf.mxu0
        %v1499 = vadd.f32 %v1171, %v1498
        %1500 = vmatmul.f32.gmra.mxu0 %v833
        %v1501 = vpop.f32.mrf.mxu0
        %v1502 = vadd.f32 %v1174, %v1501
        %1503 = vmatmul.f32.gmra.mxu0 %v834
        %v1504 = vpop.f32.mrf.mxu0
        %v1505 = vadd.f32 %v1177, %v1504
        %1506 = vmatmul.f32.gmra.mxu0 %v835
        %v1507 = vpop.f32.mrf.mxu0
        %v1508 = vadd.f32 %v1180, %v1507
        %1509 = vdwg.mxu0
        %1510 = vmatpush.msra.mxu0 %v958
        %1511 = vmatpush.msra.mxu0 %v950
        %1512 = vmatpush.msra.mxu0 %v942
        %1513 = vmatpush.msra.mxu0 %v934
        %1514 = vmatpush.msra.mxu0 %v926
        %1515 = vmatpush.msra.mxu0 %v918
        %1516 = vmatpush.msra.mxu0 %v910
        %1517 = vmatpush.msra.mxu0 %v902
        %1518 = vmatpush.msra.mxu0 %v894
        %1519 = vmatpush.msra.mxu0 %v886
        %1520 = vmatpush.msra.mxu0 %v878
        %1521 = vmatpush.msra.mxu0 %v870
        %1522 = vmatpush.msra.mxu0 %v862
        %1523 = vmatpush.msra.mxu0 %v854
        %1524 = vmatpush.msra.mxu0 %v846
        %1525 = vmatpush.msra.mxu0 %v838
        %1526 = vmatmul.f32.gmra.mxu0 %v828
        %v1527 = vpop.f32.mrf.mxu0
        %v1528 = vadd.f32 %v1200, %v1527
        %1529 = vmatmul.f32.gmra.mxu0 %v829
        %v1530 = vpop.f32.mrf.mxu0
        %v1531 = vadd.f32 %v1203, %v1530
        %1532 = vmatmul.f32.gmra.mxu0 %v830
        %v1533 = vpop.f32.mrf.mxu0
        %v1534 = vadd.f32 %v1206, %v1533
        %1535 = vmatmul.f32.gmra.mxu0 %v831
        %v1536 = vpop.f32.mrf.mxu0
        %v1537 = vadd.f32 %v1209, %v1536
        %1538 = vmatmul.f32.gmra.mxu0 %v832
        %v1539 = vpop.f32.mrf.mxu0
        %v1540 = vadd.f32 %v1212, %v1539
        %1541 = vmatmul.f32.gmra.mxu0 %v833
        %v1542 = vpop.f32.mrf.mxu0
        %v1543 = vadd.f32 %v1215, %v1542
        %1544 = vmatmul.f32.gmra.mxu0 %v834
        %v1545 = vpop.f32.mrf.mxu0
        %v1546 = vadd.f32 %v1218, %v1545
        %1547 = vmatmul.f32.gmra.mxu0 %v835
        %v1548 = vpop.f32.mrf.mxu0
        %v1549 = vadd.f32 %v1221, %v1548
        %1550 = vdwg.mxu0
        %1551 = vmatpush.msra.mxu0 %v959
        %1552 = vmatpush.msra.mxu0 %v951
        %1553 = vmatpush.msra.mxu0 %v943
        %1554 = vmatpush.msra.mxu0 %v935
        %1555 = vmatpush.msra.mxu0 %v927
        %1556 = vmatpush.msra.mxu0 %v919
        %1557 = vmatpush.msra.mxu0 %v911
        %1558 = vmatpush.msra.mxu0 %v903
        %1559 = vmatpush.msra.mxu0 %v895
        %1560 = vmatpush.msra.mxu0 %v887
        %1561 = vmatpush.msra.mxu0 %v879
        %1562 = vmatpush.msra.mxu0 %v871
        %1563 = vmatpush.msra.mxu0 %v863
        %1564 = vmatpush.msra.mxu0 %v855
        %1565 = vmatpush.msra.mxu0 %v847
        %1566 = vmatpush.msra.mxu0 %v839
        %1567 = vmatmul.f32.gmra.mxu0 %v828
        %v1568 = vpop.f32.mrf.mxu0
        %v1569 = vadd.f32 %v1241, %v1568
        %1570 = vmatmul.f32.gmra.mxu0 %v829
        %v1571 = vpop.f32.mrf.mxu0
        %v1572 = vadd.f32 %v1244, %v1571
        %1573 = vmatmul.f32.gmra.mxu0 %v830
        %v1574 = vpop.f32.mrf.mxu0
        %v1575 = vadd.f32 %v1247, %v1574
        %1576 = vmatmul.f32.gmra.mxu0 %v831
        %v1577 = vpop.f32.mrf.mxu0
        %v1578 = vadd.f32 %v1250, %v1577
        %1579 = vmatmul.f32.gmra.mxu0 %v832
        %v1580 = vpop.f32.mrf.mxu0
        %v1581 = vadd.f32 %v1253, %v1580
        %1582 = vmatmul.f32.gmra.mxu0 %v833
        %v1583 = vpop.f32.mrf.mxu0
        %v1584 = vadd.f32 %v1256, %v1583
        %1585 = vmatmul.f32.gmra.mxu0 %v834
        %v1586 = vpop.f32.mrf.mxu0
        %v1587 = vadd.f32 %v1259, %v1586
        %1588 = vmatmul.f32.gmra.mxu0 %v835
        %v1589 = vpop.f32.mrf.mxu0
        %v1590 = vadd.f32 %v1262, %v1589
        %1591 = vdwg.mxu0
        %1592 = vmatpush.msra.mxu0 %v960
        %1593 = vmatpush.msra.mxu0 %v952
        %1594 = vmatpush.msra.mxu0 %v944
        %1595 = vmatpush.msra.mxu0 %v936
        %1596 = vmatpush.msra.mxu0 %v928
        %1597 = vmatpush.msra.mxu0 %v920
        %1598 = vmatpush.msra.mxu0 %v912
        %1599 = vmatpush.msra.mxu0 %v904
        %1600 = vmatpush.msra.mxu0 %v896
        %1601 = vmatpush.msra.mxu0 %v888
        %1602 = vmatpush.msra.mxu0 %v880
        %1603 = vmatpush.msra.mxu0 %v872
        %1604 = vmatpush.msra.mxu0 %v864
        %1605 = vmatpush.msra.mxu0 %v856
        %1606 = vmatpush.msra.mxu0 %v848
        %1607 = vmatpush.msra.mxu0 %v840
        %1608 = vmatmul.f32.gmra.mxu0 %v828
        %v1609 = vpop.f32.mrf.mxu0
        %v1610 = vadd.f32 %v1282, %v1609
        %1611 = vmatmul.f32.gmra.mxu0 %v829
        %v1612 = vpop.f32.mrf.mxu0
        %v1613 = vadd.f32 %v1285, %v1612
        %1614 = vmatmul.f32.gmra.mxu0 %v830
        %v1615 = vpop.f32.mrf.mxu0
        %v1616 = vadd.f32 %v1288, %v1615
        %1617 = vmatmul.f32.gmra.mxu0 %v831
        %v1618 = vpop.f32.mrf.mxu0
        %v1619 = vadd.f32 %v1291, %v1618
        %1620 = vmatmul.f32.gmra.mxu0 %v832
        %v1621 = vpop.f32.mrf.mxu0
        %v1622 = vadd.f32 %v1294, %v1621
        %1623 = vmatmul.f32.gmra.mxu0 %v833
        %v1624 = vpop.f32.mrf.mxu0
        %v1625 = vadd.f32 %v1297, %v1624
        %1626 = vmatmul.f32.gmra.mxu0 %v834
        %v1627 = vpop.f32.mrf.mxu0
        %v1628 = vadd.f32 %v1300, %v1627
        %1629 = vmatmul.f32.gmra.mxu0 %v835
        %v1630 = vpop.f32.mrf.mxu0
        %v1631 = vadd.f32 %v1303, %v1630
        %1632 = vdwg.mxu0
        %1633 = vmatpush.msra.mxu0 %v961
        %1634 = vmatpush.msra.mxu0 %v953
        %1635 = vmatpush.msra.mxu0 %v945
        %1636 = vmatpush.msra.mxu0 %v937
        %1637 = vmatpush.msra.mxu0 %v929
        %1638 = vmatpush.msra.mxu0 %v921
        %1639 = vmatpush.msra.mxu0 %v913
        %1640 = vmatpush.msra.mxu0 %v905
        %1641 = vmatpush.msra.mxu0 %v897
        %1642 = vmatpush.msra.mxu0 %v889
        %1643 = vmatpush.msra.mxu0 %v881
        %1644 = vmatpush.msra.mxu0 %v873
        %1645 = vmatpush.msra.mxu0 %v865
        %1646 = vmatpush.msra.mxu0 %v857
        %1647 = vmatpush.msra.mxu0 %v849
        %1648 = vmatpush.msra.mxu0 %v841
        %1649 = vmatmul.f32.gmra.mxu0 %v828
        %v1650 = vpop.f32.mrf.mxu0
        %v1651 = vadd.f32 %v1323, %v1650
        %1652 = vmatmul.f32.gmra.mxu0 %v829
        %v1653 = vpop.f32.mrf.mxu0
        %v1654 = vadd.f32 %v1326, %v1653
        %1655 = vmatmul.f32.gmra.mxu0 %v830
        %v1656 = vpop.f32.mrf.mxu0
        %v1657 = vadd.f32 %v1329, %v1656
        %1658 = vmatmul.f32.gmra.mxu0 %v831
        %v1659 = vpop.f32.mrf.mxu0
        %v1660 = vadd.f32 %v1332, %v1659
        %1661 = vmatmul.f32.gmra.mxu0 %v832
        %v1662 = vpop.f32.mrf.mxu0
        %v1663 = vadd.f32 %v1335, %v1662
        %1664 = vmatmul.f32.gmra.mxu0 %v833
        %v1665 = vpop.f32.mrf.mxu0
        %v1666 = vadd.f32 %v1338, %v1665
        %1667 = vmatmul.f32.gmra.mxu0 %v834
        %v1668 = vpop.f32.mrf.mxu0
        %v1669 = vadd.f32 %v1341, %v1668
        %1670 = vmatmul.f32.gmra.mxu0 %v835
        %v1671 = vpop.f32.mrf.mxu0
        %v1672 = vadd.f32 %v1344, %v1671
        %1673 = vdwg.mxu0
        %1674 = vmatpush.msra.mxu0 %v962
        %1675 = vmatpush.msra.mxu0 %v954
        %1676 = vmatpush.msra.mxu0 %v946
        %1677 = vmatpush.msra.mxu0 %v938
        %1678 = vmatpush.msra.mxu0 %v930
        %1679 = vmatpush.msra.mxu0 %v922
        %1680 = vmatpush.msra.mxu0 %v914
        %1681 = vmatpush.msra.mxu0 %v906
        %1682 = vmatpush.msra.mxu0 %v898
        %1683 = vmatpush.msra.mxu0 %v890
        %1684 = vmatpush.msra.mxu0 %v882
        %1685 = vmatpush.msra.mxu0 %v874
        %1686 = vmatpush.msra.mxu0 %v866
        %1687 = vmatpush.msra.mxu0 %v858
        %1688 = vmatpush.msra.mxu0 %v850
        %1689 = vmatpush.msra.mxu0 %v842
        %1690 = vmatmul.f32.gmra.mxu0 %v828
        %v1691 = vpop.f32.mrf.mxu0
        %v1692 = vadd.f32 %v1364, %v1691
        %1693 = vmatmul.f32.gmra.mxu0 %v829
        %v1694 = vpop.f32.mrf.mxu0
        %v1695 = vadd.f32 %v1367, %v1694
        %1696 = vmatmul.f32.gmra.mxu0 %v830
        %v1697 = vpop.f32.mrf.mxu0
        %v1698 = vadd.f32 %v1370, %v1697
        %1699 = vmatmul.f32.gmra.mxu0 %v831
        %v1700 = vpop.f32.mrf.mxu0
        %v1701 = vadd.f32 %v1373, %v1700
        %1702 = vmatmul.f32.gmra.mxu0 %v832
        %v1703 = vpop.f32.mrf.mxu0
        %v1704 = vadd.f32 %v1376, %v1703
        %1705 = vmatmul.f32.gmra.mxu0 %v833
        %v1706 = vpop.f32.mrf.mxu0
        %v1707 = vadd.f32 %v1379, %v1706
        %1708 = vmatmul.f32.gmra.mxu0 %v834
        %v1709 = vpop.f32.mrf.mxu0
        %v1710 = vadd.f32 %v1382, %v1709
        %1711 = vmatmul.f32.gmra.mxu0 %v835
        %v1712 = vpop.f32.mrf.mxu0
        %v1713 = vadd.f32 %v1385, %v1712
        %1714 = vdwg.mxu0
        %1715 = vmatpush.msra.mxu0 %v963
        %1716 = vmatpush.msra.mxu0 %v955
        %1717 = vmatpush.msra.mxu0 %v947
        %1718 = vmatpush.msra.mxu0 %v939
        %1719 = vmatpush.msra.mxu0 %v931
        %1720 = vmatpush.msra.mxu0 %v923
        %1721 = vmatpush.msra.mxu0 %v915
        %1722 = vmatpush.msra.mxu0 %v907
        %1723 = vmatpush.msra.mxu0 %v899
        %1724 = vmatpush.msra.mxu0 %v891
        %1725 = vmatpush.msra.mxu0 %v883
        %1726 = vmatpush.msra.mxu0 %v875
        %1727 = vmatpush.msra.mxu0 %v867
        %1728 = vmatpush.msra.mxu0 %v859
        %1729 = vmatpush.msra.mxu0 %v851
        %1730 = vmatpush.msra.mxu0 %v843
        %1731 = vmatmul.f32.gmra.mxu0 %v828
        %v1732 = vpop.f32.mrf.mxu0
        %v1733 = vadd.f32 %v1405, %v1732
        %1734 = vmatmul.f32.gmra.mxu0 %v829
        %v1735 = vpop.f32.mrf.mxu0
        %v1736 = vadd.f32 %v1408, %v1735
        %1737 = vmatmul.f32.gmra.mxu0 %v830
        %v1738 = vpop.f32.mrf.mxu0
        %v1739 = vadd.f32 %v1411, %v1738
        %1740 = vmatmul.f32.gmra.mxu0 %v831
        %v1741 = vpop.f32.mrf.mxu0
        %v1742 = vadd.f32 %v1414, %v1741
        %1743 = vmatmul.f32.gmra.mxu0 %v832
        %v1744 = vpop.f32.mrf.mxu0
        %v1745 = vadd.f32 %v1417, %v1744
        %1746 = vmatmul.f32.gmra.mxu0 %v833
        %v1747 = vpop.f32.mrf.mxu0
        %v1748 = vadd.f32 %v1420, %v1747
        %1749 = vmatmul.f32.gmra.mxu0 %v834
        %v1750 = vpop.f32.mrf.mxu0
        %v1751 = vadd.f32 %v1423, %v1750
        %1752 = vmatmul.f32.gmra.mxu0 %v835
        %v1753 = vpop.f32.mrf.mxu0
        %v1754 = vadd.f32 %v1426, %v1753
        %1755 = vdwg.mxu0
        %v1756 = vld [vmem:[%s273] sm:$0xff]
        %v1758 = vperm.slane %v1756, 0
        %v1759 = vperm.slane %v1756, 1
        %v1760 = vperm.slane %v1756, 2
        %v1761 = vperm.slane %v1756, 3
        %v1762 = vperm.slane %v1756, 4
        %v1763 = vperm.slane %v1756, 5
        %v1764 = vperm.slane %v1756, 6
        %v1765 = vperm.slane %v1756, 7
        %v1774 = vadd.f32 %v1446, %v1758
        %v1775 = vadd.f32 %v1487, %v1759
        %v1776 = vadd.f32 %v1528, %v1760
        %v1777 = vadd.f32 %v1569, %v1761
        %v1778 = vadd.f32 %v1610, %v1762
        %v1779 = vadd.f32 %v1651, %v1763
        %v1780 = vadd.f32 %v1692, %v1764
        %v1781 = vadd.f32 %v1733, %v1765
        %v1782 = vadd.f32 %v1449, %v1758
        %v1783 = vadd.f32 %v1490, %v1759
        %v1784 = vadd.f32 %v1531, %v1760
        %v1785 = vadd.f32 %v1572, %v1761
        %v1786 = vadd.f32 %v1613, %v1762
        %v1787 = vadd.f32 %v1654, %v1763
        %v1788 = vadd.f32 %v1695, %v1764
        %v1789 = vadd.f32 %v1736, %v1765
        %v1790 = vadd.f32 %v1452, %v1758
        %v1791 = vadd.f32 %v1493, %v1759
        %v1792 = vadd.f32 %v1534, %v1760
        %v1793 = vadd.f32 %v1575, %v1761
        %v1794 = vadd.f32 %v1616, %v1762
        %v1795 = vadd.f32 %v1657, %v1763
        %v1796 = vadd.f32 %v1698, %v1764
        %v1797 = vadd.f32 %v1739, %v1765
        %v1798 = vadd.f32 %v1455, %v1758
        %v1799 = vadd.f32 %v1496, %v1759
        %v1800 = vadd.f32 %v1537, %v1760
        %v1801 = vadd.f32 %v1578, %v1761
        %v1802 = vadd.f32 %v1619, %v1762
        %v1803 = vadd.f32 %v1660, %v1763
        %v1804 = vadd.f32 %v1701, %v1764
        %v1805 = vadd.f32 %v1742, %v1765
        %v1806 = vadd.f32 %v1458, %v1758
        %v1807 = vadd.f32 %v1499, %v1759
        %v1808 = vadd.f32 %v1540, %v1760
        %v1809 = vadd.f32 %v1581, %v1761
        %v1810 = vadd.f32 %v1622, %v1762
        %v1811 = vadd.f32 %v1663, %v1763
        %v1812 = vadd.f32 %v1704, %v1764
        %v1813 = vadd.f32 %v1745, %v1765
        %v1814 = vadd.f32 %v1461, %v1758
        %v1815 = vadd.f32 %v1502, %v1759
        %v1816 = vadd.f32 %v1543, %v1760
        %v1817 = vadd.f32 %v1584, %v1761
        %v1818 = vadd.f32 %v1625, %v1762
        %v1819 = vadd.f32 %v1666, %v1763
        %v1820 = vadd.f32 %v1707, %v1764
        %v1821 = vadd.f32 %v1748, %v1765
        %v1822 = vadd.f32 %v1464, %v1758
        %v1823 = vadd.f32 %v1505, %v1759
        %v1824 = vadd.f32 %v1546, %v1760
        %v1825 = vadd.f32 %v1587, %v1761
        %v1826 = vadd.f32 %v1628, %v1762
        %v1827 = vadd.f32 %v1669, %v1763
        %v1828 = vadd.f32 %v1710, %v1764
        %v1829 = vadd.f32 %v1751, %v1765
        %v1830 = vadd.f32 %v1467, %v1758
        %v1831 = vadd.f32 %v1508, %v1759
        %v1832 = vadd.f32 %v1549, %v1760
        %v1833 = vadd.f32 %v1590, %v1761
        %v1834 = vadd.f32 %v1631, %v1762
        %v1835 = vadd.f32 %v1672, %v1763
        %v1836 = vadd.f32 %v1713, %v1764
        %v1837 = vadd.f32 %v1754, %v1765
        %1838 = vst [vmem:[#allocation2] sm:$0xff] %v1774
        %1839 = vst [vmem:[#allocation2 + $0x8] sm:$0xff] %v1775
        %1840 = vst [vmem:[#allocation2 + $0x10] sm:$0xff] %v1776
        %1841 = vst [vmem:[#allocation2 + $0x18] sm:$0xff] %v1777
        %1842 = vst [vmem:[#allocation2 + $0x20] sm:$0xff] %v1778
        %1843 = vst [vmem:[#allocation2 + $0x28] sm:$0xff] %v1779
        %1844 = vst [vmem:[#allocation2 + $0x30] sm:$0xff] %v1780
        %1845 = vst [vmem:[#allocation2 + $0x38] sm:$0xff] %v1781
        %1846 = vst [vmem:[#allocation2 + $0x40] sm:$0xff] %v1782
        %1847 = vst [vmem:[#allocation2 + $0x48] sm:$0xff] %v1783
        %1848 = vst [vmem:[#allocation2 + $0x50] sm:$0xff] %v1784
        %1849 = vst [vmem:[#allocation2 + $0x58] sm:$0xff] %v1785
        %1850 = vst [vmem:[#allocation2 + $0x60] sm:$0xff] %v1786
        %1851 = vst [vmem:[#allocation2 + $0x68] sm:$0xff] %v1787
        %1852 = vst [vmem:[#allocation2 + $0x70] sm:$0xff] %v1788
        %1853 = vst [vmem:[#allocation2 + $0x78] sm:$0xff] %v1789
        %1854 = vst [vmem:[#allocation2 + $0x80] sm:$0xff] %v1790
        %1855 = vst [vmem:[#allocation2 + $0x88] sm:$0xff] %v1791
        %1856 = vst [vmem:[#allocation2 + $0x90] sm:$0xff] %v1792
        %1857 = vst [vmem:[#allocation2 + $0x98] sm:$0xff] %v1793
        %1858 = vst [vmem:[#allocation2 + $0xa0] sm:$0xff] %v1794
        %1859 = vst [vmem:[#allocation2 + $0xa8] sm:$0xff] %v1795
        %1860 = vst [vmem:[#allocation2 + $0xb0] sm:$0xff] %v1796
        %1861 = vst [vmem:[#allocation2 + $0xb8] sm:$0xff] %v1797
        %1862 = vst [vmem:[#allocation2 + $0xc0] sm:$0xff] %v1798
        %1863 = vst [vmem:[#allocation2 + $0xc8] sm:$0xff] %v1799
        %1864 = vst [vmem:[#allocation2 + $0xd0] sm:$0xff] %v1800
        %1865 = vst [vmem:[#allocation2 + $0xd8] sm:$0xff] %v1801
        %1866 = vst [vmem:[#allocation2 + $0xe0] sm:$0xff] %v1802
        %1867 = vst [vmem:[#allocation2 + $0xe8] sm:$0xff] %v1803
        %1868 = vst [vmem:[#allocation2 + $0xf0] sm:$0xff] %v1804
        %1869 = vst [vmem:[#allocation2 + $0xf8] sm:$0xff] %v1805
        %1870 = vst [vmem:[#allocation2 + $0x100] sm:$0xff] %v1806
        %1871 = vst [vmem:[#allocation2 + $0x108] sm:$0xff] %v1807
        %1872 = vst [vmem:[#allocation2 + $0x110] sm:$0xff] %v1808
        %1873 = vst [vmem:[#allocation2 + $0x118] sm:$0xff] %v1809
        %1874 = vst [vmem:[#allocation2 + $0x120] sm:$0xff] %v1810
        %1875 = vst [vmem:[#allocation2 + $0x128] sm:$0xff] %v1811
        %1876 = vst [vmem:[#allocation2 + $0x130] sm:$0xff] %v1812
        %1877 = vst [vmem:[#allocation2 + $0x138] sm:$0xff] %v1813
        %1878 = vst [vmem:[#allocation2 + $0x140] sm:$0xff] %v1814
        %1879 = vst [vmem:[#allocation2 + $0x148] sm:$0xff] %v1815
        %1880 = vst [vmem:[#allocation2 + $0x150] sm:$0xff] %v1816
        %1881 = vst [vmem:[#allocation2 + $0x158] sm:$0xff] %v1817
        %1882 = vst [vmem:[#allocation2 + $0x160] sm:$0xff] %v1818
        %1883 = vst [vmem:[#allocation2 + $0x168] sm:$0xff] %v1819
        %1884 = vst [vmem:[#allocation2 + $0x170] sm:$0xff] %v1820
        %1885 = vst [vmem:[#allocation2 + $0x178] sm:$0xff] %v1821
        %1886 = vst [vmem:[#allocation2 + $0x180] sm:$0xff] %v1822
        %1887 = vst [vmem:[#allocation2 + $0x188] sm:$0xff] %v1823
        %1888 = vst [vmem:[#allocation2 + $0x190] sm:$0xff] %v1824
        %1889 = vst [vmem:[#allocation2 + $0x198] sm:$0xff] %v1825
        %1890 = vst [vmem:[#allocation2 + $0x1a0] sm:$0xff] %v1826
        %1891 = vst [vmem:[#allocation2 + $0x1a8] sm:$0xff] %v1827
        %1892 = vst [vmem:[#allocation2 + $0x1b0] sm:$0xff] %v1828
        %1893 = vst [vmem:[#allocation2 + $0x1b8] sm:$0xff] %v1829
        %1894 = vst [vmem:[#allocation2 + $0x1c0] sm:$0xff] %v1830
        %1895 = vst [vmem:[#allocation2 + $0x1c8] sm:$0xff] %v1831
        %1896 = vst [vmem:[#allocation2 + $0x1d0] sm:$0xff] %v1832
        %1897 = vst [vmem:[#allocation2 + $0x1d8] sm:$0xff] %v1833
        %1898 = vst [vmem:[#allocation2 + $0x1e0] sm:$0xff] %v1834
        %1899 = vst [vmem:[#allocation2 + $0x1e8] sm:$0xff] %v1835
        %1900 = vst [vmem:[#allocation2 + $0x1f0] sm:$0xff] %v1836
        %1901 = vst [vmem:[#allocation2 + $0x1f8] sm:$0xff] %v1837
      $region52: #{lstm_classifier_forward.1} parent=43 // pred_fallthru
        _
      %v1902 = vld [vmem:[%s269] sm:$0xff]
      %v1903 = vld [vmem:[%s269 + $0x8] sm:$0xff]
      %v1904 = vld [vmem:[%s269 + $0x10] sm:$0xff]
      %v1905 = vld [vmem:[%s269 + $0x18] sm:$0xff]
      %v1906 = vld [vmem:[%s269 + $0x20] sm:$0xff]
      %v1907 = vld [vmem:[%s269 + $0x28] sm:$0xff]
      %v1908 = vld [vmem:[%s269 + $0x30] sm:$0xff]
      %v1909 = vld [vmem:[%s269 + $0x38] sm:$0xff]
      %v1910 = vld [vmem:[%s269 + $0x40] sm:$0xff]
      %v1911 = vld [vmem:[%s269 + $0x48] sm:$0xff]
      %v1912 = vld [vmem:[%s269 + $0x50] sm:$0xff]
      %v1913 = vld [vmem:[%s269 + $0x58] sm:$0xff]
      %v1914 = vld [vmem:[%s269 + $0x60] sm:$0xff]
      %v1915 = vld [vmem:[%s269 + $0x68] sm:$0xff]
      %v1916 = vld [vmem:[%s269 + $0x70] sm:$0xff]
      %v1917 = vld [vmem:[%s269 + $0x78] sm:$0xff]
      %v1918 = vld [vmem:[%s269 + $0x80] sm:$0xff]
      %v1919 = vld [vmem:[%s269 + $0x88] sm:$0xff]
      %v1920 = vld [vmem:[%s269 + $0x90] sm:$0xff]
      %v1921 = vld [vmem:[%s269 + $0x98] sm:$0xff]
      %v1922 = vld [vmem:[%s269 + $0xa0] sm:$0xff]
      %v1923 = vld [vmem:[%s269 + $0xa8] sm:$0xff]
      %v1924 = vld [vmem:[%s269 + $0xb0] sm:$0xff]
      %v1925 = vld [vmem:[%s269 + $0xb8] sm:$0xff]
      %v1926 = vld [vmem:[%s269 + $0xc0] sm:$0xff]
      %v1927 = vld [vmem:[%s269 + $0xc8] sm:$0xff]
      %v1928 = vld [vmem:[%s269 + $0xd0] sm:$0xff]
      %v1929 = vld [vmem:[%s269 + $0xd8] sm:$0xff]
      %v1930 = vld [vmem:[%s269 + $0xe0] sm:$0xff]
      %v1931 = vld [vmem:[%s269 + $0xe8] sm:$0xff]
      %v1932 = vld [vmem:[%s269 + $0xf0] sm:$0xff]
      %v1933 = vld [vmem:[%s269 + $0xf8] sm:$0xff]
      %v1934 = vld [vmem:[%s269 + $0x100] sm:$0xff]
      %v1935 = vld [vmem:[%s269 + $0x108] sm:$0xff]
      %v1936 = vld [vmem:[%s269 + $0x110] sm:$0xff]
      %v1937 = vld [vmem:[%s269 + $0x118] sm:$0xff]
      %v1938 = vld [vmem:[%s269 + $0x120] sm:$0xff]
      %v1939 = vld [vmem:[%s269 + $0x128] sm:$0xff]
      %v1940 = vld [vmem:[%s269 + $0x130] sm:$0xff]
      %v1941 = vld [vmem:[%s269 + $0x138] sm:$0xff]
      %v1942 = vld [vmem:[%s269 + $0x140] sm:$0xff]
      %v1943 = vld [vmem:[%s269 + $0x148] sm:$0xff]
      %v1944 = vld [vmem:[%s269 + $0x150] sm:$0xff]
      %v1945 = vld [vmem:[%s269 + $0x158] sm:$0xff]
      %v1946 = vld [vmem:[%s269 + $0x160] sm:$0xff]
      %v1947 = vld [vmem:[%s269 + $0x168] sm:$0xff]
      %v1948 = vld [vmem:[%s269 + $0x170] sm:$0xff]
      %v1949 = vld [vmem:[%s269 + $0x178] sm:$0xff]
      %v1950 = vld [vmem:[%s269 + $0x180] sm:$0xff]
      %v1951 = vld [vmem:[%s269 + $0x188] sm:$0xff]
      %v1952 = vld [vmem:[%s269 + $0x190] sm:$0xff]
      %v1953 = vld [vmem:[%s269 + $0x198] sm:$0xff]
      %v1954 = vld [vmem:[%s269 + $0x1a0] sm:$0xff]
      %v1955 = vld [vmem:[%s269 + $0x1a8] sm:$0xff]
      %v1956 = vld [vmem:[%s269 + $0x1b0] sm:$0xff]
      %v1957 = vld [vmem:[%s269 + $0x1b8] sm:$0xff]
      %v1958 = vld [vmem:[%s269 + $0x1c0] sm:$0xff]
      %v1959 = vld [vmem:[%s269 + $0x1c8] sm:$0xff]
      %v1960 = vld [vmem:[%s269 + $0x1d0] sm:$0xff]
      %v1961 = vld [vmem:[%s269 + $0x1d8] sm:$0xff]
      %v1962 = vld [vmem:[%s269 + $0x1e0] sm:$0xff]
      %v1963 = vld [vmem:[%s269 + $0x1e8] sm:$0xff]
      %v1964 = vld [vmem:[%s269 + $0x1f0] sm:$0xff]
      %v1965 = vld [vmem:[%s269 + $0x1f8] sm:$0xff]
      %v1966 = vld [vmem:[%s269 + $0x200] sm:$0xff]
      %v1967 = vld [vmem:[%s269 + $0x208] sm:$0xff]
      %v1968 = vld [vmem:[%s269 + $0x210] sm:$0xff]
      %v1969 = vld [vmem:[%s269 + $0x218] sm:$0xff]
      %v1970 = vld [vmem:[%s269 + $0x220] sm:$0xff]
      %v1971 = vld [vmem:[%s269 + $0x228] sm:$0xff]
      %v1972 = vld [vmem:[%s269 + $0x230] sm:$0xff]
      %v1973 = vld [vmem:[%s269 + $0x238] sm:$0xff]
      %v1974 = vld [vmem:[%s269 + $0x240] sm:$0xff]
      %v1975 = vld [vmem:[%s269 + $0x248] sm:$0xff]
      %v1976 = vld [vmem:[%s269 + $0x250] sm:$0xff]
      %v1977 = vld [vmem:[%s269 + $0x258] sm:$0xff]
      %v1978 = vld [vmem:[%s269 + $0x260] sm:$0xff]
      %v1979 = vld [vmem:[%s269 + $0x268] sm:$0xff]
      %v1980 = vld [vmem:[%s269 + $0x270] sm:$0xff]
      %v1981 = vld [vmem:[%s269 + $0x278] sm:$0xff]
      %v1982 = vld [vmem:[%s269 + $0x280] sm:$0xff]
      %v1983 = vld [vmem:[%s269 + $0x288] sm:$0xff]
      %v1984 = vld [vmem:[%s269 + $0x290] sm:$0xff]
      %v1985 = vld [vmem:[%s269 + $0x298] sm:$0xff]
      %v1986 = vld [vmem:[%s269 + $0x2a0] sm:$0xff]
      %v1987 = vld [vmem:[%s269 + $0x2a8] sm:$0xff]
      %v1988 = vld [vmem:[%s269 + $0x2b0] sm:$0xff]
      %v1989 = vld [vmem:[%s269 + $0x2b8] sm:$0xff]
      %v1990 = vld [vmem:[%s269 + $0x2c0] sm:$0xff]
      %v1991 = vld [vmem:[%s269 + $0x2c8] sm:$0xff]
      %v1992 = vld [vmem:[%s269 + $0x2d0] sm:$0xff]
      %v1993 = vld [vmem:[%s269 + $0x2d8] sm:$0xff]
      %v1994 = vld [vmem:[%s269 + $0x2e0] sm:$0xff]
      %v1995 = vld [vmem:[%s269 + $0x2e8] sm:$0xff]
      %v1996 = vld [vmem:[%s269 + $0x2f0] sm:$0xff]
      %v1997 = vld [vmem:[%s269 + $0x2f8] sm:$0xff]
      %v1998 = vld [vmem:[%s269 + $0x300] sm:$0xff]
      %v1999 = vld [vmem:[%s269 + $0x308] sm:$0xff]
      %v2000 = vld [vmem:[%s269 + $0x310] sm:$0xff]
      %v2001 = vld [vmem:[%s269 + $0x318] sm:$0xff]
      %v2002 = vld [vmem:[%s269 + $0x320] sm:$0xff]
      %v2003 = vld [vmem:[%s269 + $0x328] sm:$0xff]
      %v2004 = vld [vmem:[%s269 + $0x330] sm:$0xff]
      %v2005 = vld [vmem:[%s269 + $0x338] sm:$0xff]
      %v2006 = vld [vmem:[%s269 + $0x340] sm:$0xff]
      %v2007 = vld [vmem:[%s269 + $0x348] sm:$0xff]
      %v2008 = vld [vmem:[%s269 + $0x350] sm:$0xff]
      %v2009 = vld [vmem:[%s269 + $0x358] sm:$0xff]
      %v2010 = vld [vmem:[%s269 + $0x360] sm:$0xff]
      %v2011 = vld [vmem:[%s269 + $0x368] sm:$0xff]
      %v2012 = vld [vmem:[%s269 + $0x370] sm:$0xff]
      %v2013 = vld [vmem:[%s269 + $0x378] sm:$0xff]
      %v2014 = vld [vmem:[%s269 + $0x380] sm:$0xff]
      %v2015 = vld [vmem:[%s269 + $0x388] sm:$0xff]
      %v2016 = vld [vmem:[%s269 + $0x390] sm:$0xff]
      %v2017 = vld [vmem:[%s269 + $0x398] sm:$0xff]
      %v2018 = vld [vmem:[%s269 + $0x3a0] sm:$0xff]
      %v2019 = vld [vmem:[%s269 + $0x3a8] sm:$0xff]
      %v2020 = vld [vmem:[%s269 + $0x3b0] sm:$0xff]
      %v2021 = vld [vmem:[%s269 + $0x3b8] sm:$0xff]
      %v2022 = vld [vmem:[%s269 + $0x3c0] sm:$0xff]
      %v2023 = vld [vmem:[%s269 + $0x3c8] sm:$0xff]
      %v2024 = vld [vmem:[%s269 + $0x3d0] sm:$0xff]
      %v2025 = vld [vmem:[%s269 + $0x3d8] sm:$0xff]
      %v2026 = vld [vmem:[%s269 + $0x3e0] sm:$0xff]
      %v2027 = vld [vmem:[%s269 + $0x3e8] sm:$0xff]
      %v2028 = vld [vmem:[%s269 + $0x3f0] sm:$0xff]
      %v2029 = vld [vmem:[%s269 + $0x3f8] sm:$0xff]
      %v2030 = vld [vmem:[%s269 + $0x400] sm:$0xff]
      %v2031 = vld [vmem:[%s269 + $0x408] sm:$0xff]
      %v2032 = vld [vmem:[%s269 + $0x410] sm:$0xff]
      %v2033 = vld [vmem:[%s269 + $0x418] sm:$0xff]
      %v2034 = vld [vmem:[%s269 + $0x420] sm:$0xff]
      %v2035 = vld [vmem:[%s269 + $0x428] sm:$0xff]
      %v2036 = vld [vmem:[%s269 + $0x430] sm:$0xff]
      %v2037 = vld [vmem:[%s269 + $0x438] sm:$0xff]
      %v2038 = vld [vmem:[%s269 + $0x440] sm:$0xff]
      %v2039 = vld [vmem:[%s269 + $0x448] sm:$0xff]
      %v2040 = vld [vmem:[%s269 + $0x450] sm:$0xff]
      %v2041 = vld [vmem:[%s269 + $0x458] sm:$0xff]
      %v2042 = vld [vmem:[%s269 + $0x460] sm:$0xff]
      %v2043 = vld [vmem:[%s269 + $0x468] sm:$0xff]
      %v2044 = vld [vmem:[%s269 + $0x470] sm:$0xff]
      %v2045 = vld [vmem:[%s269 + $0x478] sm:$0xff]
      %v2046 = vld [vmem:[%s269 + $0x480] sm:$0xff]
      %v2047 = vld [vmem:[%s269 + $0x488] sm:$0xff]
      %v2048 = vld [vmem:[%s269 + $0x490] sm:$0xff]
      %v2049 = vld [vmem:[%s269 + $0x498] sm:$0xff]
      %v2050 = vld [vmem:[%s269 + $0x4a0] sm:$0xff]
      %v2051 = vld [vmem:[%s269 + $0x4a8] sm:$0xff]
      %v2052 = vld [vmem:[%s269 + $0x4b0] sm:$0xff]
      %v2053 = vld [vmem:[%s269 + $0x4b8] sm:$0xff]
      %v2054 = vld [vmem:[%s269 + $0x4c0] sm:$0xff]
      %v2055 = vld [vmem:[%s269 + $0x4c8] sm:$0xff]
      %v2056 = vld [vmem:[%s269 + $0x4d0] sm:$0xff]
      %v2057 = vld [vmem:[%s269 + $0x4d8] sm:$0xff]
      %v2058 = vld [vmem:[%s269 + $0x4e0] sm:$0xff]
      %v2059 = vld [vmem:[%s269 + $0x4e8] sm:$0xff]
      %v2060 = vld [vmem:[%s269 + $0x4f0] sm:$0xff]
      %v2061 = vld [vmem:[%s269 + $0x4f8] sm:$0xff]
      %v2062 = vld [vmem:[%s269 + $0x500] sm:$0xff]
      %v2063 = vld [vmem:[%s269 + $0x508] sm:$0xff]
      %v2064 = vld [vmem:[%s269 + $0x510] sm:$0xff]
      %v2065 = vld [vmem:[%s269 + $0x518] sm:$0xff]
      %v2066 = vld [vmem:[%s269 + $0x520] sm:$0xff]
      %v2067 = vld [vmem:[%s269 + $0x528] sm:$0xff]
      %v2068 = vld [vmem:[%s269 + $0x530] sm:$0xff]
      %v2069 = vld [vmem:[%s269 + $0x538] sm:$0xff]
      %v2070 = vld [vmem:[%s269 + $0x540] sm:$0xff]
      %v2071 = vld [vmem:[%s269 + $0x548] sm:$0xff]
      %v2072 = vld [vmem:[%s269 + $0x550] sm:$0xff]
      %v2073 = vld [vmem:[%s269 + $0x558] sm:$0xff]
      %v2074 = vld [vmem:[%s269 + $0x560] sm:$0xff]
      %v2075 = vld [vmem:[%s269 + $0x568] sm:$0xff]
      %v2076 = vld [vmem:[%s269 + $0x570] sm:$0xff]
      %v2077 = vld [vmem:[%s269 + $0x578] sm:$0xff]
      %v2078 = vld [vmem:[%s269 + $0x580] sm:$0xff]
      %v2079 = vld [vmem:[%s269 + $0x588] sm:$0xff]
      %v2080 = vld [vmem:[%s269 + $0x590] sm:$0xff]
      %v2081 = vld [vmem:[%s269 + $0x598] sm:$0xff]
      %v2082 = vld [vmem:[%s269 + $0x5a0] sm:$0xff]
      %v2083 = vld [vmem:[%s269 + $0x5a8] sm:$0xff]
      %v2084 = vld [vmem:[%s269 + $0x5b0] sm:$0xff]
      %v2085 = vld [vmem:[%s269 + $0x5b8] sm:$0xff]
      %v2086 = vld [vmem:[%s269 + $0x5c0] sm:$0xff]
      %v2087 = vld [vmem:[%s269 + $0x5c8] sm:$0xff]
      %v2088 = vld [vmem:[%s269 + $0x5d0] sm:$0xff]
      %v2089 = vld [vmem:[%s269 + $0x5d8] sm:$0xff]
      %v2090 = vld [vmem:[%s269 + $0x5e0] sm:$0xff]
      %v2091 = vld [vmem:[%s269 + $0x5e8] sm:$0xff]
      %v2092 = vld [vmem:[%s269 + $0x5f0] sm:$0xff]
      %v2093 = vld [vmem:[%s269 + $0x5f8] sm:$0xff]
      %v2094 = vld [vmem:[%s269 + $0x600] sm:$0xff]
      %v2095 = vld [vmem:[%s269 + $0x608] sm:$0xff]
      %v2096 = vld [vmem:[%s269 + $0x610] sm:$0xff]
      %v2097 = vld [vmem:[%s269 + $0x618] sm:$0xff]
      %v2098 = vld [vmem:[%s269 + $0x620] sm:$0xff]
      %v2099 = vld [vmem:[%s269 + $0x628] sm:$0xff]
      %v2100 = vld [vmem:[%s269 + $0x630] sm:$0xff]
      %v2101 = vld [vmem:[%s269 + $0x638] sm:$0xff]
      %v2102 = vld [vmem:[%s269 + $0x640] sm:$0xff]
      %v2103 = vld [vmem:[%s269 + $0x648] sm:$0xff]
      %v2104 = vld [vmem:[%s269 + $0x650] sm:$0xff]
      %v2105 = vld [vmem:[%s269 + $0x658] sm:$0xff]
      %v2106 = vld [vmem:[%s269 + $0x660] sm:$0xff]
      %v2107 = vld [vmem:[%s269 + $0x668] sm:$0xff]
      %v2108 = vld [vmem:[%s269 + $0x670] sm:$0xff]
      %v2109 = vld [vmem:[%s269 + $0x678] sm:$0xff]
      %v2110 = vld [vmem:[%s269 + $0x680] sm:$0xff]
      %v2111 = vld [vmem:[%s269 + $0x688] sm:$0xff]
      %v2112 = vld [vmem:[%s269 + $0x690] sm:$0xff]
      %v2113 = vld [vmem:[%s269 + $0x698] sm:$0xff]
      %v2114 = vld [vmem:[%s269 + $0x6a0] sm:$0xff]
      %v2115 = vld [vmem:[%s269 + $0x6a8] sm:$0xff]
      %v2116 = vld [vmem:[%s269 + $0x6b0] sm:$0xff]
      %v2117 = vld [vmem:[%s269 + $0x6b8] sm:$0xff]
      %v2118 = vld [vmem:[%s269 + $0x6c0] sm:$0xff]
      %v2119 = vld [vmem:[%s269 + $0x6c8] sm:$0xff]
      %v2120 = vld [vmem:[%s269 + $0x6d0] sm:$0xff]
      %v2121 = vld [vmem:[%s269 + $0x6d8] sm:$0xff]
      %v2122 = vld [vmem:[%s269 + $0x6e0] sm:$0xff]
      %v2123 = vld [vmem:[%s269 + $0x6e8] sm:$0xff]
      %v2124 = vld [vmem:[%s269 + $0x6f0] sm:$0xff]
      %v2125 = vld [vmem:[%s269 + $0x6f8] sm:$0xff]
      %v2126 = vld [vmem:[%s269 + $0x700] sm:$0xff]
      %v2127 = vld [vmem:[%s269 + $0x708] sm:$0xff]
      %v2128 = vld [vmem:[%s269 + $0x710] sm:$0xff]
      %v2129 = vld [vmem:[%s269 + $0x718] sm:$0xff]
      %v2130 = vld [vmem:[%s269 + $0x720] sm:$0xff]
      %v2131 = vld [vmem:[%s269 + $0x728] sm:$0xff]
      %v2132 = vld [vmem:[%s269 + $0x730] sm:$0xff]
      %v2133 = vld [vmem:[%s269 + $0x738] sm:$0xff]
      %v2134 = vld [vmem:[%s269 + $0x740] sm:$0xff]
      %v2135 = vld [vmem:[%s269 + $0x748] sm:$0xff]
      %v2136 = vld [vmem:[%s269 + $0x750] sm:$0xff]
      %v2137 = vld [vmem:[%s269 + $0x758] sm:$0xff]
      %v2138 = vld [vmem:[%s269 + $0x760] sm:$0xff]
      %v2139 = vld [vmem:[%s269 + $0x768] sm:$0xff]
      %v2140 = vld [vmem:[%s269 + $0x770] sm:$0xff]
      %v2141 = vld [vmem:[%s269 + $0x778] sm:$0xff]
      %v2142 = vld [vmem:[%s269 + $0x780] sm:$0xff]
      %v2143 = vld [vmem:[%s269 + $0x788] sm:$0xff]
      %v2144 = vld [vmem:[%s269 + $0x790] sm:$0xff]
      %v2145 = vld [vmem:[%s269 + $0x798] sm:$0xff]
      %v2146 = vld [vmem:[%s269 + $0x7a0] sm:$0xff]
      %v2147 = vld [vmem:[%s269 + $0x7a8] sm:$0xff]
      %v2148 = vld [vmem:[%s269 + $0x7b0] sm:$0xff]
      %v2149 = vld [vmem:[%s269 + $0x7b8] sm:$0xff]
      %v2150 = vld [vmem:[%s269 + $0x7c0] sm:$0xff]
      %v2151 = vld [vmem:[%s269 + $0x7c8] sm:$0xff]
      %v2152 = vld [vmem:[%s269 + $0x7d0] sm:$0xff]
      %v2153 = vld [vmem:[%s269 + $0x7d8] sm:$0xff]
      %v2154 = vld [vmem:[%s269 + $0x7e0] sm:$0xff]
      %v2155 = vld [vmem:[%s269 + $0x7e8] sm:$0xff]
      %v2156 = vld [vmem:[%s269 + $0x7f0] sm:$0xff]
      %v2157 = vld [vmem:[%s269 + $0x7f8] sm:$0xff]
      %v2158 = vlaneseq
      %v2159 = vand.u32 %v2158, 127
      %v2160 = vadd.s32 %v2159, 128
      %v2161 = vadd.s32 %v2159, 256
      %v2162 = vadd.s32 %v2159, 384
      %v2163 = vadd.s32 %v2159, 512
      %v2164 = vadd.s32 %v2159, 640
      %v2165 = vadd.s32 %v2159, 768
      %v2166 = vadd.s32 %v2159, 896
      %vm2167 = vcmp.lt.s32.totalorder %v2159, 0
      %v2168 = vsub.s32 0, %v2159
      %v2169 = vsel %vm2167, %v2168, %v2159
      %v2170 = vshrl.u32 %v2169, 8
      %v2171 = vand.u32 %v2169, 255
      %v2172 = vsub.s32 0, %v2171
      %v2173 = vsel %vm2167, %v2172, %v2171
      %vm2174 = vcmp.lt.s32.totalorder %v2160, 0
      %v2175 = vsub.s32 0, %v2160
      %v2176 = vsel %vm2174, %v2175, %v2160
      %v2177 = vshrl.u32 %v2176, 8
      %v2178 = vand.u32 %v2176, 255
      %v2179 = vsub.s32 0, %v2178
      %v2180 = vsel %vm2174, %v2179, %v2178
      %vm2181 = vcmp.lt.s32.totalorder %v2161, 0
      %v2182 = vsub.s32 0, %v2161
      %v2183 = vsel %vm2181, %v2182, %v2161
      %v2184 = vshrl.u32 %v2183, 8
      %v2185 = vand.u32 %v2183, 255
      %v2186 = vsub.s32 0, %v2185
      %v2187 = vsel %vm2181, %v2186, %v2185
      %vm2188 = vcmp.lt.s32.totalorder %v2162, 0
      %v2189 = vsub.s32 0, %v2162
      %v2190 = vsel %vm2188, %v2189, %v2162
      %v2191 = vshrl.u32 %v2190, 8
      %v2192 = vand.u32 %v2190, 255
      %v2193 = vsub.s32 0, %v2192
      %v2194 = vsel %vm2188, %v2193, %v2192
      %vm2195 = vcmp.lt.s32.totalorder %v2163, 0
      %v2196 = vsub.s32 0, %v2163
      %v2197 = vsel %vm2195, %v2196, %v2163
      %v2198 = vshrl.u32 %v2197, 8
      %v2199 = vand.u32 %v2197, 255
      %v2200 = vsub.s32 0, %v2199
      %v2201 = vsel %vm2195, %v2200, %v2199
      %vm2202 = vcmp.lt.s32.totalorder %v2164, 0
      %v2203 = vsub.s32 0, %v2164
      %v2204 = vsel %vm2202, %v2203, %v2164
      %v2205 = vshrl.u32 %v2204, 8
      %v2206 = vand.u32 %v2204, 255
      %v2207 = vsub.s32 0, %v2206
      %v2208 = vsel %vm2202, %v2207, %v2206
      %vm2209 = vcmp.lt.s32.totalorder %v2165, 0
      %v2210 = vsub.s32 0, %v2165
      %v2211 = vsel %vm2209, %v2210, %v2165
      %v2212 = vshrl.u32 %v2211, 8
      %v2213 = vand.u32 %v2211, 255
      %v2214 = vsub.s32 0, %v2213
      %v2215 = vsel %vm2209, %v2214, %v2213
      %vm2216 = vcmp.lt.s32.totalorder %v2166, 0
      %v2217 = vsub.s32 0, %v2166
      %v2218 = vsel %vm2216, %v2217, %v2166
      %v2219 = vshrl.u32 %v2218, 8
      %v2220 = vand.u32 %v2218, 255
      %v2221 = vsub.s32 0, %v2220
      %v2222 = vsel %vm2216, %v2221, %v2220
      %vm2223 = vcmp.ne.s32.totalorder %v2173, 0
      %vm2224 = vcmp.ne.s32.totalorder %v2180, 0
      %vm2225 = vcmp.ne.s32.totalorder %v2187, 0
      %vm2226 = vcmp.ne.s32.totalorder %v2194, 0
      %vm2227 = vcmp.ne.s32.totalorder %v2201, 0
      %vm2228 = vcmp.ne.s32.totalorder %v2208, 0
      %vm2229 = vcmp.ne.s32.totalorder %v2215, 0
      %vm2230 = vcmp.ne.s32.totalorder %v2222, 0
      %vm2231 = vcmp.lt.s32.totalorder %v2173, 0
      %vm2232 = vcmp.lt.s32.totalorder %v2180, 0
      %vm2233 = vcmp.lt.s32.totalorder %v2187, 0
      %vm2234 = vcmp.lt.s32.totalorder %v2194, 0
      %vm2235 = vcmp.lt.s32.totalorder %v2201, 0
      %vm2236 = vcmp.lt.s32.totalorder %v2208, 0
      %vm2237 = vcmp.lt.s32.totalorder %v2215, 0
      %vm2238 = vcmp.lt.s32.totalorder %v2222, 0
      %vm2239 = vmand %vm2231, %vm2223
      %vm2240 = vmand %vm2232, %vm2224
      %vm2241 = vmand %vm2233, %vm2225
      %vm2242 = vmand %vm2234, %vm2226
      %vm2243 = vmand %vm2235, %vm2227
      %vm2244 = vmand %vm2236, %vm2228
      %vm2245 = vmand %vm2237, %vm2229
      %vm2246 = vmand %vm2238, %vm2230
      %v2247 = vadd.s32 %v2173, 256
      %v2248 = vadd.s32 %v2180, 256
      %v2249 = vadd.s32 %v2187, 256
      %v2250 = vadd.s32 %v2194, 256
      %v2251 = vadd.s32 %v2201, 256
      %v2252 = vadd.s32 %v2208, 256
      %v2253 = vadd.s32 %v2215, 256
      %v2254 = vadd.s32 %v2222, 256
      %v2255 = vsel %vm2239, %v2247, %v2173
      %v2256 = vsel %vm2240, %v2248, %v2180
      %v2257 = vsel %vm2241, %v2249, %v2187
      %v2258 = vsel %vm2242, %v2250, %v2194
      %v2259 = vsel %vm2243, %v2251, %v2201
      %v2260 = vsel %vm2244, %v2252, %v2208
      %v2261 = vsel %vm2245, %v2253, %v2215
      %v2262 = vsel %vm2246, %v2254, %v2222
      %vm2263 = vcmp.lt.s32.totalorder %v2255, 128
      %vm2264 = vcmp.lt.s32.totalorder %v2256, 128
      %vm2265 = vcmp.lt.s32.totalorder %v2257, 128
      %vm2266 = vcmp.lt.s32.totalorder %v2258, 128
      %vm2267 = vcmp.lt.s32.totalorder %v2259, 128
      %vm2268 = vcmp.lt.s32.totalorder %v2260, 128
      %vm2269 = vcmp.lt.s32.totalorder %v2261, 128
      %vm2270 = vcmp.lt.s32.totalorder %v2262, 128
      %s2271 = smul.u32 0, 8
      %s2272 = smul.addr %s2271, 8
      %s2273 = scalar_lea.vmem [#allocation2], %s2272
      %v2274 = vld [vmem:[%s2273] sm:$0xff]
      %v2275 = vld [vmem:[%s2273 + $0x8] sm:$0xff]
      %v2276 = vld [vmem:[%s2273 + $0x10] sm:$0xff]
      %v2277 = vld [vmem:[%s2273 + $0x18] sm:$0xff]
      %v2278 = vld [vmem:[%s2273 + $0x20] sm:$0xff]
      %v2279 = vld [vmem:[%s2273 + $0x28] sm:$0xff]
      %v2280 = vld [vmem:[%s2273 + $0x30] sm:$0xff]
      %v2281 = vld [vmem:[%s2273 + $0x38] sm:$0xff]
      %s2282 = smul.u32 7, 8
      %s2283 = smul.addr %s2282, 8
      %s2284 = scalar_lea.vmem [#allocation2], %s2283
      %v2285 = vld [vmem:[%s2284] sm:$0xff]
      %v2286 = vld [vmem:[%s2284 + $0x8] sm:$0xff]
      %v2287 = vld [vmem:[%s2284 + $0x10] sm:$0xff]
      %v2288 = vld [vmem:[%s2284 + $0x18] sm:$0xff]
      %v2289 = vld [vmem:[%s2284 + $0x20] sm:$0xff]
      %v2290 = vld [vmem:[%s2284 + $0x28] sm:$0xff]
      %v2291 = vld [vmem:[%s2284 + $0x30] sm:$0xff]
      %v2292 = vld [vmem:[%s2284 + $0x38] sm:$0xff]
      %v2293 = vsel %vm2263, %v2274, %v2285
      %v2294 = vsel %vm2264, %v2275, %v2286
      %v2295 = vsel %vm2265, %v2276, %v2287
      %v2296 = vsel %vm2266, %v2277, %v2288
      %v2297 = vsel %vm2267, %v2278, %v2289
      %v2298 = vsel %vm2268, %v2279, %v2290
      %v2299 = vsel %vm2269, %v2280, %v2291
      %v2300 = vsel %vm2270, %v2281, %v2292
      %2301 = vmatpush.msra.mxu0 %v2022
      %2302 = vmatpush.msra.mxu0 %v2014
      %2303 = vmatpush.msra.mxu0 %v2006
      %2304 = vmatpush.msra.mxu0 %v1998
      %2305 = vmatpush.msra.mxu0 %v1990
      %2306 = vmatpush.msra.mxu0 %v1982
      %2307 = vmatpush.msra.mxu0 %v1974
      %2308 = vmatpush.msra.mxu0 %v1966
      %2309 = vmatpush.msra.mxu0 %v1958
      %2310 = vmatpush.msra.mxu0 %v1950
      %2311 = vmatpush.msra.mxu0 %v1942
      %2312 = vmatpush.msra.mxu0 %v1934
      %2313 = vmatpush.msra.mxu0 %v1926
      %2314 = vmatpush.msra.mxu0 %v1918
      %2315 = vmatpush.msra.mxu0 %v1910
      %2316 = vmatpush.msra.mxu0 %v1902
      %2317 = vmatmul.f32.gmra.mxu0 0.0
      %v2318 = vpop.f32.mrf.mxu0
      %v2319 = vadd.f32 0.0, %v2318
      %2320 = vdwg.mxu0
      %2321 = vmatpush.msra.mxu0 %v2150
      %2322 = vmatpush.msra.mxu0 %v2142
      %2323 = vmatpush.msra.mxu0 %v2134
      %2324 = vmatpush.msra.mxu0 %v2126
      %2325 = vmatpush.msra.mxu0 %v2118
      %2326 = vmatpush.msra.mxu0 %v2110
      %2327 = vmatpush.msra.mxu0 %v2102
      %2328 = vmatpush.msra.mxu0 %v2094
      %2329 = vmatpush.msra.mxu0 %v2086
      %2330 = vmatpush.msra.mxu0 %v2078
      %2331 = vmatpush.msra.mxu0 %v2070
      %2332 = vmatpush.msra.mxu0 %v2062
      %2333 = vmatpush.msra.mxu0 %v2054
      %2334 = vmatpush.msra.mxu0 %v2046
      %2335 = vmatpush.msra.mxu0 %v2038
      %2336 = vmatpush.msra.mxu0 %v2030
      %2337 = vmatmul.f32.gmra.mxu0 0.0
      %v2338 = vpop.f32.mrf.mxu0
      %v2339 = vadd.f32 %v2319, %v2338
      %2340 = vdwg.mxu0
      %2341 = vmatpush.msra.mxu0 %v2023
      %2342 = vmatpush.msra.mxu0 %v2015
      %2343 = vmatpush.msra.mxu0 %v2007
      %2344 = vmatpush.msra.mxu0 %v1999
      %2345 = vmatpush.msra.mxu0 %v1991
      %2346 = vmatpush.msra.mxu0 %v1983
      %2347 = vmatpush.msra.mxu0 %v1975
      %2348 = vmatpush.msra.mxu0 %v1967
      %2349 = vmatpush.msra.mxu0 %v1959
      %2350 = vmatpush.msra.mxu0 %v1951
      %2351 = vmatpush.msra.mxu0 %v1943
      %2352 = vmatpush.msra.mxu0 %v1935
      %2353 = vmatpush.msra.mxu0 %v1927
      %2354 = vmatpush.msra.mxu0 %v1919
      %2355 = vmatpush.msra.mxu0 %v1911
      %2356 = vmatpush.msra.mxu0 %v1903
      %2357 = vmatmul.f32.gmra.mxu0 0.0
      %v2358 = vpop.f32.mrf.mxu0
      %v2359 = vadd.f32 0.0, %v2358
      %2360 = vdwg.mxu0
      %2361 = vmatpush.msra.mxu0 %v2151
      %2362 = vmatpush.msra.mxu0 %v2143
      %2363 = vmatpush.msra.mxu0 %v2135
      %2364 = vmatpush.msra.mxu0 %v2127
      %2365 = vmatpush.msra.mxu0 %v2119
      %2366 = vmatpush.msra.mxu0 %v2111
      %2367 = vmatpush.msra.mxu0 %v2103
      %2368 = vmatpush.msra.mxu0 %v2095
      %2369 = vmatpush.msra.mxu0 %v2087
      %2370 = vmatpush.msra.mxu0 %v2079
      %2371 = vmatpush.msra.mxu0 %v2071
      %2372 = vmatpush.msra.mxu0 %v2063
      %2373 = vmatpush.msra.mxu0 %v2055
      %2374 = vmatpush.msra.mxu0 %v2047
      %2375 = vmatpush.msra.mxu0 %v2039
      %2376 = vmatpush.msra.mxu0 %v2031
      %2377 = vmatmul.f32.gmra.mxu0 0.0
      %v2378 = vpop.f32.mrf.mxu0
      %v2379 = vadd.f32 %v2359, %v2378
      %2380 = vdwg.mxu0
      %2381 = vmatpush.msra.mxu0 %v2024
      %2382 = vmatpush.msra.mxu0 %v2016
      %2383 = vmatpush.msra.mxu0 %v2008
      %2384 = vmatpush.msra.mxu0 %v2000
      %2385 = vmatpush.msra.mxu0 %v1992
      %2386 = vmatpush.msra.mxu0 %v1984
      %2387 = vmatpush.msra.mxu0 %v1976
      %2388 = vmatpush.msra.mxu0 %v1968
      %2389 = vmatpush.msra.mxu0 %v1960
      %2390 = vmatpush.msra.mxu0 %v1952
      %2391 = vmatpush.msra.mxu0 %v1944
      %2392 = vmatpush.msra.mxu0 %v1936
      %2393 = vmatpush.msra.mxu0 %v1928
      %2394 = vmatpush.msra.mxu0 %v1920
      %2395 = vmatpush.msra.mxu0 %v1912
      %2396 = vmatpush.msra.mxu0 %v1904
      %2397 = vmatmul.f32.gmra.mxu0 0.0
      %v2398 = vpop.f32.mrf.mxu0
      %v2399 = vadd.f32 0.0, %v2398
      %2400 = vdwg.mxu0
      %2401 = vmatpush.msra.mxu0 %v2152
      %2402 = vmatpush.msra.mxu0 %v2144
      %2403 = vmatpush.msra.mxu0 %v2136
      %2404 = vmatpush.msra.mxu0 %v2128
      %2405 = vmatpush.msra.mxu0 %v2120
      %2406 = vmatpush.msra.mxu0 %v2112
      %2407 = vmatpush.msra.mxu0 %v2104
      %2408 = vmatpush.msra.mxu0 %v2096
      %2409 = vmatpush.msra.mxu0 %v2088
      %2410 = vmatpush.msra.mxu0 %v2080
      %2411 = vmatpush.msra.mxu0 %v2072
      %2412 = vmatpush.msra.mxu0 %v2064
      %2413 = vmatpush.msra.mxu0 %v2056
      %2414 = vmatpush.msra.mxu0 %v2048
      %2415 = vmatpush.msra.mxu0 %v2040
      %2416 = vmatpush.msra.mxu0 %v2032
      %2417 = vmatmul.f32.gmra.mxu0 0.0
      %v2418 = vpop.f32.mrf.mxu0
      %v2419 = vadd.f32 %v2399, %v2418
      %2420 = vdwg.mxu0
      %2421 = vmatpush.msra.mxu0 %v2025
      %2422 = vmatpush.msra.mxu0 %v2017
      %2423 = vmatpush.msra.mxu0 %v2009
      %2424 = vmatpush.msra.mxu0 %v2001
      %2425 = vmatpush.msra.mxu0 %v1993
      %2426 = vmatpush.msra.mxu0 %v1985
      %2427 = vmatpush.msra.mxu0 %v1977
      %2428 = vmatpush.msra.mxu0 %v1969
      %2429 = vmatpush.msra.mxu0 %v1961
      %2430 = vmatpush.msra.mxu0 %v1953
      %2431 = vmatpush.msra.mxu0 %v1945
      %2432 = vmatpush.msra.mxu0 %v1937
      %2433 = vmatpush.msra.mxu0 %v1929
      %2434 = vmatpush.msra.mxu0 %v1921
      %2435 = vmatpush.msra.mxu0 %v1913
      %2436 = vmatpush.msra.mxu0 %v1905
      %2437 = vmatmul.f32.gmra.mxu0 0.0
      %v2438 = vpop.f32.mrf.mxu0
      %v2439 = vadd.f32 0.0, %v2438
      %2440 = vdwg.mxu0
      %2441 = vmatpush.msra.mxu0 %v2153
      %2442 = vmatpush.msra.mxu0 %v2145
      %2443 = vmatpush.msra.mxu0 %v2137
      %2444 = vmatpush.msra.mxu0 %v2129
      %2445 = vmatpush.msra.mxu0 %v2121
      %2446 = vmatpush.msra.mxu0 %v2113
      %2447 = vmatpush.msra.mxu0 %v2105
      %2448 = vmatpush.msra.mxu0 %v2097
      %2449 = vmatpush.msra.mxu0 %v2089
      %2450 = vmatpush.msra.mxu0 %v2081
      %2451 = vmatpush.msra.mxu0 %v2073
      %2452 = vmatpush.msra.mxu0 %v2065
      %2453 = vmatpush.msra.mxu0 %v2057
      %2454 = vmatpush.msra.mxu0 %v2049
      %2455 = vmatpush.msra.mxu0 %v2041
      %2456 = vmatpush.msra.mxu0 %v2033
      %2457 = vmatmul.f32.gmra.mxu0 0.0
      %v2458 = vpop.f32.mrf.mxu0
      %v2459 = vadd.f32 %v2439, %v2458
      %2460 = vdwg.mxu0
      %2461 = vmatpush.msra.mxu0 %v2026
      %2462 = vmatpush.msra.mxu0 %v2018
      %2463 = vmatpush.msra.mxu0 %v2010
      %2464 = vmatpush.msra.mxu0 %v2002
      %2465 = vmatpush.msra.mxu0 %v1994
      %2466 = vmatpush.msra.mxu0 %v1986
      %2467 = vmatpush.msra.mxu0 %v1978
      %2468 = vmatpush.msra.mxu0 %v1970
      %2469 = vmatpush.msra.mxu0 %v1962
      %2470 = vmatpush.msra.mxu0 %v1954
      %2471 = vmatpush.msra.mxu0 %v1946
      %2472 = vmatpush.msra.mxu0 %v1938
      %2473 = vmatpush.msra.mxu0 %v1930
      %2474 = vmatpush.msra.mxu0 %v1922
      %2475 = vmatpush.msra.mxu0 %v1914
      %2476 = vmatpush.msra.mxu0 %v1906
      %2477 = vmatmul.f32.gmra.mxu0 0.0
      %v2478 = vpop.f32.mrf.mxu0
      %v2479 = vadd.f32 0.0, %v2478
      %2480 = vdwg.mxu0
      %2481 = vmatpush.msra.mxu0 %v2154
      %2482 = vmatpush.msra.mxu0 %v2146
      %2483 = vmatpush.msra.mxu0 %v2138
      %2484 = vmatpush.msra.mxu0 %v2130
      %2485 = vmatpush.msra.mxu0 %v2122
      %2486 = vmatpush.msra.mxu0 %v2114
      %2487 = vmatpush.msra.mxu0 %v2106
      %2488 = vmatpush.msra.mxu0 %v2098
      %2489 = vmatpush.msra.mxu0 %v2090
      %2490 = vmatpush.msra.mxu0 %v2082
      %2491 = vmatpush.msra.mxu0 %v2074
      %2492 = vmatpush.msra.mxu0 %v2066
      %2493 = vmatpush.msra.mxu0 %v2058
      %2494 = vmatpush.msra.mxu0 %v2050
      %2495 = vmatpush.msra.mxu0 %v2042
      %2496 = vmatpush.msra.mxu0 %v2034
      %2497 = vmatmul.f32.gmra.mxu0 0.0
      %v2498 = vpop.f32.mrf.mxu0
      %v2499 = vadd.f32 %v2479, %v2498
      %2500 = vdwg.mxu0
      %2501 = vmatpush.msra.mxu0 %v2027
      %2502 = vmatpush.msra.mxu0 %v2019
      %2503 = vmatpush.msra.mxu0 %v2011
      %2504 = vmatpush.msra.mxu0 %v2003
      %2505 = vmatpush.msra.mxu0 %v1995
      %2506 = vmatpush.msra.mxu0 %v1987
      %2507 = vmatpush.msra.mxu0 %v1979
      %2508 = vmatpush.msra.mxu0 %v1971
      %2509 = vmatpush.msra.mxu0 %v1963
      %2510 = vmatpush.msra.mxu0 %v1955
      %2511 = vmatpush.msra.mxu0 %v1947
      %2512 = vmatpush.msra.mxu0 %v1939
      %2513 = vmatpush.msra.mxu0 %v1931
      %2514 = vmatpush.msra.mxu0 %v1923
      %2515 = vmatpush.msra.mxu0 %v1915
      %2516 = vmatpush.msra.mxu0 %v1907
      %2517 = vmatmul.f32.gmra.mxu0 0.0
      %v2518 = vpop.f32.mrf.mxu0
      %v2519 = vadd.f32 0.0, %v2518
      %2520 = vdwg.mxu0
      %2521 = vmatpush.msra.mxu0 %v2155
      %2522 = vmatpush.msra.mxu0 %v2147
      %2523 = vmatpush.msra.mxu0 %v2139
      %2524 = vmatpush.msra.mxu0 %v2131
      %2525 = vmatpush.msra.mxu0 %v2123
      %2526 = vmatpush.msra.mxu0 %v2115
      %2527 = vmatpush.msra.mxu0 %v2107
      %2528 = vmatpush.msra.mxu0 %v2099
      %2529 = vmatpush.msra.mxu0 %v2091
      %2530 = vmatpush.msra.mxu0 %v2083
      %2531 = vmatpush.msra.mxu0 %v2075
      %2532 = vmatpush.msra.mxu0 %v2067
      %2533 = vmatpush.msra.mxu0 %v2059
      %2534 = vmatpush.msra.mxu0 %v2051
      %2535 = vmatpush.msra.mxu0 %v2043
      %2536 = vmatpush.msra.mxu0 %v2035
      %2537 = vmatmul.f32.gmra.mxu0 0.0
      %v2538 = vpop.f32.mrf.mxu0
      %v2539 = vadd.f32 %v2519, %v2538
      %2540 = vdwg.mxu0
      %2541 = vmatpush.msra.mxu0 %v2028
      %2542 = vmatpush.msra.mxu0 %v2020
      %2543 = vmatpush.msra.mxu0 %v2012
      %2544 = vmatpush.msra.mxu0 %v2004
      %2545 = vmatpush.msra.mxu0 %v1996
      %2546 = vmatpush.msra.mxu0 %v1988
      %2547 = vmatpush.msra.mxu0 %v1980
      %2548 = vmatpush.msra.mxu0 %v1972
      %2549 = vmatpush.msra.mxu0 %v1964
      %2550 = vmatpush.msra.mxu0 %v1956
      %2551 = vmatpush.msra.mxu0 %v1948
      %2552 = vmatpush.msra.mxu0 %v1940
      %2553 = vmatpush.msra.mxu0 %v1932
      %2554 = vmatpush.msra.mxu0 %v1924
      %2555 = vmatpush.msra.mxu0 %v1916
      %2556 = vmatpush.msra.mxu0 %v1908
      %2557 = vmatmul.f32.gmra.mxu0 0.0
      %v2558 = vpop.f32.mrf.mxu0
      %v2559 = vadd.f32 0.0, %v2558
      %2560 = vdwg.mxu0
      %2561 = vmatpush.msra.mxu0 %v2156
      %2562 = vmatpush.msra.mxu0 %v2148
      %2563 = vmatpush.msra.mxu0 %v2140
      %2564 = vmatpush.msra.mxu0 %v2132
      %2565 = vmatpush.msra.mxu0 %v2124
      %2566 = vmatpush.msra.mxu0 %v2116
      %2567 = vmatpush.msra.mxu0 %v2108
      %2568 = vmatpush.msra.mxu0 %v2100
      %2569 = vmatpush.msra.mxu0 %v2092
      %2570 = vmatpush.msra.mxu0 %v2084
      %2571 = vmatpush.msra.mxu0 %v2076
      %2572 = vmatpush.msra.mxu0 %v2068
      %2573 = vmatpush.msra.mxu0 %v2060
      %2574 = vmatpush.msra.mxu0 %v2052
      %2575 = vmatpush.msra.mxu0 %v2044
      %2576 = vmatpush.msra.mxu0 %v2036
      %2577 = vmatmul.f32.gmra.mxu0 0.0
      %v2578 = vpop.f32.mrf.mxu0
      %v2579 = vadd.f32 %v2559, %v2578
      %2580 = vdwg.mxu0
      %2581 = vmatpush.msra.mxu0 %v2029
      %2582 = vmatpush.msra.mxu0 %v2021
      %2583 = vmatpush.msra.mxu0 %v2013
      %2584 = vmatpush.msra.mxu0 %v2005
      %2585 = vmatpush.msra.mxu0 %v1997
      %2586 = vmatpush.msra.mxu0 %v1989
      %2587 = vmatpush.msra.mxu0 %v1981
      %2588 = vmatpush.msra.mxu0 %v1973
      %2589 = vmatpush.msra.mxu0 %v1965
      %2590 = vmatpush.msra.mxu0 %v1957
      %2591 = vmatpush.msra.mxu0 %v1949
      %2592 = vmatpush.msra.mxu0 %v1941
      %2593 = vmatpush.msra.mxu0 %v1933
      %2594 = vmatpush.msra.mxu0 %v1925
      %2595 = vmatpush.msra.mxu0 %v1917
      %2596 = vmatpush.msra.mxu0 %v1909
      %2597 = vmatmul.f32.gmra.mxu0 0.0
      %v2598 = vpop.f32.mrf.mxu0
      %v2599 = vadd.f32 0.0, %v2598
      %2600 = vdwg.mxu0
      %2601 = vmatpush.msra.mxu0 %v2157
      %2602 = vmatpush.msra.mxu0 %v2149
      %2603 = vmatpush.msra.mxu0 %v2141
      %2604 = vmatpush.msra.mxu0 %v2133
      %2605 = vmatpush.msra.mxu0 %v2125
      %2606 = vmatpush.msra.mxu0 %v2117
      %2607 = vmatpush.msra.mxu0 %v2109
      %2608 = vmatpush.msra.mxu0 %v2101
      %2609 = vmatpush.msra.mxu0 %v2093
      %2610 = vmatpush.msra.mxu0 %v2085
      %2611 = vmatpush.msra.mxu0 %v2077
      %2612 = vmatpush.msra.mxu0 %v2069
      %2613 = vmatpush.msra.mxu0 %v2061
      %2614 = vmatpush.msra.mxu0 %v2053
      %2615 = vmatpush.msra.mxu0 %v2045
      %2616 = vmatpush.msra.mxu0 %v2037
      %2617 = vmatmul.f32.gmra.mxu0 0.0
      %v2618 = vpop.f32.mrf.mxu0
      %v2619 = vadd.f32 %v2599, %v2618
      %2620 = vdwg.mxu0
      %v2621 = vadd.f32 %v2293, %v2339
      %v2622 = vadd.f32 %v2294, %v2379
      %v2623 = vadd.f32 %v2295, %v2419
      %v2624 = vadd.f32 %v2296, %v2459
      %v2625 = vadd.f32 %v2297, %v2499
      %v2626 = vadd.f32 %v2298, %v2539
      %v2627 = vadd.f32 %v2299, %v2579
      %v2628 = vadd.f32 %v2300, %v2619
      %v2629 = vxor.u32 %v2621, 2147483648
      %v2630 = vxor.u32 %v2622, 2147483648
      %v2631 = vmul.f32 %v2629, 1.442695
      %v2632 = vpow.pop %v2631
      %v2633 = vmul.f32 %v2630, 1.442695
      %v2634 = vpow.pop %v2633
      %v2635 = vadd.f32 %v2632, 1.0
      %v2636 = vadd.f32 %v2634, 1.0
      %v2637 = vrcp.pop %v2635
      %v2638 = vmul.f32 %v2635, %v2637
      %v2639 = vsub.f32 1.0, %v2638
      %v2640 = vmul.f32 %v2637, %v2639
      %v2641 = vadd.f32 %v2637, %v2640
      %vm2642 = vweird.f32 %v2635
      %vm2643 = vweird.f32 %v2637
      %vm2644 = vmor %vm2642, %vm2643
      %v2645 = vsel %vm2644, %v2637, %v2641
      %v2646 = vand.u32 2147483647, %v2635
      %vm2647 = vcmp.eq.f32.partialorder %v2646, 8.507059e+37
      %v2648 = vand.u32 %v2635, 2147483648
      %v2649 = vor.u32 1.1754944e-38, %v2648
      %v2650 = vsel %vm2647, %v2649, %v2645
      %v2651 = vmul.f32 1.0, %v2650
      %v2652 = vrcp.pop %v2636
      %v2653 = vmul.f32 %v2636, %v2652
      %v2654 = vsub.f32 1.0, %v2653
      %v2655 = vmul.f32 %v2652, %v2654
      %v2656 = vadd.f32 %v2652, %v2655
      %vm2657 = vweird.f32 %v2636
      %vm2658 = vweird.f32 %v2652
      %vm2659 = vmor %vm2657, %vm2658
      %v2660 = vsel %vm2659, %v2652, %v2656
      %v2661 = vand.u32 2147483647, %v2636
      %vm2662 = vcmp.eq.f32.partialorder %v2661, 8.507059e+37
      %v2663 = vand.u32 %v2636, 2147483648
      %v2664 = vor.u32 1.1754944e-38, %v2663
      %v2665 = vsel %vm2662, %v2664, %v2660
      %v2666 = vmul.f32 1.0, %v2665
      %v2667 = vxor.u32 %v2623, 2147483648
      %v2668 = vxor.u32 %v2624, 2147483648
      %v2669 = vmul.f32 %v2667, 1.442695
      %v2670 = vpow.pop %v2669
      %v2671 = vmul.f32 %v2668, 1.442695
      %v2672 = vpow.pop %v2671
      %v2673 = vadd.f32 %v2670, 1.0
      %v2674 = vadd.f32 %v2672, 1.0
      %v2675 = vrcp.pop %v2673
      %v2676 = vmul.f32 %v2673, %v2675
      %v2677 = vsub.f32 1.0, %v2676
      %v2678 = vmul.f32 %v2675, %v2677
      %v2679 = vadd.f32 %v2675, %v2678
      %vm2680 = vweird.f32 %v2673
      %vm2681 = vweird.f32 %v2675
      %vm2682 = vmor %vm2680, %vm2681
      %v2683 = vsel %vm2682, %v2675, %v2679
      %v2684 = vand.u32 2147483647, %v2673
      %vm2685 = vcmp.eq.f32.partialorder %v2684, 8.507059e+37
      %v2686 = vand.u32 %v2673, 2147483648
      %v2687 = vor.u32 1.1754944e-38, %v2686
      %v2688 = vsel %vm2685, %v2687, %v2683
      %v2689 = vmul.f32 1.0, %v2688
      %v2690 = vrcp.pop %v2674
      %v2691 = vmul.f32 %v2674, %v2690
      %v2692 = vsub.f32 1.0, %v2691
      %v2693 = vmul.f32 %v2690, %v2692
      %v2694 = vadd.f32 %v2690, %v2693
      %vm2695 = vweird.f32 %v2674
      %vm2696 = vweird.f32 %v2690
      %vm2697 = vmor %vm2695, %vm2696
      %v2698 = vsel %vm2697, %v2690, %v2694
      %v2699 = vand.u32 2147483647, %v2674
      %vm2700 = vcmp.eq.f32.partialorder %v2699, 8.507059e+37
      %v2701 = vand.u32 %v2674, 2147483648
      %v2702 = vor.u32 1.1754944e-38, %v2701
      %v2703 = vsel %vm2700, %v2702, %v2698
      %v2704 = vmul.f32 1.0, %v2703
      %v2705 = vtanh.pop %v2625
      %v2706 = vtanh.pop %v2626
      %v2707 = vxor.u32 %v2627, 2147483648
      %v2708 = vxor.u32 %v2628, 2147483648
      %v2709 = vmul.f32 %v2707, 1.442695
      %v2710 = vpow.pop %v2709
      %v2711 = vmul.f32 %v2708, 1.442695
      %v2712 = vpow.pop %v2711
      %v2713 = vadd.f32 %v2710, 1.0
      %v2714 = vadd.f32 %v2712, 1.0
      %v2715 = vrcp.pop %v2713
      %v2716 = vmul.f32 %v2713, %v2715
      %v2717 = vsub.f32 1.0, %v2716
      %v2718 = vmul.f32 %v2715, %v2717
      %v2719 = vadd.f32 %v2715, %v2718
      %vm2720 = vweird.f32 %v2713
      %vm2721 = vweird.f32 %v2715
      %vm2722 = vmor %vm2720, %vm2721
      %v2723 = vsel %vm2722, %v2715, %v2719
      %v2724 = vand.u32 2147483647, %v2713
      %vm2725 = vcmp.eq.f32.partialorder %v2724, 8.507059e+37
      %v2726 = vand.u32 %v2713, 2147483648
      %v2727 = vor.u32 1.1754944e-38, %v2726
      %v2728 = vsel %vm2725, %v2727, %v2723
      %v2729 = vmul.f32 1.0, %v2728
      %v2730 = vrcp.pop %v2714
      %v2731 = vmul.f32 %v2714, %v2730
      %v2732 = vsub.f32 1.0, %v2731
      %v2733 = vmul.f32 %v2730, %v2732
      %v2734 = vadd.f32 %v2730, %v2733
      %vm2735 = vweird.f32 %v2714
      %vm2736 = vweird.f32 %v2730
      %vm2737 = vmor %vm2735, %vm2736
      %v2738 = vsel %vm2737, %v2730, %v2734
      %v2739 = vand.u32 2147483647, %v2714
      %vm2740 = vcmp.eq.f32.partialorder %v2739, 8.507059e+37
      %v2741 = vand.u32 %v2714, 2147483648
      %v2742 = vor.u32 1.1754944e-38, %v2741
      %v2743 = vsel %vm2740, %v2742, %v2738
      %v2744 = vmul.f32 1.0, %v2743
      %v2745 = vmul.f32 %v2689, 0.0
      %v2746 = vmul.f32 %v2704, 0.0
      %v2747 = vmul.f32 %v2651, %v2705
      %v2748 = vmul.f32 %v2666, %v2706
      %v2749 = vadd.f32 %v2745, %v2747
      %v2750 = vadd.f32 %v2746, %v2748
      %v2751 = vtanh.pop %v2749
      %v2752 = vtanh.pop %v2750
      %v2753 = vmul.f32 %v2729, %v2751
      %v2754 = vmul.f32 %v2744, %v2752
      %2755 = vst [vmem:[#allocation3] sm:$0xff] %v2753
      %s2756 = scalar_lea.vmem [#allocation4], 56
      %2757 = vst [vmem:[%s2756] sm:$0xff] %v2754
      %v2758 = vadd.f32 %v2753, 0.0
      %v2759 = vadd.f32 %v2754, 0.0
      %s2760 = smul.u32 1, 8
      %s2761 = smul.addr %s2760, 8
      %s2762 = scalar_lea.vmem [#allocation2], %s2761
      %v2763 = vld [vmem:[%s2762] sm:$0xff]
      %v2764 = vld [vmem:[%s2762 + $0x8] sm:$0xff]
      %v2765 = vld [vmem:[%s2762 + $0x10] sm:$0xff]
      %v2766 = vld [vmem:[%s2762 + $0x18] sm:$0xff]
      %v2767 = vld [vmem:[%s2762 + $0x20] sm:$0xff]
      %v2768 = vld [vmem:[%s2762 + $0x28] sm:$0xff]
      %v2769 = vld [vmem:[%s2762 + $0x30] sm:$0xff]
      %v2770 = vld [vmem:[%s2762 + $0x38] sm:$0xff]
      %s2771 = smul.u32 6, 8
      %s2772 = smul.addr %s2771, 8
      %s2773 = scalar_lea.vmem [#allocation2], %s2772
      %v2774 = vld [vmem:[%s2773] sm:$0xff]
      %v2775 = vld [vmem:[%s2773 + $0x8] sm:$0xff]
      %v2776 = vld [vmem:[%s2773 + $0x10] sm:$0xff]
      %v2777 = vld [vmem:[%s2773 + $0x18] sm:$0xff]
      %v2778 = vld [vmem:[%s2773 + $0x20] sm:$0xff]
      %v2779 = vld [vmem:[%s2773 + $0x28] sm:$0xff]
      %v2780 = vld [vmem:[%s2773 + $0x30] sm:$0xff]
      %v2781 = vld [vmem:[%s2773 + $0x38] sm:$0xff]
      %v2782 = vsel %vm2263, %v2763, %v2774
      %v2783 = vsel %vm2264, %v2764, %v2775
      %v2784 = vsel %vm2265, %v2765, %v2776
      %v2785 = vsel %vm2266, %v2766, %v2777
      %v2786 = vsel %vm2267, %v2767, %v2778
      %v2787 = vsel %vm2268, %v2768, %v2779
      %v2788 = vsel %vm2269, %v2769, %v2780
      %v2789 = vsel %vm2270, %v2770, %v2781
      %2790 = vmatpush.msra.mxu0 %v2022
      %2791 = vmatpush.msra.mxu0 %v2014
      %2792 = vmatpush.msra.mxu0 %v2006
      %2793 = vmatpush.msra.mxu0 %v1998
      %2794 = vmatpush.msra.mxu0 %v1990
      %2795 = vmatpush.msra.mxu0 %v1982
      %2796 = vmatpush.msra.mxu0 %v1974
      %2797 = vmatpush.msra.mxu0 %v1966
      %2798 = vmatpush.msra.mxu0 %v1958
      %2799 = vmatpush.msra.mxu0 %v1950
      %2800 = vmatpush.msra.mxu0 %v1942
      %2801 = vmatpush.msra.mxu0 %v1934
      %2802 = vmatpush.msra.mxu0 %v1926
      %2803 = vmatpush.msra.mxu0 %v1918
      %2804 = vmatpush.msra.mxu0 %v1910
      %2805 = vmatpush.msra.mxu0 %v1902
      %2806 = vmatmul.f32.gmra.mxu0 %v2753
      %v2807 = vpop.f32.mrf.mxu0
      %v2808 = vadd.f32 0.0, %v2807
      %2809 = vdwg.mxu0
      %2810 = vmatpush.msra.mxu0 %v2150
      %2811 = vmatpush.msra.mxu0 %v2142
      %2812 = vmatpush.msra.mxu0 %v2134
      %2813 = vmatpush.msra.mxu0 %v2126
      %2814 = vmatpush.msra.mxu0 %v2118
      %2815 = vmatpush.msra.mxu0 %v2110
      %2816 = vmatpush.msra.mxu0 %v2102
      %2817 = vmatpush.msra.mxu0 %v2094
      %2818 = vmatpush.msra.mxu0 %v2086
      %2819 = vmatpush.msra.mxu0 %v2078
      %2820 = vmatpush.msra.mxu0 %v2070
      %2821 = vmatpush.msra.mxu0 %v2062
      %2822 = vmatpush.msra.mxu0 %v2054
      %2823 = vmatpush.msra.mxu0 %v2046
      %2824 = vmatpush.msra.mxu0 %v2038
      %2825 = vmatpush.msra.mxu0 %v2030
      %2826 = vmatmul.f32.gmra.mxu0 %v2754
      %v2827 = vpop.f32.mrf.mxu0
      %v2828 = vadd.f32 %v2808, %v2827
      %2829 = vdwg.mxu0
      %2830 = vmatpush.msra.mxu0 %v2023
      %2831 = vmatpush.msra.mxu0 %v2015
      %2832 = vmatpush.msra.mxu0 %v2007
      %2833 = vmatpush.msra.mxu0 %v1999
      %2834 = vmatpush.msra.mxu0 %v1991
      %2835 = vmatpush.msra.mxu0 %v1983
      %2836 = vmatpush.msra.mxu0 %v1975
      %2837 = vmatpush.msra.mxu0 %v1967
      %2838 = vmatpush.msra.mxu0 %v1959
      %2839 = vmatpush.msra.mxu0 %v1951
      %2840 = vmatpush.msra.mxu0 %v1943
      %2841 = vmatpush.msra.mxu0 %v1935
      %2842 = vmatpush.msra.mxu0 %v1927
      %2843 = vmatpush.msra.mxu0 %v1919
      %2844 = vmatpush.msra.mxu0 %v1911
      %2845 = vmatpush.msra.mxu0 %v1903
      %2846 = vmatmul.f32.gmra.mxu0 %v2753
      %v2847 = vpop.f32.mrf.mxu0
      %v2848 = vadd.f32 0.0, %v2847
      %2849 = vdwg.mxu0
      %2850 = vmatpush.msra.mxu0 %v2151
      %2851 = vmatpush.msra.mxu0 %v2143
      %2852 = vmatpush.msra.mxu0 %v2135
      %2853 = vmatpush.msra.mxu0 %v2127
      %2854 = vmatpush.msra.mxu0 %v2119
      %2855 = vmatpush.msra.mxu0 %v2111
      %2856 = vmatpush.msra.mxu0 %v2103
      %2857 = vmatpush.msra.mxu0 %v2095
      %2858 = vmatpush.msra.mxu0 %v2087
      %2859 = vmatpush.msra.mxu0 %v2079
      %2860 = vmatpush.msra.mxu0 %v2071
      %2861 = vmatpush.msra.mxu0 %v2063
      %2862 = vmatpush.msra.mxu0 %v2055
      %2863 = vmatpush.msra.mxu0 %v2047
      %2864 = vmatpush.msra.mxu0 %v2039
      %2865 = vmatpush.msra.mxu0 %v2031
      %2866 = vmatmul.f32.gmra.mxu0 %v2754
      %v2867 = vpop.f32.mrf.mxu0
      %v2868 = vadd.f32 %v2848, %v2867
      %2869 = vdwg.mxu0
      %2870 = vmatpush.msra.mxu0 %v2024
      %2871 = vmatpush.msra.mxu0 %v2016
      %2872 = vmatpush.msra.mxu0 %v2008
      %2873 = vmatpush.msra.mxu0 %v2000
      %2874 = vmatpush.msra.mxu0 %v1992
      %2875 = vmatpush.msra.mxu0 %v1984
      %2876 = vmatpush.msra.mxu0 %v1976
      %2877 = vmatpush.msra.mxu0 %v1968
      %2878 = vmatpush.msra.mxu0 %v1960
      %2879 = vmatpush.msra.mxu0 %v1952
      %2880 = vmatpush.msra.mxu0 %v1944
      %2881 = vmatpush.msra.mxu0 %v1936
      %2882 = vmatpush.msra.mxu0 %v1928
      %2883 = vmatpush.msra.mxu0 %v1920
      %2884 = vmatpush.msra.mxu0 %v1912
      %2885 = vmatpush.msra.mxu0 %v1904
      %2886 = vmatmul.f32.gmra.mxu0 %v2753
      %v2887 = vpop.f32.mrf.mxu0
      %v2888 = vadd.f32 0.0, %v2887
      %2889 = vdwg.mxu0
      %2890 = vmatpush.msra.mxu0 %v2152
      %2891 = vmatpush.msra.mxu0 %v2144
      %2892 = vmatpush.msra.mxu0 %v2136
      %2893 = vmatpush.msra.mxu0 %v2128
      %2894 = vmatpush.msra.mxu0 %v2120
      %2895 = vmatpush.msra.mxu0 %v2112
      %2896 = vmatpush.msra.mxu0 %v2104
      %2897 = vmatpush.msra.mxu0 %v2096
      %2898 = vmatpush.msra.mxu0 %v2088
      %2899 = vmatpush.msra.mxu0 %v2080
      %2900 = vmatpush.msra.mxu0 %v2072
      %2901 = vmatpush.msra.mxu0 %v2064
      %2902 = vmatpush.msra.mxu0 %v2056
      %2903 = vmatpush.msra.mxu0 %v2048
      %2904 = vmatpush.msra.mxu0 %v2040
      %2905 = vmatpush.msra.mxu0 %v2032
      %2906 = vmatmul.f32.gmra.mxu0 %v2754
      %v2907 = vpop.f32.mrf.mxu0
      %v2908 = vadd.f32 %v2888, %v2907
      %2909 = vdwg.mxu0
      %2910 = vmatpush.msra.mxu0 %v2025
      %2911 = vmatpush.msra.mxu0 %v2017
      %2912 = vmatpush.msra.mxu0 %v2009
      %2913 = vmatpush.msra.mxu0 %v2001
      %2914 = vmatpush.msra.mxu0 %v1993
      %2915 = vmatpush.msra.mxu0 %v1985
      %2916 = vmatpush.msra.mxu0 %v1977
      %2917 = vmatpush.msra.mxu0 %v1969
      %2918 = vmatpush.msra.mxu0 %v1961
      %2919 = vmatpush.msra.mxu0 %v1953
      %2920 = vmatpush.msra.mxu0 %v1945
      %2921 = vmatpush.msra.mxu0 %v1937
      %2922 = vmatpush.msra.mxu0 %v1929
      %2923 = vmatpush.msra.mxu0 %v1921
      %2924 = vmatpush.msra.mxu0 %v1913
      %2925 = vmatpush.msra.mxu0 %v1905
      %2926 = vmatmul.f32.gmra.mxu0 %v2753
      %v2927 = vpop.f32.mrf.mxu0
      %v2928 = vadd.f32 0.0, %v2927
      %2929 = vdwg.mxu0
      %2930 = vmatpush.msra.mxu0 %v2153
      %2931 = vmatpush.msra.mxu0 %v2145
      %2932 = vmatpush.msra.mxu0 %v2137
      %2933 = vmatpush.msra.mxu0 %v2129
      %2934 = vmatpush.msra.mxu0 %v2121
      %2935 = vmatpush.msra.mxu0 %v2113
      %2936 = vmatpush.msra.mxu0 %v2105
      %2937 = vmatpush.msra.mxu0 %v2097
      %2938 = vmatpush.msra.mxu0 %v2089
      %2939 = vmatpush.msra.mxu0 %v2081
      %2940 = vmatpush.msra.mxu0 %v2073
      %2941 = vmatpush.msra.mxu0 %v2065
      %2942 = vmatpush.msra.mxu0 %v2057
      %2943 = vmatpush.msra.mxu0 %v2049
      %2944 = vmatpush.msra.mxu0 %v2041
      %2945 = vmatpush.msra.mxu0 %v2033
      %2946 = vmatmul.f32.gmra.mxu0 %v2754
      %v2947 = vpop.f32.mrf.mxu0
      %v2948 = vadd.f32 %v2928, %v2947
      %2949 = vdwg.mxu0
      %2950 = vmatpush.msra.mxu0 %v2026
      %2951 = vmatpush.msra.mxu0 %v2018
      %2952 = vmatpush.msra.mxu0 %v2010
      %2953 = vmatpush.msra.mxu0 %v2002
      %2954 = vmatpush.msra.mxu0 %v1994
      %2955 = vmatpush.msra.mxu0 %v1986
      %2956 = vmatpush.msra.mxu0 %v1978
      %2957 = vmatpush.msra.mxu0 %v1970
      %2958 = vmatpush.msra.mxu0 %v1962
      %2959 = vmatpush.msra.mxu0 %v1954
      %2960 = vmatpush.msra.mxu0 %v1946
      %2961 = vmatpush.msra.mxu0 %v1938
      %2962 = vmatpush.msra.mxu0 %v1930
      %2963 = vmatpush.msra.mxu0 %v1922
      %2964 = vmatpush.msra.mxu0 %v1914
      %2965 = vmatpush.msra.mxu0 %v1906
      %2966 = vmatmul.f32.gmra.mxu0 %v2753
      %v2967 = vpop.f32.mrf.mxu0
      %v2968 = vadd.f32 0.0, %v2967
      %2969 = vdwg.mxu0
      %2970 = vmatpush.msra.mxu0 %v2154
      %2971 = vmatpush.msra.mxu0 %v2146
      %2972 = vmatpush.msra.mxu0 %v2138
      %2973 = vmatpush.msra.mxu0 %v2130
      %2974 = vmatpush.msra.mxu0 %v2122
      %2975 = vmatpush.msra.mxu0 %v2114
      %2976 = vmatpush.msra.mxu0 %v2106
      %2977 = vmatpush.msra.mxu0 %v2098
      %2978 = vmatpush.msra.mxu0 %v2090
      %2979 = vmatpush.msra.mxu0 %v2082
      %2980 = vmatpush.msra.mxu0 %v2074
      %2981 = vmatpush.msra.mxu0 %v2066
      %2982 = vmatpush.msra.mxu0 %v2058
      %2983 = vmatpush.msra.mxu0 %v2050
      %2984 = vmatpush.msra.mxu0 %v2042
      %2985 = vmatpush.msra.mxu0 %v2034
      %2986 = vmatmul.f32.gmra.mxu0 %v2754
      %v2987 = vpop.f32.mrf.mxu0
      %v2988 = vadd.f32 %v2968, %v2987
      %2989 = vdwg.mxu0
      %2990 = vmatpush.msra.mxu0 %v2027
      %2991 = vmatpush.msra.mxu0 %v2019
      %2992 = vmatpush.msra.mxu0 %v2011
      %2993 = vmatpush.msra.mxu0 %v2003
      %2994 = vmatpush.msra.mxu0 %v1995
      %2995 = vmatpush.msra.mxu0 %v1987
      %2996 = vmatpush.msra.mxu0 %v1979
      %2997 = vmatpush.msra.mxu0 %v1971
      %2998 = vmatpush.msra.mxu0 %v1963
      %2999 = vmatpush.msra.mxu0 %v1955
      %3000 = vmatpush.msra.mxu0 %v1947
      %3001 = vmatpush.msra.mxu0 %v1939
      %3002 = vmatpush.msra.mxu0 %v1931
      %3003 = vmatpush.msra.mxu0 %v1923
      %3004 = vmatpush.msra.mxu0 %v1915
      %3005 = vmatpush.msra.mxu0 %v1907
      %3006 = vmatmul.f32.gmra.mxu0 %v2753
      %v3007 = vpop.f32.mrf.mxu0
      %v3008 = vadd.f32 0.0, %v3007
      %3009 = vdwg.mxu0
      %3010 = vmatpush.msra.mxu0 %v2155
      %3011 = vmatpush.msra.mxu0 %v2147
      %3012 = vmatpush.msra.mxu0 %v2139
      %3013 = vmatpush.msra.mxu0 %v2131
      %3014 = vmatpush.msra.mxu0 %v2123
      %3015 = vmatpush.msra.mxu0 %v2115
      %3016 = vmatpush.msra.mxu0 %v2107
      %3017 = vmatpush.msra.mxu0 %v2099
      %3018 = vmatpush.msra.mxu0 %v2091
      %3019 = vmatpush.msra.mxu0 %v2083
      %3020 = vmatpush.msra.mxu0 %v2075
      %3021 = vmatpush.msra.mxu0 %v2067
      %3022 = vmatpush.msra.mxu0 %v2059
      %3023 = vmatpush.msra.mxu0 %v2051
      %3024 = vmatpush.msra.mxu0 %v2043
      %3025 = vmatpush.msra.mxu0 %v2035
      %3026 = vmatmul.f32.gmra.mxu0 %v2754
      %v3027 = vpop.f32.mrf.mxu0
      %v3028 = vadd.f32 %v3008, %v3027
      %3029 = vdwg.mxu0
      %3030 = vmatpush.msra.mxu0 %v2028
      %3031 = vmatpush.msra.mxu0 %v2020
      %3032 = vmatpush.msra.mxu0 %v2012
      %3033 = vmatpush.msra.mxu0 %v2004
      %3034 = vmatpush.msra.mxu0 %v1996
      %3035 = vmatpush.msra.mxu0 %v1988
      %3036 = vmatpush.msra.mxu0 %v1980
      %3037 = vmatpush.msra.mxu0 %v1972
      %3038 = vmatpush.msra.mxu0 %v1964
      %3039 = vmatpush.msra.mxu0 %v1956
      %3040 = vmatpush.msra.mxu0 %v1948
      %3041 = vmatpush.msra.mxu0 %v1940
      %3042 = vmatpush.msra.mxu0 %v1932
      %3043 = vmatpush.msra.mxu0 %v1924
      %3044 = vmatpush.msra.mxu0 %v1916
      %3045 = vmatpush.msra.mxu0 %v1908
      %3046 = vmatmul.f32.gmra.mxu0 %v2753
      %v3047 = vpop.f32.mrf.mxu0
      %v3048 = vadd.f32 0.0, %v3047
      %3049 = vdwg.mxu0
      %3050 = vmatpush.msra.mxu0 %v2156
      %3051 = vmatpush.msra.mxu0 %v2148
      %3052 = vmatpush.msra.mxu0 %v2140
      %3053 = vmatpush.msra.mxu0 %v2132
      %3054 = vmatpush.msra.mxu0 %v2124
      %3055 = vmatpush.msra.mxu0 %v2116
      %3056 = vmatpush.msra.mxu0 %v2108
      %3057 = vmatpush.msra.mxu0 %v2100
      %3058 = vmatpush.msra.mxu0 %v2092
      %3059 = vmatpush.msra.mxu0 %v2084
      %3060 = vmatpush.msra.mxu0 %v2076
      %3061 = vmatpush.msra.mxu0 %v2068
      %3062 = vmatpush.msra.mxu0 %v2060
      %3063 = vmatpush.msra.mxu0 %v2052
      %3064 = vmatpush.msra.mxu0 %v2044
      %3065 = vmatpush.msra.mxu0 %v2036
      %3066 = vmatmul.f32.gmra.mxu0 %v2754
      %v3067 = vpop.f32.mrf.mxu0
      %v3068 = vadd.f32 %v3048, %v3067
      %3069 = vdwg.mxu0
      %3070 = vmatpush.msra.mxu0 %v2029
      %3071 = vmatpush.msra.mxu0 %v2021
      %3072 = vmatpush.msra.mxu0 %v2013
      %3073 = vmatpush.msra.mxu0 %v2005
      %3074 = vmatpush.msra.mxu0 %v1997
      %3075 = vmatpush.msra.mxu0 %v1989
      %3076 = vmatpush.msra.mxu0 %v1981
      %3077 = vmatpush.msra.mxu0 %v1973
      %3078 = vmatpush.msra.mxu0 %v1965
      %3079 = vmatpush.msra.mxu0 %v1957
      %3080 = vmatpush.msra.mxu0 %v1949
      %3081 = vmatpush.msra.mxu0 %v1941
      %3082 = vmatpush.msra.mxu0 %v1933
      %3083 = vmatpush.msra.mxu0 %v1925
      %3084 = vmatpush.msra.mxu0 %v1917
      %3085 = vmatpush.msra.mxu0 %v1909
      %3086 = vmatmul.f32.gmra.mxu0 %v2753
      %v3087 = vpop.f32.mrf.mxu0
      %v3088 = vadd.f32 0.0, %v3087
      %3089 = vdwg.mxu0
      %3090 = vmatpush.msra.mxu0 %v2157
      %3091 = vmatpush.msra.mxu0 %v2149
      %3092 = vmatpush.msra.mxu0 %v2141
      %3093 = vmatpush.msra.mxu0 %v2133
      %3094 = vmatpush.msra.mxu0 %v2125
      %3095 = vmatpush.msra.mxu0 %v2117
      %3096 = vmatpush.msra.mxu0 %v2109
      %3097 = vmatpush.msra.mxu0 %v2101
      %3098 = vmatpush.msra.mxu0 %v2093
      %3099 = vmatpush.msra.mxu0 %v2085
      %3100 = vmatpush.msra.mxu0 %v2077
      %3101 = vmatpush.msra.mxu0 %v2069
      %3102 = vmatpush.msra.mxu0 %v2061
      %3103 = vmatpush.msra.mxu0 %v2053
      %3104 = vmatpush.msra.mxu0 %v2045
      %3105 = vmatpush.msra.mxu0 %v2037
      %3106 = vmatmul.f32.gmra.mxu0 %v2754
      %v3107 = vpop.f32.mrf.mxu0
      %v3108 = vadd.f32 %v3088, %v3107
      %3109 = vdwg.mxu0
      %v3110 = vadd.f32 %v2782, %v2828
      %v3111 = vadd.f32 %v2783, %v2868
      %v3112 = vadd.f32 %v2784, %v2908
      %v3113 = vadd.f32 %v2785, %v2948
      %v3114 = vadd.f32 %v2786, %v2988
      %v3115 = vadd.f32 %v2787, %v3028
      %v3116 = vadd.f32 %v2788, %v3068
      %v3117 = vadd.f32 %v2789, %v3108
      %v3118 = vxor.u32 %v3110, 2147483648
      %v3119 = vxor.u32 %v3111, 2147483648
      %v3120 = vmul.f32 %v3118, 1.442695
      %v3121 = vpow.pop %v3120
      %v3122 = vmul.f32 %v3119, 1.442695
      %v3123 = vpow.pop %v3122
      %v3124 = vadd.f32 %v3121, 1.0
      %v3125 = vadd.f32 %v3123, 1.0
      %v3126 = vrcp.pop %v3124
      %v3127 = vmul.f32 %v3124, %v3126
      %v3128 = vsub.f32 1.0, %v3127
      %v3129 = vmul.f32 %v3126, %v3128
      %v3130 = vadd.f32 %v3126, %v3129
      %vm3131 = vweird.f32 %v3124
      %vm3132 = vweird.f32 %v3126
      %vm3133 = vmor %vm3131, %vm3132
      %v3134 = vsel %vm3133, %v3126, %v3130
      %v3135 = vand.u32 2147483647, %v3124
      %vm3136 = vcmp.eq.f32.partialorder %v3135, 8.507059e+37
      %v3137 = vand.u32 %v3124, 2147483648
      %v3138 = vor.u32 1.1754944e-38, %v3137
      %v3139 = vsel %vm3136, %v3138, %v3134
      %v3140 = vmul.f32 1.0, %v3139
      %v3141 = vrcp.pop %v3125
      %v3142 = vmul.f32 %v3125, %v3141
      %v3143 = vsub.f32 1.0, %v3142
      %v3144 = vmul.f32 %v3141, %v3143
      %v3145 = vadd.f32 %v3141, %v3144
      %vm3146 = vweird.f32 %v3125
      %vm3147 = vweird.f32 %v3141
      %vm3148 = vmor %vm3146, %vm3147
      %v3149 = vsel %vm3148, %v3141, %v3145
      %v3150 = vand.u32 2147483647, %v3125
      %vm3151 = vcmp.eq.f32.partialorder %v3150, 8.507059e+37
      %v3152 = vand.u32 %v3125, 2147483648
      %v3153 = vor.u32 1.1754944e-38, %v3152
      %v3154 = vsel %vm3151, %v3153, %v3149
      %v3155 = vmul.f32 1.0, %v3154
      %v3156 = vxor.u32 %v3112, 2147483648
      %v3157 = vxor.u32 %v3113, 2147483648
      %v3158 = vmul.f32 %v3156, 1.442695
      %v3159 = vpow.pop %v3158
      %v3160 = vmul.f32 %v3157, 1.442695
      %v3161 = vpow.pop %v3160
      %v3162 = vadd.f32 %v3159, 1.0
      %v3163 = vadd.f32 %v3161, 1.0
      %v3164 = vrcp.pop %v3162
      %v3165 = vmul.f32 %v3162, %v3164
      %v3166 = vsub.f32 1.0, %v3165
      %v3167 = vmul.f32 %v3164, %v3166
      %v3168 = vadd.f32 %v3164, %v3167
      %vm3169 = vweird.f32 %v3162
      %vm3170 = vweird.f32 %v3164
      %vm3171 = vmor %vm3169, %vm3170
      %v3172 = vsel %vm3171, %v3164, %v3168
      %v3173 = vand.u32 2147483647, %v3162
      %vm3174 = vcmp.eq.f32.partialorder %v3173, 8.507059e+37
      %v3175 = vand.u32 %v3162, 2147483648
      %v3176 = vor.u32 1.1754944e-38, %v3175
      %v3177 = vsel %vm3174, %v3176, %v3172
      %v3178 = vmul.f32 1.0, %v3177
      %v3179 = vrcp.pop %v3163
      %v3180 = vmul.f32 %v3163, %v3179
      %v3181 = vsub.f32 1.0, %v3180
      %v3182 = vmul.f32 %v3179, %v3181
      %v3183 = vadd.f32 %v3179, %v3182
      %vm3184 = vweird.f32 %v3163
      %vm3185 = vweird.f32 %v3179
      %vm3186 = vmor %vm3184, %vm3185
      %v3187 = vsel %vm3186, %v3179, %v3183
      %v3188 = vand.u32 2147483647, %v3163
      %vm3189 = vcmp.eq.f32.partialorder %v3188, 8.507059e+37
      %v3190 = vand.u32 %v3163, 2147483648
      %v3191 = vor.u32 1.1754944e-38, %v3190
      %v3192 = vsel %vm3189, %v3191, %v3187
      %v3193 = vmul.f32 1.0, %v3192
      %v3194 = vtanh.pop %v3114
      %v3195 = vtanh.pop %v3115
      %v3196 = vxor.u32 %v3116, 2147483648
      %v3197 = vxor.u32 %v3117, 2147483648
      %v3198 = vmul.f32 %v3196, 1.442695
      %v3199 = vpow.pop %v3198
      %v3200 = vmul.f32 %v3197, 1.442695
      %v3201 = vpow.pop %v3200
      %v3202 = vadd.f32 %v3199, 1.0
      %v3203 = vadd.f32 %v3201, 1.0
      %v3204 = vrcp.pop %v3202
      %v3205 = vmul.f32 %v3202, %v3204
      %v3206 = vsub.f32 1.0, %v3205
      %v3207 = vmul.f32 %v3204, %v3206
      %v3208 = vadd.f32 %v3204, %v3207
      %vm3209 = vweird.f32 %v3202
      %vm3210 = vweird.f32 %v3204
      %vm3211 = vmor %vm3209, %vm3210
      %v3212 = vsel %vm3211, %v3204, %v3208
      %v3213 = vand.u32 2147483647, %v3202
      %vm3214 = vcmp.eq.f32.partialorder %v3213, 8.507059e+37
      %v3215 = vand.u32 %v3202, 2147483648
      %v3216 = vor.u32 1.1754944e-38, %v3215
      %v3217 = vsel %vm3214, %v3216, %v3212
      %v3218 = vmul.f32 1.0, %v3217
      %v3219 = vrcp.pop %v3203
      %v3220 = vmul.f32 %v3203, %v3219
      %v3221 = vsub.f32 1.0, %v3220
      %v3222 = vmul.f32 %v3219, %v3221
      %v3223 = vadd.f32 %v3219, %v3222
      %vm3224 = vweird.f32 %v3203
      %vm3225 = vweird.f32 %v3219
      %vm3226 = vmor %vm3224, %vm3225
      %v3227 = vsel %vm3226, %v3219, %v3223
      %v3228 = vand.u32 2147483647, %v3203
      %vm3229 = vcmp.eq.f32.partialorder %v3228, 8.507059e+37
      %v3230 = vand.u32 %v3203, 2147483648
      %v3231 = vor.u32 1.1754944e-38, %v3230
      %v3232 = vsel %vm3229, %v3231, %v3227
      %v3233 = vmul.f32 1.0, %v3232
      %v3234 = vmul.f32 %v3178, %v2749
      %v3235 = vmul.f32 %v3193, %v2750
      %v3236 = vmul.f32 %v3140, %v3194
      %v3237 = vmul.f32 %v3155, %v3195
      %v3238 = vadd.f32 %v3234, %v3236
      %v3239 = vadd.f32 %v3235, %v3237
      %v3240 = vtanh.pop %v3238
      %v3241 = vtanh.pop %v3239
      %v3242 = vmul.f32 %v3218, %v3240
      %v3243 = vmul.f32 %v3233, %v3241
      %s3244 = scalar_lea.vmem [#allocation3], 8
      %3245 = vst [vmem:[%s3244] sm:$0xff] %v3242
      %s3246 = scalar_lea.vmem [#allocation4], 48
      %3247 = vst [vmem:[%s3246] sm:$0xff] %v3243
      %v3248 = vadd.f32 %v2758, %v3242
      %v3249 = vadd.f32 %v2759, %v3243
      %s3250 = smul.u32 2, 8
      %s3251 = smul.addr %s3250, 8
      %s3252 = scalar_lea.vmem [#allocation2], %s3251
      %v3253 = vld [vmem:[%s3252] sm:$0xff]
      %v3254 = vld [vmem:[%s3252 + $0x8] sm:$0xff]
      %v3255 = vld [vmem:[%s3252 + $0x10] sm:$0xff]
      %v3256 = vld [vmem:[%s3252 + $0x18] sm:$0xff]
      %v3257 = vld [vmem:[%s3252 + $0x20] sm:$0xff]
      %v3258 = vld [vmem:[%s3252 + $0x28] sm:$0xff]
      %v3259 = vld [vmem:[%s3252 + $0x30] sm:$0xff]
      %v3260 = vld [vmem:[%s3252 + $0x38] sm:$0xff]
      %s3261 = smul.u32 5, 8
      %s3262 = smul.addr %s3261, 8
      %s3263 = scalar_lea.vmem [#allocation2], %s3262
      %v3264 = vld [vmem:[%s3263] sm:$0xff]
      %v3265 = vld [vmem:[%s3263 + $0x8] sm:$0xff]
      %v3266 = vld [vmem:[%s3263 + $0x10] sm:$0xff]
      %v3267 = vld [vmem:[%s3263 + $0x18] sm:$0xff]
      %v3268 = vld [vmem:[%s3263 + $0x20] sm:$0xff]
      %v3269 = vld [vmem:[%s3263 + $0x28] sm:$0xff]
      %v3270 = vld [vmem:[%s3263 + $0x30] sm:$0xff]
      %v3271 = vld [vmem:[%s3263 + $0x38] sm:$0xff]
      %v3272 = vsel %vm2263, %v3253, %v3264
      %v3273 = vsel %vm2264, %v3254, %v3265
      %v3274 = vsel %vm2265, %v3255, %v3266
      %v3275 = vsel %vm2266, %v3256, %v3267
      %v3276 = vsel %vm2267, %v3257, %v3268
      %v3277 = vsel %vm2268, %v3258, %v3269
      %v3278 = vsel %vm2269, %v3259, %v3270
      %v3279 = vsel %vm2270, %v3260, %v3271
      %3280 = vmatpush.msra.mxu0 %v2022
      %3281 = vmatpush.msra.mxu0 %v2014
      %3282 = vmatpush.msra.mxu0 %v2006
      %3283 = vmatpush.msra.mxu0 %v1998
      %3284 = vmatpush.msra.mxu0 %v1990
      %3285 = vmatpush.msra.mxu0 %v1982
      %3286 = vmatpush.msra.mxu0 %v1974
      %3287 = vmatpush.msra.mxu0 %v1966
      %3288 = vmatpush.msra.mxu0 %v1958
      %3289 = vmatpush.msra.mxu0 %v1950
      %3290 = vmatpush.msra.mxu0 %v1942
      %3291 = vmatpush.msra.mxu0 %v1934
      %3292 = vmatpush.msra.mxu0 %v1926
      %3293 = vmatpush.msra.mxu0 %v1918
      %3294 = vmatpush.msra.mxu0 %v1910
      %3295 = vmatpush.msra.mxu0 %v1902
      %3296 = vmatmul.f32.gmra.mxu0 %v3242
      %v3297 = vpop.f32.mrf.mxu0
      %v3298 = vadd.f32 0.0, %v3297
      %3299 = vdwg.mxu0
      %3300 = vmatpush.msra.mxu0 %v2150
      %3301 = vmatpush.msra.mxu0 %v2142
      %3302 = vmatpush.msra.mxu0 %v2134
      %3303 = vmatpush.msra.mxu0 %v2126
      %3304 = vmatpush.msra.mxu0 %v2118
      %3305 = vmatpush.msra.mxu0 %v2110
      %3306 = vmatpush.msra.mxu0 %v2102
      %3307 = vmatpush.msra.mxu0 %v2094
      %3308 = vmatpush.msra.mxu0 %v2086
      %3309 = vmatpush.msra.mxu0 %v2078
      %3310 = vmatpush.msra.mxu0 %v2070
      %3311 = vmatpush.msra.mxu0 %v2062
      %3312 = vmatpush.msra.mxu0 %v2054
      %3313 = vmatpush.msra.mxu0 %v2046
      %3314 = vmatpush.msra.mxu0 %v2038
      %3315 = vmatpush.msra.mxu0 %v2030
      %3316 = vmatmul.f32.gmra.mxu0 %v3243
      %v3317 = vpop.f32.mrf.mxu0
      %v3318 = vadd.f32 %v3298, %v3317
      %3319 = vdwg.mxu0
      %3320 = vmatpush.msra.mxu0 %v2023
      %3321 = vmatpush.msra.mxu0 %v2015
      %3322 = vmatpush.msra.mxu0 %v2007
      %3323 = vmatpush.msra.mxu0 %v1999
      %3324 = vmatpush.msra.mxu0 %v1991
      %3325 = vmatpush.msra.mxu0 %v1983
      %3326 = vmatpush.msra.mxu0 %v1975
      %3327 = vmatpush.msra.mxu0 %v1967
      %3328 = vmatpush.msra.mxu0 %v1959
      %3329 = vmatpush.msra.mxu0 %v1951
      %3330 = vmatpush.msra.mxu0 %v1943
      %3331 = vmatpush.msra.mxu0 %v1935
      %3332 = vmatpush.msra.mxu0 %v1927
      %3333 = vmatpush.msra.mxu0 %v1919
      %3334 = vmatpush.msra.mxu0 %v1911
      %3335 = vmatpush.msra.mxu0 %v1903
      %3336 = vmatmul.f32.gmra.mxu0 %v3242
      %v3337 = vpop.f32.mrf.mxu0
      %v3338 = vadd.f32 0.0, %v3337
      %3339 = vdwg.mxu0
      %3340 = vmatpush.msra.mxu0 %v2151
      %3341 = vmatpush.msra.mxu0 %v2143
      %3342 = vmatpush.msra.mxu0 %v2135
      %3343 = vmatpush.msra.mxu0 %v2127
      %3344 = vmatpush.msra.mxu0 %v2119
      %3345 = vmatpush.msra.mxu0 %v2111
      %3346 = vmatpush.msra.mxu0 %v2103
      %3347 = vmatpush.msra.mxu0 %v2095
      %3348 = vmatpush.msra.mxu0 %v2087
      %3349 = vmatpush.msra.mxu0 %v2079
      %3350 = vmatpush.msra.mxu0 %v2071
      %3351 = vmatpush.msra.mxu0 %v2063
      %3352 = vmatpush.msra.mxu0 %v2055
      %3353 = vmatpush.msra.mxu0 %v2047
      %3354 = vmatpush.msra.mxu0 %v2039
      %3355 = vmatpush.msra.mxu0 %v2031
      %3356 = vmatmul.f32.gmra.mxu0 %v3243
      %v3357 = vpop.f32.mrf.mxu0
      %v3358 = vadd.f32 %v3338, %v3357
      %3359 = vdwg.mxu0
      %3360 = vmatpush.msra.mxu0 %v2024
      %3361 = vmatpush.msra.mxu0 %v2016
      %3362 = vmatpush.msra.mxu0 %v2008
      %3363 = vmatpush.msra.mxu0 %v2000
      %3364 = vmatpush.msra.mxu0 %v1992
      %3365 = vmatpush.msra.mxu0 %v1984
      %3366 = vmatpush.msra.mxu0 %v1976
      %3367 = vmatpush.msra.mxu0 %v1968
      %3368 = vmatpush.msra.mxu0 %v1960
      %3369 = vmatpush.msra.mxu0 %v1952
      %3370 = vmatpush.msra.mxu0 %v1944
      %3371 = vmatpush.msra.mxu0 %v1936
      %3372 = vmatpush.msra.mxu0 %v1928
      %3373 = vmatpush.msra.mxu0 %v1920
      %3374 = vmatpush.msra.mxu0 %v1912
      %3375 = vmatpush.msra.mxu0 %v1904
      %3376 = vmatmul.f32.gmra.mxu0 %v3242
      %v3377 = vpop.f32.mrf.mxu0
      %v3378 = vadd.f32 0.0, %v3377
      %3379 = vdwg.mxu0
      %3380 = vmatpush.msra.mxu0 %v2152
      %3381 = vmatpush.msra.mxu0 %v2144
      %3382 = vmatpush.msra.mxu0 %v2136
      %3383 = vmatpush.msra.mxu0 %v2128
      %3384 = vmatpush.msra.mxu0 %v2120
      %3385 = vmatpush.msra.mxu0 %v2112
      %3386 = vmatpush.msra.mxu0 %v2104
      %3387 = vmatpush.msra.mxu0 %v2096
      %3388 = vmatpush.msra.mxu0 %v2088
      %3389 = vmatpush.msra.mxu0 %v2080
      %3390 = vmatpush.msra.mxu0 %v2072
      %3391 = vmatpush.msra.mxu0 %v2064
      %3392 = vmatpush.msra.mxu0 %v2056
      %3393 = vmatpush.msra.mxu0 %v2048
      %3394 = vmatpush.msra.mxu0 %v2040
      %3395 = vmatpush.msra.mxu0 %v2032
      %3396 = vmatmul.f32.gmra.mxu0 %v3243
      %v3397 = vpop.f32.mrf.mxu0
      %v3398 = vadd.f32 %v3378, %v3397
      %3399 = vdwg.mxu0
      %3400 = vmatpush.msra.mxu0 %v2025
      %3401 = vmatpush.msra.mxu0 %v2017
      %3402 = vmatpush.msra.mxu0 %v2009
      %3403 = vmatpush.msra.mxu0 %v2001
      %3404 = vmatpush.msra.mxu0 %v1993
      %3405 = vmatpush.msra.mxu0 %v1985
      %3406 = vmatpush.msra.mxu0 %v1977
      %3407 = vmatpush.msra.mxu0 %v1969
      %3408 = vmatpush.msra.mxu0 %v1961
      %3409 = vmatpush.msra.mxu0 %v1953
      %3410 = vmatpush.msra.mxu0 %v1945
      %3411 = vmatpush.msra.mxu0 %v1937
      %3412 = vmatpush.msra.mxu0 %v1929
      %3413 = vmatpush.msra.mxu0 %v1921
      %3414 = vmatpush.msra.mxu0 %v1913
      %3415 = vmatpush.msra.mxu0 %v1905
      %3416 = vmatmul.f32.gmra.mxu0 %v3242
      %v3417 = vpop.f32.mrf.mxu0
      %v3418 = vadd.f32 0.0, %v3417
      %3419 = vdwg.mxu0
      %3420 = vmatpush.msra.mxu0 %v2153
      %3421 = vmatpush.msra.mxu0 %v2145
      %3422 = vmatpush.msra.mxu0 %v2137
      %3423 = vmatpush.msra.mxu0 %v2129
      %3424 = vmatpush.msra.mxu0 %v2121
      %3425 = vmatpush.msra.mxu0 %v2113
      %3426 = vmatpush.msra.mxu0 %v2105
      %3427 = vmatpush.msra.mxu0 %v2097
      %3428 = vmatpush.msra.mxu0 %v2089
      %3429 = vmatpush.msra.mxu0 %v2081
      %3430 = vmatpush.msra.mxu0 %v2073
      %3431 = vmatpush.msra.mxu0 %v2065
      %3432 = vmatpush.msra.mxu0 %v2057
      %3433 = vmatpush.msra.mxu0 %v2049
      %3434 = vmatpush.msra.mxu0 %v2041
      %3435 = vmatpush.msra.mxu0 %v2033
      %3436 = vmatmul.f32.gmra.mxu0 %v3243
      %v3437 = vpop.f32.mrf.mxu0
      %v3438 = vadd.f32 %v3418, %v3437
      %3439 = vdwg.mxu0
      %3440 = vmatpush.msra.mxu0 %v2026
      %3441 = vmatpush.msra.mxu0 %v2018
      %3442 = vmatpush.msra.mxu0 %v2010
      %3443 = vmatpush.msra.mxu0 %v2002
      %3444 = vmatpush.msra.mxu0 %v1994
      %3445 = vmatpush.msra.mxu0 %v1986
      %3446 = vmatpush.msra.mxu0 %v1978
      %3447 = vmatpush.msra.mxu0 %v1970
      %3448 = vmatpush.msra.mxu0 %v1962
      %3449 = vmatpush.msra.mxu0 %v1954
      %3450 = vmatpush.msra.mxu0 %v1946
      %3451 = vmatpush.msra.mxu0 %v1938
      %3452 = vmatpush.msra.mxu0 %v1930
      %3453 = vmatpush.msra.mxu0 %v1922
      %3454 = vmatpush.msra.mxu0 %v1914
      %3455 = vmatpush.msra.mxu0 %v1906
      %3456 = vmatmul.f32.gmra.mxu0 %v3242
      %v3457 = vpop.f32.mrf.mxu0
      %v3458 = vadd.f32 0.0, %v3457
      %3459 = vdwg.mxu0
      %3460 = vmatpush.msra.mxu0 %v2154
      %3461 = vmatpush.msra.mxu0 %v2146
      %3462 = vmatpush.msra.mxu0 %v2138
      %3463 = vmatpush.msra.mxu0 %v2130
      %3464 = vmatpush.msra.mxu0 %v2122
      %3465 = vmatpush.msra.mxu0 %v2114
      %3466 = vmatpush.msra.mxu0 %v2106
      %3467 = vmatpush.msra.mxu0 %v2098
      %3468 = vmatpush.msra.mxu0 %v2090
      %3469 = vmatpush.msra.mxu0 %v2082
      %3470 = vmatpush.msra.mxu0 %v2074
      %3471 = vmatpush.msra.mxu0 %v2066
      %3472 = vmatpush.msra.mxu0 %v2058
      %3473 = vmatpush.msra.mxu0 %v2050
      %3474 = vmatpush.msra.mxu0 %v2042
      %3475 = vmatpush.msra.mxu0 %v2034
      %3476 = vmatmul.f32.gmra.mxu0 %v3243
      %v3477 = vpop.f32.mrf.mxu0
      %v3478 = vadd.f32 %v3458, %v3477
      %3479 = vdwg.mxu0
      %3480 = vmatpush.msra.mxu0 %v2027
      %3481 = vmatpush.msra.mxu0 %v2019
      %3482 = vmatpush.msra.mxu0 %v2011
      %3483 = vmatpush.msra.mxu0 %v2003
      %3484 = vmatpush.msra.mxu0 %v1995
      %3485 = vmatpush.msra.mxu0 %v1987
      %3486 = vmatpush.msra.mxu0 %v1979
      %3487 = vmatpush.msra.mxu0 %v1971
      %3488 = vmatpush.msra.mxu0 %v1963
      %3489 = vmatpush.msra.mxu0 %v1955
      %3490 = vmatpush.msra.mxu0 %v1947
      %3491 = vmatpush.msra.mxu0 %v1939
      %3492 = vmatpush.msra.mxu0 %v1931
      %3493 = vmatpush.msra.mxu0 %v1923
      %3494 = vmatpush.msra.mxu0 %v1915
      %3495 = vmatpush.msra.mxu0 %v1907
      %3496 = vmatmul.f32.gmra.mxu0 %v3242
      %v3497 = vpop.f32.mrf.mxu0
      %v3498 = vadd.f32 0.0, %v3497
      %3499 = vdwg.mxu0
      %3500 = vmatpush.msra.mxu0 %v2155
      %3501 = vmatpush.msra.mxu0 %v2147
      %3502 = vmatpush.msra.mxu0 %v2139
      %3503 = vmatpush.msra.mxu0 %v2131
      %3504 = vmatpush.msra.mxu0 %v2123
      %3505 = vmatpush.msra.mxu0 %v2115
      %3506 = vmatpush.msra.mxu0 %v2107
      %3507 = vmatpush.msra.mxu0 %v2099
      %3508 = vmatpush.msra.mxu0 %v2091
      %3509 = vmatpush.msra.mxu0 %v2083
      %3510 = vmatpush.msra.mxu0 %v2075
      %3511 = vmatpush.msra.mxu0 %v2067
      %3512 = vmatpush.msra.mxu0 %v2059
      %3513 = vmatpush.msra.mxu0 %v2051
      %3514 = vmatpush.msra.mxu0 %v2043
      %3515 = vmatpush.msra.mxu0 %v2035
      %3516 = vmatmul.f32.gmra.mxu0 %v3243
      %v3517 = vpop.f32.mrf.mxu0
      %v3518 = vadd.f32 %v3498, %v3517
      %3519 = vdwg.mxu0
      %3520 = vmatpush.msra.mxu0 %v2028
      %3521 = vmatpush.msra.mxu0 %v2020
      %3522 = vmatpush.msra.mxu0 %v2012
      %3523 = vmatpush.msra.mxu0 %v2004
      %3524 = vmatpush.msra.mxu0 %v1996
      %3525 = vmatpush.msra.mxu0 %v1988
      %3526 = vmatpush.msra.mxu0 %v1980
      %3527 = vmatpush.msra.mxu0 %v1972
      %3528 = vmatpush.msra.mxu0 %v1964
      %3529 = vmatpush.msra.mxu0 %v1956
      %3530 = vmatpush.msra.mxu0 %v1948
      %3531 = vmatpush.msra.mxu0 %v1940
      %3532 = vmatpush.msra.mxu0 %v1932
      %3533 = vmatpush.msra.mxu0 %v1924
      %3534 = vmatpush.msra.mxu0 %v1916
      %3535 = vmatpush.msra.mxu0 %v1908
      %3536 = vmatmul.f32.gmra.mxu0 %v3242
      %v3537 = vpop.f32.mrf.mxu0
      %v3538 = vadd.f32 0.0, %v3537
      %3539 = vdwg.mxu0
      %3540 = vmatpush.msra.mxu0 %v2156
      %3541 = vmatpush.msra.mxu0 %v2148
      %3542 = vmatpush.msra.mxu0 %v2140
      %3543 = vmatpush.msra.mxu0 %v2132
      %3544 = vmatpush.msra.mxu0 %v2124
      %3545 = vmatpush.msra.mxu0 %v2116
      %3546 = vmatpush.msra.mxu0 %v2108
      %3547 = vmatpush.msra.mxu0 %v2100
      %3548 = vmatpush.msra.mxu0 %v2092
      %3549 = vmatpush.msra.mxu0 %v2084
      %3550 = vmatpush.msra.mxu0 %v2076
      %3551 = vmatpush.msra.mxu0 %v2068
      %3552 = vmatpush.msra.mxu0 %v2060
      %3553 = vmatpush.msra.mxu0 %v2052
      %3554 = vmatpush.msra.mxu0 %v2044
      %3555 = vmatpush.msra.mxu0 %v2036
      %3556 = vmatmul.f32.gmra.mxu0 %v3243
      %v3557 = vpop.f32.mrf.mxu0
      %v3558 = vadd.f32 %v3538, %v3557
      %3559 = vdwg.mxu0
      %3560 = vmatpush.msra.mxu0 %v2029
      %3561 = vmatpush.msra.mxu0 %v2021
      %3562 = vmatpush.msra.mxu0 %v2013
      %3563 = vmatpush.msra.mxu0 %v2005
      %3564 = vmatpush.msra.mxu0 %v1997
      %3565 = vmatpush.msra.mxu0 %v1989
      %3566 = vmatpush.msra.mxu0 %v1981
      %3567 = vmatpush.msra.mxu0 %v1973
      %3568 = vmatpush.msra.mxu0 %v1965
      %3569 = vmatpush.msra.mxu0 %v1957
      %3570 = vmatpush.msra.mxu0 %v1949
      %3571 = vmatpush.msra.mxu0 %v1941
      %3572 = vmatpush.msra.mxu0 %v1933
      %3573 = vmatpush.msra.mxu0 %v1925
      %3574 = vmatpush.msra.mxu0 %v1917
      %3575 = vmatpush.msra.mxu0 %v1909
      %3576 = vmatmul.f32.gmra.mxu0 %v3242
      %v3577 = vpop.f32.mrf.mxu0
      %v3578 = vadd.f32 0.0, %v3577
      %3579 = vdwg.mxu0
      %3580 = vmatpush.msra.mxu0 %v2157
      %3581 = vmatpush.msra.mxu0 %v2149
      %3582 = vmatpush.msra.mxu0 %v2141
      %3583 = vmatpush.msra.mxu0 %v2133
      %3584 = vmatpush.msra.mxu0 %v2125
      %3585 = vmatpush.msra.mxu0 %v2117
      %3586 = vmatpush.msra.mxu0 %v2109
      %3587 = vmatpush.msra.mxu0 %v2101
      %3588 = vmatpush.msra.mxu0 %v2093
      %3589 = vmatpush.msra.mxu0 %v2085
      %3590 = vmatpush.msra.mxu0 %v2077
      %3591 = vmatpush.msra.mxu0 %v2069
      %3592 = vmatpush.msra.mxu0 %v2061
      %3593 = vmatpush.msra.mxu0 %v2053
      %3594 = vmatpush.msra.mxu0 %v2045
      %3595 = vmatpush.msra.mxu0 %v2037
      %3596 = vmatmul.f32.gmra.mxu0 %v3243
      %v3597 = vpop.f32.mrf.mxu0
      %v3598 = vadd.f32 %v3578, %v3597
      %3599 = vdwg.mxu0
      %v3600 = vadd.f32 %v3272, %v3318
      %v3601 = vadd.f32 %v3273, %v3358
      %v3602 = vadd.f32 %v3274, %v3398
      %v3603 = vadd.f32 %v3275, %v3438
      %v3604 = vadd.f32 %v3276, %v3478
      %v3605 = vadd.f32 %v3277, %v3518
      %v3606 = vadd.f32 %v3278, %v3558
      %v3607 = vadd.f32 %v3279, %v3598
      %v3608 = vxor.u32 %v3600, 2147483648
      %v3609 = vxor.u32 %v3601, 2147483648
      %v3610 = vmul.f32 %v3608, 1.442695
      %v3611 = vpow.pop %v3610
      %v3612 = vmul.f32 %v3609, 1.442695
      %v3613 = vpow.pop %v3612
      %v3614 = vadd.f32 %v3611, 1.0
      %v3615 = vadd.f32 %v3613, 1.0
      %v3616 = vrcp.pop %v3614
      %v3617 = vmul.f32 %v3614, %v3616
      %v3618 = vsub.f32 1.0, %v3617
      %v3619 = vmul.f32 %v3616, %v3618
      %v3620 = vadd.f32 %v3616, %v3619
      %vm3621 = vweird.f32 %v3614
      %vm3622 = vweird.f32 %v3616
      %vm3623 = vmor %vm3621, %vm3622
      %v3624 = vsel %vm3623, %v3616, %v3620
      %v3625 = vand.u32 2147483647, %v3614
      %vm3626 = vcmp.eq.f32.partialorder %v3625, 8.507059e+37
      %v3627 = vand.u32 %v3614, 2147483648
      %v3628 = vor.u32 1.1754944e-38, %v3627
      %v3629 = vsel %vm3626, %v3628, %v3624
      %v3630 = vmul.f32 1.0, %v3629
      %v3631 = vrcp.pop %v3615
      %v3632 = vmul.f32 %v3615, %v3631
      %v3633 = vsub.f32 1.0, %v3632
      %v3634 = vmul.f32 %v3631, %v3633
      %v3635 = vadd.f32 %v3631, %v3634
      %vm3636 = vweird.f32 %v3615
      %vm3637 = vweird.f32 %v3631
      %vm3638 = vmor %vm3636, %vm3637
      %v3639 = vsel %vm3638, %v3631, %v3635
      %v3640 = vand.u32 2147483647, %v3615
      %vm3641 = vcmp.eq.f32.partialorder %v3640, 8.507059e+37
      %v3642 = vand.u32 %v3615, 2147483648
      %v3643 = vor.u32 1.1754944e-38, %v3642
      %v3644 = vsel %vm3641, %v3643, %v3639
      %v3645 = vmul.f32 1.0, %v3644
      %v3646 = vxor.u32 %v3602, 2147483648
      %v3647 = vxor.u32 %v3603, 2147483648
      %v3648 = vmul.f32 %v3646, 1.442695
      %v3649 = vpow.pop %v3648
      %v3650 = vmul.f32 %v3647, 1.442695
      %v3651 = vpow.pop %v3650
      %v3652 = vadd.f32 %v3649, 1.0
      %v3653 = vadd.f32 %v3651, 1.0
      %v3654 = vrcp.pop %v3652
      %v3655 = vmul.f32 %v3652, %v3654
      %v3656 = vsub.f32 1.0, %v3655
      %v3657 = vmul.f32 %v3654, %v3656
      %v3658 = vadd.f32 %v3654, %v3657
      %vm3659 = vweird.f32 %v3652
      %vm3660 = vweird.f32 %v3654
      %vm3661 = vmor %vm3659, %vm3660
      %v3662 = vsel %vm3661, %v3654, %v3658
      %v3663 = vand.u32 2147483647, %v3652
      %vm3664 = vcmp.eq.f32.partialorder %v3663, 8.507059e+37
      %v3665 = vand.u32 %v3652, 2147483648
      %v3666 = vor.u32 1.1754944e-38, %v3665
      %v3667 = vsel %vm3664, %v3666, %v3662
      %v3668 = vmul.f32 1.0, %v3667
      %v3669 = vrcp.pop %v3653
      %v3670 = vmul.f32 %v3653, %v3669
      %v3671 = vsub.f32 1.0, %v3670
      %v3672 = vmul.f32 %v3669, %v3671
      %v3673 = vadd.f32 %v3669, %v3672
      %vm3674 = vweird.f32 %v3653
      %vm3675 = vweird.f32 %v3669
      %vm3676 = vmor %vm3674, %vm3675
      %v3677 = vsel %vm3676, %v3669, %v3673
      %v3678 = vand.u32 2147483647, %v3653
      %vm3679 = vcmp.eq.f32.partialorder %v3678, 8.507059e+37
      %v3680 = vand.u32 %v3653, 2147483648
      %v3681 = vor.u32 1.1754944e-38, %v3680
      %v3682 = vsel %vm3679, %v3681, %v3677
      %v3683 = vmul.f32 1.0, %v3682
      %v3684 = vtanh.pop %v3604
      %v3685 = vtanh.pop %v3605
      %v3686 = vxor.u32 %v3606, 2147483648
      %v3687 = vxor.u32 %v3607, 2147483648
      %v3688 = vmul.f32 %v3686, 1.442695
      %v3689 = vpow.pop %v3688
      %v3690 = vmul.f32 %v3687, 1.442695
      %v3691 = vpow.pop %v3690
      %v3692 = vadd.f32 %v3689, 1.0
      %v3693 = vadd.f32 %v3691, 1.0
      %v3694 = vrcp.pop %v3692
      %v3695 = vmul.f32 %v3692, %v3694
      %v3696 = vsub.f32 1.0, %v3695
      %v3697 = vmul.f32 %v3694, %v3696
      %v3698 = vadd.f32 %v3694, %v3697
      %vm3699 = vweird.f32 %v3692
      %vm3700 = vweird.f32 %v3694
      %vm3701 = vmor %vm3699, %vm3700
      %v3702 = vsel %vm3701, %v3694, %v3698
      %v3703 = vand.u32 2147483647, %v3692
      %vm3704 = vcmp.eq.f32.partialorder %v3703, 8.507059e+37
      %v3705 = vand.u32 %v3692, 2147483648
      %v3706 = vor.u32 1.1754944e-38, %v3705
      %v3707 = vsel %vm3704, %v3706, %v3702
      %v3708 = vmul.f32 1.0, %v3707
      %v3709 = vrcp.pop %v3693
      %v3710 = vmul.f32 %v3693, %v3709
      %v3711 = vsub.f32 1.0, %v3710
      %v3712 = vmul.f32 %v3709, %v3711
      %v3713 = vadd.f32 %v3709, %v3712
      %vm3714 = vweird.f32 %v3693
      %vm3715 = vweird.f32 %v3709
      %vm3716 = vmor %vm3714, %vm3715
      %v3717 = vsel %vm3716, %v3709, %v3713
      %v3718 = vand.u32 2147483647, %v3693
      %vm3719 = vcmp.eq.f32.partialorder %v3718, 8.507059e+37
      %v3720 = vand.u32 %v3693, 2147483648
      %v3721 = vor.u32 1.1754944e-38, %v3720
      %v3722 = vsel %vm3719, %v3721, %v3717
      %v3723 = vmul.f32 1.0, %v3722
      %v3724 = vmul.f32 %v3668, %v3238
      %v3725 = vmul.f32 %v3683, %v3239
      %v3726 = vmul.f32 %v3630, %v3684
      %v3727 = vmul.f32 %v3645, %v3685
      %v3728 = vadd.f32 %v3724, %v3726
      %v3729 = vadd.f32 %v3725, %v3727
      %v3730 = vtanh.pop %v3728
      %v3731 = vtanh.pop %v3729
      %v3732 = vmul.f32 %v3708, %v3730
      %v3733 = vmul.f32 %v3723, %v3731
      %s3734 = scalar_lea.vmem [#allocation3], 16
      %3735 = vst [vmem:[%s3734] sm:$0xff] %v3732
      %s3736 = scalar_lea.vmem [#allocation4], 40
      %3737 = vst [vmem:[%s3736] sm:$0xff] %v3733
      %v3738 = vadd.f32 %v3248, %v3732
      %v3739 = vadd.f32 %v3249, %v3733
      %s3740 = smul.u32 3, 8
      %s3741 = smul.addr %s3740, 8
      %s3742 = scalar_lea.vmem [#allocation2], %s3741
      %v3743 = vld [vmem:[%s3742] sm:$0xff]
      %v3744 = vld [vmem:[%s3742 + $0x8] sm:$0xff]
      %v3745 = vld [vmem:[%s3742 + $0x10] sm:$0xff]
      %v3746 = vld [vmem:[%s3742 + $0x18] sm:$0xff]
      %v3747 = vld [vmem:[%s3742 + $0x20] sm:$0xff]
      %v3748 = vld [vmem:[%s3742 + $0x28] sm:$0xff]
      %v3749 = vld [vmem:[%s3742 + $0x30] sm:$0xff]
      %v3750 = vld [vmem:[%s3742 + $0x38] sm:$0xff]
      %s3751 = smul.u32 4, 8
      %s3752 = smul.addr %s3751, 8
      %s3753 = scalar_lea.vmem [#allocation2], %s3752
      %v3754 = vld [vmem:[%s3753] sm:$0xff]
      %v3755 = vld [vmem:[%s3753 + $0x8] sm:$0xff]
      %v3756 = vld [vmem:[%s3753 + $0x10] sm:$0xff]
      %v3757 = vld [vmem:[%s3753 + $0x18] sm:$0xff]
      %v3758 = vld [vmem:[%s3753 + $0x20] sm:$0xff]
      %v3759 = vld [vmem:[%s3753 + $0x28] sm:$0xff]
      %v3760 = vld [vmem:[%s3753 + $0x30] sm:$0xff]
      %v3761 = vld [vmem:[%s3753 + $0x38] sm:$0xff]
      %v3762 = vsel %vm2263, %v3743, %v3754
      %v3763 = vsel %vm2264, %v3744, %v3755
      %v3764 = vsel %vm2265, %v3745, %v3756
      %v3765 = vsel %vm2266, %v3746, %v3757
      %v3766 = vsel %vm2267, %v3747, %v3758
      %v3767 = vsel %vm2268, %v3748, %v3759
      %v3768 = vsel %vm2269, %v3749, %v3760
      %v3769 = vsel %vm2270, %v3750, %v3761
      %3770 = vmatpush.msra.mxu0 %v2022
      %3771 = vmatpush.msra.mxu0 %v2014
      %3772 = vmatpush.msra.mxu0 %v2006
      %3773 = vmatpush.msra.mxu0 %v1998
      %3774 = vmatpush.msra.mxu0 %v1990
      %3775 = vmatpush.msra.mxu0 %v1982
      %3776 = vmatpush.msra.mxu0 %v1974
      %3777 = vmatpush.msra.mxu0 %v1966
      %3778 = vmatpush.msra.mxu0 %v1958
      %3779 = vmatpush.msra.mxu0 %v1950
      %3780 = vmatpush.msra.mxu0 %v1942
      %3781 = vmatpush.msra.mxu0 %v1934
      %3782 = vmatpush.msra.mxu0 %v1926
      %3783 = vmatpush.msra.mxu0 %v1918
      %3784 = vmatpush.msra.mxu0 %v1910
      %3785 = vmatpush.msra.mxu0 %v1902
      %3786 = vmatmul.f32.gmra.mxu0 %v3732
      %v3787 = vpop.f32.mrf.mxu0
      %v3788 = vadd.f32 0.0, %v3787
      %3789 = vdwg.mxu0
      %3790 = vmatpush.msra.mxu0 %v2150
      %3791 = vmatpush.msra.mxu0 %v2142
      %3792 = vmatpush.msra.mxu0 %v2134
      %3793 = vmatpush.msra.mxu0 %v2126
      %3794 = vmatpush.msra.mxu0 %v2118
      %3795 = vmatpush.msra.mxu0 %v2110
      %3796 = vmatpush.msra.mxu0 %v2102
      %3797 = vmatpush.msra.mxu0 %v2094
      %3798 = vmatpush.msra.mxu0 %v2086
      %3799 = vmatpush.msra.mxu0 %v2078
      %3800 = vmatpush.msra.mxu0 %v2070
      %3801 = vmatpush.msra.mxu0 %v2062
      %3802 = vmatpush.msra.mxu0 %v2054
      %3803 = vmatpush.msra.mxu0 %v2046
      %3804 = vmatpush.msra.mxu0 %v2038
      %3805 = vmatpush.msra.mxu0 %v2030
      %3806 = vmatmul.f32.gmra.mxu0 %v3733
      %v3807 = vpop.f32.mrf.mxu0
      %v3808 = vadd.f32 %v3788, %v3807
      %3809 = vdwg.mxu0
      %3810 = vmatpush.msra.mxu0 %v2023
      %3811 = vmatpush.msra.mxu0 %v2015
      %3812 = vmatpush.msra.mxu0 %v2007
      %3813 = vmatpush.msra.mxu0 %v1999
      %3814 = vmatpush.msra.mxu0 %v1991
      %3815 = vmatpush.msra.mxu0 %v1983
      %3816 = vmatpush.msra.mxu0 %v1975
      %3817 = vmatpush.msra.mxu0 %v1967
      %3818 = vmatpush.msra.mxu0 %v1959
      %3819 = vmatpush.msra.mxu0 %v1951
      %3820 = vmatpush.msra.mxu0 %v1943
      %3821 = vmatpush.msra.mxu0 %v1935
      %3822 = vmatpush.msra.mxu0 %v1927
      %3823 = vmatpush.msra.mxu0 %v1919
      %3824 = vmatpush.msra.mxu0 %v1911
      %3825 = vmatpush.msra.mxu0 %v1903
      %3826 = vmatmul.f32.gmra.mxu0 %v3732
      %v3827 = vpop.f32.mrf.mxu0
      %v3828 = vadd.f32 0.0, %v3827
      %3829 = vdwg.mxu0
      %3830 = vmatpush.msra.mxu0 %v2151
      %3831 = vmatpush.msra.mxu0 %v2143
      %3832 = vmatpush.msra.mxu0 %v2135
      %3833 = vmatpush.msra.mxu0 %v2127
      %3834 = vmatpush.msra.mxu0 %v2119
      %3835 = vmatpush.msra.mxu0 %v2111
      %3836 = vmatpush.msra.mxu0 %v2103
      %3837 = vmatpush.msra.mxu0 %v2095
      %3838 = vmatpush.msra.mxu0 %v2087
      %3839 = vmatpush.msra.mxu0 %v2079
      %3840 = vmatpush.msra.mxu0 %v2071
      %3841 = vmatpush.msra.mxu0 %v2063
      %3842 = vmatpush.msra.mxu0 %v2055
      %3843 = vmatpush.msra.mxu0 %v2047
      %3844 = vmatpush.msra.mxu0 %v2039
      %3845 = vmatpush.msra.mxu0 %v2031
      %3846 = vmatmul.f32.gmra.mxu0 %v3733
      %v3847 = vpop.f32.mrf.mxu0
      %v3848 = vadd.f32 %v3828, %v3847
      %3849 = vdwg.mxu0
      %3850 = vmatpush.msra.mxu0 %v2024
      %3851 = vmatpush.msra.mxu0 %v2016
      %3852 = vmatpush.msra.mxu0 %v2008
      %3853 = vmatpush.msra.mxu0 %v2000
      %3854 = vmatpush.msra.mxu0 %v1992
      %3855 = vmatpush.msra.mxu0 %v1984
      %3856 = vmatpush.msra.mxu0 %v1976
      %3857 = vmatpush.msra.mxu0 %v1968
      %3858 = vmatpush.msra.mxu0 %v1960
      %3859 = vmatpush.msra.mxu0 %v1952
      %3860 = vmatpush.msra.mxu0 %v1944
      %3861 = vmatpush.msra.mxu0 %v1936
      %3862 = vmatpush.msra.mxu0 %v1928
      %3863 = vmatpush.msra.mxu0 %v1920
      %3864 = vmatpush.msra.mxu0 %v1912
      %3865 = vmatpush.msra.mxu0 %v1904
      %3866 = vmatmul.f32.gmra.mxu0 %v3732
      %v3867 = vpop.f32.mrf.mxu0
      %v3868 = vadd.f32 0.0, %v3867
      %3869 = vdwg.mxu0
      %3870 = vmatpush.msra.mxu0 %v2152
      %3871 = vmatpush.msra.mxu0 %v2144
      %3872 = vmatpush.msra.mxu0 %v2136
      %3873 = vmatpush.msra.mxu0 %v2128
      %3874 = vmatpush.msra.mxu0 %v2120
      %3875 = vmatpush.msra.mxu0 %v2112
      %3876 = vmatpush.msra.mxu0 %v2104
      %3877 = vmatpush.msra.mxu0 %v2096
      %3878 = vmatpush.msra.mxu0 %v2088
      %3879 = vmatpush.msra.mxu0 %v2080
      %3880 = vmatpush.msra.mxu0 %v2072
      %3881 = vmatpush.msra.mxu0 %v2064
      %3882 = vmatpush.msra.mxu0 %v2056
      %3883 = vmatpush.msra.mxu0 %v2048
      %3884 = vmatpush.msra.mxu0 %v2040
      %3885 = vmatpush.msra.mxu0 %v2032
      %3886 = vmatmul.f32.gmra.mxu0 %v3733
      %v3887 = vpop.f32.mrf.mxu0
      %v3888 = vadd.f32 %v3868, %v3887
      %3889 = vdwg.mxu0
      %3890 = vmatpush.msra.mxu0 %v2025
      %3891 = vmatpush.msra.mxu0 %v2017
      %3892 = vmatpush.msra.mxu0 %v2009
      %3893 = vmatpush.msra.mxu0 %v2001
      %3894 = vmatpush.msra.mxu0 %v1993
      %3895 = vmatpush.msra.mxu0 %v1985
      %3896 = vmatpush.msra.mxu0 %v1977
      %3897 = vmatpush.msra.mxu0 %v1969
      %3898 = vmatpush.msra.mxu0 %v1961
      %3899 = vmatpush.msra.mxu0 %v1953
      %3900 = vmatpush.msra.mxu0 %v1945
      %3901 = vmatpush.msra.mxu0 %v1937
      %3902 = vmatpush.msra.mxu0 %v1929
      %3903 = vmatpush.msra.mxu0 %v1921
      %3904 = vmatpush.msra.mxu0 %v1913
      %3905 = vmatpush.msra.mxu0 %v1905
      %3906 = vmatmul.f32.gmra.mxu0 %v3732
      %v3907 = vpop.f32.mrf.mxu0
      %v3908 = vadd.f32 0.0, %v3907
      %3909 = vdwg.mxu0
      %3910 = vmatpush.msra.mxu0 %v2153
      %3911 = vmatpush.msra.mxu0 %v2145
      %3912 = vmatpush.msra.mxu0 %v2137
      %3913 = vmatpush.msra.mxu0 %v2129
      %3914 = vmatpush.msra.mxu0 %v2121
      %3915 = vmatpush.msra.mxu0 %v2113
      %3916 = vmatpush.msra.mxu0 %v2105
      %3917 = vmatpush.msra.mxu0 %v2097
      %3918 = vmatpush.msra.mxu0 %v2089
      %3919 = vmatpush.msra.mxu0 %v2081
      %3920 = vmatpush.msra.mxu0 %v2073
      %3921 = vmatpush.msra.mxu0 %v2065
      %3922 = vmatpush.msra.mxu0 %v2057
      %3923 = vmatpush.msra.mxu0 %v2049
      %3924 = vmatpush.msra.mxu0 %v2041
      %3925 = vmatpush.msra.mxu0 %v2033
      %3926 = vmatmul.f32.gmra.mxu0 %v3733
      %v3927 = vpop.f32.mrf.mxu0
      %v3928 = vadd.f32 %v3908, %v3927
      %3929 = vdwg.mxu0
      %3930 = vmatpush.msra.mxu0 %v2026
      %3931 = vmatpush.msra.mxu0 %v2018
      %3932 = vmatpush.msra.mxu0 %v2010
      %3933 = vmatpush.msra.mxu0 %v2002
      %3934 = vmatpush.msra.mxu0 %v1994
      %3935 = vmatpush.msra.mxu0 %v1986
      %3936 = vmatpush.msra.mxu0 %v1978
      %3937 = vmatpush.msra.mxu0 %v1970
      %3938 = vmatpush.msra.mxu0 %v1962
      %3939 = vmatpush.msra.mxu0 %v1954
      %3940 = vmatpush.msra.mxu0 %v1946
      %3941 = vmatpush.msra.mxu0 %v1938
      %3942 = vmatpush.msra.mxu0 %v1930
      %3943 = vmatpush.msra.mxu0 %v1922
      %3944 = vmatpush.msra.mxu0 %v1914
      %3945 = vmatpush.msra.mxu0 %v1906
      %3946 = vmatmul.f32.gmra.mxu0 %v3732
      %v3947 = vpop.f32.mrf.mxu0
      %v3948 = vadd.f32 0.0, %v3947
      %3949 = vdwg.mxu0
      %3950 = vmatpush.msra.mxu0 %v2154
      %3951 = vmatpush.msra.mxu0 %v2146
      %3952 = vmatpush.msra.mxu0 %v2138
      %3953 = vmatpush.msra.mxu0 %v2130
      %3954 = vmatpush.msra.mxu0 %v2122
      %3955 = vmatpush.msra.mxu0 %v2114
      %3956 = vmatpush.msra.mxu0 %v2106
      %3957 = vmatpush.msra.mxu0 %v2098
      %3958 = vmatpush.msra.mxu0 %v2090
      %3959 = vmatpush.msra.mxu0 %v2082
      %3960 = vmatpush.msra.mxu0 %v2074
      %3961 = vmatpush.msra.mxu0 %v2066
      %3962 = vmatpush.msra.mxu0 %v2058
      %3963 = vmatpush.msra.mxu0 %v2050
      %3964 = vmatpush.msra.mxu0 %v2042
      %3965 = vmatpush.msra.mxu0 %v2034
      %3966 = vmatmul.f32.gmra.mxu0 %v3733
      %v3967 = vpop.f32.mrf.mxu0
      %v3968 = vadd.f32 %v3948, %v3967
      %3969 = vdwg.mxu0
      %3970 = vmatpush.msra.mxu0 %v2027
      %3971 = vmatpush.msra.mxu0 %v2019
      %3972 = vmatpush.msra.mxu0 %v2011
      %3973 = vmatpush.msra.mxu0 %v2003
      %3974 = vmatpush.msra.mxu0 %v1995
      %3975 = vmatpush.msra.mxu0 %v1987
      %3976 = vmatpush.msra.mxu0 %v1979
      %3977 = vmatpush.msra.mxu0 %v1971
      %3978 = vmatpush.msra.mxu0 %v1963
      %3979 = vmatpush.msra.mxu0 %v1955
      %3980 = vmatpush.msra.mxu0 %v1947
      %3981 = vmatpush.msra.mxu0 %v1939
      %3982 = vmatpush.msra.mxu0 %v1931
      %3983 = vmatpush.msra.mxu0 %v1923
      %3984 = vmatpush.msra.mxu0 %v1915
      %3985 = vmatpush.msra.mxu0 %v1907
      %3986 = vmatmul.f32.gmra.mxu0 %v3732
      %v3987 = vpop.f32.mrf.mxu0
      %v3988 = vadd.f32 0.0, %v3987
      %3989 = vdwg.mxu0
      %3990 = vmatpush.msra.mxu0 %v2155
      %3991 = vmatpush.msra.mxu0 %v2147
      %3992 = vmatpush.msra.mxu0 %v2139
      %3993 = vmatpush.msra.mxu0 %v2131
      %3994 = vmatpush.msra.mxu0 %v2123
      %3995 = vmatpush.msra.mxu0 %v2115
      %3996 = vmatpush.msra.mxu0 %v2107
      %3997 = vmatpush.msra.mxu0 %v2099
      %3998 = vmatpush.msra.mxu0 %v2091
      %3999 = vmatpush.msra.mxu0 %v2083
      %4000 = vmatpush.msra.mxu0 %v2075
      %4001 = vmatpush.msra.mxu0 %v2067
      %4002 = vmatpush.msra.mxu0 %v2059
      %4003 = vmatpush.msra.mxu0 %v2051
      %4004 = vmatpush.msra.mxu0 %v2043
      %4005 = vmatpush.msra.mxu0 %v2035
      %4006 = vmatmul.f32.gmra.mxu0 %v3733
      %v4007 = vpop.f32.mrf.mxu0
      %v4008 = vadd.f32 %v3988, %v4007
      %4009 = vdwg.mxu0
      %4010 = vmatpush.msra.mxu0 %v2028
      %4011 = vmatpush.msra.mxu0 %v2020
      %4012 = vmatpush.msra.mxu0 %v2012
      %4013 = vmatpush.msra.mxu0 %v2004
      %4014 = vmatpush.msra.mxu0 %v1996
      %4015 = vmatpush.msra.mxu0 %v1988
      %4016 = vmatpush.msra.mxu0 %v1980
      %4017 = vmatpush.msra.mxu0 %v1972
      %4018 = vmatpush.msra.mxu0 %v1964
      %4019 = vmatpush.msra.mxu0 %v1956
      %4020 = vmatpush.msra.mxu0 %v1948
      %4021 = vmatpush.msra.mxu0 %v1940
      %4022 = vmatpush.msra.mxu0 %v1932
      %4023 = vmatpush.msra.mxu0 %v1924
      %4024 = vmatpush.msra.mxu0 %v1916
      %4025 = vmatpush.msra.mxu0 %v1908
      %4026 = vmatmul.f32.gmra.mxu0 %v3732
      %v4027 = vpop.f32.mrf.mxu0
      %v4028 = vadd.f32 0.0, %v4027
      %4029 = vdwg.mxu0
      %4030 = vmatpush.msra.mxu0 %v2156
      %4031 = vmatpush.msra.mxu0 %v2148
      %4032 = vmatpush.msra.mxu0 %v2140
      %4033 = vmatpush.msra.mxu0 %v2132
      %4034 = vmatpush.msra.mxu0 %v2124
      %4035 = vmatpush.msra.mxu0 %v2116
      %4036 = vmatpush.msra.mxu0 %v2108
      %4037 = vmatpush.msra.mxu0 %v2100
      %4038 = vmatpush.msra.mxu0 %v2092
      %4039 = vmatpush.msra.mxu0 %v2084
      %4040 = vmatpush.msra.mxu0 %v2076
      %4041 = vmatpush.msra.mxu0 %v2068
      %4042 = vmatpush.msra.mxu0 %v2060
      %4043 = vmatpush.msra.mxu0 %v2052
      %4044 = vmatpush.msra.mxu0 %v2044
      %4045 = vmatpush.msra.mxu0 %v2036
      %4046 = vmatmul.f32.gmra.mxu0 %v3733
      %v4047 = vpop.f32.mrf.mxu0
      %v4048 = vadd.f32 %v4028, %v4047
      %4049 = vdwg.mxu0
      %4050 = vmatpush.msra.mxu0 %v2029
      %4051 = vmatpush.msra.mxu0 %v2021
      %4052 = vmatpush.msra.mxu0 %v2013
      %4053 = vmatpush.msra.mxu0 %v2005
      %4054 = vmatpush.msra.mxu0 %v1997
      %4055 = vmatpush.msra.mxu0 %v1989
      %4056 = vmatpush.msra.mxu0 %v1981
      %4057 = vmatpush.msra.mxu0 %v1973
      %4058 = vmatpush.msra.mxu0 %v1965
      %4059 = vmatpush.msra.mxu0 %v1957
      %4060 = vmatpush.msra.mxu0 %v1949
      %4061 = vmatpush.msra.mxu0 %v1941
      %4062 = vmatpush.msra.mxu0 %v1933
      %4063 = vmatpush.msra.mxu0 %v1925
      %4064 = vmatpush.msra.mxu0 %v1917
      %4065 = vmatpush.msra.mxu0 %v1909
      %4066 = vmatmul.f32.gmra.mxu0 %v3732
      %v4067 = vpop.f32.mrf.mxu0
      %v4068 = vadd.f32 0.0, %v4067
      %4069 = vdwg.mxu0
      %4070 = vmatpush.msra.mxu0 %v2157
      %4071 = vmatpush.msra.mxu0 %v2149
      %4072 = vmatpush.msra.mxu0 %v2141
      %4073 = vmatpush.msra.mxu0 %v2133
      %4074 = vmatpush.msra.mxu0 %v2125
      %4075 = vmatpush.msra.mxu0 %v2117
      %4076 = vmatpush.msra.mxu0 %v2109
      %4077 = vmatpush.msra.mxu0 %v2101
      %4078 = vmatpush.msra.mxu0 %v2093
      %4079 = vmatpush.msra.mxu0 %v2085
      %4080 = vmatpush.msra.mxu0 %v2077
      %4081 = vmatpush.msra.mxu0 %v2069
      %4082 = vmatpush.msra.mxu0 %v2061
      %4083 = vmatpush.msra.mxu0 %v2053
      %4084 = vmatpush.msra.mxu0 %v2045
      %4085 = vmatpush.msra.mxu0 %v2037
      %4086 = vmatmul.f32.gmra.mxu0 %v3733
      %v4087 = vpop.f32.mrf.mxu0
      %v4088 = vadd.f32 %v4068, %v4087
      %4089 = vdwg.mxu0
      %v4090 = vadd.f32 %v3762, %v3808
      %v4091 = vadd.f32 %v3763, %v3848
      %v4092 = vadd.f32 %v3764, %v3888
      %v4093 = vadd.f32 %v3765, %v3928
      %v4094 = vadd.f32 %v3766, %v3968
      %v4095 = vadd.f32 %v3767, %v4008
      %v4096 = vadd.f32 %v3768, %v4048
      %v4097 = vadd.f32 %v3769, %v4088
      %v4098 = vxor.u32 %v4090, 2147483648
      %v4099 = vxor.u32 %v4091, 2147483648
      %v4100 = vmul.f32 %v4098, 1.442695
      %v4101 = vpow.pop %v4100
      %v4102 = vmul.f32 %v4099, 1.442695
      %v4103 = vpow.pop %v4102
      %v4104 = vadd.f32 %v4101, 1.0
      %v4105 = vadd.f32 %v4103, 1.0
      %v4106 = vrcp.pop %v4104
      %v4107 = vmul.f32 %v4104, %v4106
      %v4108 = vsub.f32 1.0, %v4107
      %v4109 = vmul.f32 %v4106, %v4108
      %v4110 = vadd.f32 %v4106, %v4109
      %vm4111 = vweird.f32 %v4104
      %vm4112 = vweird.f32 %v4106
      %vm4113 = vmor %vm4111, %vm4112
      %v4114 = vsel %vm4113, %v4106, %v4110
      %v4115 = vand.u32 2147483647, %v4104
      %vm4116 = vcmp.eq.f32.partialorder %v4115, 8.507059e+37
      %v4117 = vand.u32 %v4104, 2147483648
      %v4118 = vor.u32 1.1754944e-38, %v4117
      %v4119 = vsel %vm4116, %v4118, %v4114
      %v4120 = vmul.f32 1.0, %v4119
      %v4121 = vrcp.pop %v4105
      %v4122 = vmul.f32 %v4105, %v4121
      %v4123 = vsub.f32 1.0, %v4122
      %v4124 = vmul.f32 %v4121, %v4123
      %v4125 = vadd.f32 %v4121, %v4124
      %vm4126 = vweird.f32 %v4105
      %vm4127 = vweird.f32 %v4121
      %vm4128 = vmor %vm4126, %vm4127
      %v4129 = vsel %vm4128, %v4121, %v4125
      %v4130 = vand.u32 2147483647, %v4105
      %vm4131 = vcmp.eq.f32.partialorder %v4130, 8.507059e+37
      %v4132 = vand.u32 %v4105, 2147483648
      %v4133 = vor.u32 1.1754944e-38, %v4132
      %v4134 = vsel %vm4131, %v4133, %v4129
      %v4135 = vmul.f32 1.0, %v4134
      %v4136 = vxor.u32 %v4092, 2147483648
      %v4137 = vxor.u32 %v4093, 2147483648
      %v4138 = vmul.f32 %v4136, 1.442695
      %v4139 = vpow.pop %v4138
      %v4140 = vmul.f32 %v4137, 1.442695
      %v4141 = vpow.pop %v4140
      %v4142 = vadd.f32 %v4139, 1.0
      %v4143 = vadd.f32 %v4141, 1.0
      %v4144 = vrcp.pop %v4142
      %v4145 = vmul.f32 %v4142, %v4144
      %v4146 = vsub.f32 1.0, %v4145
      %v4147 = vmul.f32 %v4144, %v4146
      %v4148 = vadd.f32 %v4144, %v4147
      %vm4149 = vweird.f32 %v4142
      %vm4150 = vweird.f32 %v4144
      %vm4151 = vmor %vm4149, %vm4150
      %v4152 = vsel %vm4151, %v4144, %v4148
      %v4153 = vand.u32 2147483647, %v4142
      %vm4154 = vcmp.eq.f32.partialorder %v4153, 8.507059e+37
      %v4155 = vand.u32 %v4142, 2147483648
      %v4156 = vor.u32 1.1754944e-38, %v4155
      %v4157 = vsel %vm4154, %v4156, %v4152
      %v4158 = vmul.f32 1.0, %v4157
      %v4159 = vrcp.pop %v4143
      %v4160 = vmul.f32 %v4143, %v4159
      %v4161 = vsub.f32 1.0, %v4160
      %v4162 = vmul.f32 %v4159, %v4161
      %v4163 = vadd.f32 %v4159, %v4162
      %vm4164 = vweird.f32 %v4143
      %vm4165 = vweird.f32 %v4159
      %vm4166 = vmor %vm4164, %vm4165
      %v4167 = vsel %vm4166, %v4159, %v4163
      %v4168 = vand.u32 2147483647, %v4143
      %vm4169 = vcmp.eq.f32.partialorder %v4168, 8.507059e+37
      %v4170 = vand.u32 %v4143, 2147483648
      %v4171 = vor.u32 1.1754944e-38, %v4170
      %v4172 = vsel %vm4169, %v4171, %v4167
      %v4173 = vmul.f32 1.0, %v4172
      %v4174 = vtanh.pop %v4094
      %v4175 = vtanh.pop %v4095
      %v4176 = vxor.u32 %v4096, 2147483648
      %v4177 = vxor.u32 %v4097, 2147483648
      %v4178 = vmul.f32 %v4176, 1.442695
      %v4179 = vpow.pop %v4178
      %v4180 = vmul.f32 %v4177, 1.442695
      %v4181 = vpow.pop %v4180
      %v4182 = vadd.f32 %v4179, 1.0
      %v4183 = vadd.f32 %v4181, 1.0
      %v4184 = vrcp.pop %v4182
      %v4185 = vmul.f32 %v4182, %v4184
      %v4186 = vsub.f32 1.0, %v4185
      %v4187 = vmul.f32 %v4184, %v4186
      %v4188 = vadd.f32 %v4184, %v4187
      %vm4189 = vweird.f32 %v4182
      %vm4190 = vweird.f32 %v4184
      %vm4191 = vmor %vm4189, %vm4190
      %v4192 = vsel %vm4191, %v4184, %v4188
      %v4193 = vand.u32 2147483647, %v4182
      %vm4194 = vcmp.eq.f32.partialorder %v4193, 8.507059e+37
      %v4195 = vand.u32 %v4182, 2147483648
      %v4196 = vor.u32 1.1754944e-38, %v4195
      %v4197 = vsel %vm4194, %v4196, %v4192
      %v4198 = vmul.f32 1.0, %v4197
      %v4199 = vrcp.pop %v4183
      %v4200 = vmul.f32 %v4183, %v4199
      %v4201 = vsub.f32 1.0, %v4200
      %v4202 = vmul.f32 %v4199, %v4201
      %v4203 = vadd.f32 %v4199, %v4202
      %vm4204 = vweird.f32 %v4183
      %vm4205 = vweird.f32 %v4199
      %vm4206 = vmor %vm4204, %vm4205
      %v4207 = vsel %vm4206, %v4199, %v4203
      %v4208 = vand.u32 2147483647, %v4183
      %vm4209 = vcmp.eq.f32.partialorder %v4208, 8.507059e+37
      %v4210 = vand.u32 %v4183, 2147483648
      %v4211 = vor.u32 1.1754944e-38, %v4210
      %v4212 = vsel %vm4209, %v4211, %v4207
      %v4213 = vmul.f32 1.0, %v4212
      %v4214 = vmul.f32 %v4158, %v3728
      %v4215 = vmul.f32 %v4173, %v3729
      %v4216 = vmul.f32 %v4120, %v4174
      %v4217 = vmul.f32 %v4135, %v4175
      %v4218 = vadd.f32 %v4214, %v4216
      %v4219 = vadd.f32 %v4215, %v4217
      %v4220 = vtanh.pop %v4218
      %v4221 = vtanh.pop %v4219
      %v4222 = vmul.f32 %v4198, %v4220
      %v4223 = vmul.f32 %v4213, %v4221
      %s4224 = scalar_lea.vmem [#allocation3], 24
      %4225 = vst [vmem:[%s4224] sm:$0xff] %v4222
      %s4226 = scalar_lea.vmem [#allocation4], 32
      %4227 = vst [vmem:[%s4226] sm:$0xff] %v4223
      %v4228 = vadd.f32 %v3738, %v4222
      %v4229 = vadd.f32 %v3739, %v4223
      %v4230 = vld [vmem:[%s3753] sm:$0xff]
      %v4231 = vld [vmem:[%s3753 + $0x8] sm:$0xff]
      %v4232 = vld [vmem:[%s3753 + $0x10] sm:$0xff]
      %v4233 = vld [vmem:[%s3753 + $0x18] sm:$0xff]
      %v4234 = vld [vmem:[%s3753 + $0x20] sm:$0xff]
      %v4235 = vld [vmem:[%s3753 + $0x28] sm:$0xff]
      %v4236 = vld [vmem:[%s3753 + $0x30] sm:$0xff]
      %v4237 = vld [vmem:[%s3753 + $0x38] sm:$0xff]
      %v4238 = vld [vmem:[%s3742] sm:$0xff]
      %v4239 = vld [vmem:[%s3742 + $0x8] sm:$0xff]
      %v4240 = vld [vmem:[%s3742 + $0x10] sm:$0xff]
      %v4241 = vld [vmem:[%s3742 + $0x18] sm:$0xff]
      %v4242 = vld [vmem:[%s3742 + $0x20] sm:$0xff]
      %v4243 = vld [vmem:[%s3742 + $0x28] sm:$0xff]
      %v4244 = vld [vmem:[%s3742 + $0x30] sm:$0xff]
      %v4245 = vld [vmem:[%s3742 + $0x38] sm:$0xff]
      %v4246 = vsel %vm2263, %v4230, %v4238
      %v4247 = vsel %vm2264, %v4231, %v4239
      %v4248 = vsel %vm2265, %v4232, %v4240
      %v4249 = vsel %vm2266, %v4233, %v4241
      %v4250 = vsel %vm2267, %v4234, %v4242
      %v4251 = vsel %vm2268, %v4235, %v4243
      %v4252 = vsel %vm2269, %v4236, %v4244
      %v4253 = vsel %vm2270, %v4237, %v4245
      %4254 = vmatpush.msra.mxu0 %v2022
      %4255 = vmatpush.msra.mxu0 %v2014
      %4256 = vmatpush.msra.mxu0 %v2006
      %4257 = vmatpush.msra.mxu0 %v1998
      %4258 = vmatpush.msra.mxu0 %v1990
      %4259 = vmatpush.msra.mxu0 %v1982
      %4260 = vmatpush.msra.mxu0 %v1974
      %4261 = vmatpush.msra.mxu0 %v1966
      %4262 = vmatpush.msra.mxu0 %v1958
      %4263 = vmatpush.msra.mxu0 %v1950
      %4264 = vmatpush.msra.mxu0 %v1942
      %4265 = vmatpush.msra.mxu0 %v1934
      %4266 = vmatpush.msra.mxu0 %v1926
      %4267 = vmatpush.msra.mxu0 %v1918
      %4268 = vmatpush.msra.mxu0 %v1910
      %4269 = vmatpush.msra.mxu0 %v1902
      %4270 = vmatmul.f32.gmra.mxu0 %v4222
      %v4271 = vpop.f32.mrf.mxu0
      %v4272 = vadd.f32 0.0, %v4271
      %4273 = vdwg.mxu0
      %4274 = vmatpush.msra.mxu0 %v2150
      %4275 = vmatpush.msra.mxu0 %v2142
      %4276 = vmatpush.msra.mxu0 %v2134
      %4277 = vmatpush.msra.mxu0 %v2126
      %4278 = vmatpush.msra.mxu0 %v2118
      %4279 = vmatpush.msra.mxu0 %v2110
      %4280 = vmatpush.msra.mxu0 %v2102
      %4281 = vmatpush.msra.mxu0 %v2094
      %4282 = vmatpush.msra.mxu0 %v2086
      %4283 = vmatpush.msra.mxu0 %v2078
      %4284 = vmatpush.msra.mxu0 %v2070
      %4285 = vmatpush.msra.mxu0 %v2062
      %4286 = vmatpush.msra.mxu0 %v2054
      %4287 = vmatpush.msra.mxu0 %v2046
      %4288 = vmatpush.msra.mxu0 %v2038
      %4289 = vmatpush.msra.mxu0 %v2030
      %4290 = vmatmul.f32.gmra.mxu0 %v4223
      %v4291 = vpop.f32.mrf.mxu0
      %v4292 = vadd.f32 %v4272, %v4291
      %4293 = vdwg.mxu0
      %4294 = vmatpush.msra.mxu0 %v2023
      %4295 = vmatpush.msra.mxu0 %v2015
      %4296 = vmatpush.msra.mxu0 %v2007
      %4297 = vmatpush.msra.mxu0 %v1999
      %4298 = vmatpush.msra.mxu0 %v1991
      %4299 = vmatpush.msra.mxu0 %v1983
      %4300 = vmatpush.msra.mxu0 %v1975
      %4301 = vmatpush.msra.mxu0 %v1967
      %4302 = vmatpush.msra.mxu0 %v1959
      %4303 = vmatpush.msra.mxu0 %v1951
      %4304 = vmatpush.msra.mxu0 %v1943
      %4305 = vmatpush.msra.mxu0 %v1935
      %4306 = vmatpush.msra.mxu0 %v1927
      %4307 = vmatpush.msra.mxu0 %v1919
      %4308 = vmatpush.msra.mxu0 %v1911
      %4309 = vmatpush.msra.mxu0 %v1903
      %4310 = vmatmul.f32.gmra.mxu0 %v4222
      %v4311 = vpop.f32.mrf.mxu0
      %v4312 = vadd.f32 0.0, %v4311
      %4313 = vdwg.mxu0
      %4314 = vmatpush.msra.mxu0 %v2151
      %4315 = vmatpush.msra.mxu0 %v2143
      %4316 = vmatpush.msra.mxu0 %v2135
      %4317 = vmatpush.msra.mxu0 %v2127
      %4318 = vmatpush.msra.mxu0 %v2119
      %4319 = vmatpush.msra.mxu0 %v2111
      %4320 = vmatpush.msra.mxu0 %v2103
      %4321 = vmatpush.msra.mxu0 %v2095
      %4322 = vmatpush.msra.mxu0 %v2087
      %4323 = vmatpush.msra.mxu0 %v2079
      %4324 = vmatpush.msra.mxu0 %v2071
      %4325 = vmatpush.msra.mxu0 %v2063
      %4326 = vmatpush.msra.mxu0 %v2055
      %4327 = vmatpush.msra.mxu0 %v2047
      %4328 = vmatpush.msra.mxu0 %v2039
      %4329 = vmatpush.msra.mxu0 %v2031
      %4330 = vmatmul.f32.gmra.mxu0 %v4223
      %v4331 = vpop.f32.mrf.mxu0
      %v4332 = vadd.f32 %v4312, %v4331
      %4333 = vdwg.mxu0
      %4334 = vmatpush.msra.mxu0 %v2024
      %4335 = vmatpush.msra.mxu0 %v2016
      %4336 = vmatpush.msra.mxu0 %v2008
      %4337 = vmatpush.msra.mxu0 %v2000
      %4338 = vmatpush.msra.mxu0 %v1992
      %4339 = vmatpush.msra.mxu0 %v1984
      %4340 = vmatpush.msra.mxu0 %v1976
      %4341 = vmatpush.msra.mxu0 %v1968
      %4342 = vmatpush.msra.mxu0 %v1960
      %4343 = vmatpush.msra.mxu0 %v1952
      %4344 = vmatpush.msra.mxu0 %v1944
      %4345 = vmatpush.msra.mxu0 %v1936
      %4346 = vmatpush.msra.mxu0 %v1928
      %4347 = vmatpush.msra.mxu0 %v1920
      %4348 = vmatpush.msra.mxu0 %v1912
      %4349 = vmatpush.msra.mxu0 %v1904
      %4350 = vmatmul.f32.gmra.mxu0 %v4222
      %v4351 = vpop.f32.mrf.mxu0
      %v4352 = vadd.f32 0.0, %v4351
      %4353 = vdwg.mxu0
      %4354 = vmatpush.msra.mxu0 %v2152
      %4355 = vmatpush.msra.mxu0 %v2144
      %4356 = vmatpush.msra.mxu0 %v2136
      %4357 = vmatpush.msra.mxu0 %v2128
      %4358 = vmatpush.msra.mxu0 %v2120
      %4359 = vmatpush.msra.mxu0 %v2112
      %4360 = vmatpush.msra.mxu0 %v2104
      %4361 = vmatpush.msra.mxu0 %v2096
      %4362 = vmatpush.msra.mxu0 %v2088
      %4363 = vmatpush.msra.mxu0 %v2080
      %4364 = vmatpush.msra.mxu0 %v2072
      %4365 = vmatpush.msra.mxu0 %v2064
      %4366 = vmatpush.msra.mxu0 %v2056
      %4367 = vmatpush.msra.mxu0 %v2048
      %4368 = vmatpush.msra.mxu0 %v2040
      %4369 = vmatpush.msra.mxu0 %v2032
      %4370 = vmatmul.f32.gmra.mxu0 %v4223
      %v4371 = vpop.f32.mrf.mxu0
      %v4372 = vadd.f32 %v4352, %v4371
      %4373 = vdwg.mxu0
      %4374 = vmatpush.msra.mxu0 %v2025
      %4375 = vmatpush.msra.mxu0 %v2017
      %4376 = vmatpush.msra.mxu0 %v2009
      %4377 = vmatpush.msra.mxu0 %v2001
      %4378 = vmatpush.msra.mxu0 %v1993
      %4379 = vmatpush.msra.mxu0 %v1985
      %4380 = vmatpush.msra.mxu0 %v1977
      %4381 = vmatpush.msra.mxu0 %v1969
      %4382 = vmatpush.msra.mxu0 %v1961
      %4383 = vmatpush.msra.mxu0 %v1953
      %4384 = vmatpush.msra.mxu0 %v1945
      %4385 = vmatpush.msra.mxu0 %v1937
      %4386 = vmatpush.msra.mxu0 %v1929
      %4387 = vmatpush.msra.mxu0 %v1921
      %4388 = vmatpush.msra.mxu0 %v1913
      %4389 = vmatpush.msra.mxu0 %v1905
      %4390 = vmatmul.f32.gmra.mxu0 %v4222
      %v4391 = vpop.f32.mrf.mxu0
      %v4392 = vadd.f32 0.0, %v4391
      %4393 = vdwg.mxu0
      %4394 = vmatpush.msra.mxu0 %v2153
      %4395 = vmatpush.msra.mxu0 %v2145
      %4396 = vmatpush.msra.mxu0 %v2137
      %4397 = vmatpush.msra.mxu0 %v2129
      %4398 = vmatpush.msra.mxu0 %v2121
      %4399 = vmatpush.msra.mxu0 %v2113
      %4400 = vmatpush.msra.mxu0 %v2105
      %4401 = vmatpush.msra.mxu0 %v2097
      %4402 = vmatpush.msra.mxu0 %v2089
      %4403 = vmatpush.msra.mxu0 %v2081
      %4404 = vmatpush.msra.mxu0 %v2073
      %4405 = vmatpush.msra.mxu0 %v2065
      %4406 = vmatpush.msra.mxu0 %v2057
      %4407 = vmatpush.msra.mxu0 %v2049
      %4408 = vmatpush.msra.mxu0 %v2041
      %4409 = vmatpush.msra.mxu0 %v2033
      %4410 = vmatmul.f32.gmra.mxu0 %v4223
      %v4411 = vpop.f32.mrf.mxu0
      %v4412 = vadd.f32 %v4392, %v4411
      %4413 = vdwg.mxu0
      %4414 = vmatpush.msra.mxu0 %v2026
      %4415 = vmatpush.msra.mxu0 %v2018
      %4416 = vmatpush.msra.mxu0 %v2010
      %4417 = vmatpush.msra.mxu0 %v2002
      %4418 = vmatpush.msra.mxu0 %v1994
      %4419 = vmatpush.msra.mxu0 %v1986
      %4420 = vmatpush.msra.mxu0 %v1978
      %4421 = vmatpush.msra.mxu0 %v1970
      %4422 = vmatpush.msra.mxu0 %v1962
      %4423 = vmatpush.msra.mxu0 %v1954
      %4424 = vmatpush.msra.mxu0 %v1946
      %4425 = vmatpush.msra.mxu0 %v1938
      %4426 = vmatpush.msra.mxu0 %v1930
      %4427 = vmatpush.msra.mxu0 %v1922
      %4428 = vmatpush.msra.mxu0 %v1914
      %4429 = vmatpush.msra.mxu0 %v1906
      %4430 = vmatmul.f32.gmra.mxu0 %v4222
      %v4431 = vpop.f32.mrf.mxu0
      %v4432 = vadd.f32 0.0, %v4431
      %4433 = vdwg.mxu0
      %4434 = vmatpush.msra.mxu0 %v2154
      %4435 = vmatpush.msra.mxu0 %v2146
      %4436 = vmatpush.msra.mxu0 %v2138
      %4437 = vmatpush.msra.mxu0 %v2130
      %4438 = vmatpush.msra.mxu0 %v2122
      %4439 = vmatpush.msra.mxu0 %v2114
      %4440 = vmatpush.msra.mxu0 %v2106
      %4441 = vmatpush.msra.mxu0 %v2098
      %4442 = vmatpush.msra.mxu0 %v2090
      %4443 = vmatpush.msra.mxu0 %v2082
      %4444 = vmatpush.msra.mxu0 %v2074
      %4445 = vmatpush.msra.mxu0 %v2066
      %4446 = vmatpush.msra.mxu0 %v2058
      %4447 = vmatpush.msra.mxu0 %v2050
      %4448 = vmatpush.msra.mxu0 %v2042
      %4449 = vmatpush.msra.mxu0 %v2034
      %4450 = vmatmul.f32.gmra.mxu0 %v4223
      %v4451 = vpop.f32.mrf.mxu0
      %v4452 = vadd.f32 %v4432, %v4451
      %4453 = vdwg.mxu0
      %4454 = vmatpush.msra.mxu0 %v2027
      %4455 = vmatpush.msra.mxu0 %v2019
      %4456 = vmatpush.msra.mxu0 %v2011
      %4457 = vmatpush.msra.mxu0 %v2003
      %4458 = vmatpush.msra.mxu0 %v1995
      %4459 = vmatpush.msra.mxu0 %v1987
      %4460 = vmatpush.msra.mxu0 %v1979
      %4461 = vmatpush.msra.mxu0 %v1971
      %4462 = vmatpush.msra.mxu0 %v1963
      %4463 = vmatpush.msra.mxu0 %v1955
      %4464 = vmatpush.msra.mxu0 %v1947
      %4465 = vmatpush.msra.mxu0 %v1939
      %4466 = vmatpush.msra.mxu0 %v1931
      %4467 = vmatpush.msra.mxu0 %v1923
      %4468 = vmatpush.msra.mxu0 %v1915
      %4469 = vmatpush.msra.mxu0 %v1907
      %4470 = vmatmul.f32.gmra.mxu0 %v4222
      %v4471 = vpop.f32.mrf.mxu0
      %v4472 = vadd.f32 0.0, %v4471
      %4473 = vdwg.mxu0
      %4474 = vmatpush.msra.mxu0 %v2155
      %4475 = vmatpush.msra.mxu0 %v2147
      %4476 = vmatpush.msra.mxu0 %v2139
      %4477 = vmatpush.msra.mxu0 %v2131
      %4478 = vmatpush.msra.mxu0 %v2123
      %4479 = vmatpush.msra.mxu0 %v2115
      %4480 = vmatpush.msra.mxu0 %v2107
      %4481 = vmatpush.msra.mxu0 %v2099
      %4482 = vmatpush.msra.mxu0 %v2091
      %4483 = vmatpush.msra.mxu0 %v2083
      %4484 = vmatpush.msra.mxu0 %v2075
      %4485 = vmatpush.msra.mxu0 %v2067
      %4486 = vmatpush.msra.mxu0 %v2059
      %4487 = vmatpush.msra.mxu0 %v2051
      %4488 = vmatpush.msra.mxu0 %v2043
      %4489 = vmatpush.msra.mxu0 %v2035
      %4490 = vmatmul.f32.gmra.mxu0 %v4223
      %v4491 = vpop.f32.mrf.mxu0
      %v4492 = vadd.f32 %v4472, %v4491
      %4493 = vdwg.mxu0
      %4494 = vmatpush.msra.mxu0 %v2028
      %4495 = vmatpush.msra.mxu0 %v2020
      %4496 = vmatpush.msra.mxu0 %v2012
      %4497 = vmatpush.msra.mxu0 %v2004
      %4498 = vmatpush.msra.mxu0 %v1996
      %4499 = vmatpush.msra.mxu0 %v1988
      %4500 = vmatpush.msra.mxu0 %v1980
      %4501 = vmatpush.msra.mxu0 %v1972
      %4502 = vmatpush.msra.mxu0 %v1964
      %4503 = vmatpush.msra.mxu0 %v1956
      %4504 = vmatpush.msra.mxu0 %v1948
      %4505 = vmatpush.msra.mxu0 %v1940
      %4506 = vmatpush.msra.mxu0 %v1932
      %4507 = vmatpush.msra.mxu0 %v1924
      %4508 = vmatpush.msra.mxu0 %v1916
      %4509 = vmatpush.msra.mxu0 %v1908
      %4510 = vmatmul.f32.gmra.mxu0 %v4222
      %v4511 = vpop.f32.mrf.mxu0
      %v4512 = vadd.f32 0.0, %v4511
      %4513 = vdwg.mxu0
      %4514 = vmatpush.msra.mxu0 %v2156
      %4515 = vmatpush.msra.mxu0 %v2148
      %4516 = vmatpush.msra.mxu0 %v2140
      %4517 = vmatpush.msra.mxu0 %v2132
      %4518 = vmatpush.msra.mxu0 %v2124
      %4519 = vmatpush.msra.mxu0 %v2116
      %4520 = vmatpush.msra.mxu0 %v2108
      %4521 = vmatpush.msra.mxu0 %v2100
      %4522 = vmatpush.msra.mxu0 %v2092
      %4523 = vmatpush.msra.mxu0 %v2084
      %4524 = vmatpush.msra.mxu0 %v2076
      %4525 = vmatpush.msra.mxu0 %v2068
      %4526 = vmatpush.msra.mxu0 %v2060
      %4527 = vmatpush.msra.mxu0 %v2052
      %4528 = vmatpush.msra.mxu0 %v2044
      %4529 = vmatpush.msra.mxu0 %v2036
      %4530 = vmatmul.f32.gmra.mxu0 %v4223
      %v4531 = vpop.f32.mrf.mxu0
      %v4532 = vadd.f32 %v4512, %v4531
      %4533 = vdwg.mxu0
      %4534 = vmatpush.msra.mxu0 %v2029
      %4535 = vmatpush.msra.mxu0 %v2021
      %4536 = vmatpush.msra.mxu0 %v2013
      %4537 = vmatpush.msra.mxu0 %v2005
      %4538 = vmatpush.msra.mxu0 %v1997
      %4539 = vmatpush.msra.mxu0 %v1989
      %4540 = vmatpush.msra.mxu0 %v1981
      %4541 = vmatpush.msra.mxu0 %v1973
      %4542 = vmatpush.msra.mxu0 %v1965
      %4543 = vmatpush.msra.mxu0 %v1957
      %4544 = vmatpush.msra.mxu0 %v1949
      %4545 = vmatpush.msra.mxu0 %v1941
      %4546 = vmatpush.msra.mxu0 %v1933
      %4547 = vmatpush.msra.mxu0 %v1925
      %4548 = vmatpush.msra.mxu0 %v1917
      %4549 = vmatpush.msra.mxu0 %v1909
      %4550 = vmatmul.f32.gmra.mxu0 %v4222
      %v4551 = vpop.f32.mrf.mxu0
      %v4552 = vadd.f32 0.0, %v4551
      %4553 = vdwg.mxu0
      %4554 = vmatpush.msra.mxu0 %v2157
      %4555 = vmatpush.msra.mxu0 %v2149
      %4556 = vmatpush.msra.mxu0 %v2141
      %4557 = vmatpush.msra.mxu0 %v2133
      %4558 = vmatpush.msra.mxu0 %v2125
      %4559 = vmatpush.msra.mxu0 %v2117
      %4560 = vmatpush.msra.mxu0 %v2109
      %4561 = vmatpush.msra.mxu0 %v2101
      %4562 = vmatpush.msra.mxu0 %v2093
      %4563 = vmatpush.msra.mxu0 %v2085
      %4564 = vmatpush.msra.mxu0 %v2077
      %4565 = vmatpush.msra.mxu0 %v2069
      %4566 = vmatpush.msra.mxu0 %v2061
      %4567 = vmatpush.msra.mxu0 %v2053
      %4568 = vmatpush.msra.mxu0 %v2045
      %4569 = vmatpush.msra.mxu0 %v2037
      %4570 = vmatmul.f32.gmra.mxu0 %v4223
      %v4571 = vpop.f32.mrf.mxu0
      %v4572 = vadd.f32 %v4552, %v4571
      %4573 = vdwg.mxu0
      %v4574 = vadd.f32 %v4246, %v4292
      %v4575 = vadd.f32 %v4247, %v4332
      %v4576 = vadd.f32 %v4248, %v4372
      %v4577 = vadd.f32 %v4249, %v4412
      %v4578 = vadd.f32 %v4250, %v4452
      %v4579 = vadd.f32 %v4251, %v4492
      %v4580 = vadd.f32 %v4252, %v4532
      %v4581 = vadd.f32 %v4253, %v4572
      %v4582 = vxor.u32 %v4574, 2147483648
      %v4583 = vxor.u32 %v4575, 2147483648
      %v4584 = vmul.f32 %v4582, 1.442695
      %v4585 = vpow.pop %v4584
      %v4586 = vmul.f32 %v4583, 1.442695
      %v4587 = vpow.pop %v4586
      %v4588 = vadd.f32 %v4585, 1.0
      %v4589 = vadd.f32 %v4587, 1.0
      %v4590 = vrcp.pop %v4588
      %v4591 = vmul.f32 %v4588, %v4590
      %v4592 = vsub.f32 1.0, %v4591
      %v4593 = vmul.f32 %v4590, %v4592
      %v4594 = vadd.f32 %v4590, %v4593
      %vm4595 = vweird.f32 %v4588
      %vm4596 = vweird.f32 %v4590
      %vm4597 = vmor %vm4595, %vm4596
      %v4598 = vsel %vm4597, %v4590, %v4594
      %v4599 = vand.u32 2147483647, %v4588
      %vm4600 = vcmp.eq.f32.partialorder %v4599, 8.507059e+37
      %v4601 = vand.u32 %v4588, 2147483648
      %v4602 = vor.u32 1.1754944e-38, %v4601
      %v4603 = vsel %vm4600, %v4602, %v4598
      %v4604 = vmul.f32 1.0, %v4603
      %v4605 = vrcp.pop %v4589
      %v4606 = vmul.f32 %v4589, %v4605
      %v4607 = vsub.f32 1.0, %v4606
      %v4608 = vmul.f32 %v4605, %v4607
      %v4609 = vadd.f32 %v4605, %v4608
      %vm4610 = vweird.f32 %v4589
      %vm4611 = vweird.f32 %v4605
      %vm4612 = vmor %vm4610, %vm4611
      %v4613 = vsel %vm4612, %v4605, %v4609
      %v4614 = vand.u32 2147483647, %v4589
      %vm4615 = vcmp.eq.f32.partialorder %v4614, 8.507059e+37
      %v4616 = vand.u32 %v4589, 2147483648
      %v4617 = vor.u32 1.1754944e-38, %v4616
      %v4618 = vsel %vm4615, %v4617, %v4613
      %v4619 = vmul.f32 1.0, %v4618
      %v4620 = vxor.u32 %v4576, 2147483648
      %v4621 = vxor.u32 %v4577, 2147483648
      %v4622 = vmul.f32 %v4620, 1.442695
      %v4623 = vpow.pop %v4622
      %v4624 = vmul.f32 %v4621, 1.442695
      %v4625 = vpow.pop %v4624
      %v4626 = vadd.f32 %v4623, 1.0
      %v4627 = vadd.f32 %v4625, 1.0
      %v4628 = vrcp.pop %v4626
      %v4629 = vmul.f32 %v4626, %v4628
      %v4630 = vsub.f32 1.0, %v4629
      %v4631 = vmul.f32 %v4628, %v4630
      %v4632 = vadd.f32 %v4628, %v4631
      %vm4633 = vweird.f32 %v4626
      %vm4634 = vweird.f32 %v4628
      %vm4635 = vmor %vm4633, %vm4634
      %v4636 = vsel %vm4635, %v4628, %v4632
      %v4637 = vand.u32 2147483647, %v4626
      %vm4638 = vcmp.eq.f32.partialorder %v4637, 8.507059e+37
      %v4639 = vand.u32 %v4626, 2147483648
      %v4640 = vor.u32 1.1754944e-38, %v4639
      %v4641 = vsel %vm4638, %v4640, %v4636
      %v4642 = vmul.f32 1.0, %v4641
      %v4643 = vrcp.pop %v4627
      %v4644 = vmul.f32 %v4627, %v4643
      %v4645 = vsub.f32 1.0, %v4644
      %v4646 = vmul.f32 %v4643, %v4645
      %v4647 = vadd.f32 %v4643, %v4646
      %vm4648 = vweird.f32 %v4627
      %vm4649 = vweird.f32 %v4643
      %vm4650 = vmor %vm4648, %vm4649
      %v4651 = vsel %vm4650, %v4643, %v4647
      %v4652 = vand.u32 2147483647, %v4627
      %vm4653 = vcmp.eq.f32.partialorder %v4652, 8.507059e+37
      %v4654 = vand.u32 %v4627, 2147483648
      %v4655 = vor.u32 1.1754944e-38, %v4654
      %v4656 = vsel %vm4653, %v4655, %v4651
      %v4657 = vmul.f32 1.0, %v4656
      %v4658 = vtanh.pop %v4578
      %v4659 = vtanh.pop %v4579
      %v4660 = vxor.u32 %v4580, 2147483648
      %v4661 = vxor.u32 %v4581, 2147483648
      %v4662 = vmul.f32 %v4660, 1.442695
      %v4663 = vpow.pop %v4662
      %v4664 = vmul.f32 %v4661, 1.442695
      %v4665 = vpow.pop %v4664
      %v4666 = vadd.f32 %v4663, 1.0
      %v4667 = vadd.f32 %v4665, 1.0
      %v4668 = vrcp.pop %v4666
      %v4669 = vmul.f32 %v4666, %v4668
      %v4670 = vsub.f32 1.0, %v4669
      %v4671 = vmul.f32 %v4668, %v4670
      %v4672 = vadd.f32 %v4668, %v4671
      %vm4673 = vweird.f32 %v4666
      %vm4674 = vweird.f32 %v4668
      %vm4675 = vmor %vm4673, %vm4674
      %v4676 = vsel %vm4675, %v4668, %v4672
      %v4677 = vand.u32 2147483647, %v4666
      %vm4678 = vcmp.eq.f32.partialorder %v4677, 8.507059e+37
      %v4679 = vand.u32 %v4666, 2147483648
      %v4680 = vor.u32 1.1754944e-38, %v4679
      %v4681 = vsel %vm4678, %v4680, %v4676
      %v4682 = vmul.f32 1.0, %v4681
      %v4683 = vrcp.pop %v4667
      %v4684 = vmul.f32 %v4667, %v4683
      %v4685 = vsub.f32 1.0, %v4684
      %v4686 = vmul.f32 %v4683, %v4685
      %v4687 = vadd.f32 %v4683, %v4686
      %vm4688 = vweird.f32 %v4667
      %vm4689 = vweird.f32 %v4683
      %vm4690 = vmor %vm4688, %vm4689
      %v4691 = vsel %vm4690, %v4683, %v4687
      %v4692 = vand.u32 2147483647, %v4667
      %vm4693 = vcmp.eq.f32.partialorder %v4692, 8.507059e+37
      %v4694 = vand.u32 %v4667, 2147483648
      %v4695 = vor.u32 1.1754944e-38, %v4694
      %v4696 = vsel %vm4693, %v4695, %v4691
      %v4697 = vmul.f32 1.0, %v4696
      %v4698 = vmul.f32 %v4642, %v4218
      %v4699 = vmul.f32 %v4657, %v4219
      %v4700 = vmul.f32 %v4604, %v4658
      %v4701 = vmul.f32 %v4619, %v4659
      %v4702 = vadd.f32 %v4698, %v4700
      %v4703 = vadd.f32 %v4699, %v4701
      %v4704 = vtanh.pop %v4702
      %v4705 = vtanh.pop %v4703
      %v4706 = vmul.f32 %v4682, %v4704
      %v4707 = vmul.f32 %v4697, %v4705
      %s4708 = scalar_lea.vmem [#allocation3], 32
      %4709 = vst [vmem:[%s4708] sm:$0xff] %v4706
      %s4710 = scalar_lea.vmem [#allocation4], 24
      %4711 = vst [vmem:[%s4710] sm:$0xff] %v4707
      %v4712 = vadd.f32 %v4228, %v4706
      %v4713 = vadd.f32 %v4229, %v4707
      %v4714 = vld [vmem:[%s3263] sm:$0xff]
      %v4715 = vld [vmem:[%s3263 + $0x8] sm:$0xff]
      %v4716 = vld [vmem:[%s3263 + $0x10] sm:$0xff]
      %v4717 = vld [vmem:[%s3263 + $0x18] sm:$0xff]
      %v4718 = vld [vmem:[%s3263 + $0x20] sm:$0xff]
      %v4719 = vld [vmem:[%s3263 + $0x28] sm:$0xff]
      %v4720 = vld [vmem:[%s3263 + $0x30] sm:$0xff]
      %v4721 = vld [vmem:[%s3263 + $0x38] sm:$0xff]
      %v4722 = vld [vmem:[%s3252] sm:$0xff]
      %v4723 = vld [vmem:[%s3252 + $0x8] sm:$0xff]
      %v4724 = vld [vmem:[%s3252 + $0x10] sm:$0xff]
      %v4725 = vld [vmem:[%s3252 + $0x18] sm:$0xff]
      %v4726 = vld [vmem:[%s3252 + $0x20] sm:$0xff]
      %v4727 = vld [vmem:[%s3252 + $0x28] sm:$0xff]
      %v4728 = vld [vmem:[%s3252 + $0x30] sm:$0xff]
      %v4729 = vld [vmem:[%s3252 + $0x38] sm:$0xff]
      %v4730 = vsel %vm2263, %v4714, %v4722
      %v4731 = vsel %vm2264, %v4715, %v4723
      %v4732 = vsel %vm2265, %v4716, %v4724
      %v4733 = vsel %vm2266, %v4717, %v4725
      %v4734 = vsel %vm2267, %v4718, %v4726
      %v4735 = vsel %vm2268, %v4719, %v4727
      %v4736 = vsel %vm2269, %v4720, %v4728
      %v4737 = vsel %vm2270, %v4721, %v4729
      %4738 = vmatpush.msra.mxu0 %v2022
      %4739 = vmatpush.msra.mxu0 %v2014
      %4740 = vmatpush.msra.mxu0 %v2006
      %4741 = vmatpush.msra.mxu0 %v1998
      %4742 = vmatpush.msra.mxu0 %v1990
      %4743 = vmatpush.msra.mxu0 %v1982
      %4744 = vmatpush.msra.mxu0 %v1974
      %4745 = vmatpush.msra.mxu0 %v1966
      %4746 = vmatpush.msra.mxu0 %v1958
      %4747 = vmatpush.msra.mxu0 %v1950
      %4748 = vmatpush.msra.mxu0 %v1942
      %4749 = vmatpush.msra.mxu0 %v1934
      %4750 = vmatpush.msra.mxu0 %v1926
      %4751 = vmatpush.msra.mxu0 %v1918
      %4752 = vmatpush.msra.mxu0 %v1910
      %4753 = vmatpush.msra.mxu0 %v1902
      %4754 = vmatmul.f32.gmra.mxu0 %v4706
      %v4755 = vpop.f32.mrf.mxu0
      %v4756 = vadd.f32 0.0, %v4755
      %4757 = vdwg.mxu0
      %4758 = vmatpush.msra.mxu0 %v2150
      %4759 = vmatpush.msra.mxu0 %v2142
      %4760 = vmatpush.msra.mxu0 %v2134
      %4761 = vmatpush.msra.mxu0 %v2126
      %4762 = vmatpush.msra.mxu0 %v2118
      %4763 = vmatpush.msra.mxu0 %v2110
      %4764 = vmatpush.msra.mxu0 %v2102
      %4765 = vmatpush.msra.mxu0 %v2094
      %4766 = vmatpush.msra.mxu0 %v2086
      %4767 = vmatpush.msra.mxu0 %v2078
      %4768 = vmatpush.msra.mxu0 %v2070
      %4769 = vmatpush.msra.mxu0 %v2062
      %4770 = vmatpush.msra.mxu0 %v2054
      %4771 = vmatpush.msra.mxu0 %v2046
      %4772 = vmatpush.msra.mxu0 %v2038
      %4773 = vmatpush.msra.mxu0 %v2030
      %4774 = vmatmul.f32.gmra.mxu0 %v4707
      %v4775 = vpop.f32.mrf.mxu0
      %v4776 = vadd.f32 %v4756, %v4775
      %4777 = vdwg.mxu0
      %4778 = vmatpush.msra.mxu0 %v2023
      %4779 = vmatpush.msra.mxu0 %v2015
      %4780 = vmatpush.msra.mxu0 %v2007
      %4781 = vmatpush.msra.mxu0 %v1999
      %4782 = vmatpush.msra.mxu0 %v1991
      %4783 = vmatpush.msra.mxu0 %v1983
      %4784 = vmatpush.msra.mxu0 %v1975
      %4785 = vmatpush.msra.mxu0 %v1967
      %4786 = vmatpush.msra.mxu0 %v1959
      %4787 = vmatpush.msra.mxu0 %v1951
      %4788 = vmatpush.msra.mxu0 %v1943
      %4789 = vmatpush.msra.mxu0 %v1935
      %4790 = vmatpush.msra.mxu0 %v1927
      %4791 = vmatpush.msra.mxu0 %v1919
      %4792 = vmatpush.msra.mxu0 %v1911
      %4793 = vmatpush.msra.mxu0 %v1903
      %4794 = vmatmul.f32.gmra.mxu0 %v4706
      %v4795 = vpop.f32.mrf.mxu0
      %v4796 = vadd.f32 0.0, %v4795
      %4797 = vdwg.mxu0
      %4798 = vmatpush.msra.mxu0 %v2151
      %4799 = vmatpush.msra.mxu0 %v2143
      %4800 = vmatpush.msra.mxu0 %v2135
      %4801 = vmatpush.msra.mxu0 %v2127
      %4802 = vmatpush.msra.mxu0 %v2119
      %4803 = vmatpush.msra.mxu0 %v2111
      %4804 = vmatpush.msra.mxu0 %v2103
      %4805 = vmatpush.msra.mxu0 %v2095
      %4806 = vmatpush.msra.mxu0 %v2087
      %4807 = vmatpush.msra.mxu0 %v2079
      %4808 = vmatpush.msra.mxu0 %v2071
      %4809 = vmatpush.msra.mxu0 %v2063
      %4810 = vmatpush.msra.mxu0 %v2055
      %4811 = vmatpush.msra.mxu0 %v2047
      %4812 = vmatpush.msra.mxu0 %v2039
      %4813 = vmatpush.msra.mxu0 %v2031
      %4814 = vmatmul.f32.gmra.mxu0 %v4707
      %v4815 = vpop.f32.mrf.mxu0
      %v4816 = vadd.f32 %v4796, %v4815
      %4817 = vdwg.mxu0
      %4818 = vmatpush.msra.mxu0 %v2024
      %4819 = vmatpush.msra.mxu0 %v2016
      %4820 = vmatpush.msra.mxu0 %v2008
      %4821 = vmatpush.msra.mxu0 %v2000
      %4822 = vmatpush.msra.mxu0 %v1992
      %4823 = vmatpush.msra.mxu0 %v1984
      %4824 = vmatpush.msra.mxu0 %v1976
      %4825 = vmatpush.msra.mxu0 %v1968
      %4826 = vmatpush.msra.mxu0 %v1960
      %4827 = vmatpush.msra.mxu0 %v1952
      %4828 = vmatpush.msra.mxu0 %v1944
      %4829 = vmatpush.msra.mxu0 %v1936
      %4830 = vmatpush.msra.mxu0 %v1928
      %4831 = vmatpush.msra.mxu0 %v1920
      %4832 = vmatpush.msra.mxu0 %v1912
      %4833 = vmatpush.msra.mxu0 %v1904
      %4834 = vmatmul.f32.gmra.mxu0 %v4706
      %v4835 = vpop.f32.mrf.mxu0
      %v4836 = vadd.f32 0.0, %v4835
      %4837 = vdwg.mxu0
      %4838 = vmatpush.msra.mxu0 %v2152
      %4839 = vmatpush.msra.mxu0 %v2144
      %4840 = vmatpush.msra.mxu0 %v2136
      %4841 = vmatpush.msra.mxu0 %v2128
      %4842 = vmatpush.msra.mxu0 %v2120
      %4843 = vmatpush.msra.mxu0 %v2112
      %4844 = vmatpush.msra.mxu0 %v2104
      %4845 = vmatpush.msra.mxu0 %v2096
      %4846 = vmatpush.msra.mxu0 %v2088
      %4847 = vmatpush.msra.mxu0 %v2080
      %4848 = vmatpush.msra.mxu0 %v2072
      %4849 = vmatpush.msra.mxu0 %v2064
      %4850 = vmatpush.msra.mxu0 %v2056
      %4851 = vmatpush.msra.mxu0 %v2048
      %4852 = vmatpush.msra.mxu0 %v2040
      %4853 = vmatpush.msra.mxu0 %v2032
      %4854 = vmatmul.f32.gmra.mxu0 %v4707
      %v4855 = vpop.f32.mrf.mxu0
      %v4856 = vadd.f32 %v4836, %v4855
      %4857 = vdwg.mxu0
      %4858 = vmatpush.msra.mxu0 %v2025
      %4859 = vmatpush.msra.mxu0 %v2017
      %4860 = vmatpush.msra.mxu0 %v2009
      %4861 = vmatpush.msra.mxu0 %v2001
      %4862 = vmatpush.msra.mxu0 %v1993
      %4863 = vmatpush.msra.mxu0 %v1985
      %4864 = vmatpush.msra.mxu0 %v1977
      %4865 = vmatpush.msra.mxu0 %v1969
      %4866 = vmatpush.msra.mxu0 %v1961
      %4867 = vmatpush.msra.mxu0 %v1953
      %4868 = vmatpush.msra.mxu0 %v1945
      %4869 = vmatpush.msra.mxu0 %v1937
      %4870 = vmatpush.msra.mxu0 %v1929
      %4871 = vmatpush.msra.mxu0 %v1921
      %4872 = vmatpush.msra.mxu0 %v1913
      %4873 = vmatpush.msra.mxu0 %v1905
      %4874 = vmatmul.f32.gmra.mxu0 %v4706
      %v4875 = vpop.f32.mrf.mxu0
      %v4876 = vadd.f32 0.0, %v4875
      %4877 = vdwg.mxu0
      %4878 = vmatpush.msra.mxu0 %v2153
      %4879 = vmatpush.msra.mxu0 %v2145
      %4880 = vmatpush.msra.mxu0 %v2137
      %4881 = vmatpush.msra.mxu0 %v2129
      %4882 = vmatpush.msra.mxu0 %v2121
      %4883 = vmatpush.msra.mxu0 %v2113
      %4884 = vmatpush.msra.mxu0 %v2105
      %4885 = vmatpush.msra.mxu0 %v2097
      %4886 = vmatpush.msra.mxu0 %v2089
      %4887 = vmatpush.msra.mxu0 %v2081
      %4888 = vmatpush.msra.mxu0 %v2073
      %4889 = vmatpush.msra.mxu0 %v2065
      %4890 = vmatpush.msra.mxu0 %v2057
      %4891 = vmatpush.msra.mxu0 %v2049
      %4892 = vmatpush.msra.mxu0 %v2041
      %4893 = vmatpush.msra.mxu0 %v2033
      %4894 = vmatmul.f32.gmra.mxu0 %v4707
      %v4895 = vpop.f32.mrf.mxu0
      %v4896 = vadd.f32 %v4876, %v4895
      %4897 = vdwg.mxu0
      %4898 = vmatpush.msra.mxu0 %v2026
      %4899 = vmatpush.msra.mxu0 %v2018
      %4900 = vmatpush.msra.mxu0 %v2010
      %4901 = vmatpush.msra.mxu0 %v2002
      %4902 = vmatpush.msra.mxu0 %v1994
      %4903 = vmatpush.msra.mxu0 %v1986
      %4904 = vmatpush.msra.mxu0 %v1978
      %4905 = vmatpush.msra.mxu0 %v1970
      %4906 = vmatpush.msra.mxu0 %v1962
      %4907 = vmatpush.msra.mxu0 %v1954
      %4908 = vmatpush.msra.mxu0 %v1946
      %4909 = vmatpush.msra.mxu0 %v1938
      %4910 = vmatpush.msra.mxu0 %v1930
      %4911 = vmatpush.msra.mxu0 %v1922
      %4912 = vmatpush.msra.mxu0 %v1914
      %4913 = vmatpush.msra.mxu0 %v1906
      %4914 = vmatmul.f32.gmra.mxu0 %v4706
      %v4915 = vpop.f32.mrf.mxu0
      %v4916 = vadd.f32 0.0, %v4915
      %4917 = vdwg.mxu0
      %4918 = vmatpush.msra.mxu0 %v2154
      %4919 = vmatpush.msra.mxu0 %v2146
      %4920 = vmatpush.msra.mxu0 %v2138
      %4921 = vmatpush.msra.mxu0 %v2130
      %4922 = vmatpush.msra.mxu0 %v2122
      %4923 = vmatpush.msra.mxu0 %v2114
      %4924 = vmatpush.msra.mxu0 %v2106
      %4925 = vmatpush.msra.mxu0 %v2098
      %4926 = vmatpush.msra.mxu0 %v2090
      %4927 = vmatpush.msra.mxu0 %v2082
      %4928 = vmatpush.msra.mxu0 %v2074
      %4929 = vmatpush.msra.mxu0 %v2066
      %4930 = vmatpush.msra.mxu0 %v2058
      %4931 = vmatpush.msra.mxu0 %v2050
      %4932 = vmatpush.msra.mxu0 %v2042
      %4933 = vmatpush.msra.mxu0 %v2034
      %4934 = vmatmul.f32.gmra.mxu0 %v4707
      %v4935 = vpop.f32.mrf.mxu0
      %v4936 = vadd.f32 %v4916, %v4935
      %4937 = vdwg.mxu0
      %4938 = vmatpush.msra.mxu0 %v2027
      %4939 = vmatpush.msra.mxu0 %v2019
      %4940 = vmatpush.msra.mxu0 %v2011
      %4941 = vmatpush.msra.mxu0 %v2003
      %4942 = vmatpush.msra.mxu0 %v1995
      %4943 = vmatpush.msra.mxu0 %v1987
      %4944 = vmatpush.msra.mxu0 %v1979
      %4945 = vmatpush.msra.mxu0 %v1971
      %4946 = vmatpush.msra.mxu0 %v1963
      %4947 = vmatpush.msra.mxu0 %v1955
      %4948 = vmatpush.msra.mxu0 %v1947
      %4949 = vmatpush.msra.mxu0 %v1939
      %4950 = vmatpush.msra.mxu0 %v1931
      %4951 = vmatpush.msra.mxu0 %v1923
      %4952 = vmatpush.msra.mxu0 %v1915
      %4953 = vmatpush.msra.mxu0 %v1907
      %4954 = vmatmul.f32.gmra.mxu0 %v4706
      %v4955 = vpop.f32.mrf.mxu0
      %v4956 = vadd.f32 0.0, %v4955
      %4957 = vdwg.mxu0
      %4958 = vmatpush.msra.mxu0 %v2155
      %4959 = vmatpush.msra.mxu0 %v2147
      %4960 = vmatpush.msra.mxu0 %v2139
      %4961 = vmatpush.msra.mxu0 %v2131
      %4962 = vmatpush.msra.mxu0 %v2123
      %4963 = vmatpush.msra.mxu0 %v2115
      %4964 = vmatpush.msra.mxu0 %v2107
      %4965 = vmatpush.msra.mxu0 %v2099
      %4966 = vmatpush.msra.mxu0 %v2091
      %4967 = vmatpush.msra.mxu0 %v2083
      %4968 = vmatpush.msra.mxu0 %v2075
      %4969 = vmatpush.msra.mxu0 %v2067
      %4970 = vmatpush.msra.mxu0 %v2059
      %4971 = vmatpush.msra.mxu0 %v2051
      %4972 = vmatpush.msra.mxu0 %v2043
      %4973 = vmatpush.msra.mxu0 %v2035
      %4974 = vmatmul.f32.gmra.mxu0 %v4707
      %v4975 = vpop.f32.mrf.mxu0
      %v4976 = vadd.f32 %v4956, %v4975
      %4977 = vdwg.mxu0
      %4978 = vmatpush.msra.mxu0 %v2028
      %4979 = vmatpush.msra.mxu0 %v2020
      %4980 = vmatpush.msra.mxu0 %v2012
      %4981 = vmatpush.msra.mxu0 %v2004
      %4982 = vmatpush.msra.mxu0 %v1996
      %4983 = vmatpush.msra.mxu0 %v1988
      %4984 = vmatpush.msra.mxu0 %v1980
      %4985 = vmatpush.msra.mxu0 %v1972
      %4986 = vmatpush.msra.mxu0 %v1964
      %4987 = vmatpush.msra.mxu0 %v1956
      %4988 = vmatpush.msra.mxu0 %v1948
      %4989 = vmatpush.msra.mxu0 %v1940
      %4990 = vmatpush.msra.mxu0 %v1932
      %4991 = vmatpush.msra.mxu0 %v1924
      %4992 = vmatpush.msra.mxu0 %v1916
      %4993 = vmatpush.msra.mxu0 %v1908
      %4994 = vmatmul.f32.gmra.mxu0 %v4706
      %v4995 = vpop.f32.mrf.mxu0
      %v4996 = vadd.f32 0.0, %v4995
      %4997 = vdwg.mxu0
      %4998 = vmatpush.msra.mxu0 %v2156
      %4999 = vmatpush.msra.mxu0 %v2148
      %5000 = vmatpush.msra.mxu0 %v2140
      %5001 = vmatpush.msra.mxu0 %v2132
      %5002 = vmatpush.msra.mxu0 %v2124
      %5003 = vmatpush.msra.mxu0 %v2116
      %5004 = vmatpush.msra.mxu0 %v2108
      %5005 = vmatpush.msra.mxu0 %v2100
      %5006 = vmatpush.msra.mxu0 %v2092
      %5007 = vmatpush.msra.mxu0 %v2084
      %5008 = vmatpush.msra.mxu0 %v2076
      %5009 = vmatpush.msra.mxu0 %v2068
      %5010 = vmatpush.msra.mxu0 %v2060
      %5011 = vmatpush.msra.mxu0 %v2052
      %5012 = vmatpush.msra.mxu0 %v2044
      %5013 = vmatpush.msra.mxu0 %v2036
      %5014 = vmatmul.f32.gmra.mxu0 %v4707
      %v5015 = vpop.f32.mrf.mxu0
      %v5016 = vadd.f32 %v4996, %v5015
      %5017 = vdwg.mxu0
      %5018 = vmatpush.msra.mxu0 %v2029
      %5019 = vmatpush.msra.mxu0 %v2021
      %5020 = vmatpush.msra.mxu0 %v2013
      %5021 = vmatpush.msra.mxu0 %v2005
      %5022 = vmatpush.msra.mxu0 %v1997
      %5023 = vmatpush.msra.mxu0 %v1989
      %5024 = vmatpush.msra.mxu0 %v1981
      %5025 = vmatpush.msra.mxu0 %v1973
      %5026 = vmatpush.msra.mxu0 %v1965
      %5027 = vmatpush.msra.mxu0 %v1957
      %5028 = vmatpush.msra.mxu0 %v1949
      %5029 = vmatpush.msra.mxu0 %v1941
      %5030 = vmatpush.msra.mxu0 %v1933
      %5031 = vmatpush.msra.mxu0 %v1925
      %5032 = vmatpush.msra.mxu0 %v1917
      %5033 = vmatpush.msra.mxu0 %v1909
      %5034 = vmatmul.f32.gmra.mxu0 %v4706
      %v5035 = vpop.f32.mrf.mxu0
      %v5036 = vadd.f32 0.0, %v5035
      %5037 = vdwg.mxu0
      %5038 = vmatpush.msra.mxu0 %v2157
      %5039 = vmatpush.msra.mxu0 %v2149
      %5040 = vmatpush.msra.mxu0 %v2141
      %5041 = vmatpush.msra.mxu0 %v2133
      %5042 = vmatpush.msra.mxu0 %v2125
      %5043 = vmatpush.msra.mxu0 %v2117
      %5044 = vmatpush.msra.mxu0 %v2109
      %5045 = vmatpush.msra.mxu0 %v2101
      %5046 = vmatpush.msra.mxu0 %v2093
      %5047 = vmatpush.msra.mxu0 %v2085
      %5048 = vmatpush.msra.mxu0 %v2077
      %5049 = vmatpush.msra.mxu0 %v2069
      %5050 = vmatpush.msra.mxu0 %v2061
      %5051 = vmatpush.msra.mxu0 %v2053
      %5052 = vmatpush.msra.mxu0 %v2045
      %5053 = vmatpush.msra.mxu0 %v2037
      %5054 = vmatmul.f32.gmra.mxu0 %v4707
      %v5055 = vpop.f32.mrf.mxu0
      %v5056 = vadd.f32 %v5036, %v5055
      %5057 = vdwg.mxu0
      %v5058 = vadd.f32 %v4730, %v4776
      %v5059 = vadd.f32 %v4731, %v4816
      %v5060 = vadd.f32 %v4732, %v4856
      %v5061 = vadd.f32 %v4733, %v4896
      %v5062 = vadd.f32 %v4734, %v4936
      %v5063 = vadd.f32 %v4735, %v4976
      %v5064 = vadd.f32 %v4736, %v5016
      %v5065 = vadd.f32 %v4737, %v5056
      %v5066 = vxor.u32 %v5058, 2147483648
      %v5067 = vxor.u32 %v5059, 2147483648
      %v5068 = vmul.f32 %v5066, 1.442695
      %v5069 = vpow.pop %v5068
      %v5070 = vmul.f32 %v5067, 1.442695
      %v5071 = vpow.pop %v5070
      %v5072 = vadd.f32 %v5069, 1.0
      %v5073 = vadd.f32 %v5071, 1.0
      %v5074 = vrcp.pop %v5072
      %v5075 = vmul.f32 %v5072, %v5074
      %v5076 = vsub.f32 1.0, %v5075
      %v5077 = vmul.f32 %v5074, %v5076
      %v5078 = vadd.f32 %v5074, %v5077
      %vm5079 = vweird.f32 %v5072
      %vm5080 = vweird.f32 %v5074
      %vm5081 = vmor %vm5079, %vm5080
      %v5082 = vsel %vm5081, %v5074, %v5078
      %v5083 = vand.u32 2147483647, %v5072
      %vm5084 = vcmp.eq.f32.partialorder %v5083, 8.507059e+37
      %v5085 = vand.u32 %v5072, 2147483648
      %v5086 = vor.u32 1.1754944e-38, %v5085
      %v5087 = vsel %vm5084, %v5086, %v5082
      %v5088 = vmul.f32 1.0, %v5087
      %v5089 = vrcp.pop %v5073
      %v5090 = vmul.f32 %v5073, %v5089
      %v5091 = vsub.f32 1.0, %v5090
      %v5092 = vmul.f32 %v5089, %v5091
      %v5093 = vadd.f32 %v5089, %v5092
      %vm5094 = vweird.f32 %v5073
      %vm5095 = vweird.f32 %v5089
      %vm5096 = vmor %vm5094, %vm5095
      %v5097 = vsel %vm5096, %v5089, %v5093
      %v5098 = vand.u32 2147483647, %v5073
      %vm5099 = vcmp.eq.f32.partialorder %v5098, 8.507059e+37
      %v5100 = vand.u32 %v5073, 2147483648
      %v5101 = vor.u32 1.1754944e-38, %v5100
      %v5102 = vsel %vm5099, %v5101, %v5097
      %v5103 = vmul.f32 1.0, %v5102
      %v5104 = vxor.u32 %v5060, 2147483648
      %v5105 = vxor.u32 %v5061, 2147483648
      %v5106 = vmul.f32 %v5104, 1.442695
      %v5107 = vpow.pop %v5106
      %v5108 = vmul.f32 %v5105, 1.442695
      %v5109 = vpow.pop %v5108
      %v5110 = vadd.f32 %v5107, 1.0
      %v5111 = vadd.f32 %v5109, 1.0
      %v5112 = vrcp.pop %v5110
      %v5113 = vmul.f32 %v5110, %v5112
      %v5114 = vsub.f32 1.0, %v5113
      %v5115 = vmul.f32 %v5112, %v5114
      %v5116 = vadd.f32 %v5112, %v5115
      %vm5117 = vweird.f32 %v5110
      %vm5118 = vweird.f32 %v5112
      %vm5119 = vmor %vm5117, %vm5118
      %v5120 = vsel %vm5119, %v5112, %v5116
      %v5121 = vand.u32 2147483647, %v5110
      %vm5122 = vcmp.eq.f32.partialorder %v5121, 8.507059e+37
      %v5123 = vand.u32 %v5110, 2147483648
      %v5124 = vor.u32 1.1754944e-38, %v5123
      %v5125 = vsel %vm5122, %v5124, %v5120
      %v5126 = vmul.f32 1.0, %v5125
      %v5127 = vrcp.pop %v5111
      %v5128 = vmul.f32 %v5111, %v5127
      %v5129 = vsub.f32 1.0, %v5128
      %v5130 = vmul.f32 %v5127, %v5129
      %v5131 = vadd.f32 %v5127, %v5130
      %vm5132 = vweird.f32 %v5111
      %vm5133 = vweird.f32 %v5127
      %vm5134 = vmor %vm5132, %vm5133
      %v5135 = vsel %vm5134, %v5127, %v5131
      %v5136 = vand.u32 2147483647, %v5111
      %vm5137 = vcmp.eq.f32.partialorder %v5136, 8.507059e+37
      %v5138 = vand.u32 %v5111, 2147483648
      %v5139 = vor.u32 1.1754944e-38, %v5138
      %v5140 = vsel %vm5137, %v5139, %v5135
      %v5141 = vmul.f32 1.0, %v5140
      %v5142 = vtanh.pop %v5062
      %v5143 = vtanh.pop %v5063
      %v5144 = vxor.u32 %v5064, 2147483648
      %v5145 = vxor.u32 %v5065, 2147483648
      %v5146 = vmul.f32 %v5144, 1.442695
      %v5147 = vpow.pop %v5146
      %v5148 = vmul.f32 %v5145, 1.442695
      %v5149 = vpow.pop %v5148
      %v5150 = vadd.f32 %v5147, 1.0
      %v5151 = vadd.f32 %v5149, 1.0
      %v5152 = vrcp.pop %v5150
      %v5153 = vmul.f32 %v5150, %v5152
      %v5154 = vsub.f32 1.0, %v5153
      %v5155 = vmul.f32 %v5152, %v5154
      %v5156 = vadd.f32 %v5152, %v5155
      %vm5157 = vweird.f32 %v5150
      %vm5158 = vweird.f32 %v5152
      %vm5159 = vmor %vm5157, %vm5158
      %v5160 = vsel %vm5159, %v5152, %v5156
      %v5161 = vand.u32 2147483647, %v5150
      %vm5162 = vcmp.eq.f32.partialorder %v5161, 8.507059e+37
      %v5163 = vand.u32 %v5150, 2147483648
      %v5164 = vor.u32 1.1754944e-38, %v5163
      %v5165 = vsel %vm5162, %v5164, %v5160
      %v5166 = vmul.f32 1.0, %v5165
      %v5167 = vrcp.pop %v5151
      %v5168 = vmul.f32 %v5151, %v5167
      %v5169 = vsub.f32 1.0, %v5168
      %v5170 = vmul.f32 %v5167, %v5169
      %v5171 = vadd.f32 %v5167, %v5170
      %vm5172 = vweird.f32 %v5151
      %vm5173 = vweird.f32 %v5167
      %vm5174 = vmor %vm5172, %vm5173
      %v5175 = vsel %vm5174, %v5167, %v5171
      %v5176 = vand.u32 2147483647, %v5151
      %vm5177 = vcmp.eq.f32.partialorder %v5176, 8.507059e+37
      %v5178 = vand.u32 %v5151, 2147483648
      %v5179 = vor.u32 1.1754944e-38, %v5178
      %v5180 = vsel %vm5177, %v5179, %v5175
      %v5181 = vmul.f32 1.0, %v5180
      %v5182 = vmul.f32 %v5126, %v4702
      %v5183 = vmul.f32 %v5141, %v4703
      %v5184 = vmul.f32 %v5088, %v5142
      %v5185 = vmul.f32 %v5103, %v5143
      %v5186 = vadd.f32 %v5182, %v5184
      %v5187 = vadd.f32 %v5183, %v5185
      %v5188 = vtanh.pop %v5186
      %v5189 = vtanh.pop %v5187
      %v5190 = vmul.f32 %v5166, %v5188
      %v5191 = vmul.f32 %v5181, %v5189
      %s5192 = scalar_lea.vmem [#allocation3], 40
      %5193 = vst [vmem:[%s5192] sm:$0xff] %v5190
      %s5194 = scalar_lea.vmem [#allocation4], 16
      %5195 = vst [vmem:[%s5194] sm:$0xff] %v5191
      %v5196 = vadd.f32 %v4712, %v5190
      %v5197 = vadd.f32 %v4713, %v5191
      %v5198 = vld [vmem:[%s2773] sm:$0xff]
      %v5199 = vld [vmem:[%s2773 + $0x8] sm:$0xff]
      %v5200 = vld [vmem:[%s2773 + $0x10] sm:$0xff]
      %v5201 = vld [vmem:[%s2773 + $0x18] sm:$0xff]
      %v5202 = vld [vmem:[%s2773 + $0x20] sm:$0xff]
      %v5203 = vld [vmem:[%s2773 + $0x28] sm:$0xff]
      %v5204 = vld [vmem:[%s2773 + $0x30] sm:$0xff]
      %v5205 = vld [vmem:[%s2773 + $0x38] sm:$0xff]
      %v5206 = vld [vmem:[%s2762] sm:$0xff]
      %v5207 = vld [vmem:[%s2762 + $0x8] sm:$0xff]
      %v5208 = vld [vmem:[%s2762 + $0x10] sm:$0xff]
      %v5209 = vld [vmem:[%s2762 + $0x18] sm:$0xff]
      %v5210 = vld [vmem:[%s2762 + $0x20] sm:$0xff]
      %v5211 = vld [vmem:[%s2762 + $0x28] sm:$0xff]
      %v5212 = vld [vmem:[%s2762 + $0x30] sm:$0xff]
      %v5213 = vld [vmem:[%s2762 + $0x38] sm:$0xff]
      %v5214 = vsel %vm2263, %v5198, %v5206
      %v5215 = vsel %vm2264, %v5199, %v5207
      %v5216 = vsel %vm2265, %v5200, %v5208
      %v5217 = vsel %vm2266, %v5201, %v5209
      %v5218 = vsel %vm2267, %v5202, %v5210
      %v5219 = vsel %vm2268, %v5203, %v5211
      %v5220 = vsel %vm2269, %v5204, %v5212
      %v5221 = vsel %vm2270, %v5205, %v5213
      %5222 = vmatpush.msra.mxu0 %v2022
      %5223 = vmatpush.msra.mxu0 %v2014
      %5224 = vmatpush.msra.mxu0 %v2006
      %5225 = vmatpush.msra.mxu0 %v1998
      %5226 = vmatpush.msra.mxu0 %v1990
      %5227 = vmatpush.msra.mxu0 %v1982
      %5228 = vmatpush.msra.mxu0 %v1974
      %5229 = vmatpush.msra.mxu0 %v1966
      %5230 = vmatpush.msra.mxu0 %v1958
      %5231 = vmatpush.msra.mxu0 %v1950
      %5232 = vmatpush.msra.mxu0 %v1942
      %5233 = vmatpush.msra.mxu0 %v1934
      %5234 = vmatpush.msra.mxu0 %v1926
      %5235 = vmatpush.msra.mxu0 %v1918
      %5236 = vmatpush.msra.mxu0 %v1910
      %5237 = vmatpush.msra.mxu0 %v1902
      %5238 = vmatmul.f32.gmra.mxu0 %v5190
      %v5239 = vpop.f32.mrf.mxu0
      %v5240 = vadd.f32 0.0, %v5239
      %5241 = vdwg.mxu0
      %5242 = vmatpush.msra.mxu0 %v2150
      %5243 = vmatpush.msra.mxu0 %v2142
      %5244 = vmatpush.msra.mxu0 %v2134
      %5245 = vmatpush.msra.mxu0 %v2126
      %5246 = vmatpush.msra.mxu0 %v2118
      %5247 = vmatpush.msra.mxu0 %v2110
      %5248 = vmatpush.msra.mxu0 %v2102
      %5249 = vmatpush.msra.mxu0 %v2094
      %5250 = vmatpush.msra.mxu0 %v2086
      %5251 = vmatpush.msra.mxu0 %v2078
      %5252 = vmatpush.msra.mxu0 %v2070
      %5253 = vmatpush.msra.mxu0 %v2062
      %5254 = vmatpush.msra.mxu0 %v2054
      %5255 = vmatpush.msra.mxu0 %v2046
      %5256 = vmatpush.msra.mxu0 %v2038
      %5257 = vmatpush.msra.mxu0 %v2030
      %5258 = vmatmul.f32.gmra.mxu0 %v5191
      %v5259 = vpop.f32.mrf.mxu0
      %v5260 = vadd.f32 %v5240, %v5259
      %5261 = vdwg.mxu0
      %5262 = vmatpush.msra.mxu0 %v2023
      %5263 = vmatpush.msra.mxu0 %v2015
      %5264 = vmatpush.msra.mxu0 %v2007
      %5265 = vmatpush.msra.mxu0 %v1999
      %5266 = vmatpush.msra.mxu0 %v1991
      %5267 = vmatpush.msra.mxu0 %v1983
      %5268 = vmatpush.msra.mxu0 %v1975
      %5269 = vmatpush.msra.mxu0 %v1967
      %5270 = vmatpush.msra.mxu0 %v1959
      %5271 = vmatpush.msra.mxu0 %v1951
      %5272 = vmatpush.msra.mxu0 %v1943
      %5273 = vmatpush.msra.mxu0 %v1935
      %5274 = vmatpush.msra.mxu0 %v1927
      %5275 = vmatpush.msra.mxu0 %v1919
      %5276 = vmatpush.msra.mxu0 %v1911
      %5277 = vmatpush.msra.mxu0 %v1903
      %5278 = vmatmul.f32.gmra.mxu0 %v5190
      %v5279 = vpop.f32.mrf.mxu0
      %v5280 = vadd.f32 0.0, %v5279
      %5281 = vdwg.mxu0
      %5282 = vmatpush.msra.mxu0 %v2151
      %5283 = vmatpush.msra.mxu0 %v2143
      %5284 = vmatpush.msra.mxu0 %v2135
      %5285 = vmatpush.msra.mxu0 %v2127
      %5286 = vmatpush.msra.mxu0 %v2119
      %5287 = vmatpush.msra.mxu0 %v2111
      %5288 = vmatpush.msra.mxu0 %v2103
      %5289 = vmatpush.msra.mxu0 %v2095
      %5290 = vmatpush.msra.mxu0 %v2087
      %5291 = vmatpush.msra.mxu0 %v2079
      %5292 = vmatpush.msra.mxu0 %v2071
      %5293 = vmatpush.msra.mxu0 %v2063
      %5294 = vmatpush.msra.mxu0 %v2055
      %5295 = vmatpush.msra.mxu0 %v2047
      %5296 = vmatpush.msra.mxu0 %v2039
      %5297 = vmatpush.msra.mxu0 %v2031
      %5298 = vmatmul.f32.gmra.mxu0 %v5191
      %v5299 = vpop.f32.mrf.mxu0
      %v5300 = vadd.f32 %v5280, %v5299
      %5301 = vdwg.mxu0
      %5302 = vmatpush.msra.mxu0 %v2024
      %5303 = vmatpush.msra.mxu0 %v2016
      %5304 = vmatpush.msra.mxu0 %v2008
      %5305 = vmatpush.msra.mxu0 %v2000
      %5306 = vmatpush.msra.mxu0 %v1992
      %5307 = vmatpush.msra.mxu0 %v1984
      %5308 = vmatpush.msra.mxu0 %v1976
      %5309 = vmatpush.msra.mxu0 %v1968
      %5310 = vmatpush.msra.mxu0 %v1960
      %5311 = vmatpush.msra.mxu0 %v1952
      %5312 = vmatpush.msra.mxu0 %v1944
      %5313 = vmatpush.msra.mxu0 %v1936
      %5314 = vmatpush.msra.mxu0 %v1928
      %5315 = vmatpush.msra.mxu0 %v1920
      %5316 = vmatpush.msra.mxu0 %v1912
      %5317 = vmatpush.msra.mxu0 %v1904
      %5318 = vmatmul.f32.gmra.mxu0 %v5190
      %v5319 = vpop.f32.mrf.mxu0
      %v5320 = vadd.f32 0.0, %v5319
      %5321 = vdwg.mxu0
      %5322 = vmatpush.msra.mxu0 %v2152
      %5323 = vmatpush.msra.mxu0 %v2144
      %5324 = vmatpush.msra.mxu0 %v2136
      %5325 = vmatpush.msra.mxu0 %v2128
      %5326 = vmatpush.msra.mxu0 %v2120
      %5327 = vmatpush.msra.mxu0 %v2112
      %5328 = vmatpush.msra.mxu0 %v2104
      %5329 = vmatpush.msra.mxu0 %v2096
      %5330 = vmatpush.msra.mxu0 %v2088
      %5331 = vmatpush.msra.mxu0 %v2080
      %5332 = vmatpush.msra.mxu0 %v2072
      %5333 = vmatpush.msra.mxu0 %v2064
      %5334 = vmatpush.msra.mxu0 %v2056
      %5335 = vmatpush.msra.mxu0 %v2048
      %5336 = vmatpush.msra.mxu0 %v2040
      %5337 = vmatpush.msra.mxu0 %v2032
      %5338 = vmatmul.f32.gmra.mxu0 %v5191
      %v5339 = vpop.f32.mrf.mxu0
      %v5340 = vadd.f32 %v5320, %v5339
      %5341 = vdwg.mxu0
      %5342 = vmatpush.msra.mxu0 %v2025
      %5343 = vmatpush.msra.mxu0 %v2017
      %5344 = vmatpush.msra.mxu0 %v2009
      %5345 = vmatpush.msra.mxu0 %v2001
      %5346 = vmatpush.msra.mxu0 %v1993
      %5347 = vmatpush.msra.mxu0 %v1985
      %5348 = vmatpush.msra.mxu0 %v1977
      %5349 = vmatpush.msra.mxu0 %v1969
      %5350 = vmatpush.msra.mxu0 %v1961
      %5351 = vmatpush.msra.mxu0 %v1953
      %5352 = vmatpush.msra.mxu0 %v1945
      %5353 = vmatpush.msra.mxu0 %v1937
      %5354 = vmatpush.msra.mxu0 %v1929
      %5355 = vmatpush.msra.mxu0 %v1921
      %5356 = vmatpush.msra.mxu0 %v1913
      %5357 = vmatpush.msra.mxu0 %v1905
      %5358 = vmatmul.f32.gmra.mxu0 %v5190
      %v5359 = vpop.f32.mrf.mxu0
      %v5360 = vadd.f32 0.0, %v5359
      %5361 = vdwg.mxu0
      %5362 = vmatpush.msra.mxu0 %v2153
      %5363 = vmatpush.msra.mxu0 %v2145
      %5364 = vmatpush.msra.mxu0 %v2137
      %5365 = vmatpush.msra.mxu0 %v2129
      %5366 = vmatpush.msra.mxu0 %v2121
      %5367 = vmatpush.msra.mxu0 %v2113
      %5368 = vmatpush.msra.mxu0 %v2105
      %5369 = vmatpush.msra.mxu0 %v2097
      %5370 = vmatpush.msra.mxu0 %v2089
      %5371 = vmatpush.msra.mxu0 %v2081
      %5372 = vmatpush.msra.mxu0 %v2073
      %5373 = vmatpush.msra.mxu0 %v2065
      %5374 = vmatpush.msra.mxu0 %v2057
      %5375 = vmatpush.msra.mxu0 %v2049
      %5376 = vmatpush.msra.mxu0 %v2041
      %5377 = vmatpush.msra.mxu0 %v2033
      %5378 = vmatmul.f32.gmra.mxu0 %v5191
      %v5379 = vpop.f32.mrf.mxu0
      %v5380 = vadd.f32 %v5360, %v5379
      %5381 = vdwg.mxu0
      %5382 = vmatpush.msra.mxu0 %v2026
      %5383 = vmatpush.msra.mxu0 %v2018
      %5384 = vmatpush.msra.mxu0 %v2010
      %5385 = vmatpush.msra.mxu0 %v2002
      %5386 = vmatpush.msra.mxu0 %v1994
      %5387 = vmatpush.msra.mxu0 %v1986
      %5388 = vmatpush.msra.mxu0 %v1978
      %5389 = vmatpush.msra.mxu0 %v1970
      %5390 = vmatpush.msra.mxu0 %v1962
      %5391 = vmatpush.msra.mxu0 %v1954
      %5392 = vmatpush.msra.mxu0 %v1946
      %5393 = vmatpush.msra.mxu0 %v1938
      %5394 = vmatpush.msra.mxu0 %v1930
      %5395 = vmatpush.msra.mxu0 %v1922
      %5396 = vmatpush.msra.mxu0 %v1914
      %5397 = vmatpush.msra.mxu0 %v1906
      %5398 = vmatmul.f32.gmra.mxu0 %v5190
      %v5399 = vpop.f32.mrf.mxu0
      %v5400 = vadd.f32 0.0, %v5399
      %5401 = vdwg.mxu0
      %5402 = vmatpush.msra.mxu0 %v2154
      %5403 = vmatpush.msra.mxu0 %v2146
      %5404 = vmatpush.msra.mxu0 %v2138
      %5405 = vmatpush.msra.mxu0 %v2130
      %5406 = vmatpush.msra.mxu0 %v2122
      %5407 = vmatpush.msra.mxu0 %v2114
      %5408 = vmatpush.msra.mxu0 %v2106
      %5409 = vmatpush.msra.mxu0 %v2098
      %5410 = vmatpush.msra.mxu0 %v2090
      %5411 = vmatpush.msra.mxu0 %v2082
      %5412 = vmatpush.msra.mxu0 %v2074
      %5413 = vmatpush.msra.mxu0 %v2066
      %5414 = vmatpush.msra.mxu0 %v2058
      %5415 = vmatpush.msra.mxu0 %v2050
      %5416 = vmatpush.msra.mxu0 %v2042
      %5417 = vmatpush.msra.mxu0 %v2034
      %5418 = vmatmul.f32.gmra.mxu0 %v5191
      %v5419 = vpop.f32.mrf.mxu0
      %v5420 = vadd.f32 %v5400, %v5419
      %5421 = vdwg.mxu0
      %5422 = vmatpush.msra.mxu0 %v2027
      %5423 = vmatpush.msra.mxu0 %v2019
      %5424 = vmatpush.msra.mxu0 %v2011
      %5425 = vmatpush.msra.mxu0 %v2003
      %5426 = vmatpush.msra.mxu0 %v1995
      %5427 = vmatpush.msra.mxu0 %v1987
      %5428 = vmatpush.msra.mxu0 %v1979
      %5429 = vmatpush.msra.mxu0 %v1971
      %5430 = vmatpush.msra.mxu0 %v1963
      %5431 = vmatpush.msra.mxu0 %v1955
      %5432 = vmatpush.msra.mxu0 %v1947
      %5433 = vmatpush.msra.mxu0 %v1939
      %5434 = vmatpush.msra.mxu0 %v1931
      %5435 = vmatpush.msra.mxu0 %v1923
      %5436 = vmatpush.msra.mxu0 %v1915
      %5437 = vmatpush.msra.mxu0 %v1907
      %5438 = vmatmul.f32.gmra.mxu0 %v5190
      %v5439 = vpop.f32.mrf.mxu0
      %v5440 = vadd.f32 0.0, %v5439
      %5441 = vdwg.mxu0
      %5442 = vmatpush.msra.mxu0 %v2155
      %5443 = vmatpush.msra.mxu0 %v2147
      %5444 = vmatpush.msra.mxu0 %v2139
      %5445 = vmatpush.msra.mxu0 %v2131
      %5446 = vmatpush.msra.mxu0 %v2123
      %5447 = vmatpush.msra.mxu0 %v2115
      %5448 = vmatpush.msra.mxu0 %v2107
      %5449 = vmatpush.msra.mxu0 %v2099
      %5450 = vmatpush.msra.mxu0 %v2091
      %5451 = vmatpush.msra.mxu0 %v2083
      %5452 = vmatpush.msra.mxu0 %v2075
      %5453 = vmatpush.msra.mxu0 %v2067
      %5454 = vmatpush.msra.mxu0 %v2059
      %5455 = vmatpush.msra.mxu0 %v2051
      %5456 = vmatpush.msra.mxu0 %v2043
      %5457 = vmatpush.msra.mxu0 %v2035
      %5458 = vmatmul.f32.gmra.mxu0 %v5191
      %v5459 = vpop.f32.mrf.mxu0
      %v5460 = vadd.f32 %v5440, %v5459
      %5461 = vdwg.mxu0
      %5462 = vmatpush.msra.mxu0 %v2028
      %5463 = vmatpush.msra.mxu0 %v2020
      %5464 = vmatpush.msra.mxu0 %v2012
      %5465 = vmatpush.msra.mxu0 %v2004
      %5466 = vmatpush.msra.mxu0 %v1996
      %5467 = vmatpush.msra.mxu0 %v1988
      %5468 = vmatpush.msra.mxu0 %v1980
      %5469 = vmatpush.msra.mxu0 %v1972
      %5470 = vmatpush.msra.mxu0 %v1964
      %5471 = vmatpush.msra.mxu0 %v1956
      %5472 = vmatpush.msra.mxu0 %v1948
      %5473 = vmatpush.msra.mxu0 %v1940
      %5474 = vmatpush.msra.mxu0 %v1932
      %5475 = vmatpush.msra.mxu0 %v1924
      %5476 = vmatpush.msra.mxu0 %v1916
      %5477 = vmatpush.msra.mxu0 %v1908
      %5478 = vmatmul.f32.gmra.mxu0 %v5190
      %v5479 = vpop.f32.mrf.mxu0
      %v5480 = vadd.f32 0.0, %v5479
      %5481 = vdwg.mxu0
      %5482 = vmatpush.msra.mxu0 %v2156
      %5483 = vmatpush.msra.mxu0 %v2148
      %5484 = vmatpush.msra.mxu0 %v2140
      %5485 = vmatpush.msra.mxu0 %v2132
      %5486 = vmatpush.msra.mxu0 %v2124
      %5487 = vmatpush.msra.mxu0 %v2116
      %5488 = vmatpush.msra.mxu0 %v2108
      %5489 = vmatpush.msra.mxu0 %v2100
      %5490 = vmatpush.msra.mxu0 %v2092
      %5491 = vmatpush.msra.mxu0 %v2084
      %5492 = vmatpush.msra.mxu0 %v2076
      %5493 = vmatpush.msra.mxu0 %v2068
      %5494 = vmatpush.msra.mxu0 %v2060
      %5495 = vmatpush.msra.mxu0 %v2052
      %5496 = vmatpush.msra.mxu0 %v2044
      %5497 = vmatpush.msra.mxu0 %v2036
      %5498 = vmatmul.f32.gmra.mxu0 %v5191
      %v5499 = vpop.f32.mrf.mxu0
      %v5500 = vadd.f32 %v5480, %v5499
      %5501 = vdwg.mxu0
      %5502 = vmatpush.msra.mxu0 %v2029
      %5503 = vmatpush.msra.mxu0 %v2021
      %5504 = vmatpush.msra.mxu0 %v2013
      %5505 = vmatpush.msra.mxu0 %v2005
      %5506 = vmatpush.msra.mxu0 %v1997
      %5507 = vmatpush.msra.mxu0 %v1989
      %5508 = vmatpush.msra.mxu0 %v1981
      %5509 = vmatpush.msra.mxu0 %v1973
      %5510 = vmatpush.msra.mxu0 %v1965
      %5511 = vmatpush.msra.mxu0 %v1957
      %5512 = vmatpush.msra.mxu0 %v1949
      %5513 = vmatpush.msra.mxu0 %v1941
      %5514 = vmatpush.msra.mxu0 %v1933
      %5515 = vmatpush.msra.mxu0 %v1925
      %5516 = vmatpush.msra.mxu0 %v1917
      %5517 = vmatpush.msra.mxu0 %v1909
      %5518 = vmatmul.f32.gmra.mxu0 %v5190
      %v5519 = vpop.f32.mrf.mxu0
      %v5520 = vadd.f32 0.0, %v5519
      %5521 = vdwg.mxu0
      %5522 = vmatpush.msra.mxu0 %v2157
      %5523 = vmatpush.msra.mxu0 %v2149
      %5524 = vmatpush.msra.mxu0 %v2141
      %5525 = vmatpush.msra.mxu0 %v2133
      %5526 = vmatpush.msra.mxu0 %v2125
      %5527 = vmatpush.msra.mxu0 %v2117
      %5528 = vmatpush.msra.mxu0 %v2109
      %5529 = vmatpush.msra.mxu0 %v2101
      %5530 = vmatpush.msra.mxu0 %v2093
      %5531 = vmatpush.msra.mxu0 %v2085
      %5532 = vmatpush.msra.mxu0 %v2077
      %5533 = vmatpush.msra.mxu0 %v2069
      %5534 = vmatpush.msra.mxu0 %v2061
      %5535 = vmatpush.msra.mxu0 %v2053
      %5536 = vmatpush.msra.mxu0 %v2045
      %5537 = vmatpush.msra.mxu0 %v2037
      %5538 = vmatmul.f32.gmra.mxu0 %v5191
      %v5539 = vpop.f32.mrf.mxu0
      %v5540 = vadd.f32 %v5520, %v5539
      %5541 = vdwg.mxu0
      %v5542 = vadd.f32 %v5214, %v5260
      %v5543 = vadd.f32 %v5215, %v5300
      %v5544 = vadd.f32 %v5216, %v5340
      %v5545 = vadd.f32 %v5217, %v5380
      %v5546 = vadd.f32 %v5218, %v5420
      %v5547 = vadd.f32 %v5219, %v5460
      %v5548 = vadd.f32 %v5220, %v5500
      %v5549 = vadd.f32 %v5221, %v5540
      %v5550 = vxor.u32 %v5542, 2147483648
      %v5551 = vxor.u32 %v5543, 2147483648
      %v5552 = vmul.f32 %v5550, 1.442695
      %v5553 = vpow.pop %v5552
      %v5554 = vmul.f32 %v5551, 1.442695
      %v5555 = vpow.pop %v5554
      %v5556 = vadd.f32 %v5553, 1.0
      %v5557 = vadd.f32 %v5555, 1.0
      %v5558 = vrcp.pop %v5556
      %v5559 = vmul.f32 %v5556, %v5558
      %v5560 = vsub.f32 1.0, %v5559
      %v5561 = vmul.f32 %v5558, %v5560
      %v5562 = vadd.f32 %v5558, %v5561
      %vm5563 = vweird.f32 %v5556
      %vm5564 = vweird.f32 %v5558
      %vm5565 = vmor %vm5563, %vm5564
      %v5566 = vsel %vm5565, %v5558, %v5562
      %v5567 = vand.u32 2147483647, %v5556
      %vm5568 = vcmp.eq.f32.partialorder %v5567, 8.507059e+37
      %v5569 = vand.u32 %v5556, 2147483648
      %v5570 = vor.u32 1.1754944e-38, %v5569
      %v5571 = vsel %vm5568, %v5570, %v5566
      %v5572 = vmul.f32 1.0, %v5571
      %v5573 = vrcp.pop %v5557
      %v5574 = vmul.f32 %v5557, %v5573
      %v5575 = vsub.f32 1.0, %v5574
      %v5576 = vmul.f32 %v5573, %v5575
      %v5577 = vadd.f32 %v5573, %v5576
      %vm5578 = vweird.f32 %v5557
      %vm5579 = vweird.f32 %v5573
      %vm5580 = vmor %vm5578, %vm5579
      %v5581 = vsel %vm5580, %v5573, %v5577
      %v5582 = vand.u32 2147483647, %v5557
      %vm5583 = vcmp.eq.f32.partialorder %v5582, 8.507059e+37
      %v5584 = vand.u32 %v5557, 2147483648
      %v5585 = vor.u32 1.1754944e-38, %v5584
      %v5586 = vsel %vm5583, %v5585, %v5581
      %v5587 = vmul.f32 1.0, %v5586
      %v5588 = vxor.u32 %v5544, 2147483648
      %v5589 = vxor.u32 %v5545, 2147483648
      %v5590 = vmul.f32 %v5588, 1.442695
      %v5591 = vpow.pop %v5590
      %v5592 = vmul.f32 %v5589, 1.442695
      %v5593 = vpow.pop %v5592
      %v5594 = vadd.f32 %v5591, 1.0
      %v5595 = vadd.f32 %v5593, 1.0
      %v5596 = vrcp.pop %v5594
      %v5597 = vmul.f32 %v5594, %v5596
      %v5598 = vsub.f32 1.0, %v5597
      %v5599 = vmul.f32 %v5596, %v5598
      %v5600 = vadd.f32 %v5596, %v5599
      %vm5601 = vweird.f32 %v5594
      %vm5602 = vweird.f32 %v5596
      %vm5603 = vmor %vm5601, %vm5602
      %v5604 = vsel %vm5603, %v5596, %v5600
      %v5605 = vand.u32 2147483647, %v5594
      %vm5606 = vcmp.eq.f32.partialorder %v5605, 8.507059e+37
      %v5607 = vand.u32 %v5594, 2147483648
      %v5608 = vor.u32 1.1754944e-38, %v5607
      %v5609 = vsel %vm5606, %v5608, %v5604
      %v5610 = vmul.f32 1.0, %v5609
      %v5611 = vrcp.pop %v5595
      %v5612 = vmul.f32 %v5595, %v5611
      %v5613 = vsub.f32 1.0, %v5612
      %v5614 = vmul.f32 %v5611, %v5613
      %v5615 = vadd.f32 %v5611, %v5614
      %vm5616 = vweird.f32 %v5595
      %vm5617 = vweird.f32 %v5611
      %vm5618 = vmor %vm5616, %vm5617
      %v5619 = vsel %vm5618, %v5611, %v5615
      %v5620 = vand.u32 2147483647, %v5595
      %vm5621 = vcmp.eq.f32.partialorder %v5620, 8.507059e+37
      %v5622 = vand.u32 %v5595, 2147483648
      %v5623 = vor.u32 1.1754944e-38, %v5622
      %v5624 = vsel %vm5621, %v5623, %v5619
      %v5625 = vmul.f32 1.0, %v5624
      %v5626 = vtanh.pop %v5546
      %v5627 = vtanh.pop %v5547
      %v5628 = vxor.u32 %v5548, 2147483648
      %v5629 = vxor.u32 %v5549, 2147483648
      %v5630 = vmul.f32 %v5628, 1.442695
      %v5631 = vpow.pop %v5630
      %v5632 = vmul.f32 %v5629, 1.442695
      %v5633 = vpow.pop %v5632
      %v5634 = vadd.f32 %v5631, 1.0
      %v5635 = vadd.f32 %v5633, 1.0
      %v5636 = vrcp.pop %v5634
      %v5637 = vmul.f32 %v5634, %v5636
      %v5638 = vsub.f32 1.0, %v5637
      %v5639 = vmul.f32 %v5636, %v5638
      %v5640 = vadd.f32 %v5636, %v5639
      %vm5641 = vweird.f32 %v5634
      %vm5642 = vweird.f32 %v5636
      %vm5643 = vmor %vm5641, %vm5642
      %v5644 = vsel %vm5643, %v5636, %v5640
      %v5645 = vand.u32 2147483647, %v5634
      %vm5646 = vcmp.eq.f32.partialorder %v5645, 8.507059e+37
      %v5647 = vand.u32 %v5634, 2147483648
      %v5648 = vor.u32 1.1754944e-38, %v5647
      %v5649 = vsel %vm5646, %v5648, %v5644
      %v5650 = vmul.f32 1.0, %v5649
      %v5651 = vrcp.pop %v5635
      %v5652 = vmul.f32 %v5635, %v5651
      %v5653 = vsub.f32 1.0, %v5652
      %v5654 = vmul.f32 %v5651, %v5653
      %v5655 = vadd.f32 %v5651, %v5654
      %vm5656 = vweird.f32 %v5635
      %vm5657 = vweird.f32 %v5651
      %vm5658 = vmor %vm5656, %vm5657
      %v5659 = vsel %vm5658, %v5651, %v5655
      %v5660 = vand.u32 2147483647, %v5635
      %vm5661 = vcmp.eq.f32.partialorder %v5660, 8.507059e+37
      %v5662 = vand.u32 %v5635, 2147483648
      %v5663 = vor.u32 1.1754944e-38, %v5662
      %v5664 = vsel %vm5661, %v5663, %v5659
      %v5665 = vmul.f32 1.0, %v5664
      %v5666 = vmul.f32 %v5610, %v5186
      %v5667 = vmul.f32 %v5625, %v5187
      %v5668 = vmul.f32 %v5572, %v5626
      %v5669 = vmul.f32 %v5587, %v5627
      %v5670 = vadd.f32 %v5666, %v5668
      %v5671 = vadd.f32 %v5667, %v5669
      %v5672 = vtanh.pop %v5670
      %v5673 = vtanh.pop %v5671
      %v5674 = vmul.f32 %v5650, %v5672
      %v5675 = vmul.f32 %v5665, %v5673
      %s5676 = scalar_lea.vmem [#allocation3], 48
      %5677 = vst [vmem:[%s5676] sm:$0xff] %v5674
      %s5678 = scalar_lea.vmem [#allocation4], 8
      %5679 = vst [vmem:[%s5678] sm:$0xff] %v5675
      %v5680 = vadd.f32 %v5196, %v5674
      %v5681 = vadd.f32 %v5197, %v5675
      %v5682 = vld [vmem:[%s2284] sm:$0xff]
      %v5683 = vld [vmem:[%s2284 + $0x8] sm:$0xff]
      %v5684 = vld [vmem:[%s2284 + $0x10] sm:$0xff]
      %v5685 = vld [vmem:[%s2284 + $0x18] sm:$0xff]
      %v5686 = vld [vmem:[%s2284 + $0x20] sm:$0xff]
      %v5687 = vld [vmem:[%s2284 + $0x28] sm:$0xff]
      %v5688 = vld [vmem:[%s2284 + $0x30] sm:$0xff]
      %v5689 = vld [vmem:[%s2284 + $0x38] sm:$0xff]
      %v5690 = vld [vmem:[%s2273] sm:$0xff]
      %v5691 = vld [vmem:[%s2273 + $0x8] sm:$0xff]
      %v5692 = vld [vmem:[%s2273 + $0x10] sm:$0xff]
      %v5693 = vld [vmem:[%s2273 + $0x18] sm:$0xff]
      %v5694 = vld [vmem:[%s2273 + $0x20] sm:$0xff]
      %v5695 = vld [vmem:[%s2273 + $0x28] sm:$0xff]
      %v5696 = vld [vmem:[%s2273 + $0x30] sm:$0xff]
      %v5697 = vld [vmem:[%s2273 + $0x38] sm:$0xff]
      %v5698 = vsel %vm2263, %v5682, %v5690
      %v5699 = vsel %vm2264, %v5683, %v5691
      %v5700 = vsel %vm2265, %v5684, %v5692
      %v5701 = vsel %vm2266, %v5685, %v5693
      %v5702 = vsel %vm2267, %v5686, %v5694
      %v5703 = vsel %vm2268, %v5687, %v5695
      %v5704 = vsel %vm2269, %v5688, %v5696
      %v5705 = vsel %vm2270, %v5689, %v5697
      %5706 = vmatpush.msra.mxu0 %v2022
      %5707 = vmatpush.msra.mxu0 %v2014
      %5708 = vmatpush.msra.mxu0 %v2006
      %5709 = vmatpush.msra.mxu0 %v1998
      %5710 = vmatpush.msra.mxu0 %v1990
      %5711 = vmatpush.msra.mxu0 %v1982
      %5712 = vmatpush.msra.mxu0 %v1974
      %5713 = vmatpush.msra.mxu0 %v1966
      %5714 = vmatpush.msra.mxu0 %v1958
      %5715 = vmatpush.msra.mxu0 %v1950
      %5716 = vmatpush.msra.mxu0 %v1942
      %5717 = vmatpush.msra.mxu0 %v1934
      %5718 = vmatpush.msra.mxu0 %v1926
      %5719 = vmatpush.msra.mxu0 %v1918
      %5720 = vmatpush.msra.mxu0 %v1910
      %5721 = vmatpush.msra.mxu0 %v1902
      %5722 = vmatmul.f32.gmra.mxu0 %v5674
      %v5723 = vpop.f32.mrf.mxu0
      %v5724 = vadd.f32 0.0, %v5723
      %5725 = vdwg.mxu0
      %5726 = vmatpush.msra.mxu0 %v2150
      %5727 = vmatpush.msra.mxu0 %v2142
      %5728 = vmatpush.msra.mxu0 %v2134
      %5729 = vmatpush.msra.mxu0 %v2126
      %5730 = vmatpush.msra.mxu0 %v2118
      %5731 = vmatpush.msra.mxu0 %v2110
      %5732 = vmatpush.msra.mxu0 %v2102
      %5733 = vmatpush.msra.mxu0 %v2094
      %5734 = vmatpush.msra.mxu0 %v2086
      %5735 = vmatpush.msra.mxu0 %v2078
      %5736 = vmatpush.msra.mxu0 %v2070
      %5737 = vmatpush.msra.mxu0 %v2062
      %5738 = vmatpush.msra.mxu0 %v2054
      %5739 = vmatpush.msra.mxu0 %v2046
      %5740 = vmatpush.msra.mxu0 %v2038
      %5741 = vmatpush.msra.mxu0 %v2030
      %5742 = vmatmul.f32.gmra.mxu0 %v5675
      %v5743 = vpop.f32.mrf.mxu0
      %v5744 = vadd.f32 %v5724, %v5743
      %5745 = vdwg.mxu0
      %5746 = vmatpush.msra.mxu0 %v2023
      %5747 = vmatpush.msra.mxu0 %v2015
      %5748 = vmatpush.msra.mxu0 %v2007
      %5749 = vmatpush.msra.mxu0 %v1999
      %5750 = vmatpush.msra.mxu0 %v1991
      %5751 = vmatpush.msra.mxu0 %v1983
      %5752 = vmatpush.msra.mxu0 %v1975
      %5753 = vmatpush.msra.mxu0 %v1967
      %5754 = vmatpush.msra.mxu0 %v1959
      %5755 = vmatpush.msra.mxu0 %v1951
      %5756 = vmatpush.msra.mxu0 %v1943
      %5757 = vmatpush.msra.mxu0 %v1935
      %5758 = vmatpush.msra.mxu0 %v1927
      %5759 = vmatpush.msra.mxu0 %v1919
      %5760 = vmatpush.msra.mxu0 %v1911
      %5761 = vmatpush.msra.mxu0 %v1903
      %5762 = vmatmul.f32.gmra.mxu0 %v5674
      %v5763 = vpop.f32.mrf.mxu0
      %v5764 = vadd.f32 0.0, %v5763
      %5765 = vdwg.mxu0
      %5766 = vmatpush.msra.mxu0 %v2151
      %5767 = vmatpush.msra.mxu0 %v2143
      %5768 = vmatpush.msra.mxu0 %v2135
      %5769 = vmatpush.msra.mxu0 %v2127
      %5770 = vmatpush.msra.mxu0 %v2119
      %5771 = vmatpush.msra.mxu0 %v2111
      %5772 = vmatpush.msra.mxu0 %v2103
      %5773 = vmatpush.msra.mxu0 %v2095
      %5774 = vmatpush.msra.mxu0 %v2087
      %5775 = vmatpush.msra.mxu0 %v2079
      %5776 = vmatpush.msra.mxu0 %v2071
      %5777 = vmatpush.msra.mxu0 %v2063
      %5778 = vmatpush.msra.mxu0 %v2055
      %5779 = vmatpush.msra.mxu0 %v2047
      %5780 = vmatpush.msra.mxu0 %v2039
      %5781 = vmatpush.msra.mxu0 %v2031
      %5782 = vmatmul.f32.gmra.mxu0 %v5675
      %v5783 = vpop.f32.mrf.mxu0
      %v5784 = vadd.f32 %v5764, %v5783
      %5785 = vdwg.mxu0
      %5786 = vmatpush.msra.mxu0 %v2024
      %5787 = vmatpush.msra.mxu0 %v2016
      %5788 = vmatpush.msra.mxu0 %v2008
      %5789 = vmatpush.msra.mxu0 %v2000
      %5790 = vmatpush.msra.mxu0 %v1992
      %5791 = vmatpush.msra.mxu0 %v1984
      %5792 = vmatpush.msra.mxu0 %v1976
      %5793 = vmatpush.msra.mxu0 %v1968
      %5794 = vmatpush.msra.mxu0 %v1960
      %5795 = vmatpush.msra.mxu0 %v1952
      %5796 = vmatpush.msra.mxu0 %v1944
      %5797 = vmatpush.msra.mxu0 %v1936
      %5798 = vmatpush.msra.mxu0 %v1928
      %5799 = vmatpush.msra.mxu0 %v1920
      %5800 = vmatpush.msra.mxu0 %v1912
      %5801 = vmatpush.msra.mxu0 %v1904
      %5802 = vmatmul.f32.gmra.mxu0 %v5674
      %v5803 = vpop.f32.mrf.mxu0
      %v5804 = vadd.f32 0.0, %v5803
      %5805 = vdwg.mxu0
      %5806 = vmatpush.msra.mxu0 %v2152
      %5807 = vmatpush.msra.mxu0 %v2144
      %5808 = vmatpush.msra.mxu0 %v2136
      %5809 = vmatpush.msra.mxu0 %v2128
      %5810 = vmatpush.msra.mxu0 %v2120
      %5811 = vmatpush.msra.mxu0 %v2112
      %5812 = vmatpush.msra.mxu0 %v2104
      %5813 = vmatpush.msra.mxu0 %v2096
      %5814 = vmatpush.msra.mxu0 %v2088
      %5815 = vmatpush.msra.mxu0 %v2080
      %5816 = vmatpush.msra.mxu0 %v2072
      %5817 = vmatpush.msra.mxu0 %v2064
      %5818 = vmatpush.msra.mxu0 %v2056
      %5819 = vmatpush.msra.mxu0 %v2048
      %5820 = vmatpush.msra.mxu0 %v2040
      %5821 = vmatpush.msra.mxu0 %v2032
      %5822 = vmatmul.f32.gmra.mxu0 %v5675
      %v5823 = vpop.f32.mrf.mxu0
      %v5824 = vadd.f32 %v5804, %v5823
      %5825 = vdwg.mxu0
      %5826 = vmatpush.msra.mxu0 %v2025
      %5827 = vmatpush.msra.mxu0 %v2017
      %5828 = vmatpush.msra.mxu0 %v2009
      %5829 = vmatpush.msra.mxu0 %v2001
      %5830 = vmatpush.msra.mxu0 %v1993
      %5831 = vmatpush.msra.mxu0 %v1985
      %5832 = vmatpush.msra.mxu0 %v1977
      %5833 = vmatpush.msra.mxu0 %v1969
      %5834 = vmatpush.msra.mxu0 %v1961
      %5835 = vmatpush.msra.mxu0 %v1953
      %5836 = vmatpush.msra.mxu0 %v1945
      %5837 = vmatpush.msra.mxu0 %v1937
      %5838 = vmatpush.msra.mxu0 %v1929
      %5839 = vmatpush.msra.mxu0 %v1921
      %5840 = vmatpush.msra.mxu0 %v1913
      %5841 = vmatpush.msra.mxu0 %v1905
      %5842 = vmatmul.f32.gmra.mxu0 %v5674
      %v5843 = vpop.f32.mrf.mxu0
      %v5844 = vadd.f32 0.0, %v5843
      %5845 = vdwg.mxu0
      %5846 = vmatpush.msra.mxu0 %v2153
      %5847 = vmatpush.msra.mxu0 %v2145
      %5848 = vmatpush.msra.mxu0 %v2137
      %5849 = vmatpush.msra.mxu0 %v2129
      %5850 = vmatpush.msra.mxu0 %v2121
      %5851 = vmatpush.msra.mxu0 %v2113
      %5852 = vmatpush.msra.mxu0 %v2105
      %5853 = vmatpush.msra.mxu0 %v2097
      %5854 = vmatpush.msra.mxu0 %v2089
      %5855 = vmatpush.msra.mxu0 %v2081
      %5856 = vmatpush.msra.mxu0 %v2073
      %5857 = vmatpush.msra.mxu0 %v2065
      %5858 = vmatpush.msra.mxu0 %v2057
      %5859 = vmatpush.msra.mxu0 %v2049
      %5860 = vmatpush.msra.mxu0 %v2041
      %5861 = vmatpush.msra.mxu0 %v2033
      %5862 = vmatmul.f32.gmra.mxu0 %v5675
      %v5863 = vpop.f32.mrf.mxu0
      %v5864 = vadd.f32 %v5844, %v5863
      %5865 = vdwg.mxu0
      %5866 = vmatpush.msra.mxu0 %v2026
      %5867 = vmatpush.msra.mxu0 %v2018
      %5868 = vmatpush.msra.mxu0 %v2010
      %5869 = vmatpush.msra.mxu0 %v2002
      %5870 = vmatpush.msra.mxu0 %v1994
      %5871 = vmatpush.msra.mxu0 %v1986
      %5872 = vmatpush.msra.mxu0 %v1978
      %5873 = vmatpush.msra.mxu0 %v1970
      %5874 = vmatpush.msra.mxu0 %v1962
      %5875 = vmatpush.msra.mxu0 %v1954
      %5876 = vmatpush.msra.mxu0 %v1946
      %5877 = vmatpush.msra.mxu0 %v1938
      %5878 = vmatpush.msra.mxu0 %v1930
      %5879 = vmatpush.msra.mxu0 %v1922
      %5880 = vmatpush.msra.mxu0 %v1914
      %5881 = vmatpush.msra.mxu0 %v1906
      %5882 = vmatmul.f32.gmra.mxu0 %v5674
      %v5883 = vpop.f32.mrf.mxu0
      %v5884 = vadd.f32 0.0, %v5883
      %5885 = vdwg.mxu0
      %5886 = vmatpush.msra.mxu0 %v2154
      %5887 = vmatpush.msra.mxu0 %v2146
      %5888 = vmatpush.msra.mxu0 %v2138
      %5889 = vmatpush.msra.mxu0 %v2130
      %5890 = vmatpush.msra.mxu0 %v2122
      %5891 = vmatpush.msra.mxu0 %v2114
      %5892 = vmatpush.msra.mxu0 %v2106
      %5893 = vmatpush.msra.mxu0 %v2098
      %5894 = vmatpush.msra.mxu0 %v2090
      %5895 = vmatpush.msra.mxu0 %v2082
      %5896 = vmatpush.msra.mxu0 %v2074
      %5897 = vmatpush.msra.mxu0 %v2066
      %5898 = vmatpush.msra.mxu0 %v2058
      %5899 = vmatpush.msra.mxu0 %v2050
      %5900 = vmatpush.msra.mxu0 %v2042
      %5901 = vmatpush.msra.mxu0 %v2034
      %5902 = vmatmul.f32.gmra.mxu0 %v5675
      %v5903 = vpop.f32.mrf.mxu0
      %v5904 = vadd.f32 %v5884, %v5903
      %5905 = vdwg.mxu0
      %5906 = vmatpush.msra.mxu0 %v2027
      %5907 = vmatpush.msra.mxu0 %v2019
      %5908 = vmatpush.msra.mxu0 %v2011
      %5909 = vmatpush.msra.mxu0 %v2003
      %5910 = vmatpush.msra.mxu0 %v1995
      %5911 = vmatpush.msra.mxu0 %v1987
      %5912 = vmatpush.msra.mxu0 %v1979
      %5913 = vmatpush.msra.mxu0 %v1971
      %5914 = vmatpush.msra.mxu0 %v1963
      %5915 = vmatpush.msra.mxu0 %v1955
      %5916 = vmatpush.msra.mxu0 %v1947
      %5917 = vmatpush.msra.mxu0 %v1939
      %5918 = vmatpush.msra.mxu0 %v1931
      %5919 = vmatpush.msra.mxu0 %v1923
      %5920 = vmatpush.msra.mxu0 %v1915
      %5921 = vmatpush.msra.mxu0 %v1907
      %5922 = vmatmul.f32.gmra.mxu0 %v5674
      %v5923 = vpop.f32.mrf.mxu0
      %v5924 = vadd.f32 0.0, %v5923
      %5925 = vdwg.mxu0
      %5926 = vmatpush.msra.mxu0 %v2155
      %5927 = vmatpush.msra.mxu0 %v2147
      %5928 = vmatpush.msra.mxu0 %v2139
      %5929 = vmatpush.msra.mxu0 %v2131
      %5930 = vmatpush.msra.mxu0 %v2123
      %5931 = vmatpush.msra.mxu0 %v2115
      %5932 = vmatpush.msra.mxu0 %v2107
      %5933 = vmatpush.msra.mxu0 %v2099
      %5934 = vmatpush.msra.mxu0 %v2091
      %5935 = vmatpush.msra.mxu0 %v2083
      %5936 = vmatpush.msra.mxu0 %v2075
      %5937 = vmatpush.msra.mxu0 %v2067
      %5938 = vmatpush.msra.mxu0 %v2059
      %5939 = vmatpush.msra.mxu0 %v2051
      %5940 = vmatpush.msra.mxu0 %v2043
      %5941 = vmatpush.msra.mxu0 %v2035
      %5942 = vmatmul.f32.gmra.mxu0 %v5675
      %v5943 = vpop.f32.mrf.mxu0
      %v5944 = vadd.f32 %v5924, %v5943
      %5945 = vdwg.mxu0
      %5946 = vmatpush.msra.mxu0 %v2028
      %5947 = vmatpush.msra.mxu0 %v2020
      %5948 = vmatpush.msra.mxu0 %v2012
      %5949 = vmatpush.msra.mxu0 %v2004
      %5950 = vmatpush.msra.mxu0 %v1996
      %5951 = vmatpush.msra.mxu0 %v1988
      %5952 = vmatpush.msra.mxu0 %v1980
      %5953 = vmatpush.msra.mxu0 %v1972
      %5954 = vmatpush.msra.mxu0 %v1964
      %5955 = vmatpush.msra.mxu0 %v1956
      %5956 = vmatpush.msra.mxu0 %v1948
      %5957 = vmatpush.msra.mxu0 %v1940
      %5958 = vmatpush.msra.mxu0 %v1932
      %5959 = vmatpush.msra.mxu0 %v1924
      %5960 = vmatpush.msra.mxu0 %v1916
      %5961 = vmatpush.msra.mxu0 %v1908
      %5962 = vmatmul.f32.gmra.mxu0 %v5674
      %v5963 = vpop.f32.mrf.mxu0
      %v5964 = vadd.f32 0.0, %v5963
      %5965 = vdwg.mxu0
      %5966 = vmatpush.msra.mxu0 %v2156
      %5967 = vmatpush.msra.mxu0 %v2148
      %5968 = vmatpush.msra.mxu0 %v2140
      %5969 = vmatpush.msra.mxu0 %v2132
      %5970 = vmatpush.msra.mxu0 %v2124
      %5971 = vmatpush.msra.mxu0 %v2116
      %5972 = vmatpush.msra.mxu0 %v2108
      %5973 = vmatpush.msra.mxu0 %v2100
      %5974 = vmatpush.msra.mxu0 %v2092
      %5975 = vmatpush.msra.mxu0 %v2084
      %5976 = vmatpush.msra.mxu0 %v2076
      %5977 = vmatpush.msra.mxu0 %v2068
      %5978 = vmatpush.msra.mxu0 %v2060
      %5979 = vmatpush.msra.mxu0 %v2052
      %5980 = vmatpush.msra.mxu0 %v2044
      %5981 = vmatpush.msra.mxu0 %v2036
      %5982 = vmatmul.f32.gmra.mxu0 %v5675
      %v5983 = vpop.f32.mrf.mxu0
      %v5984 = vadd.f32 %v5964, %v5983
      %5985 = vdwg.mxu0
      %5986 = vmatpush.msra.mxu0 %v2029
      %5987 = vmatpush.msra.mxu0 %v2021
      %5988 = vmatpush.msra.mxu0 %v2013
      %5989 = vmatpush.msra.mxu0 %v2005
      %5990 = vmatpush.msra.mxu0 %v1997
      %5991 = vmatpush.msra.mxu0 %v1989
      %5992 = vmatpush.msra.mxu0 %v1981
      %5993 = vmatpush.msra.mxu0 %v1973
      %5994 = vmatpush.msra.mxu0 %v1965
      %5995 = vmatpush.msra.mxu0 %v1957
      %5996 = vmatpush.msra.mxu0 %v1949
      %5997 = vmatpush.msra.mxu0 %v1941
      %5998 = vmatpush.msra.mxu0 %v1933
      %5999 = vmatpush.msra.mxu0 %v1925
      %6000 = vmatpush.msra.mxu0 %v1917
      %6001 = vmatpush.msra.mxu0 %v1909
      %6002 = vmatmul.f32.gmra.mxu0 %v5674
      %v6003 = vpop.f32.mrf.mxu0
      %v6004 = vadd.f32 0.0, %v6003
      %6005 = vdwg.mxu0
      %6006 = vmatpush.msra.mxu0 %v2157
      %6007 = vmatpush.msra.mxu0 %v2149
      %6008 = vmatpush.msra.mxu0 %v2141
      %6009 = vmatpush.msra.mxu0 %v2133
      %6010 = vmatpush.msra.mxu0 %v2125
      %6011 = vmatpush.msra.mxu0 %v2117
      %6012 = vmatpush.msra.mxu0 %v2109
      %6013 = vmatpush.msra.mxu0 %v2101
      %6014 = vmatpush.msra.mxu0 %v2093
      %6015 = vmatpush.msra.mxu0 %v2085
      %6016 = vmatpush.msra.mxu0 %v2077
      %6017 = vmatpush.msra.mxu0 %v2069
      %6018 = vmatpush.msra.mxu0 %v2061
      %6019 = vmatpush.msra.mxu0 %v2053
      %6020 = vmatpush.msra.mxu0 %v2045
      %6021 = vmatpush.msra.mxu0 %v2037
      %6022 = vmatmul.f32.gmra.mxu0 %v5675
      %v6023 = vpop.f32.mrf.mxu0
      %v6024 = vadd.f32 %v6004, %v6023
      %6025 = vdwg.mxu0
      %v6026 = vadd.f32 %v5698, %v5744
      %v6027 = vadd.f32 %v5699, %v5784
      %v6028 = vadd.f32 %v5700, %v5824
      %v6029 = vadd.f32 %v5701, %v5864
      %v6030 = vadd.f32 %v5702, %v5904
      %v6031 = vadd.f32 %v5703, %v5944
      %v6032 = vadd.f32 %v5704, %v5984
      %v6033 = vadd.f32 %v5705, %v6024
      %v6034 = vxor.u32 %v6026, 2147483648
      %v6035 = vxor.u32 %v6027, 2147483648
      %v6036 = vmul.f32 %v6034, 1.442695
      %v6037 = vpow.pop %v6036
      %v6038 = vmul.f32 %v6035, 1.442695
      %v6039 = vpow.pop %v6038
      %v6040 = vadd.f32 %v6037, 1.0
      %v6041 = vadd.f32 %v6039, 1.0
      %v6042 = vrcp.pop %v6040
      %v6043 = vmul.f32 %v6040, %v6042
      %v6044 = vsub.f32 1.0, %v6043
      %v6045 = vmul.f32 %v6042, %v6044
      %v6046 = vadd.f32 %v6042, %v6045
      %vm6047 = vweird.f32 %v6040
      %vm6048 = vweird.f32 %v6042
      %vm6049 = vmor %vm6047, %vm6048
      %v6050 = vsel %vm6049, %v6042, %v6046
      %v6051 = vand.u32 2147483647, %v6040
      %vm6052 = vcmp.eq.f32.partialorder %v6051, 8.507059e+37
      %v6053 = vand.u32 %v6040, 2147483648
      %v6054 = vor.u32 1.1754944e-38, %v6053
      %v6055 = vsel %vm6052, %v6054, %v6050
      %v6056 = vmul.f32 1.0, %v6055
      %v6057 = vrcp.pop %v6041
      %v6058 = vmul.f32 %v6041, %v6057
      %v6059 = vsub.f32 1.0, %v6058
      %v6060 = vmul.f32 %v6057, %v6059
      %v6061 = vadd.f32 %v6057, %v6060
      %vm6062 = vweird.f32 %v6041
      %vm6063 = vweird.f32 %v6057
      %vm6064 = vmor %vm6062, %vm6063
      %v6065 = vsel %vm6064, %v6057, %v6061
      %v6066 = vand.u32 2147483647, %v6041
      %vm6067 = vcmp.eq.f32.partialorder %v6066, 8.507059e+37
      %v6068 = vand.u32 %v6041, 2147483648
      %v6069 = vor.u32 1.1754944e-38, %v6068
      %v6070 = vsel %vm6067, %v6069, %v6065
      %v6071 = vmul.f32 1.0, %v6070
      %v6072 = vxor.u32 %v6028, 2147483648
      %v6073 = vxor.u32 %v6029, 2147483648
      %v6074 = vmul.f32 %v6072, 1.442695
      %v6075 = vpow.pop %v6074
      %v6076 = vmul.f32 %v6073, 1.442695
      %v6077 = vpow.pop %v6076
      %v6078 = vadd.f32 %v6075, 1.0
      %v6079 = vadd.f32 %v6077, 1.0
      %v6080 = vrcp.pop %v6078
      %v6081 = vmul.f32 %v6078, %v6080
      %v6082 = vsub.f32 1.0, %v6081
      %v6083 = vmul.f32 %v6080, %v6082
      %v6084 = vadd.f32 %v6080, %v6083
      %vm6085 = vweird.f32 %v6078
      %vm6086 = vweird.f32 %v6080
      %vm6087 = vmor %vm6085, %vm6086
      %v6088 = vsel %vm6087, %v6080, %v6084
      %v6089 = vand.u32 2147483647, %v6078
      %vm6090 = vcmp.eq.f32.partialorder %v6089, 8.507059e+37
      %v6091 = vand.u32 %v6078, 2147483648
      %v6092 = vor.u32 1.1754944e-38, %v6091
      %v6093 = vsel %vm6090, %v6092, %v6088
      %v6094 = vmul.f32 1.0, %v6093
      %v6095 = vrcp.pop %v6079
      %v6096 = vmul.f32 %v6079, %v6095
      %v6097 = vsub.f32 1.0, %v6096
      %v6098 = vmul.f32 %v6095, %v6097
      %v6099 = vadd.f32 %v6095, %v6098
      %vm6100 = vweird.f32 %v6079
      %vm6101 = vweird.f32 %v6095
      %vm6102 = vmor %vm6100, %vm6101
      %v6103 = vsel %vm6102, %v6095, %v6099
      %v6104 = vand.u32 2147483647, %v6079
      %vm6105 = vcmp.eq.f32.partialorder %v6104, 8.507059e+37
      %v6106 = vand.u32 %v6079, 2147483648
      %v6107 = vor.u32 1.1754944e-38, %v6106
      %v6108 = vsel %vm6105, %v6107, %v6103
      %v6109 = vmul.f32 1.0, %v6108
      %v6110 = vtanh.pop %v6030
      %v6111 = vtanh.pop %v6031
      %v6112 = vxor.u32 %v6032, 2147483648
      %v6113 = vxor.u32 %v6033, 2147483648
      %v6114 = vmul.f32 %v6112, 1.442695
      %v6115 = vpow.pop %v6114
      %v6116 = vmul.f32 %v6113, 1.442695
      %v6117 = vpow.pop %v6116
      %v6118 = vadd.f32 %v6115, 1.0
      %v6119 = vadd.f32 %v6117, 1.0
      %v6120 = vrcp.pop %v6118
      %v6121 = vmul.f32 %v6118, %v6120
      %v6122 = vsub.f32 1.0, %v6121
      %v6123 = vmul.f32 %v6120, %v6122
      %v6124 = vadd.f32 %v6120, %v6123
      %vm6125 = vweird.f32 %v6118
      %vm6126 = vweird.f32 %v6120
      %vm6127 = vmor %vm6125, %vm6126
      %v6128 = vsel %vm6127, %v6120, %v6124
      %v6129 = vand.u32 2147483647, %v6118
      %vm6130 = vcmp.eq.f32.partialorder %v6129, 8.507059e+37
      %v6131 = vand.u32 %v6118, 2147483648
      %v6132 = vor.u32 1.1754944e-38, %v6131
      %v6133 = vsel %vm6130, %v6132, %v6128
      %v6134 = vmul.f32 1.0, %v6133
      %v6135 = vrcp.pop %v6119
      %v6136 = vmul.f32 %v6119, %v6135
      %v6137 = vsub.f32 1.0, %v6136
      %v6138 = vmul.f32 %v6135, %v6137
      %v6139 = vadd.f32 %v6135, %v6138
      %vm6140 = vweird.f32 %v6119
      %vm6141 = vweird.f32 %v6135
      %vm6142 = vmor %vm6140, %vm6141
      %v6143 = vsel %vm6142, %v6135, %v6139
      %v6144 = vand.u32 2147483647, %v6119
      %vm6145 = vcmp.eq.f32.partialorder %v6144, 8.507059e+37
      %v6146 = vand.u32 %v6119, 2147483648
      %v6147 = vor.u32 1.1754944e-38, %v6146
      %v6148 = vsel %vm6145, %v6147, %v6143
      %v6149 = vmul.f32 1.0, %v6148
      %v6150 = vmul.f32 %v6094, %v5670
      %v6151 = vmul.f32 %v6109, %v5671
      %v6152 = vmul.f32 %v6056, %v6110
      %v6153 = vmul.f32 %v6071, %v6111
      %v6154 = vadd.f32 %v6150, %v6152
      %v6155 = vadd.f32 %v6151, %v6153
      %v6156 = vtanh.pop %v6154
      %v6157 = vtanh.pop %v6155
      %v6158 = vmul.f32 %v6134, %v6156
      %v6159 = vmul.f32 %v6149, %v6157
      %s6160 = scalar_lea.vmem [#allocation3], 56
      %6161 = vst [vmem:[%s6160] sm:$0xff] %v6158
      %6162 = vst [vmem:[#allocation4] sm:$0xff] %v6159
      %v6163 = vadd.f32 %v5680, %v6158
      %v6164 = vadd.f32 %v5681, %v6159
      %p6165 = scmp.eq.s32.totalorder %s17, 3
      // Predicated region
      $region53: #{lstm_classifier_forward.1} parent=43 // pred_check
        %p6166 = pneg %p6165
      $region54: #{lstm_classifier_forward.1} parent=43 // pred_check_branch
        %6168 = sbr.rel (%p6166) target = $region56
      $region55: #{lstm_classifier_forward.1} parent=43 // pred_region
        %v6169 = vmul.f32 %v6163, 0.125
        %v6170 = vmul.f32 %v6164, 0.125
        %v6171 = vtanh.pop %v6169
        %v6172 = vtanh.pop %v6170
        %v6173 = vld [vmem:[%s4] sm:$0xff]
        %v6174 = vld [vmem:[%s4 + $0x8] sm:$0xff]
        %v6175 = vld [vmem:[%s4 + $0x10] sm:$0xff]
        %v6176 = vld [vmem:[%s4 + $0x18] sm:$0xff]
        %v6177 = vld [vmem:[%s4 + $0x20] sm:$0xff]
        %v6178 = vld [vmem:[%s4 + $0x28] sm:$0xff]
        %v6179 = vld [vmem:[%s4 + $0x30] sm:$0xff]
        %v6180 = vld [vmem:[%s4 + $0x38] sm:$0xff]
        %v6181 = vld [vmem:[%s4 + $0x40] sm:$0xff]
        %v6182 = vld [vmem:[%s4 + $0x48] sm:$0xff]
        %v6183 = vld [vmem:[%s4 + $0x50] sm:$0xff]
        %v6184 = vld [vmem:[%s4 + $0x58] sm:$0xff]
        %v6185 = vld [vmem:[%s4 + $0x60] sm:$0xff]
        %v6186 = vld [vmem:[%s4 + $0x68] sm:$0xff]
        %v6187 = vld [vmem:[%s4 + $0x70] sm:$0xff]
        %v6188 = vld [vmem:[%s4 + $0x78] sm:$0xff]
        %v6189 = vld [vmem:[%s4 + $0x80] sm:$0xff]
        %v6190 = vld [vmem:[%s4 + $0x88] sm:$0xff]
        %v6191 = vld [vmem:[%s4 + $0x90] sm:$0xff]
        %v6192 = vld [vmem:[%s4 + $0x98] sm:$0xff]
        %v6193 = vld [vmem:[%s4 + $0xa0] sm:$0xff]
        %v6194 = vld [vmem:[%s4 + $0xa8] sm:$0xff]
        %v6195 = vld [vmem:[%s4 + $0xb0] sm:$0xff]
        %v6196 = vld [vmem:[%s4 + $0xb8] sm:$0xff]
        %v6197 = vld [vmem:[%s4 + $0xc0] sm:$0xff]
        %v6198 = vld [vmem:[%s4 + $0xc8] sm:$0xff]
        %v6199 = vld [vmem:[%s4 + $0xd0] sm:$0xff]
        %v6200 = vld [vmem:[%s4 + $0xd8] sm:$0xff]
        %v6201 = vld [vmem:[%s4 + $0xe0] sm:$0xff]
        %v6202 = vld [vmem:[%s4 + $0xe8] sm:$0xff]
        %v6203 = vld [vmem:[%s4 + $0xf0] sm:$0xff]
        %v6204 = vld [vmem:[%s4 + $0xf8] sm:$0xff]
        %v6205 = vld [vmem:[%s5] sm:$0x1]
        %v6207 = vperm.slane %v6205, 0
        %6209 = vmatpush.msra.mxu0 %v6188
        %6210 = vmatpush.msra.mxu0 %v6187
        %6211 = vmatpush.msra.mxu0 %v6186
        %6212 = vmatpush.msra.mxu0 %v6185
        %6213 = vmatpush.msra.mxu0 %v6184
        %6214 = vmatpush.msra.mxu0 %v6183
        %6215 = vmatpush.msra.mxu0 %v6182
        %6216 = vmatpush.msra.mxu0 %v6181
        %6217 = vmatpush.msra.mxu0 %v6180
        %6218 = vmatpush.msra.mxu0 %v6179
        %6219 = vmatpush.msra.mxu0 %v6178
        %6220 = vmatpush.msra.mxu0 %v6177
        %6221 = vmatpush.msra.mxu0 %v6176
        %6222 = vmatpush.msra.mxu0 %v6175
        %6223 = vmatpush.msra.mxu0 %v6174
        %6224 = vmatpush.msra.mxu0 %v6173
        %6225 = vmatmul.f32.gmra.mxu0 %v6171
        %v6226 = vpop.f32.mrf.mxu0
        %v6227 = vadd.f32 %v6207, %v6226
        %6228 = vdwg.mxu0
        %6229 = vmatpush.msra.mxu0 %v6204
        %6230 = vmatpush.msra.mxu0 %v6203
        %6231 = vmatpush.msra.mxu0 %v6202
        %6232 = vmatpush.msra.mxu0 %v6201
        %6233 = vmatpush.msra.mxu0 %v6200
        %6234 = vmatpush.msra.mxu0 %v6199
        %6235 = vmatpush.msra.mxu0 %v6198
        %6236 = vmatpush.msra.mxu0 %v6197
        %6237 = vmatpush.msra.mxu0 %v6196
        %6238 = vmatpush.msra.mxu0 %v6195
        %6239 = vmatpush.msra.mxu0 %v6194
        %6240 = vmatpush.msra.mxu0 %v6193
        %6241 = vmatpush.msra.mxu0 %v6192
        %6242 = vmatpush.msra.mxu0 %v6191
        %6243 = vmatpush.msra.mxu0 %v6190
        %6244 = vmatpush.msra.mxu0 %v6189
        %6245 = vmatmul.f32.gmra.mxu0 %v6172
        %v6246 = vpop.f32.mrf.mxu0
        %v6247 = vadd.f32 %v6227, %v6246
        %6248 = vdwg.mxu0
        %6249 = vst [vmem:[%s6] sm:$0xff] %v6247
      $region56: #{lstm_classifier_forward.1} parent=43 // pred_fallthru
        _
      // Predicated region
      $region57: #{lstm_classifier_forward.1} parent=43 // pred_check
        %p6250 = pneg %p171
      $region58: #{lstm_classifier_forward.1} parent=43 // pred_check_branch
        %6252 = sbr.rel (%p6250) target = $region60
      $region59: #{lstm_classifier_forward.1} parent=43 // pred_region
        _
      $region60: #{lstm_classifier_forward.1} parent=43 // pred_fallthru
        _
      // Predicated region
      $region61: #{lstm_classifier_forward.1} parent=43 // pred_check
        %p6253 = pneg %p171
      $region62: #{lstm_classifier_forward.1} parent=43 // pred_check_branch
        %6255 = sbr.rel (%p6253) target = $region64
      $region63: #{lstm_classifier_forward.1} parent=43 // pred_region
        _
      $region64: #{lstm_classifier_forward.1} parent=43 // pred_fallthru
        _
    $region44: #{lstm_classifier_forward.1} parent=5 // pred_fallthru
      _
    %p6256 = scmp.le.s32.totalorder 2, %s12
    // Predicated region
    $region65: #{lstm_classifier_forward.1} parent=5 // pred_check
      %p6257 = pneg %p6256
    $region66: #{lstm_classifier_forward.1} parent=5 // pred_check_branch
      %6259 = sbr.rel (%p6257) target = $region68
    $region67: #{lstm_classifier_forward.1} parent=5 // pred_region
      %s6260 = ssub.s32 %s12, 2
    $region68: #{lstm_classifier_forward.1} parent=5 // pred_fallthru
      _
  $region6: #{lstm_classifier_forward.1} parent=0 // loop_footer
    %s16 = sadd.s32 1, %s12
  $region7: #{lstm_classifier_forward.1} parent=0 // loop_footer_branch
    %11 = sbr.rel target = $region3
  $region8: #{lstm_classifier_forward.1} parent=0 // loop_exit
    _

</llo_original>
